<compile_context>
chip_gen: v5e
topology: v5e:2x2
jax: 0.10.0
libtpu: 0.0.40
codegen_flags: <defaults>
</compile_context>

<pallas_src>
import jax
import jax.numpy as jnp
import numpy as np
from jax.experimental import pallas as pl
from jax.experimental.pallas import tpu as pltpu

_TAPS = tuple((dy, dx) for dy in range(3) for dx in range(3))
_PAD_LEFT = 8  # data columns start at a sublane-aligned offset (left zero pad
               # lives in column _PAD_LEFT-1; columns 0.._PAD_LEFT-2 are unused)


def _round_up(x, m):
    return ((x + m - 1) // m) * m


def _make_fused_kernel(H, W, c_in, c_out, n_layers, slot):
    """Builds the fused (conv3x3 s1 p1 + ReLU) x n_layers kernel body."""
    WP = _PAD_LEFT + W + 1  # padded width of the scratch buffers

    def kernel(*refs):
        x_ref = refs[0]                                   # (1, H, W, c_in)
        wb_refs = refs[1:1 + 2 * n_layers]                # w0, b0, w1, b1, ...
        o_ref = refs[1 + 2 * n_layers]                    # (1, H*W, c_out)
        scratch = refs[2 + 2 * n_layers:]
        pad_in_ref = scratch[0]                           # (H+2, WP, c_in)
        if n_layers > 1:
            pad_ref = scratch[1]                          # (H+2, WP, c_out)
            patches_ref = scratch[2]                      # (H*W, 9*slot)

        # Zero the padded scratches each grid step (cheap VMEM memset; keeps
        # borders / unused im2col columns at exactly 0 and is megacore-safe).
        pad_in_ref[...] = jnp.zeros_like(pad_in_ref)
        if n_layers > 1:
            pad_ref[...] = jnp.zeros_like(pad_ref)
            patches_ref[...] = jnp.zeros_like(patches_ref)

        # ---------------- layer 0: c_in -> c_out (VPU path for c_in == 1) ----
        pad_in_ref[1:H + 1, _PAD_LEFT:_PAD_LEFT + W, :] = x_ref[0]
        w0_ref, b0_ref = wb_refs[0], wb_refs[1]
        # Bias folded into the accumulator init (no separate add later).
        acc = jnp.broadcast_to(b0_ref[...], (H * W, c_out)).astype(jnp.float32)
        for tap, (dy, dx) in enumerate(_TAPS):
            c0 = _PAD_LEFT - 1 + dx
            patch = pad_in_ref[dy:dy + H, c0:c0 + W, :].reshape(H * W, c_in)
            wtap = w0_ref[tap * c_in:(tap + 1) * c_in, :]       # (c_in, c_out)
            if c_in == 1:
                # (H*W, 1) * (1, c_out) broadcast FMA on the VPU.
                acc = acc + patch * wtap
            else:
                acc = acc + jnp.dot(patch, wtap,
                                    preferred_element_type=jnp.float32)
        y = jnp.maximum(acc, 0.0)                               # (H*W, c_out)

        # ------------- layers 1..n-1: c_out -> c_out, one im2col matmul ------
        for layer in range(1, n_layers):
            w_ref, b_ref = wb_refs[2 * layer], wb_refs[2 * layer + 1]
            # Activation into the interior of the padded scratch (VMEM only).
            pad_ref[1:H + 1, _PAD_LEFT:_PAD_LEFT + W, :] = y.reshape(H, W, c_out)
            # Build the (H*W, 9*slot) patch matrix; each tap gets a 128-aligned
            # slot (upper slot-c_out columns stay zero, matching zero W rows).
            for tap, (dy, dx) in enumerate(_TAPS):
                c0 = _PAD_LEFT - 1 + dx
                patches_ref[:, tap * slot:tap * slot + c_out] = (
                    pad_ref[dy:dy + H, c0:c0 + W, :].reshape(H * W, c_out))
            # Single MXU matmul: (H*W, 9*slot) x (9*slot, c_out).
            acc = jnp.dot(patches_ref[...], w_ref[...],
                          preferred_element_type=jnp.float32)
            y = jnp.maximum(acc + b_ref[...], 0.0)

        o_ref[...] = y.reshape(1, H * W, c_out).astype(o_ref.dtype)

    return kernel


def _fused_secret_encoding(x_nhwc, packed_params):
    """Runs the fused kernel. x_nhwc: (N,H,W,c_in). Returns (N, H*W, c_out)."""
    N, H, W, c_in = x_nhwc.shape
    n_layers = len(packed_params)
    c_out = packed_params[0][1].shape[-1]
    slot = _round_up(c_out, 128)
    WP = _PAD_LEFT + W + 1

    kernel = _make_fused_kernel(H, W, c_in, c_out, n_layers, slot)

    in_specs = [pl.BlockSpec((1, H, W, c_in), lambda n: (n, 0, 0, 0))]
    flat = []
    for w, b in packed_params:
        in_specs.append(pl.BlockSpec(w.shape, lambda n: (0, 0)))
        in_specs.append(pl.BlockSpec(b.shape, lambda n: (0, 0)))
        flat += [w, b]

    scratch_shapes = [pltpu.VMEM((H + 2, WP, c_in), jnp.float32)]
    if n_layers > 1:
        scratch_shapes += [pltpu.VMEM((H + 2, WP, c_out), jnp.float32),
                           pltpu.VMEM((H * W, 9 * slot), jnp.float32)]

    grid_spec = pltpu.PrefetchScalarGridSpec(
        num_scalar_prefetch=0,
        grid=(N,),
        in_specs=in_specs,
        out_specs=pl.BlockSpec((1, H * W, c_out), lambda n: (n, 0, 0)),
        scratch_shapes=scratch_shapes,
    )

    return pl.pallas_call(
        kernel,
        out_shape=jax.ShapeDtypeStruct((N, H * W, c_out), jnp.float32),
        grid_spec=grid_spec,
        compiler_params=pltpu.CompilerParams(
            dimension_semantics=("parallel",)),
    )(x_nhwc, *flat)


@jax.jit
def secret_encoding_forward(x_nchw, packed_params):
    """Forward pass. Input NCHW (PyTorch convention), output NCHW."""
    x = jnp.transpose(x_nchw, (0, 2, 3, 1)).astype(jnp.float32)  # NCHW -> NHWC
    N, H, W, _ = x.shape
    c_out = packed_params[0][1].shape[-1]
    out = _fused_secret_encoding(x, packed_params)               # (N, H*W, Cout)
    return jnp.transpose(out.reshape(N, H, W, c_out), (0, 3, 1, 2))


def init_secret_encoding_params(key, c_in=1, c_out=64, n_layers=3):
    """PyTorch-Conv2d-like uniform init; returns [(w (3,3,cin,cout), b (cout,))]."""
    params = []
    cin = c_in
    for _ in range(n_layers):
        key, kw, kb = jax.random.split(key, 3)
        bound = 1.0 / np.sqrt(cin * 9)
        w = jax.random.uniform(kw, (3, 3, cin, c_out), jnp.float32,
                               minval=-bound, maxval=bound)
        b = jax.random.uniform(kb, (c_out,), jnp.float32,
                               minval=-bound, maxval=bound)
        params.append((w, b))
        cin = c_out
    return params


def pack_params(params):
    """Repack natural (3,3,cin,cout) weights into kernel layouts.

    layer 0      : (9*cin, cout)   -- taps stacked along rows
    layers >= 1  : (9*slot, cout)  -- each tap in a 128-row-aligned slot,
                                      rows cin..slot-1 of each slot are zero
    biases       : (1, cout)
    """
    packed = []
    for l, (w, b) in enumerate(params):
        _, _, cin, cout = w.shape
        taps = w.reshape(9, cin, cout)
        if l == 0:
            wk = taps.reshape(9 * cin, cout)
        else:
            slot = _round_up(cin, 128)
            wk = jnp.pad(taps, ((0, 0), (0, slot - cin), (0, 0)))
            wk = wk.reshape(9 * slot, cout)
        packed.append((jnp.asarray(wk, jnp.float32),
                       jnp.asarray(b, jnp.float32).reshape(1, cout)))
    return packed


def _reference_forward(x_nchw, params):
    """Pure-JAX reference (lax.conv) for validation."""
    x = x_nchw.astype(jnp.float32)
    for w, b in params:
        cout = w.shape[-1]
        w_oihw = jnp.transpose(w, (3, 2, 0, 1))
        y = jax.lax.conv_general_dilated(
            x, w_oihw, window_strides=(1, 1), padding=((1, 1), (1, 1)),
            dimension_numbers=("NCHW", "OIHW", "NCHW"))
        x = jnp.maximum(y + b.reshape(1, cout, 1, 1), 0.0)
    return x


if __name__ == "__main__":
    key = jax.random.PRNGKey(0)
    k_in, k_params = jax.random.split(key)

    # Module defaults: c_in=1, c_out=64, n_layers=3; batch=2, spatial 16x16.
    N, C_IN, H, W = 2, 1, 16, 16
    C_OUT, N_LAYERS = 64, 3

    x = jax.random.normal(k_in, (N, C_IN, H, W), jnp.float32)
    params = init_secret_encoding_params(k_params, c_in=C_IN, c_out=C_OUT,
                                         n_layers=N_LAYERS)
    packed = pack_params(params)

    out = jax.block_until_ready(secret_encoding_forward(x, packed))
    ref = jax.block_until_ready(_reference_forward(x, params))

    assert out.shape == (N, C_OUT, H, W), out.shape
    err = np.max(np.abs(np.asarray(out) - np.asarray(ref)))
    assert np.allclose(np.asarray(out), np.asarray(ref),
                       atol=1e-4, rtol=1e-4), f"max abs err = {err}"

    print("KERNEL_OK")
</pallas_src>

<mosaic_0001>
module attributes {stable_mosaic.version = 11 : i64} {
  func.func @kernel(%arg0: i32, %arg1: memref<1x16x16x1xf32, #tpu.memory_space<vmem>>, %arg2: memref<9x64xf32, #tpu.memory_space<vmem>>, %arg3: memref<1x64xf32, #tpu.memory_space<vmem>>, %arg4: memref<1152x64xf32, #tpu.memory_space<vmem>>, %arg5: memref<1x64xf32, #tpu.memory_space<vmem>>, %arg6: memref<1152x64xf32, #tpu.memory_space<vmem>>, %arg7: memref<1x64xf32, #tpu.memory_space<vmem>>, %arg8: memref<1x256x64xf32, #tpu.memory_space<vmem>>, %arg9: memref<18x25x1xf32, #tpu.memory_space<vmem>>, %arg10: memref<18x25x64xf32, #tpu.memory_space<vmem>>, %arg11: memref<256x1152xf32, #tpu.memory_space<vmem>>) attributes {dimension_semantics = [#tpu.dimension_semantics<parallel>], iteration_bounds = array<i64: 2>, scalar_prefetch = 0 : i64, scratch_operands = 3 : i64, tpu.core_type = #tpu.core_type<tc>, window_params = [{transform_indices = @transform_0, window_bounds = array<i64: 1, 16, 16, 1>}, {pipeline_mode = #tpu.pipeline_mode<synchronous>, transform_indices = @transform_1, window_bounds = array<i64: 9, 64>}, {pipeline_mode = #tpu.pipeline_mode<synchronous>, transform_indices = @transform_2, window_bounds = array<i64: 1, 64>}, {pipeline_mode = #tpu.pipeline_mode<synchronous>, transform_indices = @transform_3, window_bounds = array<i64: 1152, 64>}, {pipeline_mode = #tpu.pipeline_mode<synchronous>, transform_indices = @transform_4, window_bounds = array<i64: 1, 64>}, {pipeline_mode = #tpu.pipeline_mode<synchronous>, transform_indices = @transform_5, window_bounds = array<i64: 1152, 64>}, {pipeline_mode = #tpu.pipeline_mode<synchronous>, transform_indices = @transform_6, window_bounds = array<i64: 1, 64>}, {transform_indices = @transform_7, window_bounds = array<i64: 1, 256, 64>}]} {
    %cst = arith.constant 0.000000e+00 : f32
    %0 = vector.broadcast %cst : f32 to vector<18x25x1xf32>
    %c0 = arith.constant 0 : index
    %c0_0 = arith.constant 0 : index
    %c0_1 = arith.constant 0 : index
    %1 = vector.load %arg9[%c0, %c0_0, %c0_1] : memref<18x25x1xf32, #tpu.memory_space<vmem>>, vector<18x25x1xf32>
    tpu.vector_store %arg9[%c0, %c0_0, %c0_1], %0 {strides = array<i32>} : memref<18x25x1xf32, #tpu.memory_space<vmem>>, vector<18x25x1xf32>,
    %cst_2 = arith.constant 0.000000e+00 : f32
    %2 = vector.broadcast %cst_2 : f32 to vector<18x25x64xf32>
    %c0_3 = arith.constant 0 : index
    %c0_4 = arith.constant 0 : index
    %c0_5 = arith.constant 0 : index
    %3 = vector.load %arg10[%c0_3, %c0_4, %c0_5] : memref<18x25x64xf32, #tpu.memory_space<vmem>>, vector<18x25x64xf32>
    tpu.vector_store %arg10[%c0_3, %c0_4, %c0_5], %2 {strides = array<i32>} : memref<18x25x64xf32, #tpu.memory_space<vmem>>, vector<18x25x64xf32>,
    %cst_6 = arith.constant 0.000000e+00 : f32
    %4 = vector.broadcast %cst_6 : f32 to vector<256x1152xf32>
    %c0_7 = arith.constant 0 : index
    %c0_8 = arith.constant 0 : index
    %5 = vector.load %arg11[%c0_7, %c0_8] : memref<256x1152xf32, #tpu.memory_space<vmem>>, vector<256x1152xf32>
    tpu.vector_store %arg11[%c0_7, %c0_8], %4 {strides = array<i32>} : memref<256x1152xf32, #tpu.memory_space<vmem>>, vector<256x1152xf32>,
    %c0_9 = arith.constant 0 : index
    %c0_10 = arith.constant 0 : index
    %c0_11 = arith.constant 0 : index
    %c0_12 = arith.constant 0 : index
    %6 = vector.load %arg1[%c0_9, %c0_10, %c0_11, %c0_12] : memref<1x16x16x1xf32, #tpu.memory_space<vmem>>, vector<1x16x16x1xf32>
    %7 = vector.shape_cast %6 : vector<1x16x16x1xf32> to vector<16x16x1xf32>
    %c1 = arith.constant 1 : index
    %c8 = arith.constant 8 : index
    %c0_13 = arith.constant 0 : index
    %8 = vector.load %arg9[%c1, %c8, %c0_13] : memref<18x25x1xf32, #tpu.memory_space<vmem>>, vector<16x16x1xf32>
    tpu.vector_store %arg9[%c1, %c8, %c0_13], %7 {strides = array<i32>} : memref<18x25x1xf32, #tpu.memory_space<vmem>>, vector<16x16x1xf32>,
    %c0_14 = arith.constant 0 : index
    %c0_15 = arith.constant 0 : index
    %9 = vector.load %arg3[%c0_14, %c0_15] : memref<1x64xf32, #tpu.memory_space<vmem>>, vector<1x64xf32>
    %10 = vector.shape_cast %9 : vector<1x64xf32> to vector<1x64xf32>
    %11 = vector.broadcast %10 : vector<1x64xf32> to vector<256x64xf32>
    %c0_16 = arith.constant 0 : index
    %c7 = arith.constant 7 : index
    %c0_17 = arith.constant 0 : index
    %12 = vector.load %arg9[%c0_16, %c7, %c0_17] : memref<18x25x1xf32, #tpu.memory_space<vmem>>, vector<16x16x1xf32>
    %13 = vector.shape_cast %12 : vector<16x16x1xf32> to vector<256x1xf32>
    %c0_18 = arith.constant 0 : index
    %c0_19 = arith.constant 0 : index
    %14 = vector.load %arg2[%c0_18, %c0_19] : memref<9x64xf32, #tpu.memory_space<vmem>>, vector<1x64xf32>
    %15 = vector.broadcast %13 : vector<256x1xf32> to vector<256x64xf32>
    %16 = vector.broadcast %14 : vector<1x64xf32> to vector<256x64xf32>
    %17 = arith.mulf %15, %16 : vector<256x64xf32>
    %18 = arith.addf %11, %17 : vector<256x64xf32>
    %c0_20 = arith.constant 0 : index
    %c8_21 = arith.constant 8 : index
    %c0_22 = arith.constant 0 : index
    %19 = vector.load %arg9[%c0_20, %c8_21, %c0_22] : memref<18x25x1xf32, #tpu.memory_space<vmem>>, vector<16x16x1xf32>
    %20 = vector.shape_cast %19 : vector<16x16x1xf32> to vector<256x1xf32>
    %c1_23 = arith.constant 1 : index
    %c0_24 = arith.constant 0 : index
    %21 = vector.load %arg2[%c1_23, %c0_24] : memref<9x64xf32, #tpu.memory_space<vmem>>, vector<1x64xf32>
    %22 = vector.broadcast %20 : vector<256x1xf32> to vector<256x64xf32>
    %23 = vector.broadcast %21 : vector<1x64xf32> to vector<256x64xf32>
    %24 = arith.mulf %22, %23 : vector<256x64xf32>
    %25 = arith.addf %18, %24 : vector<256x64xf32>
    %c0_25 = arith.constant 0 : index
    %c9 = arith.constant 9 : index
    %c0_26 = arith.constant 0 : index
    %26 = vector.load %arg9[%c0_25, %c9, %c0_26] : memref<18x25x1xf32, #tpu.memory_space<vmem>>, vector<16x16x1xf32>
    %27 = vector.shape_cast %26 : vector<16x16x1xf32> to vector<256x1xf32>
    %c2 = arith.constant 2 : index
    %c0_27 = arith.constant 0 : index
    %28 = vector.load %arg2[%c2, %c0_27] : memref<9x64xf32, #tpu.memory_space<vmem>>, vector<1x64xf32>
    %29 = vector.broadcast %27 : vector<256x1xf32> to vector<256x64xf32>
    %30 = vector.broadcast %28 : vector<1x64xf32> to vector<256x64xf32>
    %31 = arith.mulf %29, %30 : vector<256x64xf32>
    %32 = arith.addf %25, %31 : vector<256x64xf32>
    %c1_28 = arith.constant 1 : index
    %c7_29 = arith.constant 7 : index
    %c0_30 = arith.constant 0 : index
    %33 = vector.load %arg9[%c1_28, %c7_29, %c0_30] : memref<18x25x1xf32, #tpu.memory_space<vmem>>, vector<16x16x1xf32>
    %34 = vector.shape_cast %33 : vector<16x16x1xf32> to vector<256x1xf32>
    %c3 = arith.constant 3 : index
    %c0_31 = arith.constant 0 : index
    %35 = vector.load %arg2[%c3, %c0_31] : memref<9x64xf32, #tpu.memory_space<vmem>>, vector<1x64xf32>
    %36 = vector.broadcast %34 : vector<256x1xf32> to vector<256x64xf32>
    %37 = vector.broadcast %35 : vector<1x64xf32> to vector<256x64xf32>
    %38 = arith.mulf %36, %37 : vector<256x64xf32>
    %39 = arith.addf %32, %38 : vector<256x64xf32>
    %c1_32 = arith.constant 1 : index
    %c8_33 = arith.constant 8 : index
    %c0_34 = arith.constant 0 : index
    %40 = vector.load %arg9[%c1_32, %c8_33, %c0_34] : memref<18x25x1xf32, #tpu.memory_space<vmem>>, vector<16x16x1xf32>
    %41 = vector.shape_cast %40 : vector<16x16x1xf32> to vector<256x1xf32>
    %c4 = arith.constant 4 : index
    %c0_35 = arith.constant 0 : index
    %42 = vector.load %arg2[%c4, %c0_35] : memref<9x64xf32, #tpu.memory_space<vmem>>, vector<1x64xf32>
    %43 = vector.broadcast %41 : vector<256x1xf32> to vector<256x64xf32>
    %44 = vector.broadcast %42 : vector<1x64xf32> to vector<256x64xf32>
    %45 = arith.mulf %43, %44 : vector<256x64xf32>
    %46 = arith.addf %39, %45 : vector<256x64xf32>
    %c1_36 = arith.constant 1 : index
    %c9_37 = arith.constant 9 : index
    %c0_38 = arith.constant 0 : index
    %47 = vector.load %arg9[%c1_36, %c9_37, %c0_38] : memref<18x25x1xf32, #tpu.memory_space<vmem>>, vector<16x16x1xf32>
    %48 = vector.shape_cast %47 : vector<16x16x1xf32> to vector<256x1xf32>
    %c5 = arith.constant 5 : index
    %c0_39 = arith.constant 0 : index
    %49 = vector.load %arg2[%c5, %c0_39] : memref<9x64xf32, #tpu.memory_space<vmem>>, vector<1x64xf32>
    %50 = vector.broadcast %48 : vector<256x1xf32> to vector<256x64xf32>
    %51 = vector.broadcast %49 : vector<1x64xf32> to vector<256x64xf32>
    %52 = arith.mulf %50, %51 : vector<256x64xf32>
    %53 = arith.addf %46, %52 : vector<256x64xf32>
    %c2_40 = arith.constant 2 : index
    %c7_41 = arith.constant 7 : index
    %c0_42 = arith.constant 0 : index
    %54 = vector.load %arg9[%c2_40, %c7_41, %c0_42] : memref<18x25x1xf32, #tpu.memory_space<vmem>>, vector<16x16x1xf32>
    %55 = vector.shape_cast %54 : vector<16x16x1xf32> to vector<256x1xf32>
    %c6 = arith.constant 6 : index
    %c0_43 = arith.constant 0 : index
    %56 = vector.load %arg2[%c6, %c0_43] : memref<9x64xf32, #tpu.memory_space<vmem>>, vector<1x64xf32>
    %57 = vector.broadcast %55 : vector<256x1xf32> to vector<256x64xf32>
    %58 = vector.broadcast %56 : vector<1x64xf32> to vector<256x64xf32>
    %59 = arith.mulf %57, %58 : vector<256x64xf32>
    %60 = arith.addf %53, %59 : vector<256x64xf32>
    %c2_44 = arith.constant 2 : index
    %c8_45 = arith.constant 8 : index
    %c0_46 = arith.constant 0 : index
    %61 = vector.load %arg9[%c2_44, %c8_45, %c0_46] : memref<18x25x1xf32, #tpu.memory_space<vmem>>, vector<16x16x1xf32>
    %62 = vector.shape_cast %61 : vector<16x16x1xf32> to vector<256x1xf32>
    %c7_47 = arith.constant 7 : index
    %c0_48 = arith.constant 0 : index
    %63 = vector.load %arg2[%c7_47, %c0_48] : memref<9x64xf32, #tpu.memory_space<vmem>>, vector<1x64xf32>
    %64 = vector.broadcast %62 : vector<256x1xf32> to vector<256x64xf32>
    %65 = vector.broadcast %63 : vector<1x64xf32> to vector<256x64xf32>
    %66 = arith.mulf %64, %65 : vector<256x64xf32>
    %67 = arith.addf %60, %66 : vector<256x64xf32>
    %c2_49 = arith.constant 2 : index
    %c9_50 = arith.constant 9 : index
    %c0_51 = arith.constant 0 : index
    %68 = vector.load %arg9[%c2_49, %c9_50, %c0_51] : memref<18x25x1xf32, #tpu.memory_space<vmem>>, vector<16x16x1xf32>
    %69 = vector.shape_cast %68 : vector<16x16x1xf32> to vector<256x1xf32>
    %c8_52 = arith.constant 8 : index
    %c0_53 = arith.constant 0 : index
    %70 = vector.load %arg2[%c8_52, %c0_53] : memref<9x64xf32, #tpu.memory_space<vmem>>, vector<1x64xf32>
    %71 = vector.broadcast %69 : vector<256x1xf32> to vector<256x64xf32>
    %72 = vector.broadcast %70 : vector<1x64xf32> to vector<256x64xf32>
    %73 = arith.mulf %71, %72 : vector<256x64xf32>
    %74 = arith.addf %67, %73 : vector<256x64xf32>
    %cst_54 = arith.constant 0.000000e+00 : f32
    %75 = vector.broadcast %cst_54 : f32 to vector<256x64xf32>
    %76 = arith.maximumf %74, %75 : vector<256x64xf32>
    %77 = vector.shape_cast %76 : vector<256x64xf32> to vector<16x16x64xf32>
    %c1_55 = arith.constant 1 : index
    %c8_56 = arith.constant 8 : index
    %c0_57 = arith.constant 0 : index
    %78 = vector.load %arg10[%c1_55, %c8_56, %c0_57] : memref<18x25x64xf32, #tpu.memory_space<vmem>>, vector<16x16x64xf32>
    tpu.vector_store %arg10[%c1_55, %c8_56, %c0_57], %77 {strides = array<i32>} : memref<18x25x64xf32, #tpu.memory_space<vmem>>, vector<16x16x64xf32>,
    %c0_58 = arith.constant 0 : index
    %c7_59 = arith.constant 7 : index
    %c0_60 = arith.constant 0 : index
    %79 = vector.load %arg10[%c0_58, %c7_59, %c0_60] : memref<18x25x64xf32, #tpu.memory_space<vmem>>, vector<16x16x64xf32>
    %80 = vector.shape_cast %79 : vector<16x16x64xf32> to vector<256x64xf32>
    %c0_61 = arith.constant 0 : index
    %c0_62 = arith.constant 0 : index
    %81 = vector.load %arg11[%c0_61, %c0_62] : memref<256x1152xf32, #tpu.memory_space<vmem>>, vector<256x64xf32>
    tpu.vector_store %arg11[%c0_61, %c0_62], %80 {strides = array<i32>} : memref<256x1152xf32, #tpu.memory_space<vmem>>, vector<256x64xf32>,
    %c0_63 = arith.constant 0 : index
    %c8_64 = arith.constant 8 : index
    %c0_65 = arith.constant 0 : index
    %82 = vector.load %arg10[%c0_63, %c8_64, %c0_65] : memref<18x25x64xf32, #tpu.memory_space<vmem>>, vector<16x16x64xf32>
    %83 = vector.shape_cast %82 : vector<16x16x64xf32> to vector<256x64xf32>
    %c0_66 = arith.constant 0 : index
    %c128 = arith.constant 128 : index
    %84 = vector.load %arg11[%c0_66, %c128] : memref<256x1152xf32, #tpu.memory_space<vmem>>, vector<256x64xf32>
    tpu.vector_store %arg11[%c0_66, %c128], %83 {strides = array<i32>} : memref<256x1152xf32, #tpu.memory_space<vmem>>, vector<256x64xf32>,
    %c0_67 = arith.constant 0 : index
    %c9_68 = arith.constant 9 : index
    %c0_69 = arith.constant 0 : index
    %85 = vector.load %arg10[%c0_67, %c9_68, %c0_69] : memref<18x25x64xf32, #tpu.memory_space<vmem>>, vector<16x16x64xf32>
    %86 = vector.shape_cast %85 : vector<16x16x64xf32> to vector<256x64xf32>
    %c0_70 = arith.constant 0 : index
    %c256 = arith.constant 256 : index
    %87 = vector.load %arg11[%c0_70, %c256] : memref<256x1152xf32, #tpu.memory_space<vmem>>, vector<256x64xf32>
    tpu.vector_store %arg11[%c0_70, %c256], %86 {strides = array<i32>} : memref<256x1152xf32, #tpu.memory_space<vmem>>, vector<256x64xf32>,
    %c1_71 = arith.constant 1 : index
    %c7_72 = arith.constant 7 : index
    %c0_73 = arith.constant 0 : index
    %88 = vector.load %arg10[%c1_71, %c7_72, %c0_73] : memref<18x25x64xf32, #tpu.memory_space<vmem>>, vector<16x16x64xf32>
    %89 = vector.shape_cast %88 : vector<16x16x64xf32> to vector<256x64xf32>
    %c0_74 = arith.constant 0 : index
    %c384 = arith.constant 384 : index
    %90 = vector.load %arg11[%c0_74, %c384] : memref<256x1152xf32, #tpu.memory_space<vmem>>, vector<256x64xf32>
    tpu.vector_store %arg11[%c0_74, %c384], %89 {strides = array<i32>} : memref<256x1152xf32, #tpu.memory_space<vmem>>, vector<256x64xf32>,
    %c1_75 = arith.constant 1 : index
    %c8_76 = arith.constant 8 : index
    %c0_77 = arith.constant 0 : index
    %91 = vector.load %arg10[%c1_75, %c8_76, %c0_77] : memref<18x25x64xf32, #tpu.memory_space<vmem>>, vector<16x16x64xf32>
    %92 = vector.shape_cast %91 : vector<16x16x64xf32> to vector<256x64xf32>
    %c0_78 = arith.constant 0 : index
    %c512 = arith.constant 512 : index
    %93 = vector.load %arg11[%c0_78, %c512] : memref<256x1152xf32, #tpu.memory_space<vmem>>, vector<256x64xf32>
    tpu.vector_store %arg11[%c0_78, %c512], %92 {strides = array<i32>} : memref<256x1152xf32, #tpu.memory_space<vmem>>, vector<256x64xf32>,
    %c1_79 = arith.constant 1 : index
    %c9_80 = arith.constant 9 : index
    %c0_81 = arith.constant 0 : index
    %94 = vector.load %arg10[%c1_79, %c9_80, %c0_81] : memref<18x25x64xf32, #tpu.memory_space<vmem>>, vector<16x16x64xf32>
    %95 = vector.shape_cast %94 : vector<16x16x64xf32> to vector<256x64xf32>
    %c0_82 = arith.constant 0 : index
    %c640 = arith.constant 640 : index
    %96 = vector.load %arg11[%c0_82, %c640] : memref<256x1152xf32, #tpu.memory_space<vmem>>, vector<256x64xf32>
    tpu.vector_store %arg11[%c0_82, %c640], %95 {strides = array<i32>} : memref<256x1152xf32, #tpu.memory_space<vmem>>, vector<256x64xf32>,
    %c2_83 = arith.constant 2 : index
    %c7_84 = arith.constant 7 : index
    %c0_85 = arith.constant 0 : index
    %97 = vector.load %arg10[%c2_83, %c7_84, %c0_85] : memref<18x25x64xf32, #tpu.memory_space<vmem>>, vector<16x16x64xf32>
    %98 = vector.shape_cast %97 : vector<16x16x64xf32> to vector<256x64xf32>
    %c0_86 = arith.constant 0 : index
    %c768 = arith.constant 768 : index
    %99 = vector.load %arg11[%c0_86, %c768] : memref<256x1152xf32, #tpu.memory_space<vmem>>, vector<256x64xf32>
    tpu.vector_store %arg11[%c0_86, %c768], %98 {strides = array<i32>} : memref<256x1152xf32, #tpu.memory_space<vmem>>, vector<256x64xf32>,
    %c2_87 = arith.constant 2 : index
    %c8_88 = arith.constant 8 : index
    %c0_89 = arith.constant 0 : index
    %100 = vector.load %arg10[%c2_87, %c8_88, %c0_89] : memref<18x25x64xf32, #tpu.memory_space<vmem>>, vector<16x16x64xf32>
    %101 = vector.shape_cast %100 : vector<16x16x64xf32> to vector<256x64xf32>
    %c0_90 = arith.constant 0 : index
    %c896 = arith.constant 896 : index
    %102 = vector.load %arg11[%c0_90, %c896] : memref<256x1152xf32, #tpu.memory_space<vmem>>, vector<256x64xf32>
    tpu.vector_store %arg11[%c0_90, %c896], %101 {strides = array<i32>} : memref<256x1152xf32, #tpu.memory_space<vmem>>, vector<256x64xf32>,
    %c2_91 = arith.constant 2 : index
    %c9_92 = arith.constant 9 : index
    %c0_93 = arith.constant 0 : index
    %103 = vector.load %arg10[%c2_91, %c9_92, %c0_93] : memref<18x25x64xf32, #tpu.memory_space<vmem>>, vector<16x16x64xf32>
    %104 = vector.shape_cast %103 : vector<16x16x64xf32> to vector<256x64xf32>
    %c0_94 = arith.constant 0 : index
    %c1024 = arith.constant 1024 : index
    %105 = vector.load %arg11[%c0_94, %c1024] : memref<256x1152xf32, #tpu.memory_space<vmem>>, vector<256x64xf32>
    tpu.vector_store %arg11[%c0_94, %c1024], %104 {strides = array<i32>} : memref<256x1152xf32, #tpu.memory_space<vmem>>, vector<256x64xf32>,
    %c0_95 = arith.constant 0 : index
    %c0_96 = arith.constant 0 : index
    %106 = vector.load %arg11[%c0_95, %c0_96] : memref<256x1152xf32, #tpu.memory_space<vmem>>, vector<256x1152xf32>
    %c0_97 = arith.constant 0 : index
    %c0_98 = arith.constant 0 : index
    %107 = vector.load %arg4[%c0_97, %c0_98] : memref<1152x64xf32, #tpu.memory_space<vmem>>, vector<1152x64xf32>
    %cst_99 = arith.constant dense<0.000000e+00> : vector<256x64xf32>
    %108 = tpu.matmul %106, %107, %cst_99 {dimension_numbers = #tpu.dot_dimension_numbers<[1], [0], [0], [1], [0, 0, 1, 1], [], []>} : vector<256x1152xf32>, vector<1152x64xf32>, vector<256x64xf32> -> vector<256x64xf32>
    %c0_100 = arith.constant 0 : index
    %c0_101 = arith.constant 0 : index
    %109 = vector.load %arg5[%c0_100, %c0_101] : memref<1x64xf32, #tpu.memory_space<vmem>>, vector<1x64xf32>
    %110 = vector.broadcast %109 : vector<1x64xf32> to vector<256x64xf32>
    %111 = arith.addf %108, %110 : vector<256x64xf32>
    %cst_102 = arith.constant 0.000000e+00 : f32
    %112 = vector.broadcast %cst_102 : f32 to vector<256x64xf32>
    %113 = arith.maximumf %111, %112 : vector<256x64xf32>
    %114 = vector.shape_cast %113 : vector<256x64xf32> to vector<16x16x64xf32>
    %c1_103 = arith.constant 1 : index
    %c8_104 = arith.constant 8 : index
    %c0_105 = arith.constant 0 : index
    %115 = vector.load %arg10[%c1_103, %c8_104, %c0_105] : memref<18x25x64xf32, #tpu.memory_space<vmem>>, vector<16x16x64xf32>
    tpu.vector_store %arg10[%c1_103, %c8_104, %c0_105], %114 {strides = array<i32>} : memref<18x25x64xf32, #tpu.memory_space<vmem>>, vector<16x16x64xf32>,
    %c0_106 = arith.constant 0 : index
    %c7_107 = arith.constant 7 : index
    %c0_108 = arith.constant 0 : index
    %116 = vector.load %arg10[%c0_106, %c7_107, %c0_108] : memref<18x25x64xf32, #tpu.memory_space<vmem>>, vector<16x16x64xf32>
    %117 = vector.shape_cast %116 : vector<16x16x64xf32> to vector<256x64xf32>
    %c0_109 = arith.constant 0 : index
    %c0_110 = arith.constant 0 : index
    %118 = vector.load %arg11[%c0_109, %c0_110] : memref<256x1152xf32, #tpu.memory_space<vmem>>, vector<256x64xf32>
    tpu.vector_store %arg11[%c0_109, %c0_110], %117 {strides = array<i32>} : memref<256x1152xf32, #tpu.memory_space<vmem>>, vector<256x64xf32>,
    %c0_111 = arith.constant 0 : index
    %c8_112 = arith.constant 8 : index
    %c0_113 = arith.constant 0 : index
    %119 = vector.load %arg10[%c0_111, %c8_112, %c0_113] : memref<18x25x64xf32, #tpu.memory_space<vmem>>, vector<16x16x64xf32>
    %120 = vector.shape_cast %119 : vector<16x16x64xf32> to vector<256x64xf32>
    %c0_114 = arith.constant 0 : index
    %c128_115 = arith.constant 128 : index
    %121 = vector.load %arg11[%c0_114, %c128_115] : memref<256x1152xf32, #tpu.memory_space<vmem>>, vector<256x64xf32>
    tpu.vector_store %arg11[%c0_114, %c128_115], %120 {strides = array<i32>} : memref<256x1152xf32, #tpu.memory_space<vmem>>, vector<256x64xf32>,
    %c0_116 = arith.constant 0 : index
    %c9_117 = arith.constant 9 : index
    %c0_118 = arith.constant 0 : index
    %122 = vector.load %arg10[%c0_116, %c9_117, %c0_118] : memref<18x25x64xf32, #tpu.memory_space<vmem>>, vector<16x16x64xf32>
    %123 = vector.shape_cast %122 : vector<16x16x64xf32> to vector<256x64xf32>
    %c0_119 = arith.constant 0 : index
    %c256_120 = arith.constant 256 : index
    %124 = vector.load %arg11[%c0_119, %c256_120] : memref<256x1152xf32, #tpu.memory_space<vmem>>, vector<256x64xf32>
    tpu.vector_store %arg11[%c0_119, %c256_120], %123 {strides = array<i32>} : memref<256x1152xf32, #tpu.memory_space<vmem>>, vector<256x64xf32>,
    %c1_121 = arith.constant 1 : index
    %c7_122 = arith.constant 7 : index
    %c0_123 = arith.constant 0 : index
    %125 = vector.load %arg10[%c1_121, %c7_122, %c0_123] : memref<18x25x64xf32, #tpu.memory_space<vmem>>, vector<16x16x64xf32>
    %126 = vector.shape_cast %125 : vector<16x16x64xf32> to vector<256x64xf32>
    %c0_124 = arith.constant 0 : index
    %c384_125 = arith.constant 384 : index
    %127 = vector.load %arg11[%c0_124, %c384_125] : memref<256x1152xf32, #tpu.memory_space<vmem>>, vector<256x64xf32>
    tpu.vector_store %arg11[%c0_124, %c384_125], %126 {strides = array<i32>} : memref<256x1152xf32, #tpu.memory_space<vmem>>, vector<256x64xf32>,
    %c1_126 = arith.constant 1 : index
    %c8_127 = arith.constant 8 : index
    %c0_128 = arith.constant 0 : index
    %128 = vector.load %arg10[%c1_126, %c8_127, %c0_128] : memref<18x25x64xf32, #tpu.memory_space<vmem>>, vector<16x16x64xf32>
    %129 = vector.shape_cast %128 : vector<16x16x64xf32> to vector<256x64xf32>
    %c0_129 = arith.constant 0 : index
    %c512_130 = arith.constant 512 : index
    %130 = vector.load %arg11[%c0_129, %c512_130] : memref<256x1152xf32, #tpu.memory_space<vmem>>, vector<256x64xf32>
    tpu.vector_store %arg11[%c0_129, %c512_130], %129 {strides = array<i32>} : memref<256x1152xf32, #tpu.memory_space<vmem>>, vector<256x64xf32>,
    %c1_131 = arith.constant 1 : index
    %c9_132 = arith.constant 9 : index
    %c0_133 = arith.constant 0 : index
    %131 = vector.load %arg10[%c1_131, %c9_132, %c0_133] : memref<18x25x64xf32, #tpu.memory_space<vmem>>, vector<16x16x64xf32>
    %132 = vector.shape_cast %131 : vector<16x16x64xf32> to vector<256x64xf32>
    %c0_134 = arith.constant 0 : index
    %c640_135 = arith.constant 640 : index
    %133 = vector.load %arg11[%c0_134, %c640_135] : memref<256x1152xf32, #tpu.memory_space<vmem>>, vector<256x64xf32>
    tpu.vector_store %arg11[%c0_134, %c640_135], %132 {strides = array<i32>} : memref<256x1152xf32, #tpu.memory_space<vmem>>, vector<256x64xf32>,
    %c2_136 = arith.constant 2 : index
    %c7_137 = arith.constant 7 : index
    %c0_138 = arith.constant 0 : index
    %134 = vector.load %arg10[%c2_136, %c7_137, %c0_138] : memref<18x25x64xf32, #tpu.memory_space<vmem>>, vector<16x16x64xf32>
    %135 = vector.shape_cast %134 : vector<16x16x64xf32> to vector<256x64xf32>
    %c0_139 = arith.constant 0 : index
    %c768_140 = arith.constant 768 : index
    %136 = vector.load %arg11[%c0_139, %c768_140] : memref<256x1152xf32, #tpu.memory_space<vmem>>, vector<256x64xf32>
    tpu.vector_store %arg11[%c0_139, %c768_140], %135 {strides = array<i32>} : memref<256x1152xf32, #tpu.memory_space<vmem>>, vector<256x64xf32>,
    %c2_141 = arith.constant 2 : index
    %c8_142 = arith.constant 8 : index
    %c0_143 = arith.constant 0 : index
    %137 = vector.load %arg10[%c2_141, %c8_142, %c0_143] : memref<18x25x64xf32, #tpu.memory_space<vmem>>, vector<16x16x64xf32>
    %138 = vector.shape_cast %137 : vector<16x16x64xf32> to vector<256x64xf32>
    %c0_144 = arith.constant 0 : index
    %c896_145 = arith.constant 896 : index
    %139 = vector.load %arg11[%c0_144, %c896_145] : memref<256x1152xf32, #tpu.memory_space<vmem>>, vector<256x64xf32>
    tpu.vector_store %arg11[%c0_144, %c896_145], %138 {strides = array<i32>} : memref<256x1152xf32, #tpu.memory_space<vmem>>, vector<256x64xf32>,
    %c2_146 = arith.constant 2 : index
    %c9_147 = arith.constant 9 : index
    %c0_148 = arith.constant 0 : index
    %140 = vector.load %arg10[%c2_146, %c9_147, %c0_148] : memref<18x25x64xf32, #tpu.memory_space<vmem>>, vector<16x16x64xf32>
    %141 = vector.shape_cast %140 : vector<16x16x64xf32> to vector<256x64xf32>
    %c0_149 = arith.constant 0 : index
    %c1024_150 = arith.constant 1024 : index
    %142 = vector.load %arg11[%c0_149, %c1024_150] : memref<256x1152xf32, #tpu.memory_space<vmem>>, vector<256x64xf32>
    tpu.vector_store %arg11[%c0_149, %c1024_150], %141 {strides = array<i32>} : memref<256x1152xf32, #tpu.memory_space<vmem>>, vector<256x64xf32>,
    %c0_151 = arith.constant 0 : index
    %c0_152 = arith.constant 0 : index
    %143 = vector.load %arg11[%c0_151, %c0_152] : memref<256x1152xf32, #tpu.memory_space<vmem>>, vector<256x1152xf32>
    %c0_153 = arith.constant 0 : index
    %c0_154 = arith.constant 0 : index
    %144 = vector.load %arg6[%c0_153, %c0_154] : memref<1152x64xf32, #tpu.memory_space<vmem>>, vector<1152x64xf32>
    %cst_155 = arith.constant dense<0.000000e+00> : vector<256x64xf32>
    %145 = tpu.matmul %143, %144, %cst_155 {dimension_numbers = #tpu.dot_dimension_numbers<[1], [0], [0], [1], [0, 0, 1, 1], [], []>} : vector<256x1152xf32>, vector<1152x64xf32>, vector<256x64xf32> -> vector<256x64xf32>
    %c0_156 = arith.constant 0 : index
    %c0_157 = arith.constant 0 : index
    %146 = vector.load %arg7[%c0_156, %c0_157] : memref<1x64xf32, #tpu.memory_space<vmem>>, vector<1x64xf32>
    %147 = vector.broadcast %146 : vector<1x64xf32> to vector<256x64xf32>
    %148 = arith.addf %145, %147 : vector<256x64xf32>
    %cst_158 = arith.constant 0.000000e+00 : f32
    %149 = vector.broadcast %cst_158 : f32 to vector<256x64xf32>
    %150 = arith.maximumf %148, %149 : vector<256x64xf32>
    %151 = vector.shape_cast %150 : vector<256x64xf32> to vector<1x256x64xf32>
    %c0_159 = arith.constant 0 : index
    %c0_160 = arith.constant 0 : index
    %c0_161 = arith.constant 0 : index
    %152 = vector.load %arg8[%c0_159, %c0_160, %c0_161] : memref<1x256x64xf32, #tpu.memory_space<vmem>>, vector<1x256x64xf32>
    tpu.vector_store %arg8[%c0_159, %c0_160, %c0_161], %151 {strides = array<i32>} : memref<1x256x64xf32, #tpu.memory_space<vmem>>, vector<1x256x64xf32>,
    return
  }
  func.func @transform_0(%arg0: i32) -> (i32, i32, i32, i32) {
    %c0_i32 = arith.constant 0 : i32
    %c0_i32_0 = arith.constant 0 : i32
    %c0_i32_1 = arith.constant 0 : i32
    %c0_i32_2 = arith.constant 0 : i32
    return %arg0, %c0_i32, %c0_i32_0, %c0_i32_1 : i32, i32, i32, i32
  }
  func.func @transform_1(%arg0: i32) -> (i32, i32) {
    %c0_i32 = arith.constant 0 : i32
    %c0_i32_0 = arith.constant 0 : i32
    %c0_i32_1 = arith.constant 0 : i32
    return %c0_i32, %c0_i32_0 : i32, i32
  }
  func.func @transform_2(%arg0: i32) -> (i32, i32) {
    %c0_i32 = arith.constant 0 : i32
    %c0_i32_0 = arith.constant 0 : i32
    %c0_i32_1 = arith.constant 0 : i32
    return %c0_i32, %c0_i32_0 : i32, i32
  }
  func.func @transform_3(%arg0: i32) -> (i32, i32) {
    %c0_i32 = arith.constant 0 : i32
    %c0_i32_0 = arith.constant 0 : i32
    %c0_i32_1 = arith.constant 0 : i32
    return %c0_i32, %c0_i32_0 : i32, i32
  }
  func.func @transform_4(%arg0: i32) -> (i32, i32) {
    %c0_i32 = arith.constant 0 : i32
    %c0_i32_0 = arith.constant 0 : i32
    %c0_i32_1 = arith.constant 0 : i32
    return %c0_i32, %c0_i32_0 : i32, i32
  }
  func.func @transform_5(%arg0: i32) -> (i32, i32) {
    %c0_i32 = arith.constant 0 : i32
    %c0_i32_0 = arith.constant 0 : i32
    %c0_i32_1 = arith.constant 0 : i32
    return %c0_i32, %c0_i32_0 : i32, i32
  }
  func.func @transform_6(%arg0: i32) -> (i32, i32) {
    %c0_i32 = arith.constant 0 : i32
    %c0_i32_0 = arith.constant 0 : i32
    %c0_i32_1 = arith.constant 0 : i32
    return %c0_i32, %c0_i32_0 : i32, i32
  }
  func.func @transform_7(%arg0: i32) -> (i32, i32, i32) {
    %c0_i32 = arith.constant 0 : i32
    %c0_i32_0 = arith.constant 0 : i32
    %c0_i32_1 = arith.constant 0 : i32
    return %arg0, %c0_i32, %c0_i32_0 : i32, i32, i32
  }
}

</mosaic_0001>

<llo_original>
// kernel: secret_encoding_forward.1
$region0: #{secret_encoding_forward.1}
  #allocation0 [shape = 'u32[]', space=smem, size = 0x4, offset = 0x4, fixed_abs, tag = 'smem constant byte address 0x4 - core index']
  #allocation1 [shape = 'u32[72,128]{1,0:T(1,128)}', space=vmem, size = 0x9000, scoped, tag = 'internal scratch']
  #allocation2 [shape = 'f32[18,25,1]{2,1,0:T(8,128)}', space=vmem, size = 0x48000, scoped, tag = 'scratch operand']
  #allocation3 [shape = 'f32[18,25,64]{2,1,0:T(8,128)}', space=vmem, size = 0x48000, scoped, tag = 'scratch operand']
  #allocation4 [shape = 'f32[256,1152]{1,0:T(8,128)}', space=vmem, size = 0x120000, scoped, tag = 'scratch operand']
  %s0 = inlined_call_operand.vmem [shape: f32[2,16,16,1], index: 0, kind: input, shape index: {}]
  %s1 = inlined_call_operand.vmem [shape: f32[9,64], index: 1, kind: input, shape index: {}]
  %s2 = inlined_call_operand.vmem [shape: f32[1,64], index: 2, kind: input, shape index: {}]
  %s3 = inlined_call_operand.vmem [shape: f32[1152,64], index: 3, kind: input, shape index: {}]
  %s4 = inlined_call_operand.vmem [shape: f32[1,64], index: 4, kind: input, shape index: {}]
  %s5 = inlined_call_operand.vmem [shape: f32[1152,64], index: 5, kind: input, shape index: {}]
  %s6 = inlined_call_operand.vmem [shape: f32[1,64], index: 6, kind: input, shape index: {}]
  %s7 = inlined_call_operand.hbm [shape: f32[2,256,64], index: 7, kind: output, shape index: {}]
  %s8 = sld [smem:[#allocation0]]
  $region61: #{secret_encoding_forward.1} parent=0
    _
  %s10 = ssub.s32 1, %s8
  %s11 = scalar_select 0, %s10, %s8
  $region1: #{secret_encoding_forward.1} parent=0
    #allocation5 [shape = 'u8[262144]{0}', space=vmem, size = 0x40000, scoped, tag = 'output window, operand 0']
    #allocation6 [shape = 's32[2]{0}', space=sflag, size = 0x8, scoped, tag = 'scoped memory for secret_encoding_forward.1']
    %12 = vsyncpa [#allocation6], 0
    %s13 = scalar_lea.sflag [#allocation6], 1
    %14 = vsyncpa %s13, 0
    loop: start=0, step=1, limit=4
    $region2: #{secret_encoding_forward.1} parent=1 // loop_pre_header
      _
    $region3: #{secret_encoding_forward.1} parent=1 // loop_header
      %s16 = sphi 0, %s20
      %p17 = scmp.ge.s32.totalorder %s16, 4
      %s26 = sphi 0, %s28
      %s29 = sphi 0, %s26
      %s30 = sphi 0, %s29
      %s46 = sphi 0, %s30
      %s50 = sphi 0, %s50
      %s52 = sphi 0, %s50
      %s53 = sphi 0, %s52
      %s67 = sphi 0, %s53
      %s71 = sphi 0, %s71
      %s73 = sphi 0, %s71
      %s74 = sphi 0, %s73
      %s88 = sphi 0, %s74
      %s92 = sphi 0, %s92
      %s94 = sphi 0, %s92
      %s95 = sphi 0, %s94
      %s109 = sphi 0, %s95
      %s113 = sphi 0, %s113
      %s115 = sphi 0, %s113
      %s116 = sphi 0, %s115
      %s130 = sphi 0, %s116
      %s134 = sphi 0, %s134
      %s136 = sphi 0, %s134
      %s137 = sphi 0, %s136
      %s151 = sphi 0, %s137
      %s155 = sphi 0, %s155
      %s157 = sphi 0, %s155
      %s158 = sphi 0, %s157
      %s172 = sphi 0, %s158
      %s178 = sphi 0, %s180
      %s181 = sphi 0, %s178
      %s182 = sphi 0, %s181
      %s198 = sphi 0, %s182
    $region4: #{secret_encoding_forward.1} parent=1 // loop_header_branch
      %19 = sbr.rel (%p17) target = $region8
    $region5: #{secret_encoding_forward.1} parent=1 // loop_body
      %s21 = ssub.s32 %s16, 1
      %s22 = ssub.s32 %s16, 2
      %s23 = sadd.s32 %s16, 1
      %s24 = ssub.s32 %s16, %s23
      %p25 = scmp.eq.s32.totalorder %s24, 0
      %s27 = sadd.s32 %s26, 1
      %s28 = scalar_select %p25, %s26, %s27
      %p31 = pneg %p25
      %p32 = scmp.eq.s32.totalorder %s16, 1
      %p33 = por %p31, %p32
      %p34 = scmp.ne.s32.totalorder %s26, %s29
      %p35 = scmp.eq.s32.totalorder %s16, 0
      %p36 = por %p34, %p35
      %p37 = scmp.ne.s32.totalorder %s26, %s29
      %p38 = scmp.eq.s32.totalorder %s21, 1
      %p39 = por %p37, %p38
      %p40 = scmp.ne.s32.totalorder %s29, %s30
      %p41 = scmp.eq.s32.totalorder %s21, 0
      %p42 = por %p40, %p41
      %p43 = scmp.ne.s32.totalorder %s29, %s30
      %p44 = scmp.eq.s32.totalorder %s22, 1
      %p45 = por %p43, %p44
      %p47 = scmp.ne.s32.totalorder %s30, %s46
      %p48 = scmp.eq.s32.totalorder %s22, 0
      %p49 = por %p47, %p48
      %s51 = sadd.s32 %s50, 1
      %p54 = scmp.eq.s32.totalorder %s16, 1
      %p55 = scmp.ne.s32.totalorder %s50, %s52
      %p56 = scmp.eq.s32.totalorder %s16, 0
      %p57 = por %p55, %p56
      %p58 = scmp.ne.s32.totalorder %s50, %s52
      %p59 = scmp.eq.s32.totalorder %s21, 1
      %p60 = por %p58, %p59
      %p61 = scmp.ne.s32.totalorder %s52, %s53
      %p62 = scmp.eq.s32.totalorder %s21, 0
      %p63 = por %p61, %p62
      %p64 = scmp.ne.s32.totalorder %s52, %s53
      %p65 = scmp.eq.s32.totalorder %s22, 1
      %p66 = por %p64, %p65
      %p68 = scmp.ne.s32.totalorder %s53, %s67
      %p69 = scmp.eq.s32.totalorder %s22, 0
      %p70 = por %p68, %p69
      %s72 = sadd.s32 %s71, 1
      %p75 = scmp.eq.s32.totalorder %s16, 1
      %p76 = scmp.ne.s32.totalorder %s71, %s73
      %p77 = scmp.eq.s32.totalorder %s16, 0
      %p78 = por %p76, %p77
      %p79 = scmp.ne.s32.totalorder %s71, %s73
      %p80 = scmp.eq.s32.totalorder %s21, 1
      %p81 = por %p79, %p80
      %p82 = scmp.ne.s32.totalorder %s73, %s74
      %p83 = scmp.eq.s32.totalorder %s21, 0
      %p84 = por %p82, %p83
      %p85 = scmp.ne.s32.totalorder %s73, %s74
      %p86 = scmp.eq.s32.totalorder %s22, 1
      %p87 = por %p85, %p86
      %p89 = scmp.ne.s32.totalorder %s74, %s88
      %p90 = scmp.eq.s32.totalorder %s22, 0
      %p91 = por %p89, %p90
      %s93 = sadd.s32 %s92, 1
      %p96 = scmp.eq.s32.totalorder %s16, 1
      %p97 = scmp.ne.s32.totalorder %s92, %s94
      %p98 = scmp.eq.s32.totalorder %s16, 0
      %p99 = por %p97, %p98
      %p100 = scmp.ne.s32.totalorder %s92, %s94
      %p101 = scmp.eq.s32.totalorder %s21, 1
      %p102 = por %p100, %p101
      %p103 = scmp.ne.s32.totalorder %s94, %s95
      %p104 = scmp.eq.s32.totalorder %s21, 0
      %p105 = por %p103, %p104
      %p106 = scmp.ne.s32.totalorder %s94, %s95
      %p107 = scmp.eq.s32.totalorder %s22, 1
      %p108 = por %p106, %p107
      %p110 = scmp.ne.s32.totalorder %s95, %s109
      %p111 = scmp.eq.s32.totalorder %s22, 0
      %p112 = por %p110, %p111
      %s114 = sadd.s32 %s113, 1
      %p117 = scmp.eq.s32.totalorder %s16, 1
      %p118 = scmp.ne.s32.totalorder %s113, %s115
      %p119 = scmp.eq.s32.totalorder %s16, 0
      %p120 = por %p118, %p119
      %p121 = scmp.ne.s32.totalorder %s113, %s115
      %p122 = scmp.eq.s32.totalorder %s21, 1
      %p123 = por %p121, %p122
      %p124 = scmp.ne.s32.totalorder %s115, %s116
      %p125 = scmp.eq.s32.totalorder %s21, 0
      %p126 = por %p124, %p125
      %p127 = scmp.ne.s32.totalorder %s115, %s116
      %p128 = scmp.eq.s32.totalorder %s22, 1
      %p129 = por %p127, %p128
      %p131 = scmp.ne.s32.totalorder %s116, %s130
      %p132 = scmp.eq.s32.totalorder %s22, 0
      %p133 = por %p131, %p132
      %s135 = sadd.s32 %s134, 1
      %p138 = scmp.eq.s32.totalorder %s16, 1
      %p139 = scmp.ne.s32.totalorder %s134, %s136
      %p140 = scmp.eq.s32.totalorder %s16, 0
      %p141 = por %p139, %p140
      %p142 = scmp.ne.s32.totalorder %s134, %s136
      %p143 = scmp.eq.s32.totalorder %s21, 1
      %p144 = por %p142, %p143
      %p145 = scmp.ne.s32.totalorder %s136, %s137
      %p146 = scmp.eq.s32.totalorder %s21, 0
      %p147 = por %p145, %p146
      %p148 = scmp.ne.s32.totalorder %s136, %s137
      %p149 = scmp.eq.s32.totalorder %s22, 1
      %p150 = por %p148, %p149
      %p152 = scmp.ne.s32.totalorder %s137, %s151
      %p153 = scmp.eq.s32.totalorder %s22, 0
      %p154 = por %p152, %p153
      %s156 = sadd.s32 %s155, 1
      %p159 = scmp.eq.s32.totalorder %s16, 1
      %p160 = scmp.ne.s32.totalorder %s155, %s157
      %p161 = scmp.eq.s32.totalorder %s16, 0
      %p162 = por %p160, %p161
      %p163 = scmp.ne.s32.totalorder %s155, %s157
      %p164 = scmp.eq.s32.totalorder %s21, 1
      %p165 = por %p163, %p164
      %p166 = scmp.ne.s32.totalorder %s157, %s158
      %p167 = scmp.eq.s32.totalorder %s21, 0
      %p168 = por %p166, %p167
      %p169 = scmp.ne.s32.totalorder %s157, %s158
      %p170 = scmp.eq.s32.totalorder %s22, 1
      %p171 = por %p169, %p170
      %p173 = scmp.ne.s32.totalorder %s158, %s172
      %p174 = scmp.eq.s32.totalorder %s22, 0
      %p175 = por %p173, %p174
      %s176 = ssub.s32 %s16, %s23
      %p177 = scmp.eq.s32.totalorder %s176, 0
      %s179 = sadd.s32 %s178, 1
      %s180 = scalar_select %p177, %s178, %s179
      %p183 = pneg %p177
      %p184 = scmp.eq.s32.totalorder %s16, 1
      %p185 = por %p183, %p184
      %p186 = scmp.ne.s32.totalorder %s178, %s181
      %p187 = scmp.eq.s32.totalorder %s16, 0
      %p188 = por %p186, %p187
      %p189 = scmp.ne.s32.totalorder %s178, %s181
      %p190 = scmp.eq.s32.totalorder %s21, 1
      %p191 = por %p189, %p190
      %p192 = scmp.ne.s32.totalorder %s181, %s182
      %p193 = scmp.eq.s32.totalorder %s21, 0
      %p194 = por %p192, %p193
      %p195 = scmp.ne.s32.totalorder %s181, %s182
      %p196 = scmp.eq.s32.totalorder %s22, 1
      %p197 = por %p195, %p196
      %p199 = scmp.ne.s32.totalorder %s182, %s198
      %p200 = scmp.eq.s32.totalorder %s22, 0
      %p201 = por %p199, %p200
      %p202 = scmp.le.s32.totalorder 1, %s16
      %p203 = scmp.lt.s32.totalorder %s16, 3
      %p204 = pnand %p202, %p203
      %p205 = pneg %p204
      // Predicated region
      $region9: #{secret_encoding_forward.1} parent=5 // pred_check
        _
      $region10: #{secret_encoding_forward.1} parent=5 // pred_check_branch
        %207 = sbr.rel (%p204) target = $region12
      $region11: #{secret_encoding_forward.1} parent=5 // pred_region
        %s208 = ssub.s32 %s16, 1
        // Predicated region
        $region13: #{secret_encoding_forward.1} parent=11 // pred_check
          %p209 = pneg %p63
        $region14: #{secret_encoding_forward.1} parent=11 // pred_check_branch
          %211 = sbr.rel (%p209) target = $region16
        $region15: #{secret_encoding_forward.1} parent=11 // pred_region
          _
        $region16: #{secret_encoding_forward.1} parent=11 // pred_fallthru
          _
        // Predicated region
        $region17: #{secret_encoding_forward.1} parent=11 // pred_check
          %p212 = pneg %p84
        $region18: #{secret_encoding_forward.1} parent=11 // pred_check_branch
          %214 = sbr.rel (%p212) target = $region20
        $region19: #{secret_encoding_forward.1} parent=11 // pred_region
          _
        $region20: #{secret_encoding_forward.1} parent=11 // pred_fallthru
          _
        // Predicated region
        $region21: #{secret_encoding_forward.1} parent=11 // pred_check
          %p215 = pneg %p105
        $region22: #{secret_encoding_forward.1} parent=11 // pred_check_branch
          %217 = sbr.rel (%p215) target = $region24
        $region23: #{secret_encoding_forward.1} parent=11 // pred_region
          _
        $region24: #{secret_encoding_forward.1} parent=11 // pred_fallthru
          _
        // Predicated region
        $region25: #{secret_encoding_forward.1} parent=11 // pred_check
          %p218 = pneg %p126
        $region26: #{secret_encoding_forward.1} parent=11 // pred_check_branch
          %220 = sbr.rel (%p218) target = $region28
        $region27: #{secret_encoding_forward.1} parent=11 // pred_region
          _
        $region28: #{secret_encoding_forward.1} parent=11 // pred_fallthru
          _
        // Predicated region
        $region29: #{secret_encoding_forward.1} parent=11 // pred_check
          %p221 = pneg %p147
        $region30: #{secret_encoding_forward.1} parent=11 // pred_check_branch
          %223 = sbr.rel (%p221) target = $region32
        $region31: #{secret_encoding_forward.1} parent=11 // pred_region
          _
        $region32: #{secret_encoding_forward.1} parent=11 // pred_fallthru
          _
        // Predicated region
        $region33: #{secret_encoding_forward.1} parent=11 // pred_check
          %p224 = pneg %p168
        $region34: #{secret_encoding_forward.1} parent=11 // pred_check_branch
          %226 = sbr.rel (%p224) target = $region36
        $region35: #{secret_encoding_forward.1} parent=11 // pred_region
          _
        $region36: #{secret_encoding_forward.1} parent=11 // pred_fallthru
          _
      $region12: #{secret_encoding_forward.1} parent=5 // pred_fallthru
        _
      %p227 = scmp.lt.s32.totalorder %s16, 2
      // Predicated region
      $region37: #{secret_encoding_forward.1} parent=5 // pred_check
        %p228 = pneg %p227
      $region38: #{secret_encoding_forward.1} parent=5 // pred_check_branch
        %230 = sbr.rel (%p228) target = $region40
      $region39: #{secret_encoding_forward.1} parent=5 // pred_region
        // Predicated region
        $region41: #{secret_encoding_forward.1} parent=39 // pred_check
          %p231 = pneg %p36
        $region42: #{secret_encoding_forward.1} parent=39 // pred_check_branch
          %233 = sbr.rel (%p231) target = $region44
        $region43: #{secret_encoding_forward.1} parent=39 // pred_region
          %p234 = scmp.lt.s32.totalorder %s16, 1
          %s235 = scalar_select %p234, %s16, 1
          %s236 = smul.addr %s235, 32
          %s237 = smul.addr %s236, 8
          %s238 = scalar_lea.vmem %s0, %s237
        $region44: #{secret_encoding_forward.1} parent=39 // pred_fallthru
          _
      $region40: #{secret_encoding_forward.1} parent=5 // pred_fallthru
        _
      %p239 = scmp.le.s32.totalorder 1, %s16
      %p240 = scmp.lt.s32.totalorder %s16, 3
      %p241 = pnand %p239, %p240
      %p242 = pneg %p241
      // Predicated region
      $region45: #{secret_encoding_forward.1} parent=5 // pred_check
        _
      $region46: #{secret_encoding_forward.1} parent=5 // pred_check_branch
        %244 = sbr.rel (%p241) target = $region48
      $region47: #{secret_encoding_forward.1} parent=5 // pred_region
        %s245 = ssub.s32 %s16, 1
        %p246 = scmp.lt.s32.totalorder %s21, 1
        %s247 = scalar_select %p246, %s21, 1
        %s248 = smul.addr %s247, 32
        %s249 = smul.addr %s248, 8
        %s250 = scalar_lea.vmem %s0, %s249
        %p251 = pneg %p42
        %p252 = pneg %p39
        %p253 = pneg %p63
        %p254 = pneg %p60
        %p255 = pneg %p84
        %p256 = pneg %p81
        %p257 = pneg %p105
        %p258 = pneg %p102
        %p259 = pneg %p126
        %p260 = pneg %p123
        %p261 = pneg %p147
        %p262 = pneg %p144
        %p263 = pneg %p168
        %p264 = pneg %p165
        %p265 = pneg %p194
        %p266 = pneg %p191
        %s267 = sand.u32 %s181, 1
        %s268 = scalar_lea.sflag [#allocation6], %s267
        %s269 = sand.u32 %s181, 1
        %s270 = smul.addr %s269, 256
        %s271 = scalar_lea.vmem [#allocation5], %s270
        %p272 = scmp.lt.s32.totalorder %s21, 1
        %s273 = scalar_select %p272, %s21, 1
        %s274 = smul.addr %s273, 32
        %s275 = smul.addr %s274, 8
        %s276 = scalar_lea.vmem %s0, %s275
        %vm277 = vcmask 7168
        %278 = vst.msk [vmem:[#allocation2] sm:$0xff] %vm277, 0.0
        %279 = vst.msk [vmem:[#allocation2 + $0x8] sm:$0xff] %vm277, 0.0
        %280 = vst.msk [vmem:[#allocation2 + $0x10] sm:$0xff] %vm277, 0.0
        %vm281 = vcmask 0
        %282 = vst.msk [vmem:[#allocation2 + $0x18] sm:$0x1] %vm281, 0.0
        %283 = vst.msk [vmem:[#allocation2 + $0x20] sm:$0xff] %vm277, 0.0
        %284 = vst.msk [vmem:[#allocation2 + $0x28] sm:$0xff] %vm277, 0.0
        %285 = vst.msk [vmem:[#allocation2 + $0x30] sm:$0xff] %vm277, 0.0
        %286 = vst.msk [vmem:[#allocation2 + $0x38] sm:$0x1] %vm281, 0.0
        %287 = vst.msk [vmem:[#allocation2 + $0x40] sm:$0xff] %vm277, 0.0
        %288 = vst.msk [vmem:[#allocation2 + $0x48] sm:$0xff] %vm277, 0.0
        %289 = vst.msk [vmem:[#allocation2 + $0x50] sm:$0xff] %vm277, 0.0
        %290 = vst.msk [vmem:[#allocation2 + $0x58] sm:$0x1] %vm281, 0.0
        %291 = vst.msk [vmem:[#allocation2 + $0x60] sm:$0xff] %vm277, 0.0
        %292 = vst.msk [vmem:[#allocation2 + $0x68] sm:$0xff] %vm277, 0.0
        %293 = vst.msk [vmem:[#allocation2 + $0x70] sm:$0xff] %vm277, 0.0
        %294 = vst.msk [vmem:[#allocation2 + $0x78] sm:$0x1] %vm281, 0.0
        %295 = vst.msk [vmem:[#allocation2 + $0x80] sm:$0xff] %vm277, 0.0
        %296 = vst.msk [vmem:[#allocation2 + $0x88] sm:$0xff] %vm277, 0.0
        %297 = vst.msk [vmem:[#allocation2 + $0x90] sm:$0xff] %vm277, 0.0
        %298 = vst.msk [vmem:[#allocation2 + $0x98] sm:$0x1] %vm281, 0.0
        %299 = vst.msk [vmem:[#allocation2 + $0xa0] sm:$0xff] %vm277, 0.0
        %300 = vst.msk [vmem:[#allocation2 + $0xa8] sm:$0xff] %vm277, 0.0
        %301 = vst.msk [vmem:[#allocation2 + $0xb0] sm:$0xff] %vm277, 0.0
        %302 = vst.msk [vmem:[#allocation2 + $0xb8] sm:$0x1] %vm281, 0.0
        %303 = vst.msk [vmem:[#allocation2 + $0xc0] sm:$0xff] %vm277, 0.0
        %304 = vst.msk [vmem:[#allocation2 + $0xc8] sm:$0xff] %vm277, 0.0
        %305 = vst.msk [vmem:[#allocation2 + $0xd0] sm:$0xff] %vm277, 0.0
        %306 = vst.msk [vmem:[#allocation2 + $0xd8] sm:$0x1] %vm281, 0.0
        %307 = vst.msk [vmem:[#allocation2 + $0xe0] sm:$0xff] %vm277, 0.0
        %308 = vst.msk [vmem:[#allocation2 + $0xe8] sm:$0xff] %vm277, 0.0
        %309 = vst.msk [vmem:[#allocation2 + $0xf0] sm:$0xff] %vm277, 0.0
        %310 = vst.msk [vmem:[#allocation2 + $0xf8] sm:$0x1] %vm281, 0.0
        %311 = vst.msk [vmem:[#allocation2 + $0x100] sm:$0xff] %vm277, 0.0
        %312 = vst.msk [vmem:[#allocation2 + $0x108] sm:$0xff] %vm277, 0.0
        %313 = vst.msk [vmem:[#allocation2 + $0x110] sm:$0xff] %vm277, 0.0
        %314 = vst.msk [vmem:[#allocation2 + $0x118] sm:$0x1] %vm281, 0.0
        %315 = vst.msk [vmem:[#allocation2 + $0x120] sm:$0xff] %vm277, 0.0
        %316 = vst.msk [vmem:[#allocation2 + $0x128] sm:$0xff] %vm277, 0.0
        %317 = vst.msk [vmem:[#allocation2 + $0x130] sm:$0xff] %vm277, 0.0
        %318 = vst.msk [vmem:[#allocation2 + $0x138] sm:$0x1] %vm281, 0.0
        %319 = vst.msk [vmem:[#allocation2 + $0x140] sm:$0xff] %vm277, 0.0
        %320 = vst.msk [vmem:[#allocation2 + $0x148] sm:$0xff] %vm277, 0.0
        %321 = vst.msk [vmem:[#allocation2 + $0x150] sm:$0xff] %vm277, 0.0
        %322 = vst.msk [vmem:[#allocation2 + $0x158] sm:$0x1] %vm281, 0.0
        %323 = vst.msk [vmem:[#allocation2 + $0x160] sm:$0xff] %vm277, 0.0
        %324 = vst.msk [vmem:[#allocation2 + $0x168] sm:$0xff] %vm277, 0.0
        %325 = vst.msk [vmem:[#allocation2 + $0x170] sm:$0xff] %vm277, 0.0
        %326 = vst.msk [vmem:[#allocation2 + $0x178] sm:$0x1] %vm281, 0.0
        %327 = vst.msk [vmem:[#allocation2 + $0x180] sm:$0xff] %vm277, 0.0
        %328 = vst.msk [vmem:[#allocation2 + $0x188] sm:$0xff] %vm277, 0.0
        %329 = vst.msk [vmem:[#allocation2 + $0x190] sm:$0xff] %vm277, 0.0
        %330 = vst.msk [vmem:[#allocation2 + $0x198] sm:$0x1] %vm281, 0.0
        %331 = vst.msk [vmem:[#allocation2 + $0x1a0] sm:$0xff] %vm277, 0.0
        %332 = vst.msk [vmem:[#allocation2 + $0x1a8] sm:$0xff] %vm277, 0.0
        %333 = vst.msk [vmem:[#allocation2 + $0x1b0] sm:$0xff] %vm277, 0.0
        %334 = vst.msk [vmem:[#allocation2 + $0x1b8] sm:$0x1] %vm281, 0.0
        %335 = vst.msk [vmem:[#allocation2 + $0x1c0] sm:$0xff] %vm277, 0.0
        %336 = vst.msk [vmem:[#allocation2 + $0x1c8] sm:$0xff] %vm277, 0.0
        %337 = vst.msk [vmem:[#allocation2 + $0x1d0] sm:$0xff] %vm277, 0.0
        %338 = vst.msk [vmem:[#allocation2 + $0x1d8] sm:$0x1] %vm281, 0.0
        %339 = vst.msk [vmem:[#allocation2 + $0x1e0] sm:$0xff] %vm277, 0.0
        %340 = vst.msk [vmem:[#allocation2 + $0x1e8] sm:$0xff] %vm277, 0.0
        %341 = vst.msk [vmem:[#allocation2 + $0x1f0] sm:$0xff] %vm277, 0.0
        %342 = vst.msk [vmem:[#allocation2 + $0x1f8] sm:$0x1] %vm281, 0.0
        %343 = vst.msk [vmem:[#allocation2 + $0x200] sm:$0xff] %vm277, 0.0
        %344 = vst.msk [vmem:[#allocation2 + $0x208] sm:$0xff] %vm277, 0.0
        %345 = vst.msk [vmem:[#allocation2 + $0x210] sm:$0xff] %vm277, 0.0
        %346 = vst.msk [vmem:[#allocation2 + $0x218] sm:$0x1] %vm281, 0.0
        %347 = vst.msk [vmem:[#allocation2 + $0x220] sm:$0xff] %vm277, 0.0
        %348 = vst.msk [vmem:[#allocation2 + $0x228] sm:$0xff] %vm277, 0.0
        %349 = vst.msk [vmem:[#allocation2 + $0x230] sm:$0xff] %vm277, 0.0
        %350 = vst.msk [vmem:[#allocation2 + $0x238] sm:$0x1] %vm281, 0.0
        %vm351 = vcmask 523264
        %352 = vst.msk [vmem:[#allocation3] sm:$0xff] %vm351, 0.0
        %353 = vst.msk [vmem:[#allocation3 + $0x8] sm:$0xff] %vm351, 0.0
        %354 = vst.msk [vmem:[#allocation3 + $0x10] sm:$0xff] %vm351, 0.0
        %vm355 = vcmask 516096
        %356 = vst.msk [vmem:[#allocation3 + $0x18] sm:$0x1] %vm355, 0.0
        %357 = vst.msk [vmem:[#allocation3 + $0x20] sm:$0xff] %vm351, 0.0
        %358 = vst.msk [vmem:[#allocation3 + $0x28] sm:$0xff] %vm351, 0.0
        %359 = vst.msk [vmem:[#allocation3 + $0x30] sm:$0xff] %vm351, 0.0
        %360 = vst.msk [vmem:[#allocation3 + $0x38] sm:$0x1] %vm355, 0.0
        %361 = vst.msk [vmem:[#allocation3 + $0x40] sm:$0xff] %vm351, 0.0
        %362 = vst.msk [vmem:[#allocation3 + $0x48] sm:$0xff] %vm351, 0.0
        %363 = vst.msk [vmem:[#allocation3 + $0x50] sm:$0xff] %vm351, 0.0
        %364 = vst.msk [vmem:[#allocation3 + $0x58] sm:$0x1] %vm355, 0.0
        %365 = vst.msk [vmem:[#allocation3 + $0x60] sm:$0xff] %vm351, 0.0
        %366 = vst.msk [vmem:[#allocation3 + $0x68] sm:$0xff] %vm351, 0.0
        %367 = vst.msk [vmem:[#allocation3 + $0x70] sm:$0xff] %vm351, 0.0
        %368 = vst.msk [vmem:[#allocation3 + $0x78] sm:$0x1] %vm355, 0.0
        %369 = vst.msk [vmem:[#allocation3 + $0x80] sm:$0xff] %vm351, 0.0
        %370 = vst.msk [vmem:[#allocation3 + $0x88] sm:$0xff] %vm351, 0.0
        %371 = vst.msk [vmem:[#allocation3 + $0x90] sm:$0xff] %vm351, 0.0
        %372 = vst.msk [vmem:[#allocation3 + $0x98] sm:$0x1] %vm355, 0.0
        %373 = vst.msk [vmem:[#allocation3 + $0xa0] sm:$0xff] %vm351, 0.0
        %374 = vst.msk [vmem:[#allocation3 + $0xa8] sm:$0xff] %vm351, 0.0
        %375 = vst.msk [vmem:[#allocation3 + $0xb0] sm:$0xff] %vm351, 0.0
        %376 = vst.msk [vmem:[#allocation3 + $0xb8] sm:$0x1] %vm355, 0.0
        %377 = vst.msk [vmem:[#allocation3 + $0xc0] sm:$0xff] %vm351, 0.0
        %378 = vst.msk [vmem:[#allocation3 + $0xc8] sm:$0xff] %vm351, 0.0
        %379 = vst.msk [vmem:[#allocation3 + $0xd0] sm:$0xff] %vm351, 0.0
        %380 = vst.msk [vmem:[#allocation3 + $0xd8] sm:$0x1] %vm355, 0.0
        %381 = vst.msk [vmem:[#allocation3 + $0xe0] sm:$0xff] %vm351, 0.0
        %382 = vst.msk [vmem:[#allocation3 + $0xe8] sm:$0xff] %vm351, 0.0
        %383 = vst.msk [vmem:[#allocation3 + $0xf0] sm:$0xff] %vm351, 0.0
        %384 = vst.msk [vmem:[#allocation3 + $0xf8] sm:$0x1] %vm355, 0.0
        %385 = vst.msk [vmem:[#allocation3 + $0x100] sm:$0xff] %vm351, 0.0
        %386 = vst.msk [vmem:[#allocation3 + $0x108] sm:$0xff] %vm351, 0.0
        %387 = vst.msk [vmem:[#allocation3 + $0x110] sm:$0xff] %vm351, 0.0
        %388 = vst.msk [vmem:[#allocation3 + $0x118] sm:$0x1] %vm355, 0.0
        %389 = vst.msk [vmem:[#allocation3 + $0x120] sm:$0xff] %vm351, 0.0
        %390 = vst.msk [vmem:[#allocation3 + $0x128] sm:$0xff] %vm351, 0.0
        %391 = vst.msk [vmem:[#allocation3 + $0x130] sm:$0xff] %vm351, 0.0
        %392 = vst.msk [vmem:[#allocation3 + $0x138] sm:$0x1] %vm355, 0.0
        %393 = vst.msk [vmem:[#allocation3 + $0x140] sm:$0xff] %vm351, 0.0
        %394 = vst.msk [vmem:[#allocation3 + $0x148] sm:$0xff] %vm351, 0.0
        %395 = vst.msk [vmem:[#allocation3 + $0x150] sm:$0xff] %vm351, 0.0
        %396 = vst.msk [vmem:[#allocation3 + $0x158] sm:$0x1] %vm355, 0.0
        %397 = vst.msk [vmem:[#allocation3 + $0x160] sm:$0xff] %vm351, 0.0
        %398 = vst.msk [vmem:[#allocation3 + $0x168] sm:$0xff] %vm351, 0.0
        %399 = vst.msk [vmem:[#allocation3 + $0x170] sm:$0xff] %vm351, 0.0
        %400 = vst.msk [vmem:[#allocation3 + $0x178] sm:$0x1] %vm355, 0.0
        %401 = vst.msk [vmem:[#allocation3 + $0x180] sm:$0xff] %vm351, 0.0
        %402 = vst.msk [vmem:[#allocation3 + $0x188] sm:$0xff] %vm351, 0.0
        %403 = vst.msk [vmem:[#allocation3 + $0x190] sm:$0xff] %vm351, 0.0
        %404 = vst.msk [vmem:[#allocation3 + $0x198] sm:$0x1] %vm355, 0.0
        %405 = vst.msk [vmem:[#allocation3 + $0x1a0] sm:$0xff] %vm351, 0.0
        %406 = vst.msk [vmem:[#allocation3 + $0x1a8] sm:$0xff] %vm351, 0.0
        %407 = vst.msk [vmem:[#allocation3 + $0x1b0] sm:$0xff] %vm351, 0.0
        %408 = vst.msk [vmem:[#allocation3 + $0x1b8] sm:$0x1] %vm355, 0.0
        %409 = vst.msk [vmem:[#allocation3 + $0x1c0] sm:$0xff] %vm351, 0.0
        %410 = vst.msk [vmem:[#allocation3 + $0x1c8] sm:$0xff] %vm351, 0.0
        %411 = vst.msk [vmem:[#allocation3 + $0x1d0] sm:$0xff] %vm351, 0.0
        %412 = vst.msk [vmem:[#allocation3 + $0x1d8] sm:$0x1] %vm355, 0.0
        %413 = vst.msk [vmem:[#allocation3 + $0x1e0] sm:$0xff] %vm351, 0.0
        %414 = vst.msk [vmem:[#allocation3 + $0x1e8] sm:$0xff] %vm351, 0.0
        %415 = vst.msk [vmem:[#allocation3 + $0x1f0] sm:$0xff] %vm351, 0.0
        %416 = vst.msk [vmem:[#allocation3 + $0x1f8] sm:$0x1] %vm355, 0.0
        %417 = vst.msk [vmem:[#allocation3 + $0x200] sm:$0xff] %vm351, 0.0
        %418 = vst.msk [vmem:[#allocation3 + $0x208] sm:$0xff] %vm351, 0.0
        %419 = vst.msk [vmem:[#allocation3 + $0x210] sm:$0xff] %vm351, 0.0
        %420 = vst.msk [vmem:[#allocation3 + $0x218] sm:$0x1] %vm355, 0.0
        %421 = vst.msk [vmem:[#allocation3 + $0x220] sm:$0xff] %vm351, 0.0
        %422 = vst.msk [vmem:[#allocation3 + $0x228] sm:$0xff] %vm351, 0.0
        %423 = vst.msk [vmem:[#allocation3 + $0x230] sm:$0xff] %vm351, 0.0
        %424 = vst.msk [vmem:[#allocation3 + $0x238] sm:$0x1] %vm355, 0.0
        %425 = vst [vmem:[#allocation4] sm:$0xff] 0.0
        %426 = vst [vmem:[#allocation4 + $0x8] sm:$0xff] 0.0
        %427 = vst [vmem:[#allocation4 + $0x10] sm:$0xff] 0.0
        %428 = vst [vmem:[#allocation4 + $0x18] sm:$0xff] 0.0
        %429 = vst [vmem:[#allocation4 + $0x20] sm:$0xff] 0.0
        %430 = vst [vmem:[#allocation4 + $0x28] sm:$0xff] 0.0
        %431 = vst [vmem:[#allocation4 + $0x30] sm:$0xff] 0.0
        %432 = vst [vmem:[#allocation4 + $0x38] sm:$0xff] 0.0
        %433 = vst [vmem:[#allocation4 + $0x40] sm:$0xff] 0.0
        %434 = vst [vmem:[#allocation4 + $0x48] sm:$0xff] 0.0
        %435 = vst [vmem:[#allocation4 + $0x50] sm:$0xff] 0.0
        %436 = vst [vmem:[#allocation4 + $0x58] sm:$0xff] 0.0
        %437 = vst [vmem:[#allocation4 + $0x60] sm:$0xff] 0.0
        %438 = vst [vmem:[#allocation4 + $0x68] sm:$0xff] 0.0
        %439 = vst [vmem:[#allocation4 + $0x70] sm:$0xff] 0.0
        %440 = vst [vmem:[#allocation4 + $0x78] sm:$0xff] 0.0
        %441 = vst [vmem:[#allocation4 + $0x80] sm:$0xff] 0.0
        %442 = vst [vmem:[#allocation4 + $0x88] sm:$0xff] 0.0
        %443 = vst [vmem:[#allocation4 + $0x90] sm:$0xff] 0.0
        %444 = vst [vmem:[#allocation4 + $0x98] sm:$0xff] 0.0
        %445 = vst [vmem:[#allocation4 + $0xa0] sm:$0xff] 0.0
        %446 = vst [vmem:[#allocation4 + $0xa8] sm:$0xff] 0.0
        %447 = vst [vmem:[#allocation4 + $0xb0] sm:$0xff] 0.0
        %448 = vst [vmem:[#allocation4 + $0xb8] sm:$0xff] 0.0
        %449 = vst [vmem:[#allocation4 + $0xc0] sm:$0xff] 0.0
        %450 = vst [vmem:[#allocation4 + $0xc8] sm:$0xff] 0.0
        %451 = vst [vmem:[#allocation4 + $0xd0] sm:$0xff] 0.0
        %452 = vst [vmem:[#allocation4 + $0xd8] sm:$0xff] 0.0
        %453 = vst [vmem:[#allocation4 + $0xe0] sm:$0xff] 0.0
        %454 = vst [vmem:[#allocation4 + $0xe8] sm:$0xff] 0.0
        %455 = vst [vmem:[#allocation4 + $0xf0] sm:$0xff] 0.0
        %456 = vst [vmem:[#allocation4 + $0xf8] sm:$0xff] 0.0
        %457 = vst [vmem:[#allocation4 + $0x100] sm:$0xff] 0.0
        %458 = vst [vmem:[#allocation4 + $0x108] sm:$0xff] 0.0
        %459 = vst [vmem:[#allocation4 + $0x110] sm:$0xff] 0.0
        %460 = vst [vmem:[#allocation4 + $0x118] sm:$0xff] 0.0
        %461 = vst [vmem:[#allocation4 + $0x120] sm:$0xff] 0.0
        %462 = vst [vmem:[#allocation4 + $0x128] sm:$0xff] 0.0
        %463 = vst [vmem:[#allocation4 + $0x130] sm:$0xff] 0.0
        %464 = vst [vmem:[#allocation4 + $0x138] sm:$0xff] 0.0
        %465 = vst [vmem:[#allocation4 + $0x140] sm:$0xff] 0.0
        %466 = vst [vmem:[#allocation4 + $0x148] sm:$0xff] 0.0
        %467 = vst [vmem:[#allocation4 + $0x150] sm:$0xff] 0.0
        %468 = vst [vmem:[#allocation4 + $0x158] sm:$0xff] 0.0
        %469 = vst [vmem:[#allocation4 + $0x160] sm:$0xff] 0.0
        %470 = vst [vmem:[#allocation4 + $0x168] sm:$0xff] 0.0
        %471 = vst [vmem:[#allocation4 + $0x170] sm:$0xff] 0.0
        %472 = vst [vmem:[#allocation4 + $0x178] sm:$0xff] 0.0
        %473 = vst [vmem:[#allocation4 + $0x180] sm:$0xff] 0.0
        %474 = vst [vmem:[#allocation4 + $0x188] sm:$0xff] 0.0
        %475 = vst [vmem:[#allocation4 + $0x190] sm:$0xff] 0.0
        %476 = vst [vmem:[#allocation4 + $0x198] sm:$0xff] 0.0
        %477 = vst [vmem:[#allocation4 + $0x1a0] sm:$0xff] 0.0
        %478 = vst [vmem:[#allocation4 + $0x1a8] sm:$0xff] 0.0
        %479 = vst [vmem:[#allocation4 + $0x1b0] sm:$0xff] 0.0
        %480 = vst [vmem:[#allocation4 + $0x1b8] sm:$0xff] 0.0
        %481 = vst [vmem:[#allocation4 + $0x1c0] sm:$0xff] 0.0
        %482 = vst [vmem:[#allocation4 + $0x1c8] sm:$0xff] 0.0
        %483 = vst [vmem:[#allocation4 + $0x1d0] sm:$0xff] 0.0
        %484 = vst [vmem:[#allocation4 + $0x1d8] sm:$0xff] 0.0
        %485 = vst [vmem:[#allocation4 + $0x1e0] sm:$0xff] 0.0
        %486 = vst [vmem:[#allocation4 + $0x1e8] sm:$0xff] 0.0
        %487 = vst [vmem:[#allocation4 + $0x1f0] sm:$0xff] 0.0
        %488 = vst [vmem:[#allocation4 + $0x1f8] sm:$0xff] 0.0
        %489 = vst [vmem:[#allocation4 + $0x200] sm:$0xff] 0.0
        %490 = vst [vmem:[#allocation4 + $0x208] sm:$0xff] 0.0
        %491 = vst [vmem:[#allocation4 + $0x210] sm:$0xff] 0.0
        %492 = vst [vmem:[#allocation4 + $0x218] sm:$0xff] 0.0
        %493 = vst [vmem:[#allocation4 + $0x220] sm:$0xff] 0.0
        %494 = vst [vmem:[#allocation4 + $0x228] sm:$0xff] 0.0
        %495 = vst [vmem:[#allocation4 + $0x230] sm:$0xff] 0.0
        %496 = vst [vmem:[#allocation4 + $0x238] sm:$0xff] 0.0
        %497 = vst [vmem:[#allocation4 + $0x240] sm:$0xff] 0.0
        %498 = vst [vmem:[#allocation4 + $0x248] sm:$0xff] 0.0
        %499 = vst [vmem:[#allocation4 + $0x250] sm:$0xff] 0.0
        %500 = vst [vmem:[#allocation4 + $0x258] sm:$0xff] 0.0
        %501 = vst [vmem:[#allocation4 + $0x260] sm:$0xff] 0.0
        %502 = vst [vmem:[#allocation4 + $0x268] sm:$0xff] 0.0
        %503 = vst [vmem:[#allocation4 + $0x270] sm:$0xff] 0.0
        %504 = vst [vmem:[#allocation4 + $0x278] sm:$0xff] 0.0
        %505 = vst [vmem:[#allocation4 + $0x280] sm:$0xff] 0.0
        %506 = vst [vmem:[#allocation4 + $0x288] sm:$0xff] 0.0
        %507 = vst [vmem:[#allocation4 + $0x290] sm:$0xff] 0.0
        %508 = vst [vmem:[#allocation4 + $0x298] sm:$0xff] 0.0
        %509 = vst [vmem:[#allocation4 + $0x2a0] sm:$0xff] 0.0
        %510 = vst [vmem:[#allocation4 + $0x2a8] sm:$0xff] 0.0
        %511 = vst [vmem:[#allocation4 + $0x2b0] sm:$0xff] 0.0
        %512 = vst [vmem:[#allocation4 + $0x2b8] sm:$0xff] 0.0
        %513 = vst [vmem:[#allocation4 + $0x2c0] sm:$0xff] 0.0
        %514 = vst [vmem:[#allocation4 + $0x2c8] sm:$0xff] 0.0
        %515 = vst [vmem:[#allocation4 + $0x2d0] sm:$0xff] 0.0
        %516 = vst [vmem:[#allocation4 + $0x2d8] sm:$0xff] 0.0
        %517 = vst [vmem:[#allocation4 + $0x2e0] sm:$0xff] 0.0
        %518 = vst [vmem:[#allocation4 + $0x2e8] sm:$0xff] 0.0
        %519 = vst [vmem:[#allocation4 + $0x2f0] sm:$0xff] 0.0
        %520 = vst [vmem:[#allocation4 + $0x2f8] sm:$0xff] 0.0
        %521 = vst [vmem:[#allocation4 + $0x300] sm:$0xff] 0.0
        %522 = vst [vmem:[#allocation4 + $0x308] sm:$0xff] 0.0
        %523 = vst [vmem:[#allocation4 + $0x310] sm:$0xff] 0.0
        %524 = vst [vmem:[#allocation4 + $0x318] sm:$0xff] 0.0
        %525 = vst [vmem:[#allocation4 + $0x320] sm:$0xff] 0.0
        %526 = vst [vmem:[#allocation4 + $0x328] sm:$0xff] 0.0
        %527 = vst [vmem:[#allocation4 + $0x330] sm:$0xff] 0.0
        %528 = vst [vmem:[#allocation4 + $0x338] sm:$0xff] 0.0
        %529 = vst [vmem:[#allocation4 + $0x340] sm:$0xff] 0.0
        %530 = vst [vmem:[#allocation4 + $0x348] sm:$0xff] 0.0
        %531 = vst [vmem:[#allocation4 + $0x350] sm:$0xff] 0.0
        %532 = vst [vmem:[#allocation4 + $0x358] sm:$0xff] 0.0
        %533 = vst [vmem:[#allocation4 + $0x360] sm:$0xff] 0.0
        %534 = vst [vmem:[#allocation4 + $0x368] sm:$0xff] 0.0
        %535 = vst [vmem:[#allocation4 + $0x370] sm:$0xff] 0.0
        %536 = vst [vmem:[#allocation4 + $0x378] sm:$0xff] 0.0
        %537 = vst [vmem:[#allocation4 + $0x380] sm:$0xff] 0.0
        %538 = vst [vmem:[#allocation4 + $0x388] sm:$0xff] 0.0
        %539 = vst [vmem:[#allocation4 + $0x390] sm:$0xff] 0.0
        %540 = vst [vmem:[#allocation4 + $0x398] sm:$0xff] 0.0
        %541 = vst [vmem:[#allocation4 + $0x3a0] sm:$0xff] 0.0
        %542 = vst [vmem:[#allocation4 + $0x3a8] sm:$0xff] 0.0
        %543 = vst [vmem:[#allocation4 + $0x3b0] sm:$0xff] 0.0
        %544 = vst [vmem:[#allocation4 + $0x3b8] sm:$0xff] 0.0
        %545 = vst [vmem:[#allocation4 + $0x3c0] sm:$0xff] 0.0
        %546 = vst [vmem:[#allocation4 + $0x3c8] sm:$0xff] 0.0
        %547 = vst [vmem:[#allocation4 + $0x3d0] sm:$0xff] 0.0
        %548 = vst [vmem:[#allocation4 + $0x3d8] sm:$0xff] 0.0
        %549 = vst [vmem:[#allocation4 + $0x3e0] sm:$0xff] 0.0
        %550 = vst [vmem:[#allocation4 + $0x3e8] sm:$0xff] 0.0
        %551 = vst [vmem:[#allocation4 + $0x3f0] sm:$0xff] 0.0
        %552 = vst [vmem:[#allocation4 + $0x3f8] sm:$0xff] 0.0
        %553 = vst [vmem:[#allocation4 + $0x400] sm:$0xff] 0.0
        %554 = vst [vmem:[#allocation4 + $0x408] sm:$0xff] 0.0
        %555 = vst [vmem:[#allocation4 + $0x410] sm:$0xff] 0.0
        %556 = vst [vmem:[#allocation4 + $0x418] sm:$0xff] 0.0
        %557 = vst [vmem:[#allocation4 + $0x420] sm:$0xff] 0.0
        %558 = vst [vmem:[#allocation4 + $0x428] sm:$0xff] 0.0
        %559 = vst [vmem:[#allocation4 + $0x430] sm:$0xff] 0.0
        %560 = vst [vmem:[#allocation4 + $0x438] sm:$0xff] 0.0
        %561 = vst [vmem:[#allocation4 + $0x440] sm:$0xff] 0.0
        %562 = vst [vmem:[#allocation4 + $0x448] sm:$0xff] 0.0
        %563 = vst [vmem:[#allocation4 + $0x450] sm:$0xff] 0.0
        %564 = vst [vmem:[#allocation4 + $0x458] sm:$0xff] 0.0
        %565 = vst [vmem:[#allocation4 + $0x460] sm:$0xff] 0.0
        %566 = vst [vmem:[#allocation4 + $0x468] sm:$0xff] 0.0
        %567 = vst [vmem:[#allocation4 + $0x470] sm:$0xff] 0.0
        %568 = vst [vmem:[#allocation4 + $0x478] sm:$0xff] 0.0
        %569 = vst [vmem:[#allocation4 + $0x480] sm:$0xff] 0.0
        %570 = vst [vmem:[#allocation4 + $0x488] sm:$0xff] 0.0
        %571 = vst [vmem:[#allocation4 + $0x490] sm:$0xff] 0.0
        %572 = vst [vmem:[#allocation4 + $0x498] sm:$0xff] 0.0
        %573 = vst [vmem:[#allocation4 + $0x4a0] sm:$0xff] 0.0
        %574 = vst [vmem:[#allocation4 + $0x4a8] sm:$0xff] 0.0
        %575 = vst [vmem:[#allocation4 + $0x4b0] sm:$0xff] 0.0
        %576 = vst [vmem:[#allocation4 + $0x4b8] sm:$0xff] 0.0
        %577 = vst [vmem:[#allocation4 + $0x4c0] sm:$0xff] 0.0
        %578 = vst [vmem:[#allocation4 + $0x4c8] sm:$0xff] 0.0
        %579 = vst [vmem:[#allocation4 + $0x4d0] sm:$0xff] 0.0
        %580 = vst [vmem:[#allocation4 + $0x4d8] sm:$0xff] 0.0
        %581 = vst [vmem:[#allocation4 + $0x4e0] sm:$0xff] 0.0
        %582 = vst [vmem:[#allocation4 + $0x4e8] sm:$0xff] 0.0
        %583 = vst [vmem:[#allocation4 + $0x4f0] sm:$0xff] 0.0
        %584 = vst [vmem:[#allocation4 + $0x4f8] sm:$0xff] 0.0
        %585 = vst [vmem:[#allocation4 + $0x500] sm:$0xff] 0.0
        %586 = vst [vmem:[#allocation4 + $0x508] sm:$0xff] 0.0
        %587 = vst [vmem:[#allocation4 + $0x510] sm:$0xff] 0.0
        %588 = vst [vmem:[#allocation4 + $0x518] sm:$0xff] 0.0
        %589 = vst [vmem:[#allocation4 + $0x520] sm:$0xff] 0.0
        %590 = vst [vmem:[#allocation4 + $0x528] sm:$0xff] 0.0
        %591 = vst [vmem:[#allocation4 + $0x530] sm:$0xff] 0.0
        %592 = vst [vmem:[#allocation4 + $0x538] sm:$0xff] 0.0
        %593 = vst [vmem:[#allocation4 + $0x540] sm:$0xff] 0.0
        %594 = vst [vmem:[#allocation4 + $0x548] sm:$0xff] 0.0
        %595 = vst [vmem:[#allocation4 + $0x550] sm:$0xff] 0.0
        %596 = vst [vmem:[#allocation4 + $0x558] sm:$0xff] 0.0
        %597 = vst [vmem:[#allocation4 + $0x560] sm:$0xff] 0.0
        %598 = vst [vmem:[#allocation4 + $0x568] sm:$0xff] 0.0
        %599 = vst [vmem:[#allocation4 + $0x570] sm:$0xff] 0.0
        %600 = vst [vmem:[#allocation4 + $0x578] sm:$0xff] 0.0
        %601 = vst [vmem:[#allocation4 + $0x580] sm:$0xff] 0.0
        %602 = vst [vmem:[#allocation4 + $0x588] sm:$0xff] 0.0
        %603 = vst [vmem:[#allocation4 + $0x590] sm:$0xff] 0.0
        %604 = vst [vmem:[#allocation4 + $0x598] sm:$0xff] 0.0
        %605 = vst [vmem:[#allocation4 + $0x5a0] sm:$0xff] 0.0
        %606 = vst [vmem:[#allocation4 + $0x5a8] sm:$0xff] 0.0
        %607 = vst [vmem:[#allocation4 + $0x5b0] sm:$0xff] 0.0
        %608 = vst [vmem:[#allocation4 + $0x5b8] sm:$0xff] 0.0
        %609 = vst [vmem:[#allocation4 + $0x5c0] sm:$0xff] 0.0
        %610 = vst [vmem:[#allocation4 + $0x5c8] sm:$0xff] 0.0
        %611 = vst [vmem:[#allocation4 + $0x5d0] sm:$0xff] 0.0
        %612 = vst [vmem:[#allocation4 + $0x5d8] sm:$0xff] 0.0
        %613 = vst [vmem:[#allocation4 + $0x5e0] sm:$0xff] 0.0
        %614 = vst [vmem:[#allocation4 + $0x5e8] sm:$0xff] 0.0
        %615 = vst [vmem:[#allocation4 + $0x5f0] sm:$0xff] 0.0
        %616 = vst [vmem:[#allocation4 + $0x5f8] sm:$0xff] 0.0
        %617 = vst [vmem:[#allocation4 + $0x600] sm:$0xff] 0.0
        %618 = vst [vmem:[#allocation4 + $0x608] sm:$0xff] 0.0
        %619 = vst [vmem:[#allocation4 + $0x610] sm:$0xff] 0.0
        %620 = vst [vmem:[#allocation4 + $0x618] sm:$0xff] 0.0
        %621 = vst [vmem:[#allocation4 + $0x620] sm:$0xff] 0.0
        %622 = vst [vmem:[#allocation4 + $0x628] sm:$0xff] 0.0
        %623 = vst [vmem:[#allocation4 + $0x630] sm:$0xff] 0.0
        %624 = vst [vmem:[#allocation4 + $0x638] sm:$0xff] 0.0
        %625 = vst [vmem:[#allocation4 + $0x640] sm:$0xff] 0.0
        %626 = vst [vmem:[#allocation4 + $0x648] sm:$0xff] 0.0
        %627 = vst [vmem:[#allocation4 + $0x650] sm:$0xff] 0.0
        %628 = vst [vmem:[#allocation4 + $0x658] sm:$0xff] 0.0
        %629 = vst [vmem:[#allocation4 + $0x660] sm:$0xff] 0.0
        %630 = vst [vmem:[#allocation4 + $0x668] sm:$0xff] 0.0
        %631 = vst [vmem:[#allocation4 + $0x670] sm:$0xff] 0.0
        %632 = vst [vmem:[#allocation4 + $0x678] sm:$0xff] 0.0
        %633 = vst [vmem:[#allocation4 + $0x680] sm:$0xff] 0.0
        %634 = vst [vmem:[#allocation4 + $0x688] sm:$0xff] 0.0
        %635 = vst [vmem:[#allocation4 + $0x690] sm:$0xff] 0.0
        %636 = vst [vmem:[#allocation4 + $0x698] sm:$0xff] 0.0
        %637 = vst [vmem:[#allocation4 + $0x6a0] sm:$0xff] 0.0
        %638 = vst [vmem:[#allocation4 + $0x6a8] sm:$0xff] 0.0
        %639 = vst [vmem:[#allocation4 + $0x6b0] sm:$0xff] 0.0
        %640 = vst [vmem:[#allocation4 + $0x6b8] sm:$0xff] 0.0
        %641 = vst [vmem:[#allocation4 + $0x6c0] sm:$0xff] 0.0
        %642 = vst [vmem:[#allocation4 + $0x6c8] sm:$0xff] 0.0
        %643 = vst [vmem:[#allocation4 + $0x6d0] sm:$0xff] 0.0
        %644 = vst [vmem:[#allocation4 + $0x6d8] sm:$0xff] 0.0
        %645 = vst [vmem:[#allocation4 + $0x6e0] sm:$0xff] 0.0
        %646 = vst [vmem:[#allocation4 + $0x6e8] sm:$0xff] 0.0
        %647 = vst [vmem:[#allocation4 + $0x6f0] sm:$0xff] 0.0
        %648 = vst [vmem:[#allocation4 + $0x6f8] sm:$0xff] 0.0
        %649 = vst [vmem:[#allocation4 + $0x700] sm:$0xff] 0.0
        %650 = vst [vmem:[#allocation4 + $0x708] sm:$0xff] 0.0
        %651 = vst [vmem:[#allocation4 + $0x710] sm:$0xff] 0.0
        %652 = vst [vmem:[#allocation4 + $0x718] sm:$0xff] 0.0
        %653 = vst [vmem:[#allocation4 + $0x720] sm:$0xff] 0.0
        %654 = vst [vmem:[#allocation4 + $0x728] sm:$0xff] 0.0
        %655 = vst [vmem:[#allocation4 + $0x730] sm:$0xff] 0.0
        %656 = vst [vmem:[#allocation4 + $0x738] sm:$0xff] 0.0
        %657 = vst [vmem:[#allocation4 + $0x740] sm:$0xff] 0.0
        %658 = vst [vmem:[#allocation4 + $0x748] sm:$0xff] 0.0
        %659 = vst [vmem:[#allocation4 + $0x750] sm:$0xff] 0.0
        %660 = vst [vmem:[#allocation4 + $0x758] sm:$0xff] 0.0
        %661 = vst [vmem:[#allocation4 + $0x760] sm:$0xff] 0.0
        %662 = vst [vmem:[#allocation4 + $0x768] sm:$0xff] 0.0
        %663 = vst [vmem:[#allocation4 + $0x770] sm:$0xff] 0.0
        %664 = vst [vmem:[#allocation4 + $0x778] sm:$0xff] 0.0
        %665 = vst [vmem:[#allocation4 + $0x780] sm:$0xff] 0.0
        %666 = vst [vmem:[#allocation4 + $0x788] sm:$0xff] 0.0
        %667 = vst [vmem:[#allocation4 + $0x790] sm:$0xff] 0.0
        %668 = vst [vmem:[#allocation4 + $0x798] sm:$0xff] 0.0
        %669 = vst [vmem:[#allocation4 + $0x7a0] sm:$0xff] 0.0
        %670 = vst [vmem:[#allocation4 + $0x7a8] sm:$0xff] 0.0
        %671 = vst [vmem:[#allocation4 + $0x7b0] sm:$0xff] 0.0
        %672 = vst [vmem:[#allocation4 + $0x7b8] sm:$0xff] 0.0
        %673 = vst [vmem:[#allocation4 + $0x7c0] sm:$0xff] 0.0
        %674 = vst [vmem:[#allocation4 + $0x7c8] sm:$0xff] 0.0
        %675 = vst [vmem:[#allocation4 + $0x7d0] sm:$0xff] 0.0
        %676 = vst [vmem:[#allocation4 + $0x7d8] sm:$0xff] 0.0
        %677 = vst [vmem:[#allocation4 + $0x7e0] sm:$0xff] 0.0
        %678 = vst [vmem:[#allocation4 + $0x7e8] sm:$0xff] 0.0
        %679 = vst [vmem:[#allocation4 + $0x7f0] sm:$0xff] 0.0
        %680 = vst [vmem:[#allocation4 + $0x7f8] sm:$0xff] 0.0
        %681 = vst [vmem:[#allocation4 + $0x800] sm:$0xff] 0.0
        %682 = vst [vmem:[#allocation4 + $0x808] sm:$0xff] 0.0
        %683 = vst [vmem:[#allocation4 + $0x810] sm:$0xff] 0.0
        %684 = vst [vmem:[#allocation4 + $0x818] sm:$0xff] 0.0
        %685 = vst [vmem:[#allocation4 + $0x820] sm:$0xff] 0.0
        %686 = vst [vmem:[#allocation4 + $0x828] sm:$0xff] 0.0
        %687 = vst [vmem:[#allocation4 + $0x830] sm:$0xff] 0.0
        %688 = vst [vmem:[#allocation4 + $0x838] sm:$0xff] 0.0
        %689 = vst [vmem:[#allocation4 + $0x840] sm:$0xff] 0.0
        %690 = vst [vmem:[#allocation4 + $0x848] sm:$0xff] 0.0
        %691 = vst [vmem:[#allocation4 + $0x850] sm:$0xff] 0.0
        %692 = vst [vmem:[#allocation4 + $0x858] sm:$0xff] 0.0
        %693 = vst [vmem:[#allocation4 + $0x860] sm:$0xff] 0.0
        %694 = vst [vmem:[#allocation4 + $0x868] sm:$0xff] 0.0
        %695 = vst [vmem:[#allocation4 + $0x870] sm:$0xff] 0.0
        %696 = vst [vmem:[#allocation4 + $0x878] sm:$0xff] 0.0
        %697 = vst [vmem:[#allocation4 + $0x880] sm:$0xff] 0.0
        %698 = vst [vmem:[#allocation4 + $0x888] sm:$0xff] 0.0
        %699 = vst [vmem:[#allocation4 + $0x890] sm:$0xff] 0.0
        %700 = vst [vmem:[#allocation4 + $0x898] sm:$0xff] 0.0
        %701 = vst [vmem:[#allocation4 + $0x8a0] sm:$0xff] 0.0
        %702 = vst [vmem:[#allocation4 + $0x8a8] sm:$0xff] 0.0
        %703 = vst [vmem:[#allocation4 + $0x8b0] sm:$0xff] 0.0
        %704 = vst [vmem:[#allocation4 + $0x8b8] sm:$0xff] 0.0
        %705 = vst [vmem:[#allocation4 + $0x8c0] sm:$0xff] 0.0
        %706 = vst [vmem:[#allocation4 + $0x8c8] sm:$0xff] 0.0
        %707 = vst [vmem:[#allocation4 + $0x8d0] sm:$0xff] 0.0
        %708 = vst [vmem:[#allocation4 + $0x8d8] sm:$0xff] 0.0
        %709 = vst [vmem:[#allocation4 + $0x8e0] sm:$0xff] 0.0
        %710 = vst [vmem:[#allocation4 + $0x8e8] sm:$0xff] 0.0
        %711 = vst [vmem:[#allocation4 + $0x8f0] sm:$0xff] 0.0
        %712 = vst [vmem:[#allocation4 + $0x8f8] sm:$0xff] 0.0
        %v713 = vld [vmem:[%s276] sm:$0xff]
        %v714 = vld [vmem:[%s276 + $0x8] sm:$0xff]
        %v715 = vld [vmem:[%s276 + $0x10] sm:$0xff]
        %v716 = vld [vmem:[%s276 + $0x18] sm:$0xff]
        %v717 = vld [vmem:[%s276 + $0x20] sm:$0xff]
        %v718 = vld [vmem:[%s276 + $0x28] sm:$0xff]
        %v719 = vld [vmem:[%s276 + $0x30] sm:$0xff]
        %v720 = vld [vmem:[%s276 + $0x38] sm:$0xff]
        %v721 = vld [vmem:[%s276 + $0x40] sm:$0xff]
        %v722 = vld [vmem:[%s276 + $0x48] sm:$0xff]
        %v723 = vld [vmem:[%s276 + $0x50] sm:$0xff]
        %v724 = vld [vmem:[%s276 + $0x58] sm:$0xff]
        %v725 = vld [vmem:[%s276 + $0x60] sm:$0xff]
        %v726 = vld [vmem:[%s276 + $0x68] sm:$0xff]
        %v727 = vld [vmem:[%s276 + $0x70] sm:$0xff]
        %v728 = vld [vmem:[%s276 + $0x78] sm:$0xff]
        %v729 = vld [vmem:[%s276 + $0x80] sm:$0xff]
        %v730 = vld [vmem:[%s276 + $0x88] sm:$0xff]
        %v731 = vld [vmem:[%s276 + $0x90] sm:$0xff]
        %v732 = vld [vmem:[%s276 + $0x98] sm:$0xff]
        %v733 = vld [vmem:[%s276 + $0xa0] sm:$0xff]
        %v734 = vld [vmem:[%s276 + $0xa8] sm:$0xff]
        %v735 = vld [vmem:[%s276 + $0xb0] sm:$0xff]
        %v736 = vld [vmem:[%s276 + $0xb8] sm:$0xff]
        %v737 = vld [vmem:[%s276 + $0xc0] sm:$0xff]
        %v738 = vld [vmem:[%s276 + $0xc8] sm:$0xff]
        %v739 = vld [vmem:[%s276 + $0xd0] sm:$0xff]
        %v740 = vld [vmem:[%s276 + $0xd8] sm:$0xff]
        %v741 = vld [vmem:[%s276 + $0xe0] sm:$0xff]
        %v742 = vld [vmem:[%s276 + $0xe8] sm:$0xff]
        %v743 = vld [vmem:[%s276 + $0xf0] sm:$0xff]
        %v744 = vld [vmem:[%s276 + $0xf8] sm:$0xff]
        %s745 = scalar_lea.vmem [#allocation2], 32
        %746 = vst.msk [vmem:[%s745 + $0x8] sm:$0xff] %vm277, %v713
        %747 = vst.msk [vmem:[%s745 + $0x10] sm:$0xff] %vm277, %v714
        %748 = vst.msk [vmem:[%s745 + $0x28] sm:$0xff] %vm277, %v715
        %749 = vst.msk [vmem:[%s745 + $0x30] sm:$0xff] %vm277, %v716
        %750 = vst.msk [vmem:[%s745 + $0x48] sm:$0xff] %vm277, %v717
        %751 = vst.msk [vmem:[%s745 + $0x50] sm:$0xff] %vm277, %v718
        %752 = vst.msk [vmem:[%s745 + $0x68] sm:$0xff] %vm277, %v719
        %753 = vst.msk [vmem:[%s745 + $0x70] sm:$0xff] %vm277, %v720
        %754 = vst.msk [vmem:[%s745 + $0x88] sm:$0xff] %vm277, %v721
        %755 = vst.msk [vmem:[%s745 + $0x90] sm:$0xff] %vm277, %v722
        %756 = vst.msk [vmem:[%s745 + $0xa8] sm:$0xff] %vm277, %v723
        %757 = vst.msk [vmem:[%s745 + $0xb0] sm:$0xff] %vm277, %v724
        %758 = vst.msk [vmem:[%s745 + $0xc8] sm:$0xff] %vm277, %v725
        %759 = vst.msk [vmem:[%s745 + $0xd0] sm:$0xff] %vm277, %v726
        %760 = vst.msk [vmem:[%s745 + $0xe8] sm:$0xff] %vm277, %v727
        %761 = vst.msk [vmem:[%s745 + $0xf0] sm:$0xff] %vm277, %v728
        %762 = vst.msk [vmem:[%s745 + $0x108] sm:$0xff] %vm277, %v729
        %763 = vst.msk [vmem:[%s745 + $0x110] sm:$0xff] %vm277, %v730
        %764 = vst.msk [vmem:[%s745 + $0x128] sm:$0xff] %vm277, %v731
        %765 = vst.msk [vmem:[%s745 + $0x130] sm:$0xff] %vm277, %v732
        %766 = vst.msk [vmem:[%s745 + $0x148] sm:$0xff] %vm277, %v733
        %767 = vst.msk [vmem:[%s745 + $0x150] sm:$0xff] %vm277, %v734
        %768 = vst.msk [vmem:[%s745 + $0x168] sm:$0xff] %vm277, %v735
        %769 = vst.msk [vmem:[%s745 + $0x170] sm:$0xff] %vm277, %v736
        %770 = vst.msk [vmem:[%s745 + $0x188] sm:$0xff] %vm277, %v737
        %771 = vst.msk [vmem:[%s745 + $0x190] sm:$0xff] %vm277, %v738
        %772 = vst.msk [vmem:[%s745 + $0x1a8] sm:$0xff] %vm277, %v739
        %773 = vst.msk [vmem:[%s745 + $0x1b0] sm:$0xff] %vm277, %v740
        %774 = vst.msk [vmem:[%s745 + $0x1c8] sm:$0xff] %vm277, %v741
        %775 = vst.msk [vmem:[%s745 + $0x1d0] sm:$0xff] %vm277, %v742
        %776 = vst.msk [vmem:[%s745 + $0x1e8] sm:$0xff] %vm277, %v743
        %777 = vst.msk [vmem:[%s745 + $0x1f0] sm:$0xff] %vm277, %v744
        %v778 = vld [vmem:[%s2] sm:$0x1]
        %v780 = vperm.slane %v778, 0
        %v782 = vld [vmem:[#allocation2 + $0x7] sm:$0xff]
        %v783 = vld [vmem:[#allocation2 + $0xf] sm:$0xff]
        %v784 = vld [vmem:[#allocation2 + $0x27] sm:$0xff]
        %v785 = vld [vmem:[#allocation2 + $0x2f] sm:$0xff]
        %v786 = vld [vmem:[#allocation2 + $0x47] sm:$0xff]
        %v787 = vld [vmem:[#allocation2 + $0x4f] sm:$0xff]
        %v788 = vld [vmem:[#allocation2 + $0x67] sm:$0xff]
        %v789 = vld [vmem:[#allocation2 + $0x6f] sm:$0xff]
        %v790 = vld [vmem:[#allocation2 + $0x87] sm:$0xff]
        %v791 = vld [vmem:[#allocation2 + $0x8f] sm:$0xff]
        %v792 = vld [vmem:[#allocation2 + $0xa7] sm:$0xff]
        %v793 = vld [vmem:[#allocation2 + $0xaf] sm:$0xff]
        %v794 = vld [vmem:[#allocation2 + $0xc7] sm:$0xff]
        %v795 = vld [vmem:[#allocation2 + $0xcf] sm:$0xff]
        %v796 = vld [vmem:[#allocation2 + $0xe7] sm:$0xff]
        %v797 = vld [vmem:[#allocation2 + $0xef] sm:$0xff]
        %v798 = vld [vmem:[#allocation2 + $0x107] sm:$0xff]
        %v799 = vld [vmem:[#allocation2 + $0x10f] sm:$0xff]
        %v800 = vld [vmem:[#allocation2 + $0x127] sm:$0xff]
        %v801 = vld [vmem:[#allocation2 + $0x12f] sm:$0xff]
        %v802 = vld [vmem:[#allocation2 + $0x147] sm:$0xff]
        %v803 = vld [vmem:[#allocation2 + $0x14f] sm:$0xff]
        %v804 = vld [vmem:[#allocation2 + $0x167] sm:$0xff]
        %v805 = vld [vmem:[#allocation2 + $0x16f] sm:$0xff]
        %v806 = vld [vmem:[#allocation2 + $0x187] sm:$0xff]
        %v807 = vld [vmem:[#allocation2 + $0x18f] sm:$0xff]
        %v808 = vld [vmem:[#allocation2 + $0x1a7] sm:$0xff]
        %v809 = vld [vmem:[#allocation2 + $0x1af] sm:$0xff]
        %v810 = vld [vmem:[#allocation2 + $0x1c7] sm:$0xff]
        %v811 = vld [vmem:[#allocation2 + $0x1cf] sm:$0xff]
        %v812 = vld [vmem:[#allocation2 + $0x1e7] sm:$0xff]
        %v813 = vld [vmem:[#allocation2 + $0x1ef] sm:$0xff]
        %v814 = vld [vmem:[%s1] sm:$0x1]
        %816 = vset.pattern.permute.xlu0 0
        %817 = vperm.xlu0 %816, %v782
        %v818 = vpop.permute.xlu0 %817
        %821 = vset.pattern.permute.xlu0 0
        %822 = vperm.xlu0 %821, %v783
        %v823 = vpop.permute.xlu0 %822
        %826 = vset.pattern.permute.xlu0 0
        %827 = vperm.xlu0 %826, %v784
        %v828 = vpop.permute.xlu0 %827
        %831 = vset.pattern.permute.xlu0 0
        %832 = vperm.xlu0 %831, %v785
        %v833 = vpop.permute.xlu0 %832
        %836 = vset.pattern.permute.xlu0 0
        %837 = vperm.xlu0 %836, %v786
        %v838 = vpop.permute.xlu0 %837
        %841 = vset.pattern.permute.xlu0 0
        %842 = vperm.xlu0 %841, %v787
        %v843 = vpop.permute.xlu0 %842
        %846 = vset.pattern.permute.xlu0 0
        %847 = vperm.xlu0 %846, %v788
        %v848 = vpop.permute.xlu0 %847
        %851 = vset.pattern.permute.xlu0 0
        %852 = vperm.xlu0 %851, %v789
        %v853 = vpop.permute.xlu0 %852
        %856 = vset.pattern.permute.xlu0 0
        %857 = vperm.xlu0 %856, %v790
        %v858 = vpop.permute.xlu0 %857
        %861 = vset.pattern.permute.xlu0 0
        %862 = vperm.xlu0 %861, %v791
        %v863 = vpop.permute.xlu0 %862
        %866 = vset.pattern.permute.xlu0 0
        %867 = vperm.xlu0 %866, %v792
        %v868 = vpop.permute.xlu0 %867
        %871 = vset.pattern.permute.xlu0 0
        %872 = vperm.xlu0 %871, %v793
        %v873 = vpop.permute.xlu0 %872
        %876 = vset.pattern.permute.xlu0 0
        %877 = vperm.xlu0 %876, %v794
        %v878 = vpop.permute.xlu0 %877
        %881 = vset.pattern.permute.xlu0 0
        %882 = vperm.xlu0 %881, %v795
        %v883 = vpop.permute.xlu0 %882
        %886 = vset.pattern.permute.xlu0 0
        %887 = vperm.xlu0 %886, %v796
        %v888 = vpop.permute.xlu0 %887
        %891 = vset.pattern.permute.xlu0 0
        %892 = vperm.xlu0 %891, %v797
        %v893 = vpop.permute.xlu0 %892
        %896 = vset.pattern.permute.xlu0 0
        %897 = vperm.xlu0 %896, %v798
        %v898 = vpop.permute.xlu0 %897
        %901 = vset.pattern.permute.xlu0 0
        %902 = vperm.xlu0 %901, %v799
        %v903 = vpop.permute.xlu0 %902
        %906 = vset.pattern.permute.xlu0 0
        %907 = vperm.xlu0 %906, %v800
        %v908 = vpop.permute.xlu0 %907
        %911 = vset.pattern.permute.xlu0 0
        %912 = vperm.xlu0 %911, %v801
        %v913 = vpop.permute.xlu0 %912
        %916 = vset.pattern.permute.xlu0 0
        %917 = vperm.xlu0 %916, %v802
        %v918 = vpop.permute.xlu0 %917
        %921 = vset.pattern.permute.xlu0 0
        %922 = vperm.xlu0 %921, %v803
        %v923 = vpop.permute.xlu0 %922
        %926 = vset.pattern.permute.xlu0 0
        %927 = vperm.xlu0 %926, %v804
        %v928 = vpop.permute.xlu0 %927
        %931 = vset.pattern.permute.xlu0 0
        %932 = vperm.xlu0 %931, %v805
        %v933 = vpop.permute.xlu0 %932
        %936 = vset.pattern.permute.xlu0 0
        %937 = vperm.xlu0 %936, %v806
        %v938 = vpop.permute.xlu0 %937
        %941 = vset.pattern.permute.xlu0 0
        %942 = vperm.xlu0 %941, %v807
        %v943 = vpop.permute.xlu0 %942
        %946 = vset.pattern.permute.xlu0 0
        %947 = vperm.xlu0 %946, %v808
        %v948 = vpop.permute.xlu0 %947
        %951 = vset.pattern.permute.xlu0 0
        %952 = vperm.xlu0 %951, %v809
        %v953 = vpop.permute.xlu0 %952
        %956 = vset.pattern.permute.xlu0 0
        %957 = vperm.xlu0 %956, %v810
        %v958 = vpop.permute.xlu0 %957
        %961 = vset.pattern.permute.xlu0 0
        %962 = vperm.xlu0 %961, %v811
        %v963 = vpop.permute.xlu0 %962
        %966 = vset.pattern.permute.xlu0 0
        %967 = vperm.xlu0 %966, %v812
        %v968 = vpop.permute.xlu0 %967
        %971 = vset.pattern.permute.xlu0 0
        %972 = vperm.xlu0 %971, %v813
        %v973 = vpop.permute.xlu0 %972
        %v975 = vperm.slane %v814, 0
        %v976 = vmul.f32 %v818, %v975
        %v977 = vmul.f32 %v823, %v975
        %v978 = vmul.f32 %v828, %v975
        %v979 = vmul.f32 %v833, %v975
        %v980 = vmul.f32 %v838, %v975
        %v981 = vmul.f32 %v843, %v975
        %v982 = vmul.f32 %v848, %v975
        %v983 = vmul.f32 %v853, %v975
        %v984 = vmul.f32 %v858, %v975
        %v985 = vmul.f32 %v863, %v975
        %v986 = vmul.f32 %v868, %v975
        %v987 = vmul.f32 %v873, %v975
        %v988 = vmul.f32 %v878, %v975
        %v989 = vmul.f32 %v883, %v975
        %v990 = vmul.f32 %v888, %v975
        %v991 = vmul.f32 %v893, %v975
        %v992 = vmul.f32 %v898, %v975
        %v993 = vmul.f32 %v903, %v975
        %v994 = vmul.f32 %v908, %v975
        %v995 = vmul.f32 %v913, %v975
        %v996 = vmul.f32 %v918, %v975
        %v997 = vmul.f32 %v923, %v975
        %v998 = vmul.f32 %v928, %v975
        %v999 = vmul.f32 %v933, %v975
        %v1000 = vmul.f32 %v938, %v975
        %v1001 = vmul.f32 %v943, %v975
        %v1002 = vmul.f32 %v948, %v975
        %v1003 = vmul.f32 %v953, %v975
        %v1004 = vmul.f32 %v958, %v975
        %v1005 = vmul.f32 %v963, %v975
        %v1006 = vmul.f32 %v968, %v975
        %v1007 = vmul.f32 %v973, %v975
        %v1008 = vadd.f32 %v780, %v976
        %v1009 = vadd.f32 %v780, %v977
        %v1010 = vadd.f32 %v780, %v978
        %v1011 = vadd.f32 %v780, %v979
        %v1012 = vadd.f32 %v780, %v980
        %v1013 = vadd.f32 %v780, %v981
        %v1014 = vadd.f32 %v780, %v982
        %v1015 = vadd.f32 %v780, %v983
        %v1016 = vadd.f32 %v780, %v984
        %v1017 = vadd.f32 %v780, %v985
        %v1018 = vadd.f32 %v780, %v986
        %v1019 = vadd.f32 %v780, %v987
        %v1020 = vadd.f32 %v780, %v988
        %v1021 = vadd.f32 %v780, %v989
        %v1022 = vadd.f32 %v780, %v990
        %v1023 = vadd.f32 %v780, %v991
        %v1024 = vadd.f32 %v780, %v992
        %v1025 = vadd.f32 %v780, %v993
        %v1026 = vadd.f32 %v780, %v994
        %v1027 = vadd.f32 %v780, %v995
        %v1028 = vadd.f32 %v780, %v996
        %v1029 = vadd.f32 %v780, %v997
        %v1030 = vadd.f32 %v780, %v998
        %v1031 = vadd.f32 %v780, %v999
        %v1032 = vadd.f32 %v780, %v1000
        %v1033 = vadd.f32 %v780, %v1001
        %v1034 = vadd.f32 %v780, %v1002
        %v1035 = vadd.f32 %v780, %v1003
        %v1036 = vadd.f32 %v780, %v1004
        %v1037 = vadd.f32 %v780, %v1005
        %v1038 = vadd.f32 %v780, %v1006
        %v1039 = vadd.f32 %v780, %v1007
        %v1040 = vld [vmem:[#allocation2 + $0x8] sm:$0xff]
        %v1041 = vld [vmem:[#allocation2 + $0x10] sm:$0xff]
        %v1042 = vld [vmem:[#allocation2 + $0x28] sm:$0xff]
        %v1043 = vld [vmem:[#allocation2 + $0x30] sm:$0xff]
        %v1044 = vld [vmem:[#allocation2 + $0x48] sm:$0xff]
        %v1045 = vld [vmem:[#allocation2 + $0x50] sm:$0xff]
        %v1046 = vld [vmem:[#allocation2 + $0x68] sm:$0xff]
        %v1047 = vld [vmem:[#allocation2 + $0x70] sm:$0xff]
        %v1048 = vld [vmem:[#allocation2 + $0x88] sm:$0xff]
        %v1049 = vld [vmem:[#allocation2 + $0x90] sm:$0xff]
        %v1050 = vld [vmem:[#allocation2 + $0xa8] sm:$0xff]
        %v1051 = vld [vmem:[#allocation2 + $0xb0] sm:$0xff]
        %v1052 = vld [vmem:[#allocation2 + $0xc8] sm:$0xff]
        %v1053 = vld [vmem:[#allocation2 + $0xd0] sm:$0xff]
        %v1054 = vld [vmem:[#allocation2 + $0xe8] sm:$0xff]
        %v1055 = vld [vmem:[#allocation2 + $0xf0] sm:$0xff]
        %v1056 = vld [vmem:[#allocation2 + $0x108] sm:$0xff]
        %v1057 = vld [vmem:[#allocation2 + $0x110] sm:$0xff]
        %v1058 = vld [vmem:[#allocation2 + $0x128] sm:$0xff]
        %v1059 = vld [vmem:[#allocation2 + $0x130] sm:$0xff]
        %v1060 = vld [vmem:[#allocation2 + $0x148] sm:$0xff]
        %v1061 = vld [vmem:[#allocation2 + $0x150] sm:$0xff]
        %v1062 = vld [vmem:[#allocation2 + $0x168] sm:$0xff]
        %v1063 = vld [vmem:[#allocation2 + $0x170] sm:$0xff]
        %v1064 = vld [vmem:[#allocation2 + $0x188] sm:$0xff]
        %v1065 = vld [vmem:[#allocation2 + $0x190] sm:$0xff]
        %v1066 = vld [vmem:[#allocation2 + $0x1a8] sm:$0xff]
        %v1067 = vld [vmem:[#allocation2 + $0x1b0] sm:$0xff]
        %v1068 = vld [vmem:[#allocation2 + $0x1c8] sm:$0xff]
        %v1069 = vld [vmem:[#allocation2 + $0x1d0] sm:$0xff]
        %v1070 = vld [vmem:[#allocation2 + $0x1e8] sm:$0xff]
        %v1071 = vld [vmem:[#allocation2 + $0x1f0] sm:$0xff]
        %v1072 = vld [vmem:[%s1 + $0x1] sm:$0x1]
        %1074 = vset.pattern.permute.xlu0 0
        %1075 = vperm.xlu0 %1074, %v1040
        %v1076 = vpop.permute.xlu0 %1075
        %1079 = vset.pattern.permute.xlu0 0
        %1080 = vperm.xlu0 %1079, %v1041
        %v1081 = vpop.permute.xlu0 %1080
        %1084 = vset.pattern.permute.xlu0 0
        %1085 = vperm.xlu0 %1084, %v1042
        %v1086 = vpop.permute.xlu0 %1085
        %1089 = vset.pattern.permute.xlu0 0
        %1090 = vperm.xlu0 %1089, %v1043
        %v1091 = vpop.permute.xlu0 %1090
        %1094 = vset.pattern.permute.xlu0 0
        %1095 = vperm.xlu0 %1094, %v1044
        %v1096 = vpop.permute.xlu0 %1095
        %1099 = vset.pattern.permute.xlu0 0
        %1100 = vperm.xlu0 %1099, %v1045
        %v1101 = vpop.permute.xlu0 %1100
        %1104 = vset.pattern.permute.xlu0 0
        %1105 = vperm.xlu0 %1104, %v1046
        %v1106 = vpop.permute.xlu0 %1105
        %1109 = vset.pattern.permute.xlu0 0
        %1110 = vperm.xlu0 %1109, %v1047
        %v1111 = vpop.permute.xlu0 %1110
        %1114 = vset.pattern.permute.xlu0 0
        %1115 = vperm.xlu0 %1114, %v1048
        %v1116 = vpop.permute.xlu0 %1115
        %1119 = vset.pattern.permute.xlu0 0
        %1120 = vperm.xlu0 %1119, %v1049
        %v1121 = vpop.permute.xlu0 %1120
        %1124 = vset.pattern.permute.xlu0 0
        %1125 = vperm.xlu0 %1124, %v1050
        %v1126 = vpop.permute.xlu0 %1125
        %1129 = vset.pattern.permute.xlu0 0
        %1130 = vperm.xlu0 %1129, %v1051
        %v1131 = vpop.permute.xlu0 %1130
        %1134 = vset.pattern.permute.xlu0 0
        %1135 = vperm.xlu0 %1134, %v1052
        %v1136 = vpop.permute.xlu0 %1135
        %1139 = vset.pattern.permute.xlu0 0
        %1140 = vperm.xlu0 %1139, %v1053
        %v1141 = vpop.permute.xlu0 %1140
        %1144 = vset.pattern.permute.xlu0 0
        %1145 = vperm.xlu0 %1144, %v1054
        %v1146 = vpop.permute.xlu0 %1145
        %1149 = vset.pattern.permute.xlu0 0
        %1150 = vperm.xlu0 %1149, %v1055
        %v1151 = vpop.permute.xlu0 %1150
        %1154 = vset.pattern.permute.xlu0 0
        %1155 = vperm.xlu0 %1154, %v1056
        %v1156 = vpop.permute.xlu0 %1155
        %1159 = vset.pattern.permute.xlu0 0
        %1160 = vperm.xlu0 %1159, %v1057
        %v1161 = vpop.permute.xlu0 %1160
        %1164 = vset.pattern.permute.xlu0 0
        %1165 = vperm.xlu0 %1164, %v1058
        %v1166 = vpop.permute.xlu0 %1165
        %1169 = vset.pattern.permute.xlu0 0
        %1170 = vperm.xlu0 %1169, %v1059
        %v1171 = vpop.permute.xlu0 %1170
        %1174 = vset.pattern.permute.xlu0 0
        %1175 = vperm.xlu0 %1174, %v1060
        %v1176 = vpop.permute.xlu0 %1175
        %1179 = vset.pattern.permute.xlu0 0
        %1180 = vperm.xlu0 %1179, %v1061
        %v1181 = vpop.permute.xlu0 %1180
        %1184 = vset.pattern.permute.xlu0 0
        %1185 = vperm.xlu0 %1184, %v1062
        %v1186 = vpop.permute.xlu0 %1185
        %1189 = vset.pattern.permute.xlu0 0
        %1190 = vperm.xlu0 %1189, %v1063
        %v1191 = vpop.permute.xlu0 %1190
        %1194 = vset.pattern.permute.xlu0 0
        %1195 = vperm.xlu0 %1194, %v1064
        %v1196 = vpop.permute.xlu0 %1195
        %1199 = vset.pattern.permute.xlu0 0
        %1200 = vperm.xlu0 %1199, %v1065
        %v1201 = vpop.permute.xlu0 %1200
        %1204 = vset.pattern.permute.xlu0 0
        %1205 = vperm.xlu0 %1204, %v1066
        %v1206 = vpop.permute.xlu0 %1205
        %1209 = vset.pattern.permute.xlu0 0
        %1210 = vperm.xlu0 %1209, %v1067
        %v1211 = vpop.permute.xlu0 %1210
        %1214 = vset.pattern.permute.xlu0 0
        %1215 = vperm.xlu0 %1214, %v1068
        %v1216 = vpop.permute.xlu0 %1215
        %1219 = vset.pattern.permute.xlu0 0
        %1220 = vperm.xlu0 %1219, %v1069
        %v1221 = vpop.permute.xlu0 %1220
        %1224 = vset.pattern.permute.xlu0 0
        %1225 = vperm.xlu0 %1224, %v1070
        %v1226 = vpop.permute.xlu0 %1225
        %1229 = vset.pattern.permute.xlu0 0
        %1230 = vperm.xlu0 %1229, %v1071
        %v1231 = vpop.permute.xlu0 %1230
        %v1233 = vperm.slane %v1072, 0
        %v1234 = vmul.f32 %v1076, %v1233
        %v1235 = vmul.f32 %v1081, %v1233
        %v1236 = vmul.f32 %v1086, %v1233
        %v1237 = vmul.f32 %v1091, %v1233
        %v1238 = vmul.f32 %v1096, %v1233
        %v1239 = vmul.f32 %v1101, %v1233
        %v1240 = vmul.f32 %v1106, %v1233
        %v1241 = vmul.f32 %v1111, %v1233
        %v1242 = vmul.f32 %v1116, %v1233
        %v1243 = vmul.f32 %v1121, %v1233
        %v1244 = vmul.f32 %v1126, %v1233
        %v1245 = vmul.f32 %v1131, %v1233
        %v1246 = vmul.f32 %v1136, %v1233
        %v1247 = vmul.f32 %v1141, %v1233
        %v1248 = vmul.f32 %v1146, %v1233
        %v1249 = vmul.f32 %v1151, %v1233
        %v1250 = vmul.f32 %v1156, %v1233
        %v1251 = vmul.f32 %v1161, %v1233
        %v1252 = vmul.f32 %v1166, %v1233
        %v1253 = vmul.f32 %v1171, %v1233
        %v1254 = vmul.f32 %v1176, %v1233
        %v1255 = vmul.f32 %v1181, %v1233
        %v1256 = vmul.f32 %v1186, %v1233
        %v1257 = vmul.f32 %v1191, %v1233
        %v1258 = vmul.f32 %v1196, %v1233
        %v1259 = vmul.f32 %v1201, %v1233
        %v1260 = vmul.f32 %v1206, %v1233
        %v1261 = vmul.f32 %v1211, %v1233
        %v1262 = vmul.f32 %v1216, %v1233
        %v1263 = vmul.f32 %v1221, %v1233
        %v1264 = vmul.f32 %v1226, %v1233
        %v1265 = vmul.f32 %v1231, %v1233
        %v1266 = vadd.f32 %v1008, %v1234
        %v1267 = vadd.f32 %v1009, %v1235
        %v1268 = vadd.f32 %v1010, %v1236
        %v1269 = vadd.f32 %v1011, %v1237
        %v1270 = vadd.f32 %v1012, %v1238
        %v1271 = vadd.f32 %v1013, %v1239
        %v1272 = vadd.f32 %v1014, %v1240
        %v1273 = vadd.f32 %v1015, %v1241
        %v1274 = vadd.f32 %v1016, %v1242
        %v1275 = vadd.f32 %v1017, %v1243
        %v1276 = vadd.f32 %v1018, %v1244
        %v1277 = vadd.f32 %v1019, %v1245
        %v1278 = vadd.f32 %v1020, %v1246
        %v1279 = vadd.f32 %v1021, %v1247
        %v1280 = vadd.f32 %v1022, %v1248
        %v1281 = vadd.f32 %v1023, %v1249
        %v1282 = vadd.f32 %v1024, %v1250
        %v1283 = vadd.f32 %v1025, %v1251
        %v1284 = vadd.f32 %v1026, %v1252
        %v1285 = vadd.f32 %v1027, %v1253
        %v1286 = vadd.f32 %v1028, %v1254
        %v1287 = vadd.f32 %v1029, %v1255
        %v1288 = vadd.f32 %v1030, %v1256
        %v1289 = vadd.f32 %v1031, %v1257
        %v1290 = vadd.f32 %v1032, %v1258
        %v1291 = vadd.f32 %v1033, %v1259
        %v1292 = vadd.f32 %v1034, %v1260
        %v1293 = vadd.f32 %v1035, %v1261
        %v1294 = vadd.f32 %v1036, %v1262
        %v1295 = vadd.f32 %v1037, %v1263
        %v1296 = vadd.f32 %v1038, %v1264
        %v1297 = vadd.f32 %v1039, %v1265
        %v1298 = vld [vmem:[#allocation2 + $0x9] sm:$0xff]
        %v1299 = vld [vmem:[#allocation2 + $0x11] sm:$0xff]
        %v1300 = vld [vmem:[#allocation2 + $0x29] sm:$0xff]
        %v1301 = vld [vmem:[#allocation2 + $0x31] sm:$0xff]
        %v1302 = vld [vmem:[#allocation2 + $0x49] sm:$0xff]
        %v1303 = vld [vmem:[#allocation2 + $0x51] sm:$0xff]
        %v1304 = vld [vmem:[#allocation2 + $0x69] sm:$0xff]
        %v1305 = vld [vmem:[#allocation2 + $0x71] sm:$0xff]
        %v1306 = vld [vmem:[#allocation2 + $0x89] sm:$0xff]
        %v1307 = vld [vmem:[#allocation2 + $0x91] sm:$0xff]
        %v1308 = vld [vmem:[#allocation2 + $0xa9] sm:$0xff]
        %v1309 = vld [vmem:[#allocation2 + $0xb1] sm:$0xff]
        %v1310 = vld [vmem:[#allocation2 + $0xc9] sm:$0xff]
        %v1311 = vld [vmem:[#allocation2 + $0xd1] sm:$0xff]
        %v1312 = vld [vmem:[#allocation2 + $0xe9] sm:$0xff]
        %v1313 = vld [vmem:[#allocation2 + $0xf1] sm:$0xff]
        %v1314 = vld [vmem:[#allocation2 + $0x109] sm:$0xff]
        %v1315 = vld [vmem:[#allocation2 + $0x111] sm:$0xff]
        %v1316 = vld [vmem:[#allocation2 + $0x129] sm:$0xff]
        %v1317 = vld [vmem:[#allocation2 + $0x131] sm:$0xff]
        %v1318 = vld [vmem:[#allocation2 + $0x149] sm:$0xff]
        %v1319 = vld [vmem:[#allocation2 + $0x151] sm:$0xff]
        %v1320 = vld [vmem:[#allocation2 + $0x169] sm:$0xff]
        %v1321 = vld [vmem:[#allocation2 + $0x171] sm:$0xff]
        %v1322 = vld [vmem:[#allocation2 + $0x189] sm:$0xff]
        %v1323 = vld [vmem:[#allocation2 + $0x191] sm:$0xff]
        %v1324 = vld [vmem:[#allocation2 + $0x1a9] sm:$0xff]
        %v1325 = vld [vmem:[#allocation2 + $0x1b1] sm:$0xff]
        %v1326 = vld [vmem:[#allocation2 + $0x1c9] sm:$0xff]
        %v1327 = vld [vmem:[#allocation2 + $0x1d1] sm:$0xff]
        %v1328 = vld [vmem:[#allocation2 + $0x1e9] sm:$0xff]
        %v1329 = vld [vmem:[#allocation2 + $0x1f1] sm:$0xff]
        %v1330 = vld [vmem:[%s1 + $0x2] sm:$0x1]
        %1332 = vset.pattern.permute.xlu0 0
        %1333 = vperm.xlu0 %1332, %v1298
        %v1334 = vpop.permute.xlu0 %1333
        %1337 = vset.pattern.permute.xlu0 0
        %1338 = vperm.xlu0 %1337, %v1299
        %v1339 = vpop.permute.xlu0 %1338
        %1342 = vset.pattern.permute.xlu0 0
        %1343 = vperm.xlu0 %1342, %v1300
        %v1344 = vpop.permute.xlu0 %1343
        %1347 = vset.pattern.permute.xlu0 0
        %1348 = vperm.xlu0 %1347, %v1301
        %v1349 = vpop.permute.xlu0 %1348
        %1352 = vset.pattern.permute.xlu0 0
        %1353 = vperm.xlu0 %1352, %v1302
        %v1354 = vpop.permute.xlu0 %1353
        %1357 = vset.pattern.permute.xlu0 0
        %1358 = vperm.xlu0 %1357, %v1303
        %v1359 = vpop.permute.xlu0 %1358
        %1362 = vset.pattern.permute.xlu0 0
        %1363 = vperm.xlu0 %1362, %v1304
        %v1364 = vpop.permute.xlu0 %1363
        %1367 = vset.pattern.permute.xlu0 0
        %1368 = vperm.xlu0 %1367, %v1305
        %v1369 = vpop.permute.xlu0 %1368
        %1372 = vset.pattern.permute.xlu0 0
        %1373 = vperm.xlu0 %1372, %v1306
        %v1374 = vpop.permute.xlu0 %1373
        %1377 = vset.pattern.permute.xlu0 0
        %1378 = vperm.xlu0 %1377, %v1307
        %v1379 = vpop.permute.xlu0 %1378
        %1382 = vset.pattern.permute.xlu0 0
        %1383 = vperm.xlu0 %1382, %v1308
        %v1384 = vpop.permute.xlu0 %1383
        %1387 = vset.pattern.permute.xlu0 0
        %1388 = vperm.xlu0 %1387, %v1309
        %v1389 = vpop.permute.xlu0 %1388
        %1392 = vset.pattern.permute.xlu0 0
        %1393 = vperm.xlu0 %1392, %v1310
        %v1394 = vpop.permute.xlu0 %1393
        %1397 = vset.pattern.permute.xlu0 0
        %1398 = vperm.xlu0 %1397, %v1311
        %v1399 = vpop.permute.xlu0 %1398
        %1402 = vset.pattern.permute.xlu0 0
        %1403 = vperm.xlu0 %1402, %v1312
        %v1404 = vpop.permute.xlu0 %1403
        %1407 = vset.pattern.permute.xlu0 0
        %1408 = vperm.xlu0 %1407, %v1313
        %v1409 = vpop.permute.xlu0 %1408
        %1412 = vset.pattern.permute.xlu0 0
        %1413 = vperm.xlu0 %1412, %v1314
        %v1414 = vpop.permute.xlu0 %1413
        %1417 = vset.pattern.permute.xlu0 0
        %1418 = vperm.xlu0 %1417, %v1315
        %v1419 = vpop.permute.xlu0 %1418
        %1422 = vset.pattern.permute.xlu0 0
        %1423 = vperm.xlu0 %1422, %v1316
        %v1424 = vpop.permute.xlu0 %1423
        %1427 = vset.pattern.permute.xlu0 0
        %1428 = vperm.xlu0 %1427, %v1317
        %v1429 = vpop.permute.xlu0 %1428
        %1432 = vset.pattern.permute.xlu0 0
        %1433 = vperm.xlu0 %1432, %v1318
        %v1434 = vpop.permute.xlu0 %1433
        %1437 = vset.pattern.permute.xlu0 0
        %1438 = vperm.xlu0 %1437, %v1319
        %v1439 = vpop.permute.xlu0 %1438
        %1442 = vset.pattern.permute.xlu0 0
        %1443 = vperm.xlu0 %1442, %v1320
        %v1444 = vpop.permute.xlu0 %1443
        %1447 = vset.pattern.permute.xlu0 0
        %1448 = vperm.xlu0 %1447, %v1321
        %v1449 = vpop.permute.xlu0 %1448
        %1452 = vset.pattern.permute.xlu0 0
        %1453 = vperm.xlu0 %1452, %v1322
        %v1454 = vpop.permute.xlu0 %1453
        %1457 = vset.pattern.permute.xlu0 0
        %1458 = vperm.xlu0 %1457, %v1323
        %v1459 = vpop.permute.xlu0 %1458
        %1462 = vset.pattern.permute.xlu0 0
        %1463 = vperm.xlu0 %1462, %v1324
        %v1464 = vpop.permute.xlu0 %1463
        %1467 = vset.pattern.permute.xlu0 0
        %1468 = vperm.xlu0 %1467, %v1325
        %v1469 = vpop.permute.xlu0 %1468
        %1472 = vset.pattern.permute.xlu0 0
        %1473 = vperm.xlu0 %1472, %v1326
        %v1474 = vpop.permute.xlu0 %1473
        %1477 = vset.pattern.permute.xlu0 0
        %1478 = vperm.xlu0 %1477, %v1327
        %v1479 = vpop.permute.xlu0 %1478
        %1482 = vset.pattern.permute.xlu0 0
        %1483 = vperm.xlu0 %1482, %v1328
        %v1484 = vpop.permute.xlu0 %1483
        %1487 = vset.pattern.permute.xlu0 0
        %1488 = vperm.xlu0 %1487, %v1329
        %v1489 = vpop.permute.xlu0 %1488
        %v1491 = vperm.slane %v1330, 0
        %v1492 = vmul.f32 %v1334, %v1491
        %v1493 = vmul.f32 %v1339, %v1491
        %v1494 = vmul.f32 %v1344, %v1491
        %v1495 = vmul.f32 %v1349, %v1491
        %v1496 = vmul.f32 %v1354, %v1491
        %v1497 = vmul.f32 %v1359, %v1491
        %v1498 = vmul.f32 %v1364, %v1491
        %v1499 = vmul.f32 %v1369, %v1491
        %v1500 = vmul.f32 %v1374, %v1491
        %v1501 = vmul.f32 %v1379, %v1491
        %v1502 = vmul.f32 %v1384, %v1491
        %v1503 = vmul.f32 %v1389, %v1491
        %v1504 = vmul.f32 %v1394, %v1491
        %v1505 = vmul.f32 %v1399, %v1491
        %v1506 = vmul.f32 %v1404, %v1491
        %v1507 = vmul.f32 %v1409, %v1491
        %v1508 = vmul.f32 %v1414, %v1491
        %v1509 = vmul.f32 %v1419, %v1491
        %v1510 = vmul.f32 %v1424, %v1491
        %v1511 = vmul.f32 %v1429, %v1491
        %v1512 = vmul.f32 %v1434, %v1491
        %v1513 = vmul.f32 %v1439, %v1491
        %v1514 = vmul.f32 %v1444, %v1491
        %v1515 = vmul.f32 %v1449, %v1491
        %v1516 = vmul.f32 %v1454, %v1491
        %v1517 = vmul.f32 %v1459, %v1491
        %v1518 = vmul.f32 %v1464, %v1491
        %v1519 = vmul.f32 %v1469, %v1491
        %v1520 = vmul.f32 %v1474, %v1491
        %v1521 = vmul.f32 %v1479, %v1491
        %v1522 = vmul.f32 %v1484, %v1491
        %v1523 = vmul.f32 %v1489, %v1491
        %v1524 = vadd.f32 %v1266, %v1492
        %v1525 = vadd.f32 %v1267, %v1493
        %v1526 = vadd.f32 %v1268, %v1494
        %v1527 = vadd.f32 %v1269, %v1495
        %v1528 = vadd.f32 %v1270, %v1496
        %v1529 = vadd.f32 %v1271, %v1497
        %v1530 = vadd.f32 %v1272, %v1498
        %v1531 = vadd.f32 %v1273, %v1499
        %v1532 = vadd.f32 %v1274, %v1500
        %v1533 = vadd.f32 %v1275, %v1501
        %v1534 = vadd.f32 %v1276, %v1502
        %v1535 = vadd.f32 %v1277, %v1503
        %v1536 = vadd.f32 %v1278, %v1504
        %v1537 = vadd.f32 %v1279, %v1505
        %v1538 = vadd.f32 %v1280, %v1506
        %v1539 = vadd.f32 %v1281, %v1507
        %v1540 = vadd.f32 %v1282, %v1508
        %v1541 = vadd.f32 %v1283, %v1509
        %v1542 = vadd.f32 %v1284, %v1510
        %v1543 = vadd.f32 %v1285, %v1511
        %v1544 = vadd.f32 %v1286, %v1512
        %v1545 = vadd.f32 %v1287, %v1513
        %v1546 = vadd.f32 %v1288, %v1514
        %v1547 = vadd.f32 %v1289, %v1515
        %v1548 = vadd.f32 %v1290, %v1516
        %v1549 = vadd.f32 %v1291, %v1517
        %v1550 = vadd.f32 %v1292, %v1518
        %v1551 = vadd.f32 %v1293, %v1519
        %v1552 = vadd.f32 %v1294, %v1520
        %v1553 = vadd.f32 %v1295, %v1521
        %v1554 = vadd.f32 %v1296, %v1522
        %v1555 = vadd.f32 %v1297, %v1523
        %v1556 = vld [vmem:[%s745 + $0x7] sm:$0xff]
        %v1557 = vld [vmem:[%s745 + $0xf] sm:$0xff]
        %v1558 = vld [vmem:[%s745 + $0x27] sm:$0xff]
        %v1559 = vld [vmem:[%s745 + $0x2f] sm:$0xff]
        %v1560 = vld [vmem:[%s745 + $0x47] sm:$0xff]
        %v1561 = vld [vmem:[%s745 + $0x4f] sm:$0xff]
        %v1562 = vld [vmem:[%s745 + $0x67] sm:$0xff]
        %v1563 = vld [vmem:[%s745 + $0x6f] sm:$0xff]
        %v1564 = vld [vmem:[%s745 + $0x87] sm:$0xff]
        %v1565 = vld [vmem:[%s745 + $0x8f] sm:$0xff]
        %v1566 = vld [vmem:[%s745 + $0xa7] sm:$0xff]
        %v1567 = vld [vmem:[%s745 + $0xaf] sm:$0xff]
        %v1568 = vld [vmem:[%s745 + $0xc7] sm:$0xff]
        %v1569 = vld [vmem:[%s745 + $0xcf] sm:$0xff]
        %v1570 = vld [vmem:[%s745 + $0xe7] sm:$0xff]
        %v1571 = vld [vmem:[%s745 + $0xef] sm:$0xff]
        %v1572 = vld [vmem:[%s745 + $0x107] sm:$0xff]
        %v1573 = vld [vmem:[%s745 + $0x10f] sm:$0xff]
        %v1574 = vld [vmem:[%s745 + $0x127] sm:$0xff]
        %v1575 = vld [vmem:[%s745 + $0x12f] sm:$0xff]
        %v1576 = vld [vmem:[%s745 + $0x147] sm:$0xff]
        %v1577 = vld [vmem:[%s745 + $0x14f] sm:$0xff]
        %v1578 = vld [vmem:[%s745 + $0x167] sm:$0xff]
        %v1579 = vld [vmem:[%s745 + $0x16f] sm:$0xff]
        %v1580 = vld [vmem:[%s745 + $0x187] sm:$0xff]
        %v1581 = vld [vmem:[%s745 + $0x18f] sm:$0xff]
        %v1582 = vld [vmem:[%s745 + $0x1a7] sm:$0xff]
        %v1583 = vld [vmem:[%s745 + $0x1af] sm:$0xff]
        %v1584 = vld [vmem:[%s745 + $0x1c7] sm:$0xff]
        %v1585 = vld [vmem:[%s745 + $0x1cf] sm:$0xff]
        %v1586 = vld [vmem:[%s745 + $0x1e7] sm:$0xff]
        %v1587 = vld [vmem:[%s745 + $0x1ef] sm:$0xff]
        %v1588 = vld [vmem:[%s1 + $0x3] sm:$0x1]
        %1590 = vset.pattern.permute.xlu0 0
        %1591 = vperm.xlu0 %1590, %v1556
        %v1592 = vpop.permute.xlu0 %1591
        %1595 = vset.pattern.permute.xlu0 0
        %1596 = vperm.xlu0 %1595, %v1557
        %v1597 = vpop.permute.xlu0 %1596
        %1600 = vset.pattern.permute.xlu0 0
        %1601 = vperm.xlu0 %1600, %v1558
        %v1602 = vpop.permute.xlu0 %1601
        %1605 = vset.pattern.permute.xlu0 0
        %1606 = vperm.xlu0 %1605, %v1559
        %v1607 = vpop.permute.xlu0 %1606
        %1610 = vset.pattern.permute.xlu0 0
        %1611 = vperm.xlu0 %1610, %v1560
        %v1612 = vpop.permute.xlu0 %1611
        %1615 = vset.pattern.permute.xlu0 0
        %1616 = vperm.xlu0 %1615, %v1561
        %v1617 = vpop.permute.xlu0 %1616
        %1620 = vset.pattern.permute.xlu0 0
        %1621 = vperm.xlu0 %1620, %v1562
        %v1622 = vpop.permute.xlu0 %1621
        %1625 = vset.pattern.permute.xlu0 0
        %1626 = vperm.xlu0 %1625, %v1563
        %v1627 = vpop.permute.xlu0 %1626
        %1630 = vset.pattern.permute.xlu0 0
        %1631 = vperm.xlu0 %1630, %v1564
        %v1632 = vpop.permute.xlu0 %1631
        %1635 = vset.pattern.permute.xlu0 0
        %1636 = vperm.xlu0 %1635, %v1565
        %v1637 = vpop.permute.xlu0 %1636
        %1640 = vset.pattern.permute.xlu0 0
        %1641 = vperm.xlu0 %1640, %v1566
        %v1642 = vpop.permute.xlu0 %1641
        %1645 = vset.pattern.permute.xlu0 0
        %1646 = vperm.xlu0 %1645, %v1567
        %v1647 = vpop.permute.xlu0 %1646
        %1650 = vset.pattern.permute.xlu0 0
        %1651 = vperm.xlu0 %1650, %v1568
        %v1652 = vpop.permute.xlu0 %1651
        %1655 = vset.pattern.permute.xlu0 0
        %1656 = vperm.xlu0 %1655, %v1569
        %v1657 = vpop.permute.xlu0 %1656
        %1660 = vset.pattern.permute.xlu0 0
        %1661 = vperm.xlu0 %1660, %v1570
        %v1662 = vpop.permute.xlu0 %1661
        %1665 = vset.pattern.permute.xlu0 0
        %1666 = vperm.xlu0 %1665, %v1571
        %v1667 = vpop.permute.xlu0 %1666
        %1670 = vset.pattern.permute.xlu0 0
        %1671 = vperm.xlu0 %1670, %v1572
        %v1672 = vpop.permute.xlu0 %1671
        %1675 = vset.pattern.permute.xlu0 0
        %1676 = vperm.xlu0 %1675, %v1573
        %v1677 = vpop.permute.xlu0 %1676
        %1680 = vset.pattern.permute.xlu0 0
        %1681 = vperm.xlu0 %1680, %v1574
        %v1682 = vpop.permute.xlu0 %1681
        %1685 = vset.pattern.permute.xlu0 0
        %1686 = vperm.xlu0 %1685, %v1575
        %v1687 = vpop.permute.xlu0 %1686
        %1690 = vset.pattern.permute.xlu0 0
        %1691 = vperm.xlu0 %1690, %v1576
        %v1692 = vpop.permute.xlu0 %1691
        %1695 = vset.pattern.permute.xlu0 0
        %1696 = vperm.xlu0 %1695, %v1577
        %v1697 = vpop.permute.xlu0 %1696
        %1700 = vset.pattern.permute.xlu0 0
        %1701 = vperm.xlu0 %1700, %v1578
        %v1702 = vpop.permute.xlu0 %1701
        %1705 = vset.pattern.permute.xlu0 0
        %1706 = vperm.xlu0 %1705, %v1579
        %v1707 = vpop.permute.xlu0 %1706
        %1710 = vset.pattern.permute.xlu0 0
        %1711 = vperm.xlu0 %1710, %v1580
        %v1712 = vpop.permute.xlu0 %1711
        %1715 = vset.pattern.permute.xlu0 0
        %1716 = vperm.xlu0 %1715, %v1581
        %v1717 = vpop.permute.xlu0 %1716
        %1720 = vset.pattern.permute.xlu0 0
        %1721 = vperm.xlu0 %1720, %v1582
        %v1722 = vpop.permute.xlu0 %1721
        %1725 = vset.pattern.permute.xlu0 0
        %1726 = vperm.xlu0 %1725, %v1583
        %v1727 = vpop.permute.xlu0 %1726
        %1730 = vset.pattern.permute.xlu0 0
        %1731 = vperm.xlu0 %1730, %v1584
        %v1732 = vpop.permute.xlu0 %1731
        %1735 = vset.pattern.permute.xlu0 0
        %1736 = vperm.xlu0 %1735, %v1585
        %v1737 = vpop.permute.xlu0 %1736
        %1740 = vset.pattern.permute.xlu0 0
        %1741 = vperm.xlu0 %1740, %v1586
        %v1742 = vpop.permute.xlu0 %1741
        %1745 = vset.pattern.permute.xlu0 0
        %1746 = vperm.xlu0 %1745, %v1587
        %v1747 = vpop.permute.xlu0 %1746
        %v1749 = vperm.slane %v1588, 0
        %v1750 = vmul.f32 %v1592, %v1749
        %v1751 = vmul.f32 %v1597, %v1749
        %v1752 = vmul.f32 %v1602, %v1749
        %v1753 = vmul.f32 %v1607, %v1749
        %v1754 = vmul.f32 %v1612, %v1749
        %v1755 = vmul.f32 %v1617, %v1749
        %v1756 = vmul.f32 %v1622, %v1749
        %v1757 = vmul.f32 %v1627, %v1749
        %v1758 = vmul.f32 %v1632, %v1749
        %v1759 = vmul.f32 %v1637, %v1749
        %v1760 = vmul.f32 %v1642, %v1749
        %v1761 = vmul.f32 %v1647, %v1749
        %v1762 = vmul.f32 %v1652, %v1749
        %v1763 = vmul.f32 %v1657, %v1749
        %v1764 = vmul.f32 %v1662, %v1749
        %v1765 = vmul.f32 %v1667, %v1749
        %v1766 = vmul.f32 %v1672, %v1749
        %v1767 = vmul.f32 %v1677, %v1749
        %v1768 = vmul.f32 %v1682, %v1749
        %v1769 = vmul.f32 %v1687, %v1749
        %v1770 = vmul.f32 %v1692, %v1749
        %v1771 = vmul.f32 %v1697, %v1749
        %v1772 = vmul.f32 %v1702, %v1749
        %v1773 = vmul.f32 %v1707, %v1749
        %v1774 = vmul.f32 %v1712, %v1749
        %v1775 = vmul.f32 %v1717, %v1749
        %v1776 = vmul.f32 %v1722, %v1749
        %v1777 = vmul.f32 %v1727, %v1749
        %v1778 = vmul.f32 %v1732, %v1749
        %v1779 = vmul.f32 %v1737, %v1749
        %v1780 = vmul.f32 %v1742, %v1749
        %v1781 = vmul.f32 %v1747, %v1749
        %v1782 = vadd.f32 %v1524, %v1750
        %v1783 = vadd.f32 %v1525, %v1751
        %v1784 = vadd.f32 %v1526, %v1752
        %v1785 = vadd.f32 %v1527, %v1753
        %v1786 = vadd.f32 %v1528, %v1754
        %v1787 = vadd.f32 %v1529, %v1755
        %v1788 = vadd.f32 %v1530, %v1756
        %v1789 = vadd.f32 %v1531, %v1757
        %v1790 = vadd.f32 %v1532, %v1758
        %v1791 = vadd.f32 %v1533, %v1759
        %v1792 = vadd.f32 %v1534, %v1760
        %v1793 = vadd.f32 %v1535, %v1761
        %v1794 = vadd.f32 %v1536, %v1762
        %v1795 = vadd.f32 %v1537, %v1763
        %v1796 = vadd.f32 %v1538, %v1764
        %v1797 = vadd.f32 %v1539, %v1765
        %v1798 = vadd.f32 %v1540, %v1766
        %v1799 = vadd.f32 %v1541, %v1767
        %v1800 = vadd.f32 %v1542, %v1768
        %v1801 = vadd.f32 %v1543, %v1769
        %v1802 = vadd.f32 %v1544, %v1770
        %v1803 = vadd.f32 %v1545, %v1771
        %v1804 = vadd.f32 %v1546, %v1772
        %v1805 = vadd.f32 %v1547, %v1773
        %v1806 = vadd.f32 %v1548, %v1774
        %v1807 = vadd.f32 %v1549, %v1775
        %v1808 = vadd.f32 %v1550, %v1776
        %v1809 = vadd.f32 %v1551, %v1777
        %v1810 = vadd.f32 %v1552, %v1778
        %v1811 = vadd.f32 %v1553, %v1779
        %v1812 = vadd.f32 %v1554, %v1780
        %v1813 = vadd.f32 %v1555, %v1781
        %v1814 = vld [vmem:[%s745 + $0x8] sm:$0xff]
        %v1815 = vld [vmem:[%s745 + $0x10] sm:$0xff]
        %v1816 = vld [vmem:[%s745 + $0x28] sm:$0xff]
        %v1817 = vld [vmem:[%s745 + $0x30] sm:$0xff]
        %v1818 = vld [vmem:[%s745 + $0x48] sm:$0xff]
        %v1819 = vld [vmem:[%s745 + $0x50] sm:$0xff]
        %v1820 = vld [vmem:[%s745 + $0x68] sm:$0xff]
        %v1821 = vld [vmem:[%s745 + $0x70] sm:$0xff]
        %v1822 = vld [vmem:[%s745 + $0x88] sm:$0xff]
        %v1823 = vld [vmem:[%s745 + $0x90] sm:$0xff]
        %v1824 = vld [vmem:[%s745 + $0xa8] sm:$0xff]
        %v1825 = vld [vmem:[%s745 + $0xb0] sm:$0xff]
        %v1826 = vld [vmem:[%s745 + $0xc8] sm:$0xff]
        %v1827 = vld [vmem:[%s745 + $0xd0] sm:$0xff]
        %v1828 = vld [vmem:[%s745 + $0xe8] sm:$0xff]
        %v1829 = vld [vmem:[%s745 + $0xf0] sm:$0xff]
        %v1830 = vld [vmem:[%s745 + $0x108] sm:$0xff]
        %v1831 = vld [vmem:[%s745 + $0x110] sm:$0xff]
        %v1832 = vld [vmem:[%s745 + $0x128] sm:$0xff]
        %v1833 = vld [vmem:[%s745 + $0x130] sm:$0xff]
        %v1834 = vld [vmem:[%s745 + $0x148] sm:$0xff]
        %v1835 = vld [vmem:[%s745 + $0x150] sm:$0xff]
        %v1836 = vld [vmem:[%s745 + $0x168] sm:$0xff]
        %v1837 = vld [vmem:[%s745 + $0x170] sm:$0xff]
        %v1838 = vld [vmem:[%s745 + $0x188] sm:$0xff]
        %v1839 = vld [vmem:[%s745 + $0x190] sm:$0xff]
        %v1840 = vld [vmem:[%s745 + $0x1a8] sm:$0xff]
        %v1841 = vld [vmem:[%s745 + $0x1b0] sm:$0xff]
        %v1842 = vld [vmem:[%s745 + $0x1c8] sm:$0xff]
        %v1843 = vld [vmem:[%s745 + $0x1d0] sm:$0xff]
        %v1844 = vld [vmem:[%s745 + $0x1e8] sm:$0xff]
        %v1845 = vld [vmem:[%s745 + $0x1f0] sm:$0xff]
        %v1846 = vld [vmem:[%s1 + $0x4] sm:$0x1]
        %1848 = vset.pattern.permute.xlu0 0
        %1849 = vperm.xlu0 %1848, %v1814
        %v1850 = vpop.permute.xlu0 %1849
        %1853 = vset.pattern.permute.xlu0 0
        %1854 = vperm.xlu0 %1853, %v1815
        %v1855 = vpop.permute.xlu0 %1854
        %1858 = vset.pattern.permute.xlu0 0
        %1859 = vperm.xlu0 %1858, %v1816
        %v1860 = vpop.permute.xlu0 %1859
        %1863 = vset.pattern.permute.xlu0 0
        %1864 = vperm.xlu0 %1863, %v1817
        %v1865 = vpop.permute.xlu0 %1864
        %1868 = vset.pattern.permute.xlu0 0
        %1869 = vperm.xlu0 %1868, %v1818
        %v1870 = vpop.permute.xlu0 %1869
        %1873 = vset.pattern.permute.xlu0 0
        %1874 = vperm.xlu0 %1873, %v1819
        %v1875 = vpop.permute.xlu0 %1874
        %1878 = vset.pattern.permute.xlu0 0
        %1879 = vperm.xlu0 %1878, %v1820
        %v1880 = vpop.permute.xlu0 %1879
        %1883 = vset.pattern.permute.xlu0 0
        %1884 = vperm.xlu0 %1883, %v1821
        %v1885 = vpop.permute.xlu0 %1884
        %1888 = vset.pattern.permute.xlu0 0
        %1889 = vperm.xlu0 %1888, %v1822
        %v1890 = vpop.permute.xlu0 %1889
        %1893 = vset.pattern.permute.xlu0 0
        %1894 = vperm.xlu0 %1893, %v1823
        %v1895 = vpop.permute.xlu0 %1894
        %1898 = vset.pattern.permute.xlu0 0
        %1899 = vperm.xlu0 %1898, %v1824
        %v1900 = vpop.permute.xlu0 %1899
        %1903 = vset.pattern.permute.xlu0 0
        %1904 = vperm.xlu0 %1903, %v1825
        %v1905 = vpop.permute.xlu0 %1904
        %1908 = vset.pattern.permute.xlu0 0
        %1909 = vperm.xlu0 %1908, %v1826
        %v1910 = vpop.permute.xlu0 %1909
        %1913 = vset.pattern.permute.xlu0 0
        %1914 = vperm.xlu0 %1913, %v1827
        %v1915 = vpop.permute.xlu0 %1914
        %1918 = vset.pattern.permute.xlu0 0
        %1919 = vperm.xlu0 %1918, %v1828
        %v1920 = vpop.permute.xlu0 %1919
        %1923 = vset.pattern.permute.xlu0 0
        %1924 = vperm.xlu0 %1923, %v1829
        %v1925 = vpop.permute.xlu0 %1924
        %1928 = vset.pattern.permute.xlu0 0
        %1929 = vperm.xlu0 %1928, %v1830
        %v1930 = vpop.permute.xlu0 %1929
        %1933 = vset.pattern.permute.xlu0 0
        %1934 = vperm.xlu0 %1933, %v1831
        %v1935 = vpop.permute.xlu0 %1934
        %1938 = vset.pattern.permute.xlu0 0
        %1939 = vperm.xlu0 %1938, %v1832
        %v1940 = vpop.permute.xlu0 %1939
        %1943 = vset.pattern.permute.xlu0 0
        %1944 = vperm.xlu0 %1943, %v1833
        %v1945 = vpop.permute.xlu0 %1944
        %1948 = vset.pattern.permute.xlu0 0
        %1949 = vperm.xlu0 %1948, %v1834
        %v1950 = vpop.permute.xlu0 %1949
        %1953 = vset.pattern.permute.xlu0 0
        %1954 = vperm.xlu0 %1953, %v1835
        %v1955 = vpop.permute.xlu0 %1954
        %1958 = vset.pattern.permute.xlu0 0
        %1959 = vperm.xlu0 %1958, %v1836
        %v1960 = vpop.permute.xlu0 %1959
        %1963 = vset.pattern.permute.xlu0 0
        %1964 = vperm.xlu0 %1963, %v1837
        %v1965 = vpop.permute.xlu0 %1964
        %1968 = vset.pattern.permute.xlu0 0
        %1969 = vperm.xlu0 %1968, %v1838
        %v1970 = vpop.permute.xlu0 %1969
        %1973 = vset.pattern.permute.xlu0 0
        %1974 = vperm.xlu0 %1973, %v1839
        %v1975 = vpop.permute.xlu0 %1974
        %1978 = vset.pattern.permute.xlu0 0
        %1979 = vperm.xlu0 %1978, %v1840
        %v1980 = vpop.permute.xlu0 %1979
        %1983 = vset.pattern.permute.xlu0 0
        %1984 = vperm.xlu0 %1983, %v1841
        %v1985 = vpop.permute.xlu0 %1984
        %1988 = vset.pattern.permute.xlu0 0
        %1989 = vperm.xlu0 %1988, %v1842
        %v1990 = vpop.permute.xlu0 %1989
        %1993 = vset.pattern.permute.xlu0 0
        %1994 = vperm.xlu0 %1993, %v1843
        %v1995 = vpop.permute.xlu0 %1994
        %1998 = vset.pattern.permute.xlu0 0
        %1999 = vperm.xlu0 %1998, %v1844
        %v2000 = vpop.permute.xlu0 %1999
        %2003 = vset.pattern.permute.xlu0 0
        %2004 = vperm.xlu0 %2003, %v1845
        %v2005 = vpop.permute.xlu0 %2004
        %v2007 = vperm.slane %v1846, 0
        %v2008 = vmul.f32 %v1850, %v2007
        %v2009 = vmul.f32 %v1855, %v2007
        %v2010 = vmul.f32 %v1860, %v2007
        %v2011 = vmul.f32 %v1865, %v2007
        %v2012 = vmul.f32 %v1870, %v2007
        %v2013 = vmul.f32 %v1875, %v2007
        %v2014 = vmul.f32 %v1880, %v2007
        %v2015 = vmul.f32 %v1885, %v2007
        %v2016 = vmul.f32 %v1890, %v2007
        %v2017 = vmul.f32 %v1895, %v2007
        %v2018 = vmul.f32 %v1900, %v2007
        %v2019 = vmul.f32 %v1905, %v2007
        %v2020 = vmul.f32 %v1910, %v2007
        %v2021 = vmul.f32 %v1915, %v2007
        %v2022 = vmul.f32 %v1920, %v2007
        %v2023 = vmul.f32 %v1925, %v2007
        %v2024 = vmul.f32 %v1930, %v2007
        %v2025 = vmul.f32 %v1935, %v2007
        %v2026 = vmul.f32 %v1940, %v2007
        %v2027 = vmul.f32 %v1945, %v2007
        %v2028 = vmul.f32 %v1950, %v2007
        %v2029 = vmul.f32 %v1955, %v2007
        %v2030 = vmul.f32 %v1960, %v2007
        %v2031 = vmul.f32 %v1965, %v2007
        %v2032 = vmul.f32 %v1970, %v2007
        %v2033 = vmul.f32 %v1975, %v2007
        %v2034 = vmul.f32 %v1980, %v2007
        %v2035 = vmul.f32 %v1985, %v2007
        %v2036 = vmul.f32 %v1990, %v2007
        %v2037 = vmul.f32 %v1995, %v2007
        %v2038 = vmul.f32 %v2000, %v2007
        %v2039 = vmul.f32 %v2005, %v2007
        %v2040 = vadd.f32 %v1782, %v2008
        %v2041 = vadd.f32 %v1783, %v2009
        %v2042 = vadd.f32 %v1784, %v2010
        %v2043 = vadd.f32 %v1785, %v2011
        %v2044 = vadd.f32 %v1786, %v2012
        %v2045 = vadd.f32 %v1787, %v2013
        %v2046 = vadd.f32 %v1788, %v2014
        %v2047 = vadd.f32 %v1789, %v2015
        %v2048 = vadd.f32 %v1790, %v2016
        %v2049 = vadd.f32 %v1791, %v2017
        %v2050 = vadd.f32 %v1792, %v2018
        %v2051 = vadd.f32 %v1793, %v2019
        %v2052 = vadd.f32 %v1794, %v2020
        %v2053 = vadd.f32 %v1795, %v2021
        %v2054 = vadd.f32 %v1796, %v2022
        %v2055 = vadd.f32 %v1797, %v2023
        %v2056 = vadd.f32 %v1798, %v2024
        %v2057 = vadd.f32 %v1799, %v2025
        %v2058 = vadd.f32 %v1800, %v2026
        %v2059 = vadd.f32 %v1801, %v2027
        %v2060 = vadd.f32 %v1802, %v2028
        %v2061 = vadd.f32 %v1803, %v2029
        %v2062 = vadd.f32 %v1804, %v2030
        %v2063 = vadd.f32 %v1805, %v2031
        %v2064 = vadd.f32 %v1806, %v2032
        %v2065 = vadd.f32 %v1807, %v2033
        %v2066 = vadd.f32 %v1808, %v2034
        %v2067 = vadd.f32 %v1809, %v2035
        %v2068 = vadd.f32 %v1810, %v2036
        %v2069 = vadd.f32 %v1811, %v2037
        %v2070 = vadd.f32 %v1812, %v2038
        %v2071 = vadd.f32 %v1813, %v2039
        %v2072 = vld [vmem:[%s745 + $0x9] sm:$0xff]
        %v2073 = vld [vmem:[%s745 + $0x11] sm:$0xff]
        %v2074 = vld [vmem:[%s745 + $0x29] sm:$0xff]
        %v2075 = vld [vmem:[%s745 + $0x31] sm:$0xff]
        %v2076 = vld [vmem:[%s745 + $0x49] sm:$0xff]
        %v2077 = vld [vmem:[%s745 + $0x51] sm:$0xff]
        %v2078 = vld [vmem:[%s745 + $0x69] sm:$0xff]
        %v2079 = vld [vmem:[%s745 + $0x71] sm:$0xff]
        %v2080 = vld [vmem:[%s745 + $0x89] sm:$0xff]
        %v2081 = vld [vmem:[%s745 + $0x91] sm:$0xff]
        %v2082 = vld [vmem:[%s745 + $0xa9] sm:$0xff]
        %v2083 = vld [vmem:[%s745 + $0xb1] sm:$0xff]
        %v2084 = vld [vmem:[%s745 + $0xc9] sm:$0xff]
        %v2085 = vld [vmem:[%s745 + $0xd1] sm:$0xff]
        %v2086 = vld [vmem:[%s745 + $0xe9] sm:$0xff]
        %v2087 = vld [vmem:[%s745 + $0xf1] sm:$0xff]
        %v2088 = vld [vmem:[%s745 + $0x109] sm:$0xff]
        %v2089 = vld [vmem:[%s745 + $0x111] sm:$0xff]
        %v2090 = vld [vmem:[%s745 + $0x129] sm:$0xff]
        %v2091 = vld [vmem:[%s745 + $0x131] sm:$0xff]
        %v2092 = vld [vmem:[%s745 + $0x149] sm:$0xff]
        %v2093 = vld [vmem:[%s745 + $0x151] sm:$0xff]
        %v2094 = vld [vmem:[%s745 + $0x169] sm:$0xff]
        %v2095 = vld [vmem:[%s745 + $0x171] sm:$0xff]
        %v2096 = vld [vmem:[%s745 + $0x189] sm:$0xff]
        %v2097 = vld [vmem:[%s745 + $0x191] sm:$0xff]
        %v2098 = vld [vmem:[%s745 + $0x1a9] sm:$0xff]
        %v2099 = vld [vmem:[%s745 + $0x1b1] sm:$0xff]
        %v2100 = vld [vmem:[%s745 + $0x1c9] sm:$0xff]
        %v2101 = vld [vmem:[%s745 + $0x1d1] sm:$0xff]
        %v2102 = vld [vmem:[%s745 + $0x1e9] sm:$0xff]
        %v2103 = vld [vmem:[%s745 + $0x1f1] sm:$0xff]
        %v2104 = vld [vmem:[%s1 + $0x5] sm:$0x1]
        %2106 = vset.pattern.permute.xlu0 0
        %2107 = vperm.xlu0 %2106, %v2072
        %v2108 = vpop.permute.xlu0 %2107
        %2111 = vset.pattern.permute.xlu0 0
        %2112 = vperm.xlu0 %2111, %v2073
        %v2113 = vpop.permute.xlu0 %2112
        %2116 = vset.pattern.permute.xlu0 0
        %2117 = vperm.xlu0 %2116, %v2074
        %v2118 = vpop.permute.xlu0 %2117
        %2121 = vset.pattern.permute.xlu0 0
        %2122 = vperm.xlu0 %2121, %v2075
        %v2123 = vpop.permute.xlu0 %2122
        %2126 = vset.pattern.permute.xlu0 0
        %2127 = vperm.xlu0 %2126, %v2076
        %v2128 = vpop.permute.xlu0 %2127
        %2131 = vset.pattern.permute.xlu0 0
        %2132 = vperm.xlu0 %2131, %v2077
        %v2133 = vpop.permute.xlu0 %2132
        %2136 = vset.pattern.permute.xlu0 0
        %2137 = vperm.xlu0 %2136, %v2078
        %v2138 = vpop.permute.xlu0 %2137
        %2141 = vset.pattern.permute.xlu0 0
        %2142 = vperm.xlu0 %2141, %v2079
        %v2143 = vpop.permute.xlu0 %2142
        %2146 = vset.pattern.permute.xlu0 0
        %2147 = vperm.xlu0 %2146, %v2080
        %v2148 = vpop.permute.xlu0 %2147
        %2151 = vset.pattern.permute.xlu0 0
        %2152 = vperm.xlu0 %2151, %v2081
        %v2153 = vpop.permute.xlu0 %2152
        %2156 = vset.pattern.permute.xlu0 0
        %2157 = vperm.xlu0 %2156, %v2082
        %v2158 = vpop.permute.xlu0 %2157
        %2161 = vset.pattern.permute.xlu0 0
        %2162 = vperm.xlu0 %2161, %v2083
        %v2163 = vpop.permute.xlu0 %2162
        %2166 = vset.pattern.permute.xlu0 0
        %2167 = vperm.xlu0 %2166, %v2084
        %v2168 = vpop.permute.xlu0 %2167
        %2171 = vset.pattern.permute.xlu0 0
        %2172 = vperm.xlu0 %2171, %v2085
        %v2173 = vpop.permute.xlu0 %2172
        %2176 = vset.pattern.permute.xlu0 0
        %2177 = vperm.xlu0 %2176, %v2086
        %v2178 = vpop.permute.xlu0 %2177
        %2181 = vset.pattern.permute.xlu0 0
        %2182 = vperm.xlu0 %2181, %v2087
        %v2183 = vpop.permute.xlu0 %2182
        %2186 = vset.pattern.permute.xlu0 0
        %2187 = vperm.xlu0 %2186, %v2088
        %v2188 = vpop.permute.xlu0 %2187
        %2191 = vset.pattern.permute.xlu0 0
        %2192 = vperm.xlu0 %2191, %v2089
        %v2193 = vpop.permute.xlu0 %2192
        %2196 = vset.pattern.permute.xlu0 0
        %2197 = vperm.xlu0 %2196, %v2090
        %v2198 = vpop.permute.xlu0 %2197
        %2201 = vset.pattern.permute.xlu0 0
        %2202 = vperm.xlu0 %2201, %v2091
        %v2203 = vpop.permute.xlu0 %2202
        %2206 = vset.pattern.permute.xlu0 0
        %2207 = vperm.xlu0 %2206, %v2092
        %v2208 = vpop.permute.xlu0 %2207
        %2211 = vset.pattern.permute.xlu0 0
        %2212 = vperm.xlu0 %2211, %v2093
        %v2213 = vpop.permute.xlu0 %2212
        %2216 = vset.pattern.permute.xlu0 0
        %2217 = vperm.xlu0 %2216, %v2094
        %v2218 = vpop.permute.xlu0 %2217
        %2221 = vset.pattern.permute.xlu0 0
        %2222 = vperm.xlu0 %2221, %v2095
        %v2223 = vpop.permute.xlu0 %2222
        %2226 = vset.pattern.permute.xlu0 0
        %2227 = vperm.xlu0 %2226, %v2096
        %v2228 = vpop.permute.xlu0 %2227
        %2231 = vset.pattern.permute.xlu0 0
        %2232 = vperm.xlu0 %2231, %v2097
        %v2233 = vpop.permute.xlu0 %2232
        %2236 = vset.pattern.permute.xlu0 0
        %2237 = vperm.xlu0 %2236, %v2098
        %v2238 = vpop.permute.xlu0 %2237
        %2241 = vset.pattern.permute.xlu0 0
        %2242 = vperm.xlu0 %2241, %v2099
        %v2243 = vpop.permute.xlu0 %2242
        %2246 = vset.pattern.permute.xlu0 0
        %2247 = vperm.xlu0 %2246, %v2100
        %v2248 = vpop.permute.xlu0 %2247
        %2251 = vset.pattern.permute.xlu0 0
        %2252 = vperm.xlu0 %2251, %v2101
        %v2253 = vpop.permute.xlu0 %2252
        %2256 = vset.pattern.permute.xlu0 0
        %2257 = vperm.xlu0 %2256, %v2102
        %v2258 = vpop.permute.xlu0 %2257
        %2261 = vset.pattern.permute.xlu0 0
        %2262 = vperm.xlu0 %2261, %v2103
        %v2263 = vpop.permute.xlu0 %2262
        %v2265 = vperm.slane %v2104, 0
        %v2266 = vmul.f32 %v2108, %v2265
        %v2267 = vmul.f32 %v2113, %v2265
        %v2268 = vmul.f32 %v2118, %v2265
        %v2269 = vmul.f32 %v2123, %v2265
        %v2270 = vmul.f32 %v2128, %v2265
        %v2271 = vmul.f32 %v2133, %v2265
        %v2272 = vmul.f32 %v2138, %v2265
        %v2273 = vmul.f32 %v2143, %v2265
        %v2274 = vmul.f32 %v2148, %v2265
        %v2275 = vmul.f32 %v2153, %v2265
        %v2276 = vmul.f32 %v2158, %v2265
        %v2277 = vmul.f32 %v2163, %v2265
        %v2278 = vmul.f32 %v2168, %v2265
        %v2279 = vmul.f32 %v2173, %v2265
        %v2280 = vmul.f32 %v2178, %v2265
        %v2281 = vmul.f32 %v2183, %v2265
        %v2282 = vmul.f32 %v2188, %v2265
        %v2283 = vmul.f32 %v2193, %v2265
        %v2284 = vmul.f32 %v2198, %v2265
        %v2285 = vmul.f32 %v2203, %v2265
        %v2286 = vmul.f32 %v2208, %v2265
        %v2287 = vmul.f32 %v2213, %v2265
        %v2288 = vmul.f32 %v2218, %v2265
        %v2289 = vmul.f32 %v2223, %v2265
        %v2290 = vmul.f32 %v2228, %v2265
        %v2291 = vmul.f32 %v2233, %v2265
        %v2292 = vmul.f32 %v2238, %v2265
        %v2293 = vmul.f32 %v2243, %v2265
        %v2294 = vmul.f32 %v2248, %v2265
        %v2295 = vmul.f32 %v2253, %v2265
        %v2296 = vmul.f32 %v2258, %v2265
        %v2297 = vmul.f32 %v2263, %v2265
        %v2298 = vadd.f32 %v2040, %v2266
        %v2299 = vadd.f32 %v2041, %v2267
        %v2300 = vadd.f32 %v2042, %v2268
        %v2301 = vadd.f32 %v2043, %v2269
        %v2302 = vadd.f32 %v2044, %v2270
        %v2303 = vadd.f32 %v2045, %v2271
        %v2304 = vadd.f32 %v2046, %v2272
        %v2305 = vadd.f32 %v2047, %v2273
        %v2306 = vadd.f32 %v2048, %v2274
        %v2307 = vadd.f32 %v2049, %v2275
        %v2308 = vadd.f32 %v2050, %v2276
        %v2309 = vadd.f32 %v2051, %v2277
        %v2310 = vadd.f32 %v2052, %v2278
        %v2311 = vadd.f32 %v2053, %v2279
        %v2312 = vadd.f32 %v2054, %v2280
        %v2313 = vadd.f32 %v2055, %v2281
        %v2314 = vadd.f32 %v2056, %v2282
        %v2315 = vadd.f32 %v2057, %v2283
        %v2316 = vadd.f32 %v2058, %v2284
        %v2317 = vadd.f32 %v2059, %v2285
        %v2318 = vadd.f32 %v2060, %v2286
        %v2319 = vadd.f32 %v2061, %v2287
        %v2320 = vadd.f32 %v2062, %v2288
        %v2321 = vadd.f32 %v2063, %v2289
        %v2322 = vadd.f32 %v2064, %v2290
        %v2323 = vadd.f32 %v2065, %v2291
        %v2324 = vadd.f32 %v2066, %v2292
        %v2325 = vadd.f32 %v2067, %v2293
        %v2326 = vadd.f32 %v2068, %v2294
        %v2327 = vadd.f32 %v2069, %v2295
        %v2328 = vadd.f32 %v2070, %v2296
        %v2329 = vadd.f32 %v2071, %v2297
        %s2330 = scalar_lea.vmem [#allocation2], 64
        %v2331 = vld [vmem:[%s2330 + $0x7] sm:$0xff]
        %v2332 = vld [vmem:[%s2330 + $0xf] sm:$0xff]
        %v2333 = vld [vmem:[%s2330 + $0x27] sm:$0xff]
        %v2334 = vld [vmem:[%s2330 + $0x2f] sm:$0xff]
        %v2335 = vld [vmem:[%s2330 + $0x47] sm:$0xff]
        %v2336 = vld [vmem:[%s2330 + $0x4f] sm:$0xff]
        %v2337 = vld [vmem:[%s2330 + $0x67] sm:$0xff]
        %v2338 = vld [vmem:[%s2330 + $0x6f] sm:$0xff]
        %v2339 = vld [vmem:[%s2330 + $0x87] sm:$0xff]
        %v2340 = vld [vmem:[%s2330 + $0x8f] sm:$0xff]
        %v2341 = vld [vmem:[%s2330 + $0xa7] sm:$0xff]
        %v2342 = vld [vmem:[%s2330 + $0xaf] sm:$0xff]
        %v2343 = vld [vmem:[%s2330 + $0xc7] sm:$0xff]
        %v2344 = vld [vmem:[%s2330 + $0xcf] sm:$0xff]
        %v2345 = vld [vmem:[%s2330 + $0xe7] sm:$0xff]
        %v2346 = vld [vmem:[%s2330 + $0xef] sm:$0xff]
        %v2347 = vld [vmem:[%s2330 + $0x107] sm:$0xff]
        %v2348 = vld [vmem:[%s2330 + $0x10f] sm:$0xff]
        %v2349 = vld [vmem:[%s2330 + $0x127] sm:$0xff]
        %v2350 = vld [vmem:[%s2330 + $0x12f] sm:$0xff]
        %v2351 = vld [vmem:[%s2330 + $0x147] sm:$0xff]
        %v2352 = vld [vmem:[%s2330 + $0x14f] sm:$0xff]
        %v2353 = vld [vmem:[%s2330 + $0x167] sm:$0xff]
        %v2354 = vld [vmem:[%s2330 + $0x16f] sm:$0xff]
        %v2355 = vld [vmem:[%s2330 + $0x187] sm:$0xff]
        %v2356 = vld [vmem:[%s2330 + $0x18f] sm:$0xff]
        %v2357 = vld [vmem:[%s2330 + $0x1a7] sm:$0xff]
        %v2358 = vld [vmem:[%s2330 + $0x1af] sm:$0xff]
        %v2359 = vld [vmem:[%s2330 + $0x1c7] sm:$0xff]
        %v2360 = vld [vmem:[%s2330 + $0x1cf] sm:$0xff]
        %v2361 = vld [vmem:[%s2330 + $0x1e7] sm:$0xff]
        %v2362 = vld [vmem:[%s2330 + $0x1ef] sm:$0xff]
        %v2363 = vld [vmem:[%s1 + $0x6] sm:$0x1]
        %2365 = vset.pattern.permute.xlu0 0
        %2366 = vperm.xlu0 %2365, %v2331
        %v2367 = vpop.permute.xlu0 %2366
        %2370 = vset.pattern.permute.xlu0 0
        %2371 = vperm.xlu0 %2370, %v2332
        %v2372 = vpop.permute.xlu0 %2371
        %2375 = vset.pattern.permute.xlu0 0
        %2376 = vperm.xlu0 %2375, %v2333
        %v2377 = vpop.permute.xlu0 %2376
        %2380 = vset.pattern.permute.xlu0 0
        %2381 = vperm.xlu0 %2380, %v2334
        %v2382 = vpop.permute.xlu0 %2381
        %2385 = vset.pattern.permute.xlu0 0
        %2386 = vperm.xlu0 %2385, %v2335
        %v2387 = vpop.permute.xlu0 %2386
        %2390 = vset.pattern.permute.xlu0 0
        %2391 = vperm.xlu0 %2390, %v2336
        %v2392 = vpop.permute.xlu0 %2391
        %2395 = vset.pattern.permute.xlu0 0
        %2396 = vperm.xlu0 %2395, %v2337
        %v2397 = vpop.permute.xlu0 %2396
        %2400 = vset.pattern.permute.xlu0 0
        %2401 = vperm.xlu0 %2400, %v2338
        %v2402 = vpop.permute.xlu0 %2401
        %2405 = vset.pattern.permute.xlu0 0
        %2406 = vperm.xlu0 %2405, %v2339
        %v2407 = vpop.permute.xlu0 %2406
        %2410 = vset.pattern.permute.xlu0 0
        %2411 = vperm.xlu0 %2410, %v2340
        %v2412 = vpop.permute.xlu0 %2411
        %2415 = vset.pattern.permute.xlu0 0
        %2416 = vperm.xlu0 %2415, %v2341
        %v2417 = vpop.permute.xlu0 %2416
        %2420 = vset.pattern.permute.xlu0 0
        %2421 = vperm.xlu0 %2420, %v2342
        %v2422 = vpop.permute.xlu0 %2421
        %2425 = vset.pattern.permute.xlu0 0
        %2426 = vperm.xlu0 %2425, %v2343
        %v2427 = vpop.permute.xlu0 %2426
        %2430 = vset.pattern.permute.xlu0 0
        %2431 = vperm.xlu0 %2430, %v2344
        %v2432 = vpop.permute.xlu0 %2431
        %2435 = vset.pattern.permute.xlu0 0
        %2436 = vperm.xlu0 %2435, %v2345
        %v2437 = vpop.permute.xlu0 %2436
        %2440 = vset.pattern.permute.xlu0 0
        %2441 = vperm.xlu0 %2440, %v2346
        %v2442 = vpop.permute.xlu0 %2441
        %2445 = vset.pattern.permute.xlu0 0
        %2446 = vperm.xlu0 %2445, %v2347
        %v2447 = vpop.permute.xlu0 %2446
        %2450 = vset.pattern.permute.xlu0 0
        %2451 = vperm.xlu0 %2450, %v2348
        %v2452 = vpop.permute.xlu0 %2451
        %2455 = vset.pattern.permute.xlu0 0
        %2456 = vperm.xlu0 %2455, %v2349
        %v2457 = vpop.permute.xlu0 %2456
        %2460 = vset.pattern.permute.xlu0 0
        %2461 = vperm.xlu0 %2460, %v2350
        %v2462 = vpop.permute.xlu0 %2461
        %2465 = vset.pattern.permute.xlu0 0
        %2466 = vperm.xlu0 %2465, %v2351
        %v2467 = vpop.permute.xlu0 %2466
        %2470 = vset.pattern.permute.xlu0 0
        %2471 = vperm.xlu0 %2470, %v2352
        %v2472 = vpop.permute.xlu0 %2471
        %2475 = vset.pattern.permute.xlu0 0
        %2476 = vperm.xlu0 %2475, %v2353
        %v2477 = vpop.permute.xlu0 %2476
        %2480 = vset.pattern.permute.xlu0 0
        %2481 = vperm.xlu0 %2480, %v2354
        %v2482 = vpop.permute.xlu0 %2481
        %2485 = vset.pattern.permute.xlu0 0
        %2486 = vperm.xlu0 %2485, %v2355
        %v2487 = vpop.permute.xlu0 %2486
        %2490 = vset.pattern.permute.xlu0 0
        %2491 = vperm.xlu0 %2490, %v2356
        %v2492 = vpop.permute.xlu0 %2491
        %2495 = vset.pattern.permute.xlu0 0
        %2496 = vperm.xlu0 %2495, %v2357
        %v2497 = vpop.permute.xlu0 %2496
        %2500 = vset.pattern.permute.xlu0 0
        %2501 = vperm.xlu0 %2500, %v2358
        %v2502 = vpop.permute.xlu0 %2501
        %2505 = vset.pattern.permute.xlu0 0
        %2506 = vperm.xlu0 %2505, %v2359
        %v2507 = vpop.permute.xlu0 %2506
        %2510 = vset.pattern.permute.xlu0 0
        %2511 = vperm.xlu0 %2510, %v2360
        %v2512 = vpop.permute.xlu0 %2511
        %2515 = vset.pattern.permute.xlu0 0
        %2516 = vperm.xlu0 %2515, %v2361
        %v2517 = vpop.permute.xlu0 %2516
        %2520 = vset.pattern.permute.xlu0 0
        %2521 = vperm.xlu0 %2520, %v2362
        %v2522 = vpop.permute.xlu0 %2521
        %v2524 = vperm.slane %v2363, 0
        %v2525 = vmul.f32 %v2367, %v2524
        %v2526 = vmul.f32 %v2372, %v2524
        %v2527 = vmul.f32 %v2377, %v2524
        %v2528 = vmul.f32 %v2382, %v2524
        %v2529 = vmul.f32 %v2387, %v2524
        %v2530 = vmul.f32 %v2392, %v2524
        %v2531 = vmul.f32 %v2397, %v2524
        %v2532 = vmul.f32 %v2402, %v2524
        %v2533 = vmul.f32 %v2407, %v2524
        %v2534 = vmul.f32 %v2412, %v2524
        %v2535 = vmul.f32 %v2417, %v2524
        %v2536 = vmul.f32 %v2422, %v2524
        %v2537 = vmul.f32 %v2427, %v2524
        %v2538 = vmul.f32 %v2432, %v2524
        %v2539 = vmul.f32 %v2437, %v2524
        %v2540 = vmul.f32 %v2442, %v2524
        %v2541 = vmul.f32 %v2447, %v2524
        %v2542 = vmul.f32 %v2452, %v2524
        %v2543 = vmul.f32 %v2457, %v2524
        %v2544 = vmul.f32 %v2462, %v2524
        %v2545 = vmul.f32 %v2467, %v2524
        %v2546 = vmul.f32 %v2472, %v2524
        %v2547 = vmul.f32 %v2477, %v2524
        %v2548 = vmul.f32 %v2482, %v2524
        %v2549 = vmul.f32 %v2487, %v2524
        %v2550 = vmul.f32 %v2492, %v2524
        %v2551 = vmul.f32 %v2497, %v2524
        %v2552 = vmul.f32 %v2502, %v2524
        %v2553 = vmul.f32 %v2507, %v2524
        %v2554 = vmul.f32 %v2512, %v2524
        %v2555 = vmul.f32 %v2517, %v2524
        %v2556 = vmul.f32 %v2522, %v2524
        %v2557 = vadd.f32 %v2298, %v2525
        %v2558 = vadd.f32 %v2299, %v2526
        %v2559 = vadd.f32 %v2300, %v2527
        %v2560 = vadd.f32 %v2301, %v2528
        %v2561 = vadd.f32 %v2302, %v2529
        %v2562 = vadd.f32 %v2303, %v2530
        %v2563 = vadd.f32 %v2304, %v2531
        %v2564 = vadd.f32 %v2305, %v2532
        %v2565 = vadd.f32 %v2306, %v2533
        %v2566 = vadd.f32 %v2307, %v2534
        %v2567 = vadd.f32 %v2308, %v2535
        %v2568 = vadd.f32 %v2309, %v2536
        %v2569 = vadd.f32 %v2310, %v2537
        %v2570 = vadd.f32 %v2311, %v2538
        %v2571 = vadd.f32 %v2312, %v2539
        %v2572 = vadd.f32 %v2313, %v2540
        %v2573 = vadd.f32 %v2314, %v2541
        %v2574 = vadd.f32 %v2315, %v2542
        %v2575 = vadd.f32 %v2316, %v2543
        %v2576 = vadd.f32 %v2317, %v2544
        %v2577 = vadd.f32 %v2318, %v2545
        %v2578 = vadd.f32 %v2319, %v2546
        %v2579 = vadd.f32 %v2320, %v2547
        %v2580 = vadd.f32 %v2321, %v2548
        %v2581 = vadd.f32 %v2322, %v2549
        %v2582 = vadd.f32 %v2323, %v2550
        %v2583 = vadd.f32 %v2324, %v2551
        %v2584 = vadd.f32 %v2325, %v2552
        %v2585 = vadd.f32 %v2326, %v2553
        %v2586 = vadd.f32 %v2327, %v2554
        %v2587 = vadd.f32 %v2328, %v2555
        %v2588 = vadd.f32 %v2329, %v2556
        %v2589 = vld [vmem:[%s2330 + $0x8] sm:$0xff]
        %v2590 = vld [vmem:[%s2330 + $0x10] sm:$0xff]
        %v2591 = vld [vmem:[%s2330 + $0x28] sm:$0xff]
        %v2592 = vld [vmem:[%s2330 + $0x30] sm:$0xff]
        %v2593 = vld [vmem:[%s2330 + $0x48] sm:$0xff]
        %v2594 = vld [vmem:[%s2330 + $0x50] sm:$0xff]
        %v2595 = vld [vmem:[%s2330 + $0x68] sm:$0xff]
        %v2596 = vld [vmem:[%s2330 + $0x70] sm:$0xff]
        %v2597 = vld [vmem:[%s2330 + $0x88] sm:$0xff]
        %v2598 = vld [vmem:[%s2330 + $0x90] sm:$0xff]
        %v2599 = vld [vmem:[%s2330 + $0xa8] sm:$0xff]
        %v2600 = vld [vmem:[%s2330 + $0xb0] sm:$0xff]
        %v2601 = vld [vmem:[%s2330 + $0xc8] sm:$0xff]
        %v2602 = vld [vmem:[%s2330 + $0xd0] sm:$0xff]
        %v2603 = vld [vmem:[%s2330 + $0xe8] sm:$0xff]
        %v2604 = vld [vmem:[%s2330 + $0xf0] sm:$0xff]
        %v2605 = vld [vmem:[%s2330 + $0x108] sm:$0xff]
        %v2606 = vld [vmem:[%s2330 + $0x110] sm:$0xff]
        %v2607 = vld [vmem:[%s2330 + $0x128] sm:$0xff]
        %v2608 = vld [vmem:[%s2330 + $0x130] sm:$0xff]
        %v2609 = vld [vmem:[%s2330 + $0x148] sm:$0xff]
        %v2610 = vld [vmem:[%s2330 + $0x150] sm:$0xff]
        %v2611 = vld [vmem:[%s2330 + $0x168] sm:$0xff]
        %v2612 = vld [vmem:[%s2330 + $0x170] sm:$0xff]
        %v2613 = vld [vmem:[%s2330 + $0x188] sm:$0xff]
        %v2614 = vld [vmem:[%s2330 + $0x190] sm:$0xff]
        %v2615 = vld [vmem:[%s2330 + $0x1a8] sm:$0xff]
        %v2616 = vld [vmem:[%s2330 + $0x1b0] sm:$0xff]
        %v2617 = vld [vmem:[%s2330 + $0x1c8] sm:$0xff]
        %v2618 = vld [vmem:[%s2330 + $0x1d0] sm:$0xff]
        %v2619 = vld [vmem:[%s2330 + $0x1e8] sm:$0xff]
        %v2620 = vld [vmem:[%s2330 + $0x1f0] sm:$0xff]
        %v2621 = vld [vmem:[%s1 + $0x7] sm:$0x1]
        %2623 = vset.pattern.permute.xlu0 0
        %2624 = vperm.xlu0 %2623, %v2589
        %v2625 = vpop.permute.xlu0 %2624
        %2628 = vset.pattern.permute.xlu0 0
        %2629 = vperm.xlu0 %2628, %v2590
        %v2630 = vpop.permute.xlu0 %2629
        %2633 = vset.pattern.permute.xlu0 0
        %2634 = vperm.xlu0 %2633, %v2591
        %v2635 = vpop.permute.xlu0 %2634
        %2638 = vset.pattern.permute.xlu0 0
        %2639 = vperm.xlu0 %2638, %v2592
        %v2640 = vpop.permute.xlu0 %2639
        %2643 = vset.pattern.permute.xlu0 0
        %2644 = vperm.xlu0 %2643, %v2593
        %v2645 = vpop.permute.xlu0 %2644
        %2648 = vset.pattern.permute.xlu0 0
        %2649 = vperm.xlu0 %2648, %v2594
        %v2650 = vpop.permute.xlu0 %2649
        %2653 = vset.pattern.permute.xlu0 0
        %2654 = vperm.xlu0 %2653, %v2595
        %v2655 = vpop.permute.xlu0 %2654
        %2658 = vset.pattern.permute.xlu0 0
        %2659 = vperm.xlu0 %2658, %v2596
        %v2660 = vpop.permute.xlu0 %2659
        %2663 = vset.pattern.permute.xlu0 0
        %2664 = vperm.xlu0 %2663, %v2597
        %v2665 = vpop.permute.xlu0 %2664
        %2668 = vset.pattern.permute.xlu0 0
        %2669 = vperm.xlu0 %2668, %v2598
        %v2670 = vpop.permute.xlu0 %2669
        %2673 = vset.pattern.permute.xlu0 0
        %2674 = vperm.xlu0 %2673, %v2599
        %v2675 = vpop.permute.xlu0 %2674
        %2678 = vset.pattern.permute.xlu0 0
        %2679 = vperm.xlu0 %2678, %v2600
        %v2680 = vpop.permute.xlu0 %2679
        %2683 = vset.pattern.permute.xlu0 0
        %2684 = vperm.xlu0 %2683, %v2601
        %v2685 = vpop.permute.xlu0 %2684
        %2688 = vset.pattern.permute.xlu0 0
        %2689 = vperm.xlu0 %2688, %v2602
        %v2690 = vpop.permute.xlu0 %2689
        %2693 = vset.pattern.permute.xlu0 0
        %2694 = vperm.xlu0 %2693, %v2603
        %v2695 = vpop.permute.xlu0 %2694
        %2698 = vset.pattern.permute.xlu0 0
        %2699 = vperm.xlu0 %2698, %v2604
        %v2700 = vpop.permute.xlu0 %2699
        %2703 = vset.pattern.permute.xlu0 0
        %2704 = vperm.xlu0 %2703, %v2605
        %v2705 = vpop.permute.xlu0 %2704
        %2708 = vset.pattern.permute.xlu0 0
        %2709 = vperm.xlu0 %2708, %v2606
        %v2710 = vpop.permute.xlu0 %2709
        %2713 = vset.pattern.permute.xlu0 0
        %2714 = vperm.xlu0 %2713, %v2607
        %v2715 = vpop.permute.xlu0 %2714
        %2718 = vset.pattern.permute.xlu0 0
        %2719 = vperm.xlu0 %2718, %v2608
        %v2720 = vpop.permute.xlu0 %2719
        %2723 = vset.pattern.permute.xlu0 0
        %2724 = vperm.xlu0 %2723, %v2609
        %v2725 = vpop.permute.xlu0 %2724
        %2728 = vset.pattern.permute.xlu0 0
        %2729 = vperm.xlu0 %2728, %v2610
        %v2730 = vpop.permute.xlu0 %2729
        %2733 = vset.pattern.permute.xlu0 0
        %2734 = vperm.xlu0 %2733, %v2611
        %v2735 = vpop.permute.xlu0 %2734
        %2738 = vset.pattern.permute.xlu0 0
        %2739 = vperm.xlu0 %2738, %v2612
        %v2740 = vpop.permute.xlu0 %2739
        %2743 = vset.pattern.permute.xlu0 0
        %2744 = vperm.xlu0 %2743, %v2613
        %v2745 = vpop.permute.xlu0 %2744
        %2748 = vset.pattern.permute.xlu0 0
        %2749 = vperm.xlu0 %2748, %v2614
        %v2750 = vpop.permute.xlu0 %2749
        %2753 = vset.pattern.permute.xlu0 0
        %2754 = vperm.xlu0 %2753, %v2615
        %v2755 = vpop.permute.xlu0 %2754
        %2758 = vset.pattern.permute.xlu0 0
        %2759 = vperm.xlu0 %2758, %v2616
        %v2760 = vpop.permute.xlu0 %2759
        %2763 = vset.pattern.permute.xlu0 0
        %2764 = vperm.xlu0 %2763, %v2617
        %v2765 = vpop.permute.xlu0 %2764
        %2768 = vset.pattern.permute.xlu0 0
        %2769 = vperm.xlu0 %2768, %v2618
        %v2770 = vpop.permute.xlu0 %2769
        %2773 = vset.pattern.permute.xlu0 0
        %2774 = vperm.xlu0 %2773, %v2619
        %v2775 = vpop.permute.xlu0 %2774
        %2778 = vset.pattern.permute.xlu0 0
        %2779 = vperm.xlu0 %2778, %v2620
        %v2780 = vpop.permute.xlu0 %2779
        %v2782 = vperm.slane %v2621, 0
        %v2783 = vmul.f32 %v2625, %v2782
        %v2784 = vmul.f32 %v2630, %v2782
        %v2785 = vmul.f32 %v2635, %v2782
        %v2786 = vmul.f32 %v2640, %v2782
        %v2787 = vmul.f32 %v2645, %v2782
        %v2788 = vmul.f32 %v2650, %v2782
        %v2789 = vmul.f32 %v2655, %v2782
        %v2790 = vmul.f32 %v2660, %v2782
        %v2791 = vmul.f32 %v2665, %v2782
        %v2792 = vmul.f32 %v2670, %v2782
        %v2793 = vmul.f32 %v2675, %v2782
        %v2794 = vmul.f32 %v2680, %v2782
        %v2795 = vmul.f32 %v2685, %v2782
        %v2796 = vmul.f32 %v2690, %v2782
        %v2797 = vmul.f32 %v2695, %v2782
        %v2798 = vmul.f32 %v2700, %v2782
        %v2799 = vmul.f32 %v2705, %v2782
        %v2800 = vmul.f32 %v2710, %v2782
        %v2801 = vmul.f32 %v2715, %v2782
        %v2802 = vmul.f32 %v2720, %v2782
        %v2803 = vmul.f32 %v2725, %v2782
        %v2804 = vmul.f32 %v2730, %v2782
        %v2805 = vmul.f32 %v2735, %v2782
        %v2806 = vmul.f32 %v2740, %v2782
        %v2807 = vmul.f32 %v2745, %v2782
        %v2808 = vmul.f32 %v2750, %v2782
        %v2809 = vmul.f32 %v2755, %v2782
        %v2810 = vmul.f32 %v2760, %v2782
        %v2811 = vmul.f32 %v2765, %v2782
        %v2812 = vmul.f32 %v2770, %v2782
        %v2813 = vmul.f32 %v2775, %v2782
        %v2814 = vmul.f32 %v2780, %v2782
        %v2815 = vadd.f32 %v2557, %v2783
        %v2816 = vadd.f32 %v2558, %v2784
        %v2817 = vadd.f32 %v2559, %v2785
        %v2818 = vadd.f32 %v2560, %v2786
        %v2819 = vadd.f32 %v2561, %v2787
        %v2820 = vadd.f32 %v2562, %v2788
        %v2821 = vadd.f32 %v2563, %v2789
        %v2822 = vadd.f32 %v2564, %v2790
        %v2823 = vadd.f32 %v2565, %v2791
        %v2824 = vadd.f32 %v2566, %v2792
        %v2825 = vadd.f32 %v2567, %v2793
        %v2826 = vadd.f32 %v2568, %v2794
        %v2827 = vadd.f32 %v2569, %v2795
        %v2828 = vadd.f32 %v2570, %v2796
        %v2829 = vadd.f32 %v2571, %v2797
        %v2830 = vadd.f32 %v2572, %v2798
        %v2831 = vadd.f32 %v2573, %v2799
        %v2832 = vadd.f32 %v2574, %v2800
        %v2833 = vadd.f32 %v2575, %v2801
        %v2834 = vadd.f32 %v2576, %v2802
        %v2835 = vadd.f32 %v2577, %v2803
        %v2836 = vadd.f32 %v2578, %v2804
        %v2837 = vadd.f32 %v2579, %v2805
        %v2838 = vadd.f32 %v2580, %v2806
        %v2839 = vadd.f32 %v2581, %v2807
        %v2840 = vadd.f32 %v2582, %v2808
        %v2841 = vadd.f32 %v2583, %v2809
        %v2842 = vadd.f32 %v2584, %v2810
        %v2843 = vadd.f32 %v2585, %v2811
        %v2844 = vadd.f32 %v2586, %v2812
        %v2845 = vadd.f32 %v2587, %v2813
        %v2846 = vadd.f32 %v2588, %v2814
        %v2847 = vld [vmem:[%s2330 + $0x9] sm:$0xff]
        %v2848 = vld [vmem:[%s2330 + $0x11] sm:$0xff]
        %v2849 = vld [vmem:[%s2330 + $0x29] sm:$0xff]
        %v2850 = vld [vmem:[%s2330 + $0x31] sm:$0xff]
        %v2851 = vld [vmem:[%s2330 + $0x49] sm:$0xff]
        %v2852 = vld [vmem:[%s2330 + $0x51] sm:$0xff]
        %v2853 = vld [vmem:[%s2330 + $0x69] sm:$0xff]
        %v2854 = vld [vmem:[%s2330 + $0x71] sm:$0xff]
        %v2855 = vld [vmem:[%s2330 + $0x89] sm:$0xff]
        %v2856 = vld [vmem:[%s2330 + $0x91] sm:$0xff]
        %v2857 = vld [vmem:[%s2330 + $0xa9] sm:$0xff]
        %v2858 = vld [vmem:[%s2330 + $0xb1] sm:$0xff]
        %v2859 = vld [vmem:[%s2330 + $0xc9] sm:$0xff]
        %v2860 = vld [vmem:[%s2330 + $0xd1] sm:$0xff]
        %v2861 = vld [vmem:[%s2330 + $0xe9] sm:$0xff]
        %v2862 = vld [vmem:[%s2330 + $0xf1] sm:$0xff]
        %v2863 = vld [vmem:[%s2330 + $0x109] sm:$0xff]
        %v2864 = vld [vmem:[%s2330 + $0x111] sm:$0xff]
        %v2865 = vld [vmem:[%s2330 + $0x129] sm:$0xff]
        %v2866 = vld [vmem:[%s2330 + $0x131] sm:$0xff]
        %v2867 = vld [vmem:[%s2330 + $0x149] sm:$0xff]
        %v2868 = vld [vmem:[%s2330 + $0x151] sm:$0xff]
        %v2869 = vld [vmem:[%s2330 + $0x169] sm:$0xff]
        %v2870 = vld [vmem:[%s2330 + $0x171] sm:$0xff]
        %v2871 = vld [vmem:[%s2330 + $0x189] sm:$0xff]
        %v2872 = vld [vmem:[%s2330 + $0x191] sm:$0xff]
        %v2873 = vld [vmem:[%s2330 + $0x1a9] sm:$0xff]
        %v2874 = vld [vmem:[%s2330 + $0x1b1] sm:$0xff]
        %v2875 = vld [vmem:[%s2330 + $0x1c9] sm:$0xff]
        %v2876 = vld [vmem:[%s2330 + $0x1d1] sm:$0xff]
        %v2877 = vld [vmem:[%s2330 + $0x1e9] sm:$0xff]
        %v2878 = vld [vmem:[%s2330 + $0x1f1] sm:$0xff]
        %v2879 = vld [vmem:[%s1 + $0x8] sm:$0x1]
        %2881 = vset.pattern.permute.xlu0 0
        %2882 = vperm.xlu0 %2881, %v2847
        %v2883 = vpop.permute.xlu0 %2882
        %2886 = vset.pattern.permute.xlu0 0
        %2887 = vperm.xlu0 %2886, %v2848
        %v2888 = vpop.permute.xlu0 %2887
        %2891 = vset.pattern.permute.xlu0 0
        %2892 = vperm.xlu0 %2891, %v2849
        %v2893 = vpop.permute.xlu0 %2892
        %2896 = vset.pattern.permute.xlu0 0
        %2897 = vperm.xlu0 %2896, %v2850
        %v2898 = vpop.permute.xlu0 %2897
        %2901 = vset.pattern.permute.xlu0 0
        %2902 = vperm.xlu0 %2901, %v2851
        %v2903 = vpop.permute.xlu0 %2902
        %2906 = vset.pattern.permute.xlu0 0
        %2907 = vperm.xlu0 %2906, %v2852
        %v2908 = vpop.permute.xlu0 %2907
        %2911 = vset.pattern.permute.xlu0 0
        %2912 = vperm.xlu0 %2911, %v2853
        %v2913 = vpop.permute.xlu0 %2912
        %2916 = vset.pattern.permute.xlu0 0
        %2917 = vperm.xlu0 %2916, %v2854
        %v2918 = vpop.permute.xlu0 %2917
        %2921 = vset.pattern.permute.xlu0 0
        %2922 = vperm.xlu0 %2921, %v2855
        %v2923 = vpop.permute.xlu0 %2922
        %2926 = vset.pattern.permute.xlu0 0
        %2927 = vperm.xlu0 %2926, %v2856
        %v2928 = vpop.permute.xlu0 %2927
        %2931 = vset.pattern.permute.xlu0 0
        %2932 = vperm.xlu0 %2931, %v2857
        %v2933 = vpop.permute.xlu0 %2932
        %2936 = vset.pattern.permute.xlu0 0
        %2937 = vperm.xlu0 %2936, %v2858
        %v2938 = vpop.permute.xlu0 %2937
        %2941 = vset.pattern.permute.xlu0 0
        %2942 = vperm.xlu0 %2941, %v2859
        %v2943 = vpop.permute.xlu0 %2942
        %2946 = vset.pattern.permute.xlu0 0
        %2947 = vperm.xlu0 %2946, %v2860
        %v2948 = vpop.permute.xlu0 %2947
        %2951 = vset.pattern.permute.xlu0 0
        %2952 = vperm.xlu0 %2951, %v2861
        %v2953 = vpop.permute.xlu0 %2952
        %2956 = vset.pattern.permute.xlu0 0
        %2957 = vperm.xlu0 %2956, %v2862
        %v2958 = vpop.permute.xlu0 %2957
        %2961 = vset.pattern.permute.xlu0 0
        %2962 = vperm.xlu0 %2961, %v2863
        %v2963 = vpop.permute.xlu0 %2962
        %2966 = vset.pattern.permute.xlu0 0
        %2967 = vperm.xlu0 %2966, %v2864
        %v2968 = vpop.permute.xlu0 %2967
        %2971 = vset.pattern.permute.xlu0 0
        %2972 = vperm.xlu0 %2971, %v2865
        %v2973 = vpop.permute.xlu0 %2972
        %2976 = vset.pattern.permute.xlu0 0
        %2977 = vperm.xlu0 %2976, %v2866
        %v2978 = vpop.permute.xlu0 %2977
        %2981 = vset.pattern.permute.xlu0 0
        %2982 = vperm.xlu0 %2981, %v2867
        %v2983 = vpop.permute.xlu0 %2982
        %2986 = vset.pattern.permute.xlu0 0
        %2987 = vperm.xlu0 %2986, %v2868
        %v2988 = vpop.permute.xlu0 %2987
        %2991 = vset.pattern.permute.xlu0 0
        %2992 = vperm.xlu0 %2991, %v2869
        %v2993 = vpop.permute.xlu0 %2992
        %2996 = vset.pattern.permute.xlu0 0
        %2997 = vperm.xlu0 %2996, %v2870
        %v2998 = vpop.permute.xlu0 %2997
        %3001 = vset.pattern.permute.xlu0 0
        %3002 = vperm.xlu0 %3001, %v2871
        %v3003 = vpop.permute.xlu0 %3002
        %3006 = vset.pattern.permute.xlu0 0
        %3007 = vperm.xlu0 %3006, %v2872
        %v3008 = vpop.permute.xlu0 %3007
        %3011 = vset.pattern.permute.xlu0 0
        %3012 = vperm.xlu0 %3011, %v2873
        %v3013 = vpop.permute.xlu0 %3012
        %3016 = vset.pattern.permute.xlu0 0
        %3017 = vperm.xlu0 %3016, %v2874
        %v3018 = vpop.permute.xlu0 %3017
        %3021 = vset.pattern.permute.xlu0 0
        %3022 = vperm.xlu0 %3021, %v2875
        %v3023 = vpop.permute.xlu0 %3022
        %3026 = vset.pattern.permute.xlu0 0
        %3027 = vperm.xlu0 %3026, %v2876
        %v3028 = vpop.permute.xlu0 %3027
        %3031 = vset.pattern.permute.xlu0 0
        %3032 = vperm.xlu0 %3031, %v2877
        %v3033 = vpop.permute.xlu0 %3032
        %3036 = vset.pattern.permute.xlu0 0
        %3037 = vperm.xlu0 %3036, %v2878
        %v3038 = vpop.permute.xlu0 %3037
        %v3040 = vperm.slane %v2879, 0
        %v3041 = vmul.f32 %v2883, %v3040
        %v3042 = vmul.f32 %v2888, %v3040
        %v3043 = vmul.f32 %v2893, %v3040
        %v3044 = vmul.f32 %v2898, %v3040
        %v3045 = vmul.f32 %v2903, %v3040
        %v3046 = vmul.f32 %v2908, %v3040
        %v3047 = vmul.f32 %v2913, %v3040
        %v3048 = vmul.f32 %v2918, %v3040
        %v3049 = vmul.f32 %v2923, %v3040
        %v3050 = vmul.f32 %v2928, %v3040
        %v3051 = vmul.f32 %v2933, %v3040
        %v3052 = vmul.f32 %v2938, %v3040
        %v3053 = vmul.f32 %v2943, %v3040
        %v3054 = vmul.f32 %v2948, %v3040
        %v3055 = vmul.f32 %v2953, %v3040
        %v3056 = vmul.f32 %v2958, %v3040
        %v3057 = vmul.f32 %v2963, %v3040
        %v3058 = vmul.f32 %v2968, %v3040
        %v3059 = vmul.f32 %v2973, %v3040
        %v3060 = vmul.f32 %v2978, %v3040
        %v3061 = vmul.f32 %v2983, %v3040
        %v3062 = vmul.f32 %v2988, %v3040
        %v3063 = vmul.f32 %v2993, %v3040
        %v3064 = vmul.f32 %v2998, %v3040
        %v3065 = vmul.f32 %v3003, %v3040
        %v3066 = vmul.f32 %v3008, %v3040
        %v3067 = vmul.f32 %v3013, %v3040
        %v3068 = vmul.f32 %v3018, %v3040
        %v3069 = vmul.f32 %v3023, %v3040
        %v3070 = vmul.f32 %v3028, %v3040
        %v3071 = vmul.f32 %v3033, %v3040
        %v3072 = vmul.f32 %v3038, %v3040
        %v3073 = vadd.f32 %v2815, %v3041
        %v3074 = vadd.f32 %v2816, %v3042
        %v3075 = vadd.f32 %v2817, %v3043
        %v3076 = vadd.f32 %v2818, %v3044
        %v3077 = vadd.f32 %v2819, %v3045
        %v3078 = vadd.f32 %v2820, %v3046
        %v3079 = vadd.f32 %v2821, %v3047
        %v3080 = vadd.f32 %v2822, %v3048
        %v3081 = vadd.f32 %v2823, %v3049
        %v3082 = vadd.f32 %v2824, %v3050
        %v3083 = vadd.f32 %v2825, %v3051
        %v3084 = vadd.f32 %v2826, %v3052
        %v3085 = vadd.f32 %v2827, %v3053
        %v3086 = vadd.f32 %v2828, %v3054
        %v3087 = vadd.f32 %v2829, %v3055
        %v3088 = vadd.f32 %v2830, %v3056
        %v3089 = vadd.f32 %v2831, %v3057
        %v3090 = vadd.f32 %v2832, %v3058
        %v3091 = vadd.f32 %v2833, %v3059
        %v3092 = vadd.f32 %v2834, %v3060
        %v3093 = vadd.f32 %v2835, %v3061
        %v3094 = vadd.f32 %v2836, %v3062
        %v3095 = vadd.f32 %v2837, %v3063
        %v3096 = vadd.f32 %v2838, %v3064
        %v3097 = vadd.f32 %v2839, %v3065
        %v3098 = vadd.f32 %v2840, %v3066
        %v3099 = vadd.f32 %v2841, %v3067
        %v3100 = vadd.f32 %v2842, %v3068
        %v3101 = vadd.f32 %v2843, %v3069
        %v3102 = vadd.f32 %v2844, %v3070
        %v3103 = vadd.f32 %v2845, %v3071
        %v3104 = vadd.f32 %v2846, %v3072
        %v3105 = vmax.f32 %v3073, 0.0
        %v3106 = vmax.f32 %v3074, 0.0
        %v3107 = vmax.f32 %v3075, 0.0
        %v3108 = vmax.f32 %v3076, 0.0
        %v3109 = vmax.f32 %v3077, 0.0
        %v3110 = vmax.f32 %v3078, 0.0
        %v3111 = vmax.f32 %v3079, 0.0
        %v3112 = vmax.f32 %v3080, 0.0
        %v3113 = vmax.f32 %v3081, 0.0
        %v3114 = vmax.f32 %v3082, 0.0
        %v3115 = vmax.f32 %v3083, 0.0
        %v3116 = vmax.f32 %v3084, 0.0
        %v3117 = vmax.f32 %v3085, 0.0
        %v3118 = vmax.f32 %v3086, 0.0
        %v3119 = vmax.f32 %v3087, 0.0
        %v3120 = vmax.f32 %v3088, 0.0
        %v3121 = vmax.f32 %v3089, 0.0
        %v3122 = vmax.f32 %v3090, 0.0
        %v3123 = vmax.f32 %v3091, 0.0
        %v3124 = vmax.f32 %v3092, 0.0
        %v3125 = vmax.f32 %v3093, 0.0
        %v3126 = vmax.f32 %v3094, 0.0
        %v3127 = vmax.f32 %v3095, 0.0
        %v3128 = vmax.f32 %v3096, 0.0
        %v3129 = vmax.f32 %v3097, 0.0
        %v3130 = vmax.f32 %v3098, 0.0
        %v3131 = vmax.f32 %v3099, 0.0
        %v3132 = vmax.f32 %v3100, 0.0
        %v3133 = vmax.f32 %v3101, 0.0
        %v3134 = vmax.f32 %v3102, 0.0
        %v3135 = vmax.f32 %v3103, 0.0
        %v3136 = vmax.f32 %v3104, 0.0
        %s3137 = scalar_lea.vmem [#allocation3], 32
        %3138 = vst.msk [vmem:[%s3137 + $0x8] sm:$0xff] %vm351, %v3105
        %3139 = vst.msk [vmem:[%s3137 + $0x10] sm:$0xff] %vm351, %v3106
        %3140 = vst.msk [vmem:[%s3137 + $0x28] sm:$0xff] %vm351, %v3107
        %3141 = vst.msk [vmem:[%s3137 + $0x30] sm:$0xff] %vm351, %v3108
        %3142 = vst.msk [vmem:[%s3137 + $0x48] sm:$0xff] %vm351, %v3109
        %3143 = vst.msk [vmem:[%s3137 + $0x50] sm:$0xff] %vm351, %v3110
        %3144 = vst.msk [vmem:[%s3137 + $0x68] sm:$0xff] %vm351, %v3111
        %3145 = vst.msk [vmem:[%s3137 + $0x70] sm:$0xff] %vm351, %v3112
        %3146 = vst.msk [vmem:[%s3137 + $0x88] sm:$0xff] %vm351, %v3113
        %3147 = vst.msk [vmem:[%s3137 + $0x90] sm:$0xff] %vm351, %v3114
        %3148 = vst.msk [vmem:[%s3137 + $0xa8] sm:$0xff] %vm351, %v3115
        %3149 = vst.msk [vmem:[%s3137 + $0xb0] sm:$0xff] %vm351, %v3116
        %3150 = vst.msk [vmem:[%s3137 + $0xc8] sm:$0xff] %vm351, %v3117
        %3151 = vst.msk [vmem:[%s3137 + $0xd0] sm:$0xff] %vm351, %v3118
        %3152 = vst.msk [vmem:[%s3137 + $0xe8] sm:$0xff] %vm351, %v3119
        %3153 = vst.msk [vmem:[%s3137 + $0xf0] sm:$0xff] %vm351, %v3120
        %3154 = vst.msk [vmem:[%s3137 + $0x108] sm:$0xff] %vm351, %v3121
        %3155 = vst.msk [vmem:[%s3137 + $0x110] sm:$0xff] %vm351, %v3122
        %3156 = vst.msk [vmem:[%s3137 + $0x128] sm:$0xff] %vm351, %v3123
        %3157 = vst.msk [vmem:[%s3137 + $0x130] sm:$0xff] %vm351, %v3124
        %3158 = vst.msk [vmem:[%s3137 + $0x148] sm:$0xff] %vm351, %v3125
        %3159 = vst.msk [vmem:[%s3137 + $0x150] sm:$0xff] %vm351, %v3126
        %3160 = vst.msk [vmem:[%s3137 + $0x168] sm:$0xff] %vm351, %v3127
        %3161 = vst.msk [vmem:[%s3137 + $0x170] sm:$0xff] %vm351, %v3128
        %3162 = vst.msk [vmem:[%s3137 + $0x188] sm:$0xff] %vm351, %v3129
        %3163 = vst.msk [vmem:[%s3137 + $0x190] sm:$0xff] %vm351, %v3130
        %3164 = vst.msk [vmem:[%s3137 + $0x1a8] sm:$0xff] %vm351, %v3131
        %3165 = vst.msk [vmem:[%s3137 + $0x1b0] sm:$0xff] %vm351, %v3132
        %3166 = vst.msk [vmem:[%s3137 + $0x1c8] sm:$0xff] %vm351, %v3133
        %3167 = vst.msk [vmem:[%s3137 + $0x1d0] sm:$0xff] %vm351, %v3134
        %3168 = vst.msk [vmem:[%s3137 + $0x1e8] sm:$0xff] %vm351, %v3135
        %3169 = vst.msk [vmem:[%s3137 + $0x1f0] sm:$0xff] %vm351, %v3136
        %v3170 = vld [vmem:[#allocation3 + $0x7] sm:$0xff]
        %v3171 = vld [vmem:[#allocation3 + $0xf] sm:$0xff]
        %v3172 = vld [vmem:[#allocation3 + $0x27] sm:$0xff]
        %v3173 = vld [vmem:[#allocation3 + $0x2f] sm:$0xff]
        %v3174 = vld [vmem:[#allocation3 + $0x47] sm:$0xff]
        %v3175 = vld [vmem:[#allocation3 + $0x4f] sm:$0xff]
        %v3176 = vld [vmem:[#allocation3 + $0x67] sm:$0xff]
        %v3177 = vld [vmem:[#allocation3 + $0x6f] sm:$0xff]
        %v3178 = vld [vmem:[#allocation3 + $0x87] sm:$0xff]
        %v3179 = vld [vmem:[#allocation3 + $0x8f] sm:$0xff]
        %v3180 = vld [vmem:[#allocation3 + $0xa7] sm:$0xff]
        %v3181 = vld [vmem:[#allocation3 + $0xaf] sm:$0xff]
        %v3182 = vld [vmem:[#allocation3 + $0xc7] sm:$0xff]
        %v3183 = vld [vmem:[#allocation3 + $0xcf] sm:$0xff]
        %v3184 = vld [vmem:[#allocation3 + $0xe7] sm:$0xff]
        %v3185 = vld [vmem:[#allocation3 + $0xef] sm:$0xff]
        %v3186 = vld [vmem:[#allocation3 + $0x107] sm:$0xff]
        %v3187 = vld [vmem:[#allocation3 + $0x10f] sm:$0xff]
        %v3188 = vld [vmem:[#allocation3 + $0x127] sm:$0xff]
        %v3189 = vld [vmem:[#allocation3 + $0x12f] sm:$0xff]
        %v3190 = vld [vmem:[#allocation3 + $0x147] sm:$0xff]
        %v3191 = vld [vmem:[#allocation3 + $0x14f] sm:$0xff]
        %v3192 = vld [vmem:[#allocation3 + $0x167] sm:$0xff]
        %v3193 = vld [vmem:[#allocation3 + $0x16f] sm:$0xff]
        %v3194 = vld [vmem:[#allocation3 + $0x187] sm:$0xff]
        %v3195 = vld [vmem:[#allocation3 + $0x18f] sm:$0xff]
        %v3196 = vld [vmem:[#allocation3 + $0x1a7] sm:$0xff]
        %v3197 = vld [vmem:[#allocation3 + $0x1af] sm:$0xff]
        %v3198 = vld [vmem:[#allocation3 + $0x1c7] sm:$0xff]
        %v3199 = vld [vmem:[#allocation3 + $0x1cf] sm:$0xff]
        %v3200 = vld [vmem:[#allocation3 + $0x1e7] sm:$0xff]
        %v3201 = vld [vmem:[#allocation3 + $0x1ef] sm:$0xff]
        %3202 = vst.msk [vmem:[#allocation4] sm:$0xff] %vm351, %v3170
        %3203 = vst.msk [vmem:[#allocation4 + $0x48] sm:$0xff] %vm351, %v3171
        %3204 = vst.msk [vmem:[#allocation4 + $0x90] sm:$0xff] %vm351, %v3172
        %3205 = vst.msk [vmem:[#allocation4 + $0xd8] sm:$0xff] %vm351, %v3173
        %3206 = vst.msk [vmem:[#allocation4 + $0x120] sm:$0xff] %vm351, %v3174
        %3207 = vst.msk [vmem:[#allocation4 + $0x168] sm:$0xff] %vm351, %v3175
        %3208 = vst.msk [vmem:[#allocation4 + $0x1b0] sm:$0xff] %vm351, %v3176
        %3209 = vst.msk [vmem:[#allocation4 + $0x1f8] sm:$0xff] %vm351, %v3177
        %3210 = vst.msk [vmem:[#allocation4 + $0x240] sm:$0xff] %vm351, %v3178
        %3211 = vst.msk [vmem:[#allocation4 + $0x288] sm:$0xff] %vm351, %v3179
        %3212 = vst.msk [vmem:[#allocation4 + $0x2d0] sm:$0xff] %vm351, %v3180
        %3213 = vst.msk [vmem:[#allocation4 + $0x318] sm:$0xff] %vm351, %v3181
        %3214 = vst.msk [vmem:[#allocation4 + $0x360] sm:$0xff] %vm351, %v3182
        %3215 = vst.msk [vmem:[#allocation4 + $0x3a8] sm:$0xff] %vm351, %v3183
        %3216 = vst.msk [vmem:[#allocation4 + $0x3f0] sm:$0xff] %vm351, %v3184
        %3217 = vst.msk [vmem:[#allocation4 + $0x438] sm:$0xff] %vm351, %v3185
        %3218 = vst.msk [vmem:[#allocation4 + $0x480] sm:$0xff] %vm351, %v3186
        %3219 = vst.msk [vmem:[#allocation4 + $0x4c8] sm:$0xff] %vm351, %v3187
        %3220 = vst.msk [vmem:[#allocation4 + $0x510] sm:$0xff] %vm351, %v3188
        %3221 = vst.msk [vmem:[#allocation4 + $0x558] sm:$0xff] %vm351, %v3189
        %3222 = vst.msk [vmem:[#allocation4 + $0x5a0] sm:$0xff] %vm351, %v3190
        %3223 = vst.msk [vmem:[#allocation4 + $0x5e8] sm:$0xff] %vm351, %v3191
        %3224 = vst.msk [vmem:[#allocation4 + $0x630] sm:$0xff] %vm351, %v3192
        %3225 = vst.msk [vmem:[#allocation4 + $0x678] sm:$0xff] %vm351, %v3193
        %3226 = vst.msk [vmem:[#allocation4 + $0x6c0] sm:$0xff] %vm351, %v3194
        %3227 = vst.msk [vmem:[#allocation4 + $0x708] sm:$0xff] %vm351, %v3195
        %3228 = vst.msk [vmem:[#allocation4 + $0x750] sm:$0xff] %vm351, %v3196
        %3229 = vst.msk [vmem:[#allocation4 + $0x798] sm:$0xff] %vm351, %v3197
        %3230 = vst.msk [vmem:[#allocation4 + $0x7e0] sm:$0xff] %vm351, %v3198
        %3231 = vst.msk [vmem:[#allocation4 + $0x828] sm:$0xff] %vm351, %v3199
        %3232 = vst.msk [vmem:[#allocation4 + $0x870] sm:$0xff] %vm351, %v3200
        %3233 = vst.msk [vmem:[#allocation4 + $0x8b8] sm:$0xff] %vm351, %v3201
        %v3234 = vld [vmem:[#allocation3 + $0x8] sm:$0xff]
        %v3235 = vld [vmem:[#allocation3 + $0x10] sm:$0xff]
        %v3236 = vld [vmem:[#allocation3 + $0x28] sm:$0xff]
        %v3237 = vld [vmem:[#allocation3 + $0x30] sm:$0xff]
        %v3238 = vld [vmem:[#allocation3 + $0x48] sm:$0xff]
        %v3239 = vld [vmem:[#allocation3 + $0x50] sm:$0xff]
        %v3240 = vld [vmem:[#allocation3 + $0x68] sm:$0xff]
        %v3241 = vld [vmem:[#allocation3 + $0x70] sm:$0xff]
        %v3242 = vld [vmem:[#allocation3 + $0x88] sm:$0xff]
        %v3243 = vld [vmem:[#allocation3 + $0x90] sm:$0xff]
        %v3244 = vld [vmem:[#allocation3 + $0xa8] sm:$0xff]
        %v3245 = vld [vmem:[#allocation3 + $0xb0] sm:$0xff]
        %v3246 = vld [vmem:[#allocation3 + $0xc8] sm:$0xff]
        %v3247 = vld [vmem:[#allocation3 + $0xd0] sm:$0xff]
        %v3248 = vld [vmem:[#allocation3 + $0xe8] sm:$0xff]
        %v3249 = vld [vmem:[#allocation3 + $0xf0] sm:$0xff]
        %v3250 = vld [vmem:[#allocation3 + $0x108] sm:$0xff]
        %v3251 = vld [vmem:[#allocation3 + $0x110] sm:$0xff]
        %v3252 = vld [vmem:[#allocation3 + $0x128] sm:$0xff]
        %v3253 = vld [vmem:[#allocation3 + $0x130] sm:$0xff]
        %v3254 = vld [vmem:[#allocation3 + $0x148] sm:$0xff]
        %v3255 = vld [vmem:[#allocation3 + $0x150] sm:$0xff]
        %v3256 = vld [vmem:[#allocation3 + $0x168] sm:$0xff]
        %v3257 = vld [vmem:[#allocation3 + $0x170] sm:$0xff]
        %v3258 = vld [vmem:[#allocation3 + $0x188] sm:$0xff]
        %v3259 = vld [vmem:[#allocation3 + $0x190] sm:$0xff]
        %v3260 = vld [vmem:[#allocation3 + $0x1a8] sm:$0xff]
        %v3261 = vld [vmem:[#allocation3 + $0x1b0] sm:$0xff]
        %v3262 = vld [vmem:[#allocation3 + $0x1c8] sm:$0xff]
        %v3263 = vld [vmem:[#allocation3 + $0x1d0] sm:$0xff]
        %v3264 = vld [vmem:[#allocation3 + $0x1e8] sm:$0xff]
        %v3265 = vld [vmem:[#allocation3 + $0x1f0] sm:$0xff]
        %3266 = vst.msk [vmem:[#allocation4 + $0x8] sm:$0xff] %vm351, %v3234
        %3267 = vst.msk [vmem:[#allocation4 + $0x50] sm:$0xff] %vm351, %v3235
        %3268 = vst.msk [vmem:[#allocation4 + $0x98] sm:$0xff] %vm351, %v3236
        %3269 = vst.msk [vmem:[#allocation4 + $0xe0] sm:$0xff] %vm351, %v3237
        %3270 = vst.msk [vmem:[#allocation4 + $0x128] sm:$0xff] %vm351, %v3238
        %3271 = vst.msk [vmem:[#allocation4 + $0x170] sm:$0xff] %vm351, %v3239
        %3272 = vst.msk [vmem:[#allocation4 + $0x1b8] sm:$0xff] %vm351, %v3240
        %3273 = vst.msk [vmem:[#allocation4 + $0x200] sm:$0xff] %vm351, %v3241
        %3274 = vst.msk [vmem:[#allocation4 + $0x248] sm:$0xff] %vm351, %v3242
        %3275 = vst.msk [vmem:[#allocation4 + $0x290] sm:$0xff] %vm351, %v3243
        %3276 = vst.msk [vmem:[#allocation4 + $0x2d8] sm:$0xff] %vm351, %v3244
        %3277 = vst.msk [vmem:[#allocation4 + $0x320] sm:$0xff] %vm351, %v3245
        %3278 = vst.msk [vmem:[#allocation4 + $0x368] sm:$0xff] %vm351, %v3246
        %3279 = vst.msk [vmem:[#allocation4 + $0x3b0] sm:$0xff] %vm351, %v3247
        %3280 = vst.msk [vmem:[#allocation4 + $0x3f8] sm:$0xff] %vm351, %v3248
        %3281 = vst.msk [vmem:[#allocation4 + $0x440] sm:$0xff] %vm351, %v3249
        %3282 = vst.msk [vmem:[#allocation4 + $0x488] sm:$0xff] %vm351, %v3250
        %3283 = vst.msk [vmem:[#allocation4 + $0x4d0] sm:$0xff] %vm351, %v3251
        %3284 = vst.msk [vmem:[#allocation4 + $0x518] sm:$0xff] %vm351, %v3252
        %3285 = vst.msk [vmem:[#allocation4 + $0x560] sm:$0xff] %vm351, %v3253
        %3286 = vst.msk [vmem:[#allocation4 + $0x5a8] sm:$0xff] %vm351, %v3254
        %3287 = vst.msk [vmem:[#allocation4 + $0x5f0] sm:$0xff] %vm351, %v3255
        %3288 = vst.msk [vmem:[#allocation4 + $0x638] sm:$0xff] %vm351, %v3256
        %3289 = vst.msk [vmem:[#allocation4 + $0x680] sm:$0xff] %vm351, %v3257
        %3290 = vst.msk [vmem:[#allocation4 + $0x6c8] sm:$0xff] %vm351, %v3258
        %3291 = vst.msk [vmem:[#allocation4 + $0x710] sm:$0xff] %vm351, %v3259
        %3292 = vst.msk [vmem:[#allocation4 + $0x758] sm:$0xff] %vm351, %v3260
        %3293 = vst.msk [vmem:[#allocation4 + $0x7a0] sm:$0xff] %vm351, %v3261
        %3294 = vst.msk [vmem:[#allocation4 + $0x7e8] sm:$0xff] %vm351, %v3262
        %3295 = vst.msk [vmem:[#allocation4 + $0x830] sm:$0xff] %vm351, %v3263
        %3296 = vst.msk [vmem:[#allocation4 + $0x878] sm:$0xff] %vm351, %v3264
        %3297 = vst.msk [vmem:[#allocation4 + $0x8c0] sm:$0xff] %vm351, %v3265
        %v3298 = vld [vmem:[#allocation3 + $0x9] sm:$0xff]
        %v3299 = vld [vmem:[#allocation3 + $0x11] sm:$0xff]
        %v3300 = vld [vmem:[#allocation3 + $0x29] sm:$0xff]
        %v3301 = vld [vmem:[#allocation3 + $0x31] sm:$0xff]
        %v3302 = vld [vmem:[#allocation3 + $0x49] sm:$0xff]
        %v3303 = vld [vmem:[#allocation3 + $0x51] sm:$0xff]
        %v3304 = vld [vmem:[#allocation3 + $0x69] sm:$0xff]
        %v3305 = vld [vmem:[#allocation3 + $0x71] sm:$0xff]
        %v3306 = vld [vmem:[#allocation3 + $0x89] sm:$0xff]
        %v3307 = vld [vmem:[#allocation3 + $0x91] sm:$0xff]
        %v3308 = vld [vmem:[#allocation3 + $0xa9] sm:$0xff]
        %v3309 = vld [vmem:[#allocation3 + $0xb1] sm:$0xff]
        %v3310 = vld [vmem:[#allocation3 + $0xc9] sm:$0xff]
        %v3311 = vld [vmem:[#allocation3 + $0xd1] sm:$0xff]
        %v3312 = vld [vmem:[#allocation3 + $0xe9] sm:$0xff]
        %v3313 = vld [vmem:[#allocation3 + $0xf1] sm:$0xff]
        %v3314 = vld [vmem:[#allocation3 + $0x109] sm:$0xff]
        %v3315 = vld [vmem:[#allocation3 + $0x111] sm:$0xff]
        %v3316 = vld [vmem:[#allocation3 + $0x129] sm:$0xff]
        %v3317 = vld [vmem:[#allocation3 + $0x131] sm:$0xff]
        %v3318 = vld [vmem:[#allocation3 + $0x149] sm:$0xff]
        %v3319 = vld [vmem:[#allocation3 + $0x151] sm:$0xff]
        %v3320 = vld [vmem:[#allocation3 + $0x169] sm:$0xff]
        %v3321 = vld [vmem:[#allocation3 + $0x171] sm:$0xff]
        %v3322 = vld [vmem:[#allocation3 + $0x189] sm:$0xff]
        %v3323 = vld [vmem:[#allocation3 + $0x191] sm:$0xff]
        %v3324 = vld [vmem:[#allocation3 + $0x1a9] sm:$0xff]
        %v3325 = vld [vmem:[#allocation3 + $0x1b1] sm:$0xff]
        %v3326 = vld [vmem:[#allocation3 + $0x1c9] sm:$0xff]
        %v3327 = vld [vmem:[#allocation3 + $0x1d1] sm:$0xff]
        %v3328 = vld [vmem:[#allocation3 + $0x1e9] sm:$0xff]
        %v3329 = vld [vmem:[#allocation3 + $0x1f1] sm:$0xff]
        %3330 = vst.msk [vmem:[#allocation4 + $0x10] sm:$0xff] %vm351, %v3298
        %3331 = vst.msk [vmem:[#allocation4 + $0x58] sm:$0xff] %vm351, %v3299
        %3332 = vst.msk [vmem:[#allocation4 + $0xa0] sm:$0xff] %vm351, %v3300
        %3333 = vst.msk [vmem:[#allocation4 + $0xe8] sm:$0xff] %vm351, %v3301
        %3334 = vst.msk [vmem:[#allocation4 + $0x130] sm:$0xff] %vm351, %v3302
        %3335 = vst.msk [vmem:[#allocation4 + $0x178] sm:$0xff] %vm351, %v3303
        %3336 = vst.msk [vmem:[#allocation4 + $0x1c0] sm:$0xff] %vm351, %v3304
        %3337 = vst.msk [vmem:[#allocation4 + $0x208] sm:$0xff] %vm351, %v3305
        %3338 = vst.msk [vmem:[#allocation4 + $0x250] sm:$0xff] %vm351, %v3306
        %3339 = vst.msk [vmem:[#allocation4 + $0x298] sm:$0xff] %vm351, %v3307
        %3340 = vst.msk [vmem:[#allocation4 + $0x2e0] sm:$0xff] %vm351, %v3308
        %3341 = vst.msk [vmem:[#allocation4 + $0x328] sm:$0xff] %vm351, %v3309
        %3342 = vst.msk [vmem:[#allocation4 + $0x370] sm:$0xff] %vm351, %v3310
        %3343 = vst.msk [vmem:[#allocation4 + $0x3b8] sm:$0xff] %vm351, %v3311
        %3344 = vst.msk [vmem:[#allocation4 + $0x400] sm:$0xff] %vm351, %v3312
        %3345 = vst.msk [vmem:[#allocation4 + $0x448] sm:$0xff] %vm351, %v3313
        %3346 = vst.msk [vmem:[#allocation4 + $0x490] sm:$0xff] %vm351, %v3314
        %3347 = vst.msk [vmem:[#allocation4 + $0x4d8] sm:$0xff] %vm351, %v3315
        %3348 = vst.msk [vmem:[#allocation4 + $0x520] sm:$0xff] %vm351, %v3316
        %3349 = vst.msk [vmem:[#allocation4 + $0x568] sm:$0xff] %vm351, %v3317
        %3350 = vst.msk [vmem:[#allocation4 + $0x5b0] sm:$0xff] %vm351, %v3318
        %3351 = vst.msk [vmem:[#allocation4 + $0x5f8] sm:$0xff] %vm351, %v3319
        %3352 = vst.msk [vmem:[#allocation4 + $0x640] sm:$0xff] %vm351, %v3320
        %3353 = vst.msk [vmem:[#allocation4 + $0x688] sm:$0xff] %vm351, %v3321
        %3354 = vst.msk [vmem:[#allocation4 + $0x6d0] sm:$0xff] %vm351, %v3322
        %3355 = vst.msk [vmem:[#allocation4 + $0x718] sm:$0xff] %vm351, %v3323
        %3356 = vst.msk [vmem:[#allocation4 + $0x760] sm:$0xff] %vm351, %v3324
        %3357 = vst.msk [vmem:[#allocation4 + $0x7a8] sm:$0xff] %vm351, %v3325
        %3358 = vst.msk [vmem:[#allocation4 + $0x7f0] sm:$0xff] %vm351, %v3326
        %3359 = vst.msk [vmem:[#allocation4 + $0x838] sm:$0xff] %vm351, %v3327
        %3360 = vst.msk [vmem:[#allocation4 + $0x880] sm:$0xff] %vm351, %v3328
        %3361 = vst.msk [vmem:[#allocation4 + $0x8c8] sm:$0xff] %vm351, %v3329
        %v3362 = vld [vmem:[%s3137 + $0x7] sm:$0xff]
        %v3363 = vld [vmem:[%s3137 + $0xf] sm:$0xff]
        %v3364 = vld [vmem:[%s3137 + $0x27] sm:$0xff]
        %v3365 = vld [vmem:[%s3137 + $0x2f] sm:$0xff]
        %v3366 = vld [vmem:[%s3137 + $0x47] sm:$0xff]
        %v3367 = vld [vmem:[%s3137 + $0x4f] sm:$0xff]
        %v3368 = vld [vmem:[%s3137 + $0x67] sm:$0xff]
        %v3369 = vld [vmem:[%s3137 + $0x6f] sm:$0xff]
        %v3370 = vld [vmem:[%s3137 + $0x87] sm:$0xff]
        %v3371 = vld [vmem:[%s3137 + $0x8f] sm:$0xff]
        %v3372 = vld [vmem:[%s3137 + $0xa7] sm:$0xff]
        %v3373 = vld [vmem:[%s3137 + $0xaf] sm:$0xff]
        %v3374 = vld [vmem:[%s3137 + $0xc7] sm:$0xff]
        %v3375 = vld [vmem:[%s3137 + $0xcf] sm:$0xff]
        %v3376 = vld [vmem:[%s3137 + $0xe7] sm:$0xff]
        %v3377 = vld [vmem:[%s3137 + $0xef] sm:$0xff]
        %v3378 = vld [vmem:[%s3137 + $0x107] sm:$0xff]
        %v3379 = vld [vmem:[%s3137 + $0x10f] sm:$0xff]
        %v3380 = vld [vmem:[%s3137 + $0x127] sm:$0xff]
        %v3381 = vld [vmem:[%s3137 + $0x12f] sm:$0xff]
        %v3382 = vld [vmem:[%s3137 + $0x147] sm:$0xff]
        %v3383 = vld [vmem:[%s3137 + $0x14f] sm:$0xff]
        %v3384 = vld [vmem:[%s3137 + $0x167] sm:$0xff]
        %v3385 = vld [vmem:[%s3137 + $0x16f] sm:$0xff]
        %v3386 = vld [vmem:[%s3137 + $0x187] sm:$0xff]
        %v3387 = vld [vmem:[%s3137 + $0x18f] sm:$0xff]
        %v3388 = vld [vmem:[%s3137 + $0x1a7] sm:$0xff]
        %v3389 = vld [vmem:[%s3137 + $0x1af] sm:$0xff]
        %v3390 = vld [vmem:[%s3137 + $0x1c7] sm:$0xff]
        %v3391 = vld [vmem:[%s3137 + $0x1cf] sm:$0xff]
        %v3392 = vld [vmem:[%s3137 + $0x1e7] sm:$0xff]
        %v3393 = vld [vmem:[%s3137 + $0x1ef] sm:$0xff]
        %3394 = vst.msk [vmem:[#allocation4 + $0x18] sm:$0xff] %vm351, %v3362
        %3395 = vst.msk [vmem:[#allocation4 + $0x60] sm:$0xff] %vm351, %v3363
        %3396 = vst.msk [vmem:[#allocation4 + $0xa8] sm:$0xff] %vm351, %v3364
        %3397 = vst.msk [vmem:[#allocation4 + $0xf0] sm:$0xff] %vm351, %v3365
        %3398 = vst.msk [vmem:[#allocation4 + $0x138] sm:$0xff] %vm351, %v3366
        %3399 = vst.msk [vmem:[#allocation4 + $0x180] sm:$0xff] %vm351, %v3367
        %3400 = vst.msk [vmem:[#allocation4 + $0x1c8] sm:$0xff] %vm351, %v3368
        %3401 = vst.msk [vmem:[#allocation4 + $0x210] sm:$0xff] %vm351, %v3369
        %3402 = vst.msk [vmem:[#allocation4 + $0x258] sm:$0xff] %vm351, %v3370
        %3403 = vst.msk [vmem:[#allocation4 + $0x2a0] sm:$0xff] %vm351, %v3371
        %3404 = vst.msk [vmem:[#allocation4 + $0x2e8] sm:$0xff] %vm351, %v3372
        %3405 = vst.msk [vmem:[#allocation4 + $0x330] sm:$0xff] %vm351, %v3373
        %3406 = vst.msk [vmem:[#allocation4 + $0x378] sm:$0xff] %vm351, %v3374
        %3407 = vst.msk [vmem:[#allocation4 + $0x3c0] sm:$0xff] %vm351, %v3375
        %3408 = vst.msk [vmem:[#allocation4 + $0x408] sm:$0xff] %vm351, %v3376
        %3409 = vst.msk [vmem:[#allocation4 + $0x450] sm:$0xff] %vm351, %v3377
        %3410 = vst.msk [vmem:[#allocation4 + $0x498] sm:$0xff] %vm351, %v3378
        %3411 = vst.msk [vmem:[#allocation4 + $0x4e0] sm:$0xff] %vm351, %v3379
        %3412 = vst.msk [vmem:[#allocation4 + $0x528] sm:$0xff] %vm351, %v3380
        %3413 = vst.msk [vmem:[#allocation4 + $0x570] sm:$0xff] %vm351, %v3381
        %3414 = vst.msk [vmem:[#allocation4 + $0x5b8] sm:$0xff] %vm351, %v3382
        %3415 = vst.msk [vmem:[#allocation4 + $0x600] sm:$0xff] %vm351, %v3383
        %3416 = vst.msk [vmem:[#allocation4 + $0x648] sm:$0xff] %vm351, %v3384
        %3417 = vst.msk [vmem:[#allocation4 + $0x690] sm:$0xff] %vm351, %v3385
        %3418 = vst.msk [vmem:[#allocation4 + $0x6d8] sm:$0xff] %vm351, %v3386
        %3419 = vst.msk [vmem:[#allocation4 + $0x720] sm:$0xff] %vm351, %v3387
        %3420 = vst.msk [vmem:[#allocation4 + $0x768] sm:$0xff] %vm351, %v3388
        %3421 = vst.msk [vmem:[#allocation4 + $0x7b0] sm:$0xff] %vm351, %v3389
        %3422 = vst.msk [vmem:[#allocation4 + $0x7f8] sm:$0xff] %vm351, %v3390
        %3423 = vst.msk [vmem:[#allocation4 + $0x840] sm:$0xff] %vm351, %v3391
        %3424 = vst.msk [vmem:[#allocation4 + $0x888] sm:$0xff] %vm351, %v3392
        %3425 = vst.msk [vmem:[#allocation4 + $0x8d0] sm:$0xff] %vm351, %v3393
        %v3426 = vld [vmem:[%s3137 + $0x8] sm:$0xff]
        %v3427 = vld [vmem:[%s3137 + $0x10] sm:$0xff]
        %v3428 = vld [vmem:[%s3137 + $0x28] sm:$0xff]
        %v3429 = vld [vmem:[%s3137 + $0x30] sm:$0xff]
        %v3430 = vld [vmem:[%s3137 + $0x48] sm:$0xff]
        %v3431 = vld [vmem:[%s3137 + $0x50] sm:$0xff]
        %v3432 = vld [vmem:[%s3137 + $0x68] sm:$0xff]
        %v3433 = vld [vmem:[%s3137 + $0x70] sm:$0xff]
        %v3434 = vld [vmem:[%s3137 + $0x88] sm:$0xff]
        %v3435 = vld [vmem:[%s3137 + $0x90] sm:$0xff]
        %v3436 = vld [vmem:[%s3137 + $0xa8] sm:$0xff]
        %v3437 = vld [vmem:[%s3137 + $0xb0] sm:$0xff]
        %v3438 = vld [vmem:[%s3137 + $0xc8] sm:$0xff]
        %v3439 = vld [vmem:[%s3137 + $0xd0] sm:$0xff]
        %v3440 = vld [vmem:[%s3137 + $0xe8] sm:$0xff]
        %v3441 = vld [vmem:[%s3137 + $0xf0] sm:$0xff]
        %v3442 = vld [vmem:[%s3137 + $0x108] sm:$0xff]
        %v3443 = vld [vmem:[%s3137 + $0x110] sm:$0xff]
        %v3444 = vld [vmem:[%s3137 + $0x128] sm:$0xff]
        %v3445 = vld [vmem:[%s3137 + $0x130] sm:$0xff]
        %v3446 = vld [vmem:[%s3137 + $0x148] sm:$0xff]
        %v3447 = vld [vmem:[%s3137 + $0x150] sm:$0xff]
        %v3448 = vld [vmem:[%s3137 + $0x168] sm:$0xff]
        %v3449 = vld [vmem:[%s3137 + $0x170] sm:$0xff]
        %v3450 = vld [vmem:[%s3137 + $0x188] sm:$0xff]
        %v3451 = vld [vmem:[%s3137 + $0x190] sm:$0xff]
        %v3452 = vld [vmem:[%s3137 + $0x1a8] sm:$0xff]
        %v3453 = vld [vmem:[%s3137 + $0x1b0] sm:$0xff]
        %v3454 = vld [vmem:[%s3137 + $0x1c8] sm:$0xff]
        %v3455 = vld [vmem:[%s3137 + $0x1d0] sm:$0xff]
        %v3456 = vld [vmem:[%s3137 + $0x1e8] sm:$0xff]
        %v3457 = vld [vmem:[%s3137 + $0x1f0] sm:$0xff]
        %3458 = vst.msk [vmem:[#allocation4 + $0x20] sm:$0xff] %vm351, %v3426
        %3459 = vst.msk [vmem:[#allocation4 + $0x68] sm:$0xff] %vm351, %v3427
        %3460 = vst.msk [vmem:[#allocation4 + $0xb0] sm:$0xff] %vm351, %v3428
        %3461 = vst.msk [vmem:[#allocation4 + $0xf8] sm:$0xff] %vm351, %v3429
        %3462 = vst.msk [vmem:[#allocation4 + $0x140] sm:$0xff] %vm351, %v3430
        %3463 = vst.msk [vmem:[#allocation4 + $0x188] sm:$0xff] %vm351, %v3431
        %3464 = vst.msk [vmem:[#allocation4 + $0x1d0] sm:$0xff] %vm351, %v3432
        %3465 = vst.msk [vmem:[#allocation4 + $0x218] sm:$0xff] %vm351, %v3433
        %3466 = vst.msk [vmem:[#allocation4 + $0x260] sm:$0xff] %vm351, %v3434
        %3467 = vst.msk [vmem:[#allocation4 + $0x2a8] sm:$0xff] %vm351, %v3435
        %3468 = vst.msk [vmem:[#allocation4 + $0x2f0] sm:$0xff] %vm351, %v3436
        %3469 = vst.msk [vmem:[#allocation4 + $0x338] sm:$0xff] %vm351, %v3437
        %3470 = vst.msk [vmem:[#allocation4 + $0x380] sm:$0xff] %vm351, %v3438
        %3471 = vst.msk [vmem:[#allocation4 + $0x3c8] sm:$0xff] %vm351, %v3439
        %3472 = vst.msk [vmem:[#allocation4 + $0x410] sm:$0xff] %vm351, %v3440
        %3473 = vst.msk [vmem:[#allocation4 + $0x458] sm:$0xff] %vm351, %v3441
        %3474 = vst.msk [vmem:[#allocation4 + $0x4a0] sm:$0xff] %vm351, %v3442
        %3475 = vst.msk [vmem:[#allocation4 + $0x4e8] sm:$0xff] %vm351, %v3443
        %3476 = vst.msk [vmem:[#allocation4 + $0x530] sm:$0xff] %vm351, %v3444
        %3477 = vst.msk [vmem:[#allocation4 + $0x578] sm:$0xff] %vm351, %v3445
        %3478 = vst.msk [vmem:[#allocation4 + $0x5c0] sm:$0xff] %vm351, %v3446
        %3479 = vst.msk [vmem:[#allocation4 + $0x608] sm:$0xff] %vm351, %v3447
        %3480 = vst.msk [vmem:[#allocation4 + $0x650] sm:$0xff] %vm351, %v3448
        %3481 = vst.msk [vmem:[#allocation4 + $0x698] sm:$0xff] %vm351, %v3449
        %3482 = vst.msk [vmem:[#allocation4 + $0x6e0] sm:$0xff] %vm351, %v3450
        %3483 = vst.msk [vmem:[#allocation4 + $0x728] sm:$0xff] %vm351, %v3451
        %3484 = vst.msk [vmem:[#allocation4 + $0x770] sm:$0xff] %vm351, %v3452
        %3485 = vst.msk [vmem:[#allocation4 + $0x7b8] sm:$0xff] %vm351, %v3453
        %3486 = vst.msk [vmem:[#allocation4 + $0x800] sm:$0xff] %vm351, %v3454
        %3487 = vst.msk [vmem:[#allocation4 + $0x848] sm:$0xff] %vm351, %v3455
        %3488 = vst.msk [vmem:[#allocation4 + $0x890] sm:$0xff] %vm351, %v3456
        %3489 = vst.msk [vmem:[#allocation4 + $0x8d8] sm:$0xff] %vm351, %v3457
        %v3490 = vld [vmem:[%s3137 + $0x9] sm:$0xff]
        %v3491 = vld [vmem:[%s3137 + $0x11] sm:$0xff]
        %v3492 = vld [vmem:[%s3137 + $0x29] sm:$0xff]
        %v3493 = vld [vmem:[%s3137 + $0x31] sm:$0xff]
        %v3494 = vld [vmem:[%s3137 + $0x49] sm:$0xff]
        %v3495 = vld [vmem:[%s3137 + $0x51] sm:$0xff]
        %v3496 = vld [vmem:[%s3137 + $0x69] sm:$0xff]
        %v3497 = vld [vmem:[%s3137 + $0x71] sm:$0xff]
        %v3498 = vld [vmem:[%s3137 + $0x89] sm:$0xff]
        %v3499 = vld [vmem:[%s3137 + $0x91] sm:$0xff]
        %v3500 = vld [vmem:[%s3137 + $0xa9] sm:$0xff]
        %v3501 = vld [vmem:[%s3137 + $0xb1] sm:$0xff]
        %v3502 = vld [vmem:[%s3137 + $0xc9] sm:$0xff]
        %v3503 = vld [vmem:[%s3137 + $0xd1] sm:$0xff]
        %v3504 = vld [vmem:[%s3137 + $0xe9] sm:$0xff]
        %v3505 = vld [vmem:[%s3137 + $0xf1] sm:$0xff]
        %v3506 = vld [vmem:[%s3137 + $0x109] sm:$0xff]
        %v3507 = vld [vmem:[%s3137 + $0x111] sm:$0xff]
        %v3508 = vld [vmem:[%s3137 + $0x129] sm:$0xff]
        %v3509 = vld [vmem:[%s3137 + $0x131] sm:$0xff]
        %v3510 = vld [vmem:[%s3137 + $0x149] sm:$0xff]
        %v3511 = vld [vmem:[%s3137 + $0x151] sm:$0xff]
        %v3512 = vld [vmem:[%s3137 + $0x169] sm:$0xff]
        %v3513 = vld [vmem:[%s3137 + $0x171] sm:$0xff]
        %v3514 = vld [vmem:[%s3137 + $0x189] sm:$0xff]
        %v3515 = vld [vmem:[%s3137 + $0x191] sm:$0xff]
        %v3516 = vld [vmem:[%s3137 + $0x1a9] sm:$0xff]
        %v3517 = vld [vmem:[%s3137 + $0x1b1] sm:$0xff]
        %v3518 = vld [vmem:[%s3137 + $0x1c9] sm:$0xff]
        %v3519 = vld [vmem:[%s3137 + $0x1d1] sm:$0xff]
        %v3520 = vld [vmem:[%s3137 + $0x1e9] sm:$0xff]
        %v3521 = vld [vmem:[%s3137 + $0x1f1] sm:$0xff]
        %3522 = vst.msk [vmem:[#allocation4 + $0x28] sm:$0xff] %vm351, %v3490
        %3523 = vst.msk [vmem:[#allocation4 + $0x70] sm:$0xff] %vm351, %v3491
        %3524 = vst.msk [vmem:[#allocation4 + $0xb8] sm:$0xff] %vm351, %v3492
        %3525 = vst.msk [vmem:[#allocation4 + $0x100] sm:$0xff] %vm351, %v3493
        %3526 = vst.msk [vmem:[#allocation4 + $0x148] sm:$0xff] %vm351, %v3494
        %3527 = vst.msk [vmem:[#allocation4 + $0x190] sm:$0xff] %vm351, %v3495
        %3528 = vst.msk [vmem:[#allocation4 + $0x1d8] sm:$0xff] %vm351, %v3496
        %3529 = vst.msk [vmem:[#allocation4 + $0x220] sm:$0xff] %vm351, %v3497
        %3530 = vst.msk [vmem:[#allocation4 + $0x268] sm:$0xff] %vm351, %v3498
        %3531 = vst.msk [vmem:[#allocation4 + $0x2b0] sm:$0xff] %vm351, %v3499
        %3532 = vst.msk [vmem:[#allocation4 + $0x2f8] sm:$0xff] %vm351, %v3500
        %3533 = vst.msk [vmem:[#allocation4 + $0x340] sm:$0xff] %vm351, %v3501
        %3534 = vst.msk [vmem:[#allocation4 + $0x388] sm:$0xff] %vm351, %v3502
        %3535 = vst.msk [vmem:[#allocation4 + $0x3d0] sm:$0xff] %vm351, %v3503
        %3536 = vst.msk [vmem:[#allocation4 + $0x418] sm:$0xff] %vm351, %v3504
        %3537 = vst.msk [vmem:[#allocation4 + $0x460] sm:$0xff] %vm351, %v3505
        %3538 = vst.msk [vmem:[#allocation4 + $0x4a8] sm:$0xff] %vm351, %v3506
        %3539 = vst.msk [vmem:[#allocation4 + $0x4f0] sm:$0xff] %vm351, %v3507
        %3540 = vst.msk [vmem:[#allocation4 + $0x538] sm:$0xff] %vm351, %v3508
        %3541 = vst.msk [vmem:[#allocation4 + $0x580] sm:$0xff] %vm351, %v3509
        %3542 = vst.msk [vmem:[#allocation4 + $0x5c8] sm:$0xff] %vm351, %v3510
        %3543 = vst.msk [vmem:[#allocation4 + $0x610] sm:$0xff] %vm351, %v3511
        %3544 = vst.msk [vmem:[#allocation4 + $0x658] sm:$0xff] %vm351, %v3512
        %3545 = vst.msk [vmem:[#allocation4 + $0x6a0] sm:$0xff] %vm351, %v3513
        %3546 = vst.msk [vmem:[#allocation4 + $0x6e8] sm:$0xff] %vm351, %v3514
        %3547 = vst.msk [vmem:[#allocation4 + $0x730] sm:$0xff] %vm351, %v3515
        %3548 = vst.msk [vmem:[#allocation4 + $0x778] sm:$0xff] %vm351, %v3516
        %3549 = vst.msk [vmem:[#allocation4 + $0x7c0] sm:$0xff] %vm351, %v3517
        %3550 = vst.msk [vmem:[#allocation4 + $0x808] sm:$0xff] %vm351, %v3518
        %3551 = vst.msk [vmem:[#allocation4 + $0x850] sm:$0xff] %vm351, %v3519
        %3552 = vst.msk [vmem:[#allocation4 + $0x898] sm:$0xff] %vm351, %v3520
        %3553 = vst.msk [vmem:[#allocation4 + $0x8e0] sm:$0xff] %vm351, %v3521
        %s3554 = scalar_lea.vmem [#allocation3], 64
        %v3555 = vld [vmem:[%s3554 + $0x7] sm:$0xff]
        %v3556 = vld [vmem:[%s3554 + $0xf] sm:$0xff]
        %v3557 = vld [vmem:[%s3554 + $0x27] sm:$0xff]
        %v3558 = vld [vmem:[%s3554 + $0x2f] sm:$0xff]
        %v3559 = vld [vmem:[%s3554 + $0x47] sm:$0xff]
        %v3560 = vld [vmem:[%s3554 + $0x4f] sm:$0xff]
        %v3561 = vld [vmem:[%s3554 + $0x67] sm:$0xff]
        %v3562 = vld [vmem:[%s3554 + $0x6f] sm:$0xff]
        %v3563 = vld [vmem:[%s3554 + $0x87] sm:$0xff]
        %v3564 = vld [vmem:[%s3554 + $0x8f] sm:$0xff]
        %v3565 = vld [vmem:[%s3554 + $0xa7] sm:$0xff]
        %v3566 = vld [vmem:[%s3554 + $0xaf] sm:$0xff]
        %v3567 = vld [vmem:[%s3554 + $0xc7] sm:$0xff]
        %v3568 = vld [vmem:[%s3554 + $0xcf] sm:$0xff]
        %v3569 = vld [vmem:[%s3554 + $0xe7] sm:$0xff]
        %v3570 = vld [vmem:[%s3554 + $0xef] sm:$0xff]
        %v3571 = vld [vmem:[%s3554 + $0x107] sm:$0xff]
        %v3572 = vld [vmem:[%s3554 + $0x10f] sm:$0xff]
        %v3573 = vld [vmem:[%s3554 + $0x127] sm:$0xff]
        %v3574 = vld [vmem:[%s3554 + $0x12f] sm:$0xff]
        %v3575 = vld [vmem:[%s3554 + $0x147] sm:$0xff]
        %v3576 = vld [vmem:[%s3554 + $0x14f] sm:$0xff]
        %v3577 = vld [vmem:[%s3554 + $0x167] sm:$0xff]
        %v3578 = vld [vmem:[%s3554 + $0x16f] sm:$0xff]
        %v3579 = vld [vmem:[%s3554 + $0x187] sm:$0xff]
        %v3580 = vld [vmem:[%s3554 + $0x18f] sm:$0xff]
        %v3581 = vld [vmem:[%s3554 + $0x1a7] sm:$0xff]
        %v3582 = vld [vmem:[%s3554 + $0x1af] sm:$0xff]
        %v3583 = vld [vmem:[%s3554 + $0x1c7] sm:$0xff]
        %v3584 = vld [vmem:[%s3554 + $0x1cf] sm:$0xff]
        %v3585 = vld [vmem:[%s3554 + $0x1e7] sm:$0xff]
        %v3586 = vld [vmem:[%s3554 + $0x1ef] sm:$0xff]
        %3587 = vst.msk [vmem:[#allocation4 + $0x30] sm:$0xff] %vm351, %v3555
        %3588 = vst.msk [vmem:[#allocation4 + $0x78] sm:$0xff] %vm351, %v3556
        %3589 = vst.msk [vmem:[#allocation4 + $0xc0] sm:$0xff] %vm351, %v3557
        %3590 = vst.msk [vmem:[#allocation4 + $0x108] sm:$0xff] %vm351, %v3558
        %3591 = vst.msk [vmem:[#allocation4 + $0x150] sm:$0xff] %vm351, %v3559
        %3592 = vst.msk [vmem:[#allocation4 + $0x198] sm:$0xff] %vm351, %v3560
        %3593 = vst.msk [vmem:[#allocation4 + $0x1e0] sm:$0xff] %vm351, %v3561
        %3594 = vst.msk [vmem:[#allocation4 + $0x228] sm:$0xff] %vm351, %v3562
        %3595 = vst.msk [vmem:[#allocation4 + $0x270] sm:$0xff] %vm351, %v3563
        %3596 = vst.msk [vmem:[#allocation4 + $0x2b8] sm:$0xff] %vm351, %v3564
        %3597 = vst.msk [vmem:[#allocation4 + $0x300] sm:$0xff] %vm351, %v3565
        %3598 = vst.msk [vmem:[#allocation4 + $0x348] sm:$0xff] %vm351, %v3566
        %3599 = vst.msk [vmem:[#allocation4 + $0x390] sm:$0xff] %vm351, %v3567
        %3600 = vst.msk [vmem:[#allocation4 + $0x3d8] sm:$0xff] %vm351, %v3568
        %3601 = vst.msk [vmem:[#allocation4 + $0x420] sm:$0xff] %vm351, %v3569
        %3602 = vst.msk [vmem:[#allocation4 + $0x468] sm:$0xff] %vm351, %v3570
        %3603 = vst.msk [vmem:[#allocation4 + $0x4b0] sm:$0xff] %vm351, %v3571
        %3604 = vst.msk [vmem:[#allocation4 + $0x4f8] sm:$0xff] %vm351, %v3572
        %3605 = vst.msk [vmem:[#allocation4 + $0x540] sm:$0xff] %vm351, %v3573
        %3606 = vst.msk [vmem:[#allocation4 + $0x588] sm:$0xff] %vm351, %v3574
        %3607 = vst.msk [vmem:[#allocation4 + $0x5d0] sm:$0xff] %vm351, %v3575
        %3608 = vst.msk [vmem:[#allocation4 + $0x618] sm:$0xff] %vm351, %v3576
        %3609 = vst.msk [vmem:[#allocation4 + $0x660] sm:$0xff] %vm351, %v3577
        %3610 = vst.msk [vmem:[#allocation4 + $0x6a8] sm:$0xff] %vm351, %v3578
        %3611 = vst.msk [vmem:[#allocation4 + $0x6f0] sm:$0xff] %vm351, %v3579
        %3612 = vst.msk [vmem:[#allocation4 + $0x738] sm:$0xff] %vm351, %v3580
        %3613 = vst.msk [vmem:[#allocation4 + $0x780] sm:$0xff] %vm351, %v3581
        %3614 = vst.msk [vmem:[#allocation4 + $0x7c8] sm:$0xff] %vm351, %v3582
        %3615 = vst.msk [vmem:[#allocation4 + $0x810] sm:$0xff] %vm351, %v3583
        %3616 = vst.msk [vmem:[#allocation4 + $0x858] sm:$0xff] %vm351, %v3584
        %3617 = vst.msk [vmem:[#allocation4 + $0x8a0] sm:$0xff] %vm351, %v3585
        %3618 = vst.msk [vmem:[#allocation4 + $0x8e8] sm:$0xff] %vm351, %v3586
        %v3619 = vld [vmem:[%s3554 + $0x8] sm:$0xff]
        %v3620 = vld [vmem:[%s3554 + $0x10] sm:$0xff]
        %v3621 = vld [vmem:[%s3554 + $0x28] sm:$0xff]
        %v3622 = vld [vmem:[%s3554 + $0x30] sm:$0xff]
        %v3623 = vld [vmem:[%s3554 + $0x48] sm:$0xff]
        %v3624 = vld [vmem:[%s3554 + $0x50] sm:$0xff]
        %v3625 = vld [vmem:[%s3554 + $0x68] sm:$0xff]
        %v3626 = vld [vmem:[%s3554 + $0x70] sm:$0xff]
        %v3627 = vld [vmem:[%s3554 + $0x88] sm:$0xff]
        %v3628 = vld [vmem:[%s3554 + $0x90] sm:$0xff]
        %v3629 = vld [vmem:[%s3554 + $0xa8] sm:$0xff]
        %v3630 = vld [vmem:[%s3554 + $0xb0] sm:$0xff]
        %v3631 = vld [vmem:[%s3554 + $0xc8] sm:$0xff]
        %v3632 = vld [vmem:[%s3554 + $0xd0] sm:$0xff]
        %v3633 = vld [vmem:[%s3554 + $0xe8] sm:$0xff]
        %v3634 = vld [vmem:[%s3554 + $0xf0] sm:$0xff]
        %v3635 = vld [vmem:[%s3554 + $0x108] sm:$0xff]
        %v3636 = vld [vmem:[%s3554 + $0x110] sm:$0xff]
        %v3637 = vld [vmem:[%s3554 + $0x128] sm:$0xff]
        %v3638 = vld [vmem:[%s3554 + $0x130] sm:$0xff]
        %v3639 = vld [vmem:[%s3554 + $0x148] sm:$0xff]
        %v3640 = vld [vmem:[%s3554 + $0x150] sm:$0xff]
        %v3641 = vld [vmem:[%s3554 + $0x168] sm:$0xff]
        %v3642 = vld [vmem:[%s3554 + $0x170] sm:$0xff]
        %v3643 = vld [vmem:[%s3554 + $0x188] sm:$0xff]
        %v3644 = vld [vmem:[%s3554 + $0x190] sm:$0xff]
        %v3645 = vld [vmem:[%s3554 + $0x1a8] sm:$0xff]
        %v3646 = vld [vmem:[%s3554 + $0x1b0] sm:$0xff]
        %v3647 = vld [vmem:[%s3554 + $0x1c8] sm:$0xff]
        %v3648 = vld [vmem:[%s3554 + $0x1d0] sm:$0xff]
        %v3649 = vld [vmem:[%s3554 + $0x1e8] sm:$0xff]
        %v3650 = vld [vmem:[%s3554 + $0x1f0] sm:$0xff]
        %3651 = vst.msk [vmem:[#allocation4 + $0x38] sm:$0xff] %vm351, %v3619
        %3652 = vst.msk [vmem:[#allocation4 + $0x80] sm:$0xff] %vm351, %v3620
        %3653 = vst.msk [vmem:[#allocation4 + $0xc8] sm:$0xff] %vm351, %v3621
        %3654 = vst.msk [vmem:[#allocation4 + $0x110] sm:$0xff] %vm351, %v3622
        %3655 = vst.msk [vmem:[#allocation4 + $0x158] sm:$0xff] %vm351, %v3623
        %3656 = vst.msk [vmem:[#allocation4 + $0x1a0] sm:$0xff] %vm351, %v3624
        %3657 = vst.msk [vmem:[#allocation4 + $0x1e8] sm:$0xff] %vm351, %v3625
        %3658 = vst.msk [vmem:[#allocation4 + $0x230] sm:$0xff] %vm351, %v3626
        %3659 = vst.msk [vmem:[#allocation4 + $0x278] sm:$0xff] %vm351, %v3627
        %3660 = vst.msk [vmem:[#allocation4 + $0x2c0] sm:$0xff] %vm351, %v3628
        %3661 = vst.msk [vmem:[#allocation4 + $0x308] sm:$0xff] %vm351, %v3629
        %3662 = vst.msk [vmem:[#allocation4 + $0x350] sm:$0xff] %vm351, %v3630
        %3663 = vst.msk [vmem:[#allocation4 + $0x398] sm:$0xff] %vm351, %v3631
        %3664 = vst.msk [vmem:[#allocation4 + $0x3e0] sm:$0xff] %vm351, %v3632
        %3665 = vst.msk [vmem:[#allocation4 + $0x428] sm:$0xff] %vm351, %v3633
        %3666 = vst.msk [vmem:[#allocation4 + $0x470] sm:$0xff] %vm351, %v3634
        %3667 = vst.msk [vmem:[#allocation4 + $0x4b8] sm:$0xff] %vm351, %v3635
        %3668 = vst.msk [vmem:[#allocation4 + $0x500] sm:$0xff] %vm351, %v3636
        %3669 = vst.msk [vmem:[#allocation4 + $0x548] sm:$0xff] %vm351, %v3637
        %3670 = vst.msk [vmem:[#allocation4 + $0x590] sm:$0xff] %vm351, %v3638
        %3671 = vst.msk [vmem:[#allocation4 + $0x5d8] sm:$0xff] %vm351, %v3639
        %3672 = vst.msk [vmem:[#allocation4 + $0x620] sm:$0xff] %vm351, %v3640
        %3673 = vst.msk [vmem:[#allocation4 + $0x668] sm:$0xff] %vm351, %v3641
        %3674 = vst.msk [vmem:[#allocation4 + $0x6b0] sm:$0xff] %vm351, %v3642
        %3675 = vst.msk [vmem:[#allocation4 + $0x6f8] sm:$0xff] %vm351, %v3643
        %3676 = vst.msk [vmem:[#allocation4 + $0x740] sm:$0xff] %vm351, %v3644
        %3677 = vst.msk [vmem:[#allocation4 + $0x788] sm:$0xff] %vm351, %v3645
        %3678 = vst.msk [vmem:[#allocation4 + $0x7d0] sm:$0xff] %vm351, %v3646
        %3679 = vst.msk [vmem:[#allocation4 + $0x818] sm:$0xff] %vm351, %v3647
        %3680 = vst.msk [vmem:[#allocation4 + $0x860] sm:$0xff] %vm351, %v3648
        %3681 = vst.msk [vmem:[#allocation4 + $0x8a8] sm:$0xff] %vm351, %v3649
        %3682 = vst.msk [vmem:[#allocation4 + $0x8f0] sm:$0xff] %vm351, %v3650
        %v3683 = vld [vmem:[%s3554 + $0x9] sm:$0xff]
        %v3684 = vld [vmem:[%s3554 + $0x11] sm:$0xff]
        %v3685 = vld [vmem:[%s3554 + $0x29] sm:$0xff]
        %v3686 = vld [vmem:[%s3554 + $0x31] sm:$0xff]
        %v3687 = vld [vmem:[%s3554 + $0x49] sm:$0xff]
        %v3688 = vld [vmem:[%s3554 + $0x51] sm:$0xff]
        %v3689 = vld [vmem:[%s3554 + $0x69] sm:$0xff]
        %v3690 = vld [vmem:[%s3554 + $0x71] sm:$0xff]
        %v3691 = vld [vmem:[%s3554 + $0x89] sm:$0xff]
        %v3692 = vld [vmem:[%s3554 + $0x91] sm:$0xff]
        %v3693 = vld [vmem:[%s3554 + $0xa9] sm:$0xff]
        %v3694 = vld [vmem:[%s3554 + $0xb1] sm:$0xff]
        %v3695 = vld [vmem:[%s3554 + $0xc9] sm:$0xff]
        %v3696 = vld [vmem:[%s3554 + $0xd1] sm:$0xff]
        %v3697 = vld [vmem:[%s3554 + $0xe9] sm:$0xff]
        %v3698 = vld [vmem:[%s3554 + $0xf1] sm:$0xff]
        %v3699 = vld [vmem:[%s3554 + $0x109] sm:$0xff]
        %v3700 = vld [vmem:[%s3554 + $0x111] sm:$0xff]
        %v3701 = vld [vmem:[%s3554 + $0x129] sm:$0xff]
        %v3702 = vld [vmem:[%s3554 + $0x131] sm:$0xff]
        %v3703 = vld [vmem:[%s3554 + $0x149] sm:$0xff]
        %v3704 = vld [vmem:[%s3554 + $0x151] sm:$0xff]
        %v3705 = vld [vmem:[%s3554 + $0x169] sm:$0xff]
        %v3706 = vld [vmem:[%s3554 + $0x171] sm:$0xff]
        %v3707 = vld [vmem:[%s3554 + $0x189] sm:$0xff]
        %v3708 = vld [vmem:[%s3554 + $0x191] sm:$0xff]
        %v3709 = vld [vmem:[%s3554 + $0x1a9] sm:$0xff]
        %v3710 = vld [vmem:[%s3554 + $0x1b1] sm:$0xff]
        %v3711 = vld [vmem:[%s3554 + $0x1c9] sm:$0xff]
        %v3712 = vld [vmem:[%s3554 + $0x1d1] sm:$0xff]
        %v3713 = vld [vmem:[%s3554 + $0x1e9] sm:$0xff]
        %v3714 = vld [vmem:[%s3554 + $0x1f1] sm:$0xff]
        %3715 = vst.msk [vmem:[#allocation4 + $0x40] sm:$0xff] %vm351, %v3683
        %3716 = vst.msk [vmem:[#allocation4 + $0x88] sm:$0xff] %vm351, %v3684
        %3717 = vst.msk [vmem:[#allocation4 + $0xd0] sm:$0xff] %vm351, %v3685
        %3718 = vst.msk [vmem:[#allocation4 + $0x118] sm:$0xff] %vm351, %v3686
        %3719 = vst.msk [vmem:[#allocation4 + $0x160] sm:$0xff] %vm351, %v3687
        %3720 = vst.msk [vmem:[#allocation4 + $0x1a8] sm:$0xff] %vm351, %v3688
        %3721 = vst.msk [vmem:[#allocation4 + $0x1f0] sm:$0xff] %vm351, %v3689
        %3722 = vst.msk [vmem:[#allocation4 + $0x238] sm:$0xff] %vm351, %v3690
        %3723 = vst.msk [vmem:[#allocation4 + $0x280] sm:$0xff] %vm351, %v3691
        %3724 = vst.msk [vmem:[#allocation4 + $0x2c8] sm:$0xff] %vm351, %v3692
        %3725 = vst.msk [vmem:[#allocation4 + $0x310] sm:$0xff] %vm351, %v3693
        %3726 = vst.msk [vmem:[#allocation4 + $0x358] sm:$0xff] %vm351, %v3694
        %3727 = vst.msk [vmem:[#allocation4 + $0x3a0] sm:$0xff] %vm351, %v3695
        %3728 = vst.msk [vmem:[#allocation4 + $0x3e8] sm:$0xff] %vm351, %v3696
        %3729 = vst.msk [vmem:[#allocation4 + $0x430] sm:$0xff] %vm351, %v3697
        %3730 = vst.msk [vmem:[#allocation4 + $0x478] sm:$0xff] %vm351, %v3698
        %3731 = vst.msk [vmem:[#allocation4 + $0x4c0] sm:$0xff] %vm351, %v3699
        %3732 = vst.msk [vmem:[#allocation4 + $0x508] sm:$0xff] %vm351, %v3700
        %3733 = vst.msk [vmem:[#allocation4 + $0x550] sm:$0xff] %vm351, %v3701
        %3734 = vst.msk [vmem:[#allocation4 + $0x598] sm:$0xff] %vm351, %v3702
        %3735 = vst.msk [vmem:[#allocation4 + $0x5e0] sm:$0xff] %vm351, %v3703
        %3736 = vst.msk [vmem:[#allocation4 + $0x628] sm:$0xff] %vm351, %v3704
        %3737 = vst.msk [vmem:[#allocation4 + $0x670] sm:$0xff] %vm351, %v3705
        %3738 = vst.msk [vmem:[#allocation4 + $0x6b8] sm:$0xff] %vm351, %v3706
        %3739 = vst.msk [vmem:[#allocation4 + $0x700] sm:$0xff] %vm351, %v3707
        %3740 = vst.msk [vmem:[#allocation4 + $0x748] sm:$0xff] %vm351, %v3708
        %3741 = vst.msk [vmem:[#allocation4 + $0x790] sm:$0xff] %vm351, %v3709
        %3742 = vst.msk [vmem:[#allocation4 + $0x7d8] sm:$0xff] %vm351, %v3710
        %3743 = vst.msk [vmem:[#allocation4 + $0x820] sm:$0xff] %vm351, %v3711
        %3744 = vst.msk [vmem:[#allocation4 + $0x868] sm:$0xff] %vm351, %v3712
        %3745 = vst.msk [vmem:[#allocation4 + $0x8b0] sm:$0xff] %vm351, %v3713
        %3746 = vst.msk [vmem:[#allocation4 + $0x8f8] sm:$0xff] %vm351, %v3714
        %v3747 = vld [vmem:[#allocation4] sm:$0xff]
        %v3748 = vld [vmem:[#allocation4 + $0x8] sm:$0xff]
        %v3749 = vld [vmem:[#allocation4 + $0x10] sm:$0xff]
        %v3750 = vld [vmem:[#allocation4 + $0x18] sm:$0xff]
        %v3751 = vld [vmem:[#allocation4 + $0x20] sm:$0xff]
        %v3752 = vld [vmem:[#allocation4 + $0x28] sm:$0xff]
        %v3753 = vld [vmem:[#allocation4 + $0x30] sm:$0xff]
        %v3754 = vld [vmem:[#allocation4 + $0x38] sm:$0xff]
        %v3755 = vld [vmem:[#allocation4 + $0x40] sm:$0xff]
        %v3756 = vld [vmem:[#allocation4 + $0x48] sm:$0xff]
        %v3757 = vld [vmem:[#allocation4 + $0x50] sm:$0xff]
        %v3758 = vld [vmem:[#allocation4 + $0x58] sm:$0xff]
        %v3759 = vld [vmem:[#allocation4 + $0x60] sm:$0xff]
        %v3760 = vld [vmem:[#allocation4 + $0x68] sm:$0xff]
        %v3761 = vld [vmem:[#allocation4 + $0x70] sm:$0xff]
        %v3762 = vld [vmem:[#allocation4 + $0x78] sm:$0xff]
        %v3763 = vld [vmem:[#allocation4 + $0x80] sm:$0xff]
        %v3764 = vld [vmem:[#allocation4 + $0x88] sm:$0xff]
        %v3765 = vld [vmem:[#allocation4 + $0x90] sm:$0xff]
        %v3766 = vld [vmem:[#allocation4 + $0x98] sm:$0xff]
        %v3767 = vld [vmem:[#allocation4 + $0xa0] sm:$0xff]
        %v3768 = vld [vmem:[#allocation4 + $0xa8] sm:$0xff]
        %v3769 = vld [vmem:[#allocation4 + $0xb0] sm:$0xff]
        %v3770 = vld [vmem:[#allocation4 + $0xb8] sm:$0xff]
        %v3771 = vld [vmem:[#allocation4 + $0xc0] sm:$0xff]
        %v3772 = vld [vmem:[#allocation4 + $0xc8] sm:$0xff]
        %v3773 = vld [vmem:[#allocation4 + $0xd0] sm:$0xff]
        %v3774 = vld [vmem:[#allocation4 + $0xd8] sm:$0xff]
        %v3775 = vld [vmem:[#allocation4 + $0xe0] sm:$0xff]
        %v3776 = vld [vmem:[#allocation4 + $0xe8] sm:$0xff]
        %v3777 = vld [vmem:[#allocation4 + $0xf0] sm:$0xff]
        %v3778 = vld [vmem:[#allocation4 + $0xf8] sm:$0xff]
        %v3779 = vld [vmem:[#allocation4 + $0x100] sm:$0xff]
        %v3780 = vld [vmem:[#allocation4 + $0x108] sm:$0xff]
        %v3781 = vld [vmem:[#allocation4 + $0x110] sm:$0xff]
        %v3782 = vld [vmem:[#allocation4 + $0x118] sm:$0xff]
        %v3783 = vld [vmem:[#allocation4 + $0x120] sm:$0xff]
        %v3784 = vld [vmem:[#allocation4 + $0x128] sm:$0xff]
        %v3785 = vld [vmem:[#allocation4 + $0x130] sm:$0xff]
        %v3786 = vld [vmem:[#allocation4 + $0x138] sm:$0xff]
        %v3787 = vld [vmem:[#allocation4 + $0x140] sm:$0xff]
        %v3788 = vld [vmem:[#allocation4 + $0x148] sm:$0xff]
        %v3789 = vld [vmem:[#allocation4 + $0x150] sm:$0xff]
        %v3790 = vld [vmem:[#allocation4 + $0x158] sm:$0xff]
        %v3791 = vld [vmem:[#allocation4 + $0x160] sm:$0xff]
        %v3792 = vld [vmem:[#allocation4 + $0x168] sm:$0xff]
        %v3793 = vld [vmem:[#allocation4 + $0x170] sm:$0xff]
        %v3794 = vld [vmem:[#allocation4 + $0x178] sm:$0xff]
        %v3795 = vld [vmem:[#allocation4 + $0x180] sm:$0xff]
        %v3796 = vld [vmem:[#allocation4 + $0x188] sm:$0xff]
        %v3797 = vld [vmem:[#allocation4 + $0x190] sm:$0xff]
        %v3798 = vld [vmem:[#allocation4 + $0x198] sm:$0xff]
        %v3799 = vld [vmem:[#allocation4 + $0x1a0] sm:$0xff]
        %v3800 = vld [vmem:[#allocation4 + $0x1a8] sm:$0xff]
        %v3801 = vld [vmem:[#allocation4 + $0x1b0] sm:$0xff]
        %v3802 = vld [vmem:[#allocation4 + $0x1b8] sm:$0xff]
        %v3803 = vld [vmem:[#allocation4 + $0x1c0] sm:$0xff]
        %v3804 = vld [vmem:[#allocation4 + $0x1c8] sm:$0xff]
        %v3805 = vld [vmem:[#allocation4 + $0x1d0] sm:$0xff]
        %v3806 = vld [vmem:[#allocation4 + $0x1d8] sm:$0xff]
        %v3807 = vld [vmem:[#allocation4 + $0x1e0] sm:$0xff]
        %v3808 = vld [vmem:[#allocation4 + $0x1e8] sm:$0xff]
        %v3809 = vld [vmem:[#allocation4 + $0x1f0] sm:$0xff]
        %v3810 = vld [vmem:[#allocation4 + $0x1f8] sm:$0xff]
        %v3811 = vld [vmem:[#allocation4 + $0x200] sm:$0xff]
        %v3812 = vld [vmem:[#allocation4 + $0x208] sm:$0xff]
        %v3813 = vld [vmem:[#allocation4 + $0x210] sm:$0xff]
        %v3814 = vld [vmem:[#allocation4 + $0x218] sm:$0xff]
        %v3815 = vld [vmem:[#allocation4 + $0x220] sm:$0xff]
        %v3816 = vld [vmem:[#allocation4 + $0x228] sm:$0xff]
        %v3817 = vld [vmem:[#allocation4 + $0x230] sm:$0xff]
        %v3818 = vld [vmem:[#allocation4 + $0x238] sm:$0xff]
        %v3819 = vld [vmem:[#allocation4 + $0x240] sm:$0xff]
        %v3820 = vld [vmem:[#allocation4 + $0x248] sm:$0xff]
        %v3821 = vld [vmem:[#allocation4 + $0x250] sm:$0xff]
        %v3822 = vld [vmem:[#allocation4 + $0x258] sm:$0xff]
        %v3823 = vld [vmem:[#allocation4 + $0x260] sm:$0xff]
        %v3824 = vld [vmem:[#allocation4 + $0x268] sm:$0xff]
        %v3825 = vld [vmem:[#allocation4 + $0x270] sm:$0xff]
        %v3826 = vld [vmem:[#allocation4 + $0x278] sm:$0xff]
        %v3827 = vld [vmem:[#allocation4 + $0x280] sm:$0xff]
        %v3828 = vld [vmem:[#allocation4 + $0x288] sm:$0xff]
        %v3829 = vld [vmem:[#allocation4 + $0x290] sm:$0xff]
        %v3830 = vld [vmem:[#allocation4 + $0x298] sm:$0xff]
        %v3831 = vld [vmem:[#allocation4 + $0x2a0] sm:$0xff]
        %v3832 = vld [vmem:[#allocation4 + $0x2a8] sm:$0xff]
        %v3833 = vld [vmem:[#allocation4 + $0x2b0] sm:$0xff]
        %v3834 = vld [vmem:[#allocation4 + $0x2b8] sm:$0xff]
        %v3835 = vld [vmem:[#allocation4 + $0x2c0] sm:$0xff]
        %v3836 = vld [vmem:[#allocation4 + $0x2c8] sm:$0xff]
        %v3837 = vld [vmem:[#allocation4 + $0x2d0] sm:$0xff]
        %v3838 = vld [vmem:[#allocation4 + $0x2d8] sm:$0xff]
        %v3839 = vld [vmem:[#allocation4 + $0x2e0] sm:$0xff]
        %v3840 = vld [vmem:[#allocation4 + $0x2e8] sm:$0xff]
        %v3841 = vld [vmem:[#allocation4 + $0x2f0] sm:$0xff]
        %v3842 = vld [vmem:[#allocation4 + $0x2f8] sm:$0xff]
        %v3843 = vld [vmem:[#allocation4 + $0x300] sm:$0xff]
        %v3844 = vld [vmem:[#allocation4 + $0x308] sm:$0xff]
        %v3845 = vld [vmem:[#allocation4 + $0x310] sm:$0xff]
        %v3846 = vld [vmem:[#allocation4 + $0x318] sm:$0xff]
        %v3847 = vld [vmem:[#allocation4 + $0x320] sm:$0xff]
        %v3848 = vld [vmem:[#allocation4 + $0x328] sm:$0xff]
        %v3849 = vld [vmem:[#allocation4 + $0x330] sm:$0xff]
        %v3850 = vld [vmem:[#allocation4 + $0x338] sm:$0xff]
        %v3851 = vld [vmem:[#allocation4 + $0x340] sm:$0xff]
        %v3852 = vld [vmem:[#allocation4 + $0x348] sm:$0xff]
        %v3853 = vld [vmem:[#allocation4 + $0x350] sm:$0xff]
        %v3854 = vld [vmem:[#allocation4 + $0x358] sm:$0xff]
        %v3855 = vld [vmem:[#allocation4 + $0x360] sm:$0xff]
        %v3856 = vld [vmem:[#allocation4 + $0x368] sm:$0xff]
        %v3857 = vld [vmem:[#allocation4 + $0x370] sm:$0xff]
        %v3858 = vld [vmem:[#allocation4 + $0x378] sm:$0xff]
        %v3859 = vld [vmem:[#allocation4 + $0x380] sm:$0xff]
        %v3860 = vld [vmem:[#allocation4 + $0x388] sm:$0xff]
        %v3861 = vld [vmem:[#allocation4 + $0x390] sm:$0xff]
        %v3862 = vld [vmem:[#allocation4 + $0x398] sm:$0xff]
        %v3863 = vld [vmem:[#allocation4 + $0x3a0] sm:$0xff]
        %v3864 = vld [vmem:[#allocation4 + $0x3a8] sm:$0xff]
        %v3865 = vld [vmem:[#allocation4 + $0x3b0] sm:$0xff]
        %v3866 = vld [vmem:[#allocation4 + $0x3b8] sm:$0xff]
        %v3867 = vld [vmem:[#allocation4 + $0x3c0] sm:$0xff]
        %v3868 = vld [vmem:[#allocation4 + $0x3c8] sm:$0xff]
        %v3869 = vld [vmem:[#allocation4 + $0x3d0] sm:$0xff]
        %v3870 = vld [vmem:[#allocation4 + $0x3d8] sm:$0xff]
        %v3871 = vld [vmem:[#allocation4 + $0x3e0] sm:$0xff]
        %v3872 = vld [vmem:[#allocation4 + $0x3e8] sm:$0xff]
        %v3873 = vld [vmem:[#allocation4 + $0x3f0] sm:$0xff]
        %v3874 = vld [vmem:[#allocation4 + $0x3f8] sm:$0xff]
        %v3875 = vld [vmem:[#allocation4 + $0x400] sm:$0xff]
        %v3876 = vld [vmem:[#allocation4 + $0x408] sm:$0xff]
        %v3877 = vld [vmem:[#allocation4 + $0x410] sm:$0xff]
        %v3878 = vld [vmem:[#allocation4 + $0x418] sm:$0xff]
        %v3879 = vld [vmem:[#allocation4 + $0x420] sm:$0xff]
        %v3880 = vld [vmem:[#allocation4 + $0x428] sm:$0xff]
        %v3881 = vld [vmem:[#allocation4 + $0x430] sm:$0xff]
        %v3882 = vld [vmem:[#allocation4 + $0x438] sm:$0xff]
        %v3883 = vld [vmem:[#allocation4 + $0x440] sm:$0xff]
        %v3884 = vld [vmem:[#allocation4 + $0x448] sm:$0xff]
        %v3885 = vld [vmem:[#allocation4 + $0x450] sm:$0xff]
        %v3886 = vld [vmem:[#allocation4 + $0x458] sm:$0xff]
        %v3887 = vld [vmem:[#allocation4 + $0x460] sm:$0xff]
        %v3888 = vld [vmem:[#allocation4 + $0x468] sm:$0xff]
        %v3889 = vld [vmem:[#allocation4 + $0x470] sm:$0xff]
        %v3890 = vld [vmem:[#allocation4 + $0x478] sm:$0xff]
        %v3891 = vld [vmem:[#allocation4 + $0x480] sm:$0xff]
        %v3892 = vld [vmem:[#allocation4 + $0x488] sm:$0xff]
        %v3893 = vld [vmem:[#allocation4 + $0x490] sm:$0xff]
        %v3894 = vld [vmem:[#allocation4 + $0x498] sm:$0xff]
        %v3895 = vld [vmem:[#allocation4 + $0x4a0] sm:$0xff]
        %v3896 = vld [vmem:[#allocation4 + $0x4a8] sm:$0xff]
        %v3897 = vld [vmem:[#allocation4 + $0x4b0] sm:$0xff]
        %v3898 = vld [vmem:[#allocation4 + $0x4b8] sm:$0xff]
        %v3899 = vld [vmem:[#allocation4 + $0x4c0] sm:$0xff]
        %v3900 = vld [vmem:[#allocation4 + $0x4c8] sm:$0xff]
        %v3901 = vld [vmem:[#allocation4 + $0x4d0] sm:$0xff]
        %v3902 = vld [vmem:[#allocation4 + $0x4d8] sm:$0xff]
        %v3903 = vld [vmem:[#allocation4 + $0x4e0] sm:$0xff]
        %v3904 = vld [vmem:[#allocation4 + $0x4e8] sm:$0xff]
        %v3905 = vld [vmem:[#allocation4 + $0x4f0] sm:$0xff]
        %v3906 = vld [vmem:[#allocation4 + $0x4f8] sm:$0xff]
        %v3907 = vld [vmem:[#allocation4 + $0x500] sm:$0xff]
        %v3908 = vld [vmem:[#allocation4 + $0x508] sm:$0xff]
        %v3909 = vld [vmem:[#allocation4 + $0x510] sm:$0xff]
        %v3910 = vld [vmem:[#allocation4 + $0x518] sm:$0xff]
        %v3911 = vld [vmem:[#allocation4 + $0x520] sm:$0xff]
        %v3912 = vld [vmem:[#allocation4 + $0x528] sm:$0xff]
        %v3913 = vld [vmem:[#allocation4 + $0x530] sm:$0xff]
        %v3914 = vld [vmem:[#allocation4 + $0x538] sm:$0xff]
        %v3915 = vld [vmem:[#allocation4 + $0x540] sm:$0xff]
        %v3916 = vld [vmem:[#allocation4 + $0x548] sm:$0xff]
        %v3917 = vld [vmem:[#allocation4 + $0x550] sm:$0xff]
        %v3918 = vld [vmem:[#allocation4 + $0x558] sm:$0xff]
        %v3919 = vld [vmem:[#allocation4 + $0x560] sm:$0xff]
        %v3920 = vld [vmem:[#allocation4 + $0x568] sm:$0xff]
        %v3921 = vld [vmem:[#allocation4 + $0x570] sm:$0xff]
        %v3922 = vld [vmem:[#allocation4 + $0x578] sm:$0xff]
        %v3923 = vld [vmem:[#allocation4 + $0x580] sm:$0xff]
        %v3924 = vld [vmem:[#allocation4 + $0x588] sm:$0xff]
        %v3925 = vld [vmem:[#allocation4 + $0x590] sm:$0xff]
        %v3926 = vld [vmem:[#allocation4 + $0x598] sm:$0xff]
        %v3927 = vld [vmem:[#allocation4 + $0x5a0] sm:$0xff]
        %v3928 = vld [vmem:[#allocation4 + $0x5a8] sm:$0xff]
        %v3929 = vld [vmem:[#allocation4 + $0x5b0] sm:$0xff]
        %v3930 = vld [vmem:[#allocation4 + $0x5b8] sm:$0xff]
        %v3931 = vld [vmem:[#allocation4 + $0x5c0] sm:$0xff]
        %v3932 = vld [vmem:[#allocation4 + $0x5c8] sm:$0xff]
        %v3933 = vld [vmem:[#allocation4 + $0x5d0] sm:$0xff]
        %v3934 = vld [vmem:[#allocation4 + $0x5d8] sm:$0xff]
        %v3935 = vld [vmem:[#allocation4 + $0x5e0] sm:$0xff]
        %v3936 = vld [vmem:[#allocation4 + $0x5e8] sm:$0xff]
        %v3937 = vld [vmem:[#allocation4 + $0x5f0] sm:$0xff]
        %v3938 = vld [vmem:[#allocation4 + $0x5f8] sm:$0xff]
        %v3939 = vld [vmem:[#allocation4 + $0x600] sm:$0xff]
        %v3940 = vld [vmem:[#allocation4 + $0x608] sm:$0xff]
        %v3941 = vld [vmem:[#allocation4 + $0x610] sm:$0xff]
        %v3942 = vld [vmem:[#allocation4 + $0x618] sm:$0xff]
        %v3943 = vld [vmem:[#allocation4 + $0x620] sm:$0xff]
        %v3944 = vld [vmem:[#allocation4 + $0x628] sm:$0xff]
        %v3945 = vld [vmem:[#allocation4 + $0x630] sm:$0xff]
        %v3946 = vld [vmem:[#allocation4 + $0x638] sm:$0xff]
        %v3947 = vld [vmem:[#allocation4 + $0x640] sm:$0xff]
        %v3948 = vld [vmem:[#allocation4 + $0x648] sm:$0xff]
        %v3949 = vld [vmem:[#allocation4 + $0x650] sm:$0xff]
        %v3950 = vld [vmem:[#allocation4 + $0x658] sm:$0xff]
        %v3951 = vld [vmem:[#allocation4 + $0x660] sm:$0xff]
        %v3952 = vld [vmem:[#allocation4 + $0x668] sm:$0xff]
        %v3953 = vld [vmem:[#allocation4 + $0x670] sm:$0xff]
        %v3954 = vld [vmem:[#allocation4 + $0x678] sm:$0xff]
        %v3955 = vld [vmem:[#allocation4 + $0x680] sm:$0xff]
        %v3956 = vld [vmem:[#allocation4 + $0x688] sm:$0xff]
        %v3957 = vld [vmem:[#allocation4 + $0x690] sm:$0xff]
        %v3958 = vld [vmem:[#allocation4 + $0x698] sm:$0xff]
        %v3959 = vld [vmem:[#allocation4 + $0x6a0] sm:$0xff]
        %v3960 = vld [vmem:[#allocation4 + $0x6a8] sm:$0xff]
        %v3961 = vld [vmem:[#allocation4 + $0x6b0] sm:$0xff]
        %v3962 = vld [vmem:[#allocation4 + $0x6b8] sm:$0xff]
        %v3963 = vld [vmem:[#allocation4 + $0x6c0] sm:$0xff]
        %v3964 = vld [vmem:[#allocation4 + $0x6c8] sm:$0xff]
        %v3965 = vld [vmem:[#allocation4 + $0x6d0] sm:$0xff]
        %v3966 = vld [vmem:[#allocation4 + $0x6d8] sm:$0xff]
        %v3967 = vld [vmem:[#allocation4 + $0x6e0] sm:$0xff]
        %v3968 = vld [vmem:[#allocation4 + $0x6e8] sm:$0xff]
        %v3969 = vld [vmem:[#allocation4 + $0x6f0] sm:$0xff]
        %v3970 = vld [vmem:[#allocation4 + $0x6f8] sm:$0xff]
        %v3971 = vld [vmem:[#allocation4 + $0x700] sm:$0xff]
        %v3972 = vld [vmem:[#allocation4 + $0x708] sm:$0xff]
        %v3973 = vld [vmem:[#allocation4 + $0x710] sm:$0xff]
        %v3974 = vld [vmem:[#allocation4 + $0x718] sm:$0xff]
        %v3975 = vld [vmem:[#allocation4 + $0x720] sm:$0xff]
        %v3976 = vld [vmem:[#allocation4 + $0x728] sm:$0xff]
        %v3977 = vld [vmem:[#allocation4 + $0x730] sm:$0xff]
        %v3978 = vld [vmem:[#allocation4 + $0x738] sm:$0xff]
        %v3979 = vld [vmem:[#allocation4 + $0x740] sm:$0xff]
        %v3980 = vld [vmem:[#allocation4 + $0x748] sm:$0xff]
        %v3981 = vld [vmem:[#allocation4 + $0x750] sm:$0xff]
        %v3982 = vld [vmem:[#allocation4 + $0x758] sm:$0xff]
        %v3983 = vld [vmem:[#allocation4 + $0x760] sm:$0xff]
        %v3984 = vld [vmem:[#allocation4 + $0x768] sm:$0xff]
        %v3985 = vld [vmem:[#allocation4 + $0x770] sm:$0xff]
        %v3986 = vld [vmem:[#allocation4 + $0x778] sm:$0xff]
        %v3987 = vld [vmem:[#allocation4 + $0x780] sm:$0xff]
        %v3988 = vld [vmem:[#allocation4 + $0x788] sm:$0xff]
        %v3989 = vld [vmem:[#allocation4 + $0x790] sm:$0xff]
        %v3990 = vld [vmem:[#allocation4 + $0x798] sm:$0xff]
        %v3991 = vld [vmem:[#allocation4 + $0x7a0] sm:$0xff]
        %v3992 = vld [vmem:[#allocation4 + $0x7a8] sm:$0xff]
        %v3993 = vld [vmem:[#allocation4 + $0x7b0] sm:$0xff]
        %v3994 = vld [vmem:[#allocation4 + $0x7b8] sm:$0xff]
        %v3995 = vld [vmem:[#allocation4 + $0x7c0] sm:$0xff]
        %v3996 = vld [vmem:[#allocation4 + $0x7c8] sm:$0xff]
        %v3997 = vld [vmem:[#allocation4 + $0x7d0] sm:$0xff]
        %v3998 = vld [vmem:[#allocation4 + $0x7d8] sm:$0xff]
        %v3999 = vld [vmem:[#allocation4 + $0x7e0] sm:$0xff]
        %v4000 = vld [vmem:[#allocation4 + $0x7e8] sm:$0xff]
        %v4001 = vld [vmem:[#allocation4 + $0x7f0] sm:$0xff]
        %v4002 = vld [vmem:[#allocation4 + $0x7f8] sm:$0xff]
        %v4003 = vld [vmem:[#allocation4 + $0x800] sm:$0xff]
        %v4004 = vld [vmem:[#allocation4 + $0x808] sm:$0xff]
        %v4005 = vld [vmem:[#allocation4 + $0x810] sm:$0xff]
        %v4006 = vld [vmem:[#allocation4 + $0x818] sm:$0xff]
        %v4007 = vld [vmem:[#allocation4 + $0x820] sm:$0xff]
        %v4008 = vld [vmem:[#allocation4 + $0x828] sm:$0xff]
        %v4009 = vld [vmem:[#allocation4 + $0x830] sm:$0xff]
        %v4010 = vld [vmem:[#allocation4 + $0x838] sm:$0xff]
        %v4011 = vld [vmem:[#allocation4 + $0x840] sm:$0xff]
        %v4012 = vld [vmem:[#allocation4 + $0x848] sm:$0xff]
        %v4013 = vld [vmem:[#allocation4 + $0x850] sm:$0xff]
        %v4014 = vld [vmem:[#allocation4 + $0x858] sm:$0xff]
        %v4015 = vld [vmem:[#allocation4 + $0x860] sm:$0xff]
        %v4016 = vld [vmem:[#allocation4 + $0x868] sm:$0xff]
        %v4017 = vld [vmem:[#allocation4 + $0x870] sm:$0xff]
        %v4018 = vld [vmem:[#allocation4 + $0x878] sm:$0xff]
        %v4019 = vld [vmem:[#allocation4 + $0x880] sm:$0xff]
        %v4020 = vld [vmem:[#allocation4 + $0x888] sm:$0xff]
        %v4021 = vld [vmem:[#allocation4 + $0x890] sm:$0xff]
        %v4022 = vld [vmem:[#allocation4 + $0x898] sm:$0xff]
        %v4023 = vld [vmem:[#allocation4 + $0x8a0] sm:$0xff]
        %v4024 = vld [vmem:[#allocation4 + $0x8a8] sm:$0xff]
        %v4025 = vld [vmem:[#allocation4 + $0x8b0] sm:$0xff]
        %v4026 = vld [vmem:[#allocation4 + $0x8b8] sm:$0xff]
        %v4027 = vld [vmem:[#allocation4 + $0x8c0] sm:$0xff]
        %v4028 = vld [vmem:[#allocation4 + $0x8c8] sm:$0xff]
        %v4029 = vld [vmem:[#allocation4 + $0x8d0] sm:$0xff]
        %v4030 = vld [vmem:[#allocation4 + $0x8d8] sm:$0xff]
        %v4031 = vld [vmem:[#allocation4 + $0x8e0] sm:$0xff]
        %v4032 = vld [vmem:[#allocation4 + $0x8e8] sm:$0xff]
        %v4033 = vld [vmem:[#allocation4 + $0x8f0] sm:$0xff]
        %v4034 = vld [vmem:[#allocation4 + $0x8f8] sm:$0xff]
        %v4035 = vld [vmem:[%s3] sm:$0xff]
        %v4036 = vld [vmem:[%s3 + $0x8] sm:$0xff]
        %v4037 = vld [vmem:[%s3 + $0x10] sm:$0xff]
        %v4038 = vld [vmem:[%s3 + $0x18] sm:$0xff]
        %v4039 = vld [vmem:[%s3 + $0x20] sm:$0xff]
        %v4040 = vld [vmem:[%s3 + $0x28] sm:$0xff]
        %v4041 = vld [vmem:[%s3 + $0x30] sm:$0xff]
        %v4042 = vld [vmem:[%s3 + $0x38] sm:$0xff]
        %v4043 = vld [vmem:[%s3 + $0x40] sm:$0xff]
        %v4044 = vld [vmem:[%s3 + $0x48] sm:$0xff]
        %v4045 = vld [vmem:[%s3 + $0x50] sm:$0xff]
        %v4046 = vld [vmem:[%s3 + $0x58] sm:$0xff]
        %v4047 = vld [vmem:[%s3 + $0x60] sm:$0xff]
        %v4048 = vld [vmem:[%s3 + $0x68] sm:$0xff]
        %v4049 = vld [vmem:[%s3 + $0x70] sm:$0xff]
        %v4050 = vld [vmem:[%s3 + $0x78] sm:$0xff]
        %v4051 = vld [vmem:[%s3 + $0x80] sm:$0xff]
        %v4052 = vld [vmem:[%s3 + $0x88] sm:$0xff]
        %v4053 = vld [vmem:[%s3 + $0x90] sm:$0xff]
        %v4054 = vld [vmem:[%s3 + $0x98] sm:$0xff]
        %v4055 = vld [vmem:[%s3 + $0xa0] sm:$0xff]
        %v4056 = vld [vmem:[%s3 + $0xa8] sm:$0xff]
        %v4057 = vld [vmem:[%s3 + $0xb0] sm:$0xff]
        %v4058 = vld [vmem:[%s3 + $0xb8] sm:$0xff]
        %v4059 = vld [vmem:[%s3 + $0xc0] sm:$0xff]
        %v4060 = vld [vmem:[%s3 + $0xc8] sm:$0xff]
        %v4061 = vld [vmem:[%s3 + $0xd0] sm:$0xff]
        %v4062 = vld [vmem:[%s3 + $0xd8] sm:$0xff]
        %v4063 = vld [vmem:[%s3 + $0xe0] sm:$0xff]
        %v4064 = vld [vmem:[%s3 + $0xe8] sm:$0xff]
        %v4065 = vld [vmem:[%s3 + $0xf0] sm:$0xff]
        %v4066 = vld [vmem:[%s3 + $0xf8] sm:$0xff]
        %v4067 = vld [vmem:[%s3 + $0x100] sm:$0xff]
        %v4068 = vld [vmem:[%s3 + $0x108] sm:$0xff]
        %v4069 = vld [vmem:[%s3 + $0x110] sm:$0xff]
        %v4070 = vld [vmem:[%s3 + $0x118] sm:$0xff]
        %v4071 = vld [vmem:[%s3 + $0x120] sm:$0xff]
        %v4072 = vld [vmem:[%s3 + $0x128] sm:$0xff]
        %v4073 = vld [vmem:[%s3 + $0x130] sm:$0xff]
        %v4074 = vld [vmem:[%s3 + $0x138] sm:$0xff]
        %v4075 = vld [vmem:[%s3 + $0x140] sm:$0xff]
        %v4076 = vld [vmem:[%s3 + $0x148] sm:$0xff]
        %v4077 = vld [vmem:[%s3 + $0x150] sm:$0xff]
        %v4078 = vld [vmem:[%s3 + $0x158] sm:$0xff]
        %v4079 = vld [vmem:[%s3 + $0x160] sm:$0xff]
        %v4080 = vld [vmem:[%s3 + $0x168] sm:$0xff]
        %v4081 = vld [vmem:[%s3 + $0x170] sm:$0xff]
        %v4082 = vld [vmem:[%s3 + $0x178] sm:$0xff]
        %v4083 = vld [vmem:[%s3 + $0x180] sm:$0xff]
        %v4084 = vld [vmem:[%s3 + $0x188] sm:$0xff]
        %v4085 = vld [vmem:[%s3 + $0x190] sm:$0xff]
        %v4086 = vld [vmem:[%s3 + $0x198] sm:$0xff]
        %v4087 = vld [vmem:[%s3 + $0x1a0] sm:$0xff]
        %v4088 = vld [vmem:[%s3 + $0x1a8] sm:$0xff]
        %v4089 = vld [vmem:[%s3 + $0x1b0] sm:$0xff]
        %v4090 = vld [vmem:[%s3 + $0x1b8] sm:$0xff]
        %v4091 = vld [vmem:[%s3 + $0x1c0] sm:$0xff]
        %v4092 = vld [vmem:[%s3 + $0x1c8] sm:$0xff]
        %v4093 = vld [vmem:[%s3 + $0x1d0] sm:$0xff]
        %v4094 = vld [vmem:[%s3 + $0x1d8] sm:$0xff]
        %v4095 = vld [vmem:[%s3 + $0x1e0] sm:$0xff]
        %v4096 = vld [vmem:[%s3 + $0x1e8] sm:$0xff]
        %v4097 = vld [vmem:[%s3 + $0x1f0] sm:$0xff]
        %v4098 = vld [vmem:[%s3 + $0x1f8] sm:$0xff]
        %v4099 = vld [vmem:[%s3 + $0x200] sm:$0xff]
        %v4100 = vld [vmem:[%s3 + $0x208] sm:$0xff]
        %v4101 = vld [vmem:[%s3 + $0x210] sm:$0xff]
        %v4102 = vld [vmem:[%s3 + $0x218] sm:$0xff]
        %v4103 = vld [vmem:[%s3 + $0x220] sm:$0xff]
        %v4104 = vld [vmem:[%s3 + $0x228] sm:$0xff]
        %v4105 = vld [vmem:[%s3 + $0x230] sm:$0xff]
        %v4106 = vld [vmem:[%s3 + $0x238] sm:$0xff]
        %v4107 = vld [vmem:[%s3 + $0x240] sm:$0xff]
        %v4108 = vld [vmem:[%s3 + $0x248] sm:$0xff]
        %v4109 = vld [vmem:[%s3 + $0x250] sm:$0xff]
        %v4110 = vld [vmem:[%s3 + $0x258] sm:$0xff]
        %v4111 = vld [vmem:[%s3 + $0x260] sm:$0xff]
        %v4112 = vld [vmem:[%s3 + $0x268] sm:$0xff]
        %v4113 = vld [vmem:[%s3 + $0x270] sm:$0xff]
        %v4114 = vld [vmem:[%s3 + $0x278] sm:$0xff]
        %v4115 = vld [vmem:[%s3 + $0x280] sm:$0xff]
        %v4116 = vld [vmem:[%s3 + $0x288] sm:$0xff]
        %v4117 = vld [vmem:[%s3 + $0x290] sm:$0xff]
        %v4118 = vld [vmem:[%s3 + $0x298] sm:$0xff]
        %v4119 = vld [vmem:[%s3 + $0x2a0] sm:$0xff]
        %v4120 = vld [vmem:[%s3 + $0x2a8] sm:$0xff]
        %v4121 = vld [vmem:[%s3 + $0x2b0] sm:$0xff]
        %v4122 = vld [vmem:[%s3 + $0x2b8] sm:$0xff]
        %v4123 = vld [vmem:[%s3 + $0x2c0] sm:$0xff]
        %v4124 = vld [vmem:[%s3 + $0x2c8] sm:$0xff]
        %v4125 = vld [vmem:[%s3 + $0x2d0] sm:$0xff]
        %v4126 = vld [vmem:[%s3 + $0x2d8] sm:$0xff]
        %v4127 = vld [vmem:[%s3 + $0x2e0] sm:$0xff]
        %v4128 = vld [vmem:[%s3 + $0x2e8] sm:$0xff]
        %v4129 = vld [vmem:[%s3 + $0x2f0] sm:$0xff]
        %v4130 = vld [vmem:[%s3 + $0x2f8] sm:$0xff]
        %v4131 = vld [vmem:[%s3 + $0x300] sm:$0xff]
        %v4132 = vld [vmem:[%s3 + $0x308] sm:$0xff]
        %v4133 = vld [vmem:[%s3 + $0x310] sm:$0xff]
        %v4134 = vld [vmem:[%s3 + $0x318] sm:$0xff]
        %v4135 = vld [vmem:[%s3 + $0x320] sm:$0xff]
        %v4136 = vld [vmem:[%s3 + $0x328] sm:$0xff]
        %v4137 = vld [vmem:[%s3 + $0x330] sm:$0xff]
        %v4138 = vld [vmem:[%s3 + $0x338] sm:$0xff]
        %v4139 = vld [vmem:[%s3 + $0x340] sm:$0xff]
        %v4140 = vld [vmem:[%s3 + $0x348] sm:$0xff]
        %v4141 = vld [vmem:[%s3 + $0x350] sm:$0xff]
        %v4142 = vld [vmem:[%s3 + $0x358] sm:$0xff]
        %v4143 = vld [vmem:[%s3 + $0x360] sm:$0xff]
        %v4144 = vld [vmem:[%s3 + $0x368] sm:$0xff]
        %v4145 = vld [vmem:[%s3 + $0x370] sm:$0xff]
        %v4146 = vld [vmem:[%s3 + $0x378] sm:$0xff]
        %v4147 = vld [vmem:[%s3 + $0x380] sm:$0xff]
        %v4148 = vld [vmem:[%s3 + $0x388] sm:$0xff]
        %v4149 = vld [vmem:[%s3 + $0x390] sm:$0xff]
        %v4150 = vld [vmem:[%s3 + $0x398] sm:$0xff]
        %v4151 = vld [vmem:[%s3 + $0x3a0] sm:$0xff]
        %v4152 = vld [vmem:[%s3 + $0x3a8] sm:$0xff]
        %v4153 = vld [vmem:[%s3 + $0x3b0] sm:$0xff]
        %v4154 = vld [vmem:[%s3 + $0x3b8] sm:$0xff]
        %v4155 = vld [vmem:[%s3 + $0x3c0] sm:$0xff]
        %v4156 = vld [vmem:[%s3 + $0x3c8] sm:$0xff]
        %v4157 = vld [vmem:[%s3 + $0x3d0] sm:$0xff]
        %v4158 = vld [vmem:[%s3 + $0x3d8] sm:$0xff]
        %v4159 = vld [vmem:[%s3 + $0x3e0] sm:$0xff]
        %v4160 = vld [vmem:[%s3 + $0x3e8] sm:$0xff]
        %v4161 = vld [vmem:[%s3 + $0x3f0] sm:$0xff]
        %v4162 = vld [vmem:[%s3 + $0x3f8] sm:$0xff]
        %v4163 = vld [vmem:[%s3 + $0x400] sm:$0xff]
        %v4164 = vld [vmem:[%s3 + $0x408] sm:$0xff]
        %v4165 = vld [vmem:[%s3 + $0x410] sm:$0xff]
        %v4166 = vld [vmem:[%s3 + $0x418] sm:$0xff]
        %v4167 = vld [vmem:[%s3 + $0x420] sm:$0xff]
        %v4168 = vld [vmem:[%s3 + $0x428] sm:$0xff]
        %v4169 = vld [vmem:[%s3 + $0x430] sm:$0xff]
        %v4170 = vld [vmem:[%s3 + $0x438] sm:$0xff]
        %v4171 = vld [vmem:[%s3 + $0x440] sm:$0xff]
        %v4172 = vld [vmem:[%s3 + $0x448] sm:$0xff]
        %v4173 = vld [vmem:[%s3 + $0x450] sm:$0xff]
        %v4174 = vld [vmem:[%s3 + $0x458] sm:$0xff]
        %v4175 = vld [vmem:[%s3 + $0x460] sm:$0xff]
        %v4176 = vld [vmem:[%s3 + $0x468] sm:$0xff]
        %v4177 = vld [vmem:[%s3 + $0x470] sm:$0xff]
        %v4178 = vld [vmem:[%s3 + $0x478] sm:$0xff]
        %v4179 = vld [vmem:[%s4] sm:$0x1]
        %v4181 = vperm.slane %v4179, 0
        %4183 = vmatpush.msra.mxu0 %v4050
        %4184 = vmatpush.msra.mxu0 %v4049
        %4185 = vmatpush.msra.mxu0 %v4048
        %4186 = vmatpush.msra.mxu0 %v4047
        %4187 = vmatpush.msra.mxu0 %v4046
        %4188 = vmatpush.msra.mxu0 %v4045
        %4189 = vmatpush.msra.mxu0 %v4044
        %4190 = vmatpush.msra.mxu0 %v4043
        %4191 = vmatpush.msra.mxu0 %v4042
        %4192 = vmatpush.msra.mxu0 %v4041
        %4193 = vmatpush.msra.mxu0 %v4040
        %4194 = vmatpush.msra.mxu0 %v4039
        %4195 = vmatpush.msra.mxu0 %v4038
        %4196 = vmatpush.msra.mxu0 %v4037
        %4197 = vmatpush.msra.mxu0 %v4036
        %4198 = vmatpush.msra.mxu0 %v4035
        %4199 = vmatmul.f32.gmra.mxu0 %v3747
        %v4200 = vpop.f32.mrf.mxu0
        %v4201 = vadd.f32 %v4181, %v4200
        %4202 = vmatmul.f32.gmra.mxu0 %v3756
        %v4203 = vpop.f32.mrf.mxu0
        %v4204 = vadd.f32 %v4181, %v4203
        %4205 = vmatmul.f32.gmra.mxu0 %v3765
        %v4206 = vpop.f32.mrf.mxu0
        %v4207 = vadd.f32 %v4181, %v4206
        %4208 = vmatmul.f32.gmra.mxu0 %v3774
        %v4209 = vpop.f32.mrf.mxu0
        %v4210 = vadd.f32 %v4181, %v4209
        %4211 = vmatmul.f32.gmra.mxu0 %v3783
        %v4212 = vpop.f32.mrf.mxu0
        %v4213 = vadd.f32 %v4181, %v4212
        %4214 = vmatmul.f32.gmra.mxu0 %v3792
        %v4215 = vpop.f32.mrf.mxu0
        %v4216 = vadd.f32 %v4181, %v4215
        %4217 = vmatmul.f32.gmra.mxu0 %v3801
        %v4218 = vpop.f32.mrf.mxu0
        %v4219 = vadd.f32 %v4181, %v4218
        %4220 = vmatmul.f32.gmra.mxu0 %v3810
        %v4221 = vpop.f32.mrf.mxu0
        %v4222 = vadd.f32 %v4181, %v4221
        %4223 = vmatmul.f32.gmra.mxu0 %v3819
        %v4224 = vpop.f32.mrf.mxu0
        %v4225 = vadd.f32 %v4181, %v4224
        %4226 = vmatmul.f32.gmra.mxu0 %v3828
        %v4227 = vpop.f32.mrf.mxu0
        %v4228 = vadd.f32 %v4181, %v4227
        %4229 = vmatmul.f32.gmra.mxu0 %v3837
        %v4230 = vpop.f32.mrf.mxu0
        %v4231 = vadd.f32 %v4181, %v4230
        %4232 = vmatmul.f32.gmra.mxu0 %v3846
        %v4233 = vpop.f32.mrf.mxu0
        %v4234 = vadd.f32 %v4181, %v4233
        %4235 = vmatmul.f32.gmra.mxu0 %v3855
        %v4236 = vpop.f32.mrf.mxu0
        %v4237 = vadd.f32 %v4181, %v4236
        %4238 = vmatmul.f32.gmra.mxu0 %v3864
        %v4239 = vpop.f32.mrf.mxu0
        %v4240 = vadd.f32 %v4181, %v4239
        %4241 = vmatmul.f32.gmra.mxu0 %v3873
        %v4242 = vpop.f32.mrf.mxu0
        %v4243 = vadd.f32 %v4181, %v4242
        %4244 = vmatmul.f32.gmra.mxu0 %v3882
        %v4245 = vpop.f32.mrf.mxu0
        %v4246 = vadd.f32 %v4181, %v4245
        %4247 = vmatmul.f32.gmra.mxu0 %v3891
        %v4248 = vpop.f32.mrf.mxu0
        %v4249 = vadd.f32 %v4181, %v4248
        %4250 = vmatmul.f32.gmra.mxu0 %v3900
        %v4251 = vpop.f32.mrf.mxu0
        %v4252 = vadd.f32 %v4181, %v4251
        %4253 = vmatmul.f32.gmra.mxu0 %v3909
        %v4254 = vpop.f32.mrf.mxu0
        %v4255 = vadd.f32 %v4181, %v4254
        %4256 = vmatmul.f32.gmra.mxu0 %v3918
        %v4257 = vpop.f32.mrf.mxu0
        %v4258 = vadd.f32 %v4181, %v4257
        %4259 = vmatmul.f32.gmra.mxu0 %v3927
        %v4260 = vpop.f32.mrf.mxu0
        %v4261 = vadd.f32 %v4181, %v4260
        %4262 = vmatmul.f32.gmra.mxu0 %v3936
        %v4263 = vpop.f32.mrf.mxu0
        %v4264 = vadd.f32 %v4181, %v4263
        %4265 = vmatmul.f32.gmra.mxu0 %v3945
        %v4266 = vpop.f32.mrf.mxu0
        %v4267 = vadd.f32 %v4181, %v4266
        %4268 = vmatmul.f32.gmra.mxu0 %v3954
        %v4269 = vpop.f32.mrf.mxu0
        %v4270 = vadd.f32 %v4181, %v4269
        %4271 = vmatmul.f32.gmra.mxu0 %v3963
        %v4272 = vpop.f32.mrf.mxu0
        %v4273 = vadd.f32 %v4181, %v4272
        %4274 = vmatmul.f32.gmra.mxu0 %v3972
        %v4275 = vpop.f32.mrf.mxu0
        %v4276 = vadd.f32 %v4181, %v4275
        %4277 = vmatmul.f32.gmra.mxu0 %v3981
        %v4278 = vpop.f32.mrf.mxu0
        %v4279 = vadd.f32 %v4181, %v4278
        %4280 = vmatmul.f32.gmra.mxu0 %v3990
        %v4281 = vpop.f32.mrf.mxu0
        %v4282 = vadd.f32 %v4181, %v4281
        %4283 = vmatmul.f32.gmra.mxu0 %v3999
        %v4284 = vpop.f32.mrf.mxu0
        %v4285 = vadd.f32 %v4181, %v4284
        %4286 = vmatmul.f32.gmra.mxu0 %v4008
        %v4287 = vpop.f32.mrf.mxu0
        %v4288 = vadd.f32 %v4181, %v4287
        %4289 = vmatmul.f32.gmra.mxu0 %v4017
        %v4290 = vpop.f32.mrf.mxu0
        %v4291 = vadd.f32 %v4181, %v4290
        %4292 = vmatmul.f32.gmra.mxu0 %v4026
        %v4293 = vpop.f32.mrf.mxu0
        %v4294 = vadd.f32 %v4181, %v4293
        %4295 = vdwg.mxu0
        %4296 = vmatpush.msra.mxu0 %v4066
        %4297 = vmatpush.msra.mxu0 %v4065
        %4298 = vmatpush.msra.mxu0 %v4064
        %4299 = vmatpush.msra.mxu0 %v4063
        %4300 = vmatpush.msra.mxu0 %v4062
        %4301 = vmatpush.msra.mxu0 %v4061
        %4302 = vmatpush.msra.mxu0 %v4060
        %4303 = vmatpush.msra.mxu0 %v4059
        %4304 = vmatpush.msra.mxu0 %v4058
        %4305 = vmatpush.msra.mxu0 %v4057
        %4306 = vmatpush.msra.mxu0 %v4056
        %4307 = vmatpush.msra.mxu0 %v4055
        %4308 = vmatpush.msra.mxu0 %v4054
        %4309 = vmatpush.msra.mxu0 %v4053
        %4310 = vmatpush.msra.mxu0 %v4052
        %4311 = vmatpush.msra.mxu0 %v4051
        %4312 = vmatmul.f32.gmra.mxu0 %v3748
        %v4313 = vpop.f32.mrf.mxu0
        %v4314 = vadd.f32 %v4201, %v4313
        %4315 = vmatmul.f32.gmra.mxu0 %v3757
        %v4316 = vpop.f32.mrf.mxu0
        %v4317 = vadd.f32 %v4204, %v4316
        %4318 = vmatmul.f32.gmra.mxu0 %v3766
        %v4319 = vpop.f32.mrf.mxu0
        %v4320 = vadd.f32 %v4207, %v4319
        %4321 = vmatmul.f32.gmra.mxu0 %v3775
        %v4322 = vpop.f32.mrf.mxu0
        %v4323 = vadd.f32 %v4210, %v4322
        %4324 = vmatmul.f32.gmra.mxu0 %v3784
        %v4325 = vpop.f32.mrf.mxu0
        %v4326 = vadd.f32 %v4213, %v4325
        %4327 = vmatmul.f32.gmra.mxu0 %v3793
        %v4328 = vpop.f32.mrf.mxu0
        %v4329 = vadd.f32 %v4216, %v4328
        %4330 = vmatmul.f32.gmra.mxu0 %v3802
        %v4331 = vpop.f32.mrf.mxu0
        %v4332 = vadd.f32 %v4219, %v4331
        %4333 = vmatmul.f32.gmra.mxu0 %v3811
        %v4334 = vpop.f32.mrf.mxu0
        %v4335 = vadd.f32 %v4222, %v4334
        %4336 = vmatmul.f32.gmra.mxu0 %v3820
        %v4337 = vpop.f32.mrf.mxu0
        %v4338 = vadd.f32 %v4225, %v4337
        %4339 = vmatmul.f32.gmra.mxu0 %v3829
        %v4340 = vpop.f32.mrf.mxu0
        %v4341 = vadd.f32 %v4228, %v4340
        %4342 = vmatmul.f32.gmra.mxu0 %v3838
        %v4343 = vpop.f32.mrf.mxu0
        %v4344 = vadd.f32 %v4231, %v4343
        %4345 = vmatmul.f32.gmra.mxu0 %v3847
        %v4346 = vpop.f32.mrf.mxu0
        %v4347 = vadd.f32 %v4234, %v4346
        %4348 = vmatmul.f32.gmra.mxu0 %v3856
        %v4349 = vpop.f32.mrf.mxu0
        %v4350 = vadd.f32 %v4237, %v4349
        %4351 = vmatmul.f32.gmra.mxu0 %v3865
        %v4352 = vpop.f32.mrf.mxu0
        %v4353 = vadd.f32 %v4240, %v4352
        %4354 = vmatmul.f32.gmra.mxu0 %v3874
        %v4355 = vpop.f32.mrf.mxu0
        %v4356 = vadd.f32 %v4243, %v4355
        %4357 = vmatmul.f32.gmra.mxu0 %v3883
        %v4358 = vpop.f32.mrf.mxu0
        %v4359 = vadd.f32 %v4246, %v4358
        %4360 = vmatmul.f32.gmra.mxu0 %v3892
        %v4361 = vpop.f32.mrf.mxu0
        %v4362 = vadd.f32 %v4249, %v4361
        %4363 = vmatmul.f32.gmra.mxu0 %v3901
        %v4364 = vpop.f32.mrf.mxu0
        %v4365 = vadd.f32 %v4252, %v4364
        %4366 = vmatmul.f32.gmra.mxu0 %v3910
        %v4367 = vpop.f32.mrf.mxu0
        %v4368 = vadd.f32 %v4255, %v4367
        %4369 = vmatmul.f32.gmra.mxu0 %v3919
        %v4370 = vpop.f32.mrf.mxu0
        %v4371 = vadd.f32 %v4258, %v4370
        %4372 = vmatmul.f32.gmra.mxu0 %v3928
        %v4373 = vpop.f32.mrf.mxu0
        %v4374 = vadd.f32 %v4261, %v4373
        %4375 = vmatmul.f32.gmra.mxu0 %v3937
        %v4376 = vpop.f32.mrf.mxu0
        %v4377 = vadd.f32 %v4264, %v4376
        %4378 = vmatmul.f32.gmra.mxu0 %v3946
        %v4379 = vpop.f32.mrf.mxu0
        %v4380 = vadd.f32 %v4267, %v4379
        %4381 = vmatmul.f32.gmra.mxu0 %v3955
        %v4382 = vpop.f32.mrf.mxu0
        %v4383 = vadd.f32 %v4270, %v4382
        %4384 = vmatmul.f32.gmra.mxu0 %v3964
        %v4385 = vpop.f32.mrf.mxu0
        %v4386 = vadd.f32 %v4273, %v4385
        %4387 = vmatmul.f32.gmra.mxu0 %v3973
        %v4388 = vpop.f32.mrf.mxu0
        %v4389 = vadd.f32 %v4276, %v4388
        %4390 = vmatmul.f32.gmra.mxu0 %v3982
        %v4391 = vpop.f32.mrf.mxu0
        %v4392 = vadd.f32 %v4279, %v4391
        %4393 = vmatmul.f32.gmra.mxu0 %v3991
        %v4394 = vpop.f32.mrf.mxu0
        %v4395 = vadd.f32 %v4282, %v4394
        %4396 = vmatmul.f32.gmra.mxu0 %v4000
        %v4397 = vpop.f32.mrf.mxu0
        %v4398 = vadd.f32 %v4285, %v4397
        %4399 = vmatmul.f32.gmra.mxu0 %v4009
        %v4400 = vpop.f32.mrf.mxu0
        %v4401 = vadd.f32 %v4288, %v4400
        %4402 = vmatmul.f32.gmra.mxu0 %v4018
        %v4403 = vpop.f32.mrf.mxu0
        %v4404 = vadd.f32 %v4291, %v4403
        %4405 = vmatmul.f32.gmra.mxu0 %v4027
        %v4406 = vpop.f32.mrf.mxu0
        %v4407 = vadd.f32 %v4294, %v4406
        %4408 = vdwg.mxu0
        %4409 = vmatpush.msra.mxu0 %v4082
        %4410 = vmatpush.msra.mxu0 %v4081
        %4411 = vmatpush.msra.mxu0 %v4080
        %4412 = vmatpush.msra.mxu0 %v4079
        %4413 = vmatpush.msra.mxu0 %v4078
        %4414 = vmatpush.msra.mxu0 %v4077
        %4415 = vmatpush.msra.mxu0 %v4076
        %4416 = vmatpush.msra.mxu0 %v4075
        %4417 = vmatpush.msra.mxu0 %v4074
        %4418 = vmatpush.msra.mxu0 %v4073
        %4419 = vmatpush.msra.mxu0 %v4072
        %4420 = vmatpush.msra.mxu0 %v4071
        %4421 = vmatpush.msra.mxu0 %v4070
        %4422 = vmatpush.msra.mxu0 %v4069
        %4423 = vmatpush.msra.mxu0 %v4068
        %4424 = vmatpush.msra.mxu0 %v4067
        %4425 = vmatmul.f32.gmra.mxu0 %v3749
        %v4426 = vpop.f32.mrf.mxu0
        %v4427 = vadd.f32 %v4314, %v4426
        %4428 = vmatmul.f32.gmra.mxu0 %v3758
        %v4429 = vpop.f32.mrf.mxu0
        %v4430 = vadd.f32 %v4317, %v4429
        %4431 = vmatmul.f32.gmra.mxu0 %v3767
        %v4432 = vpop.f32.mrf.mxu0
        %v4433 = vadd.f32 %v4320, %v4432
        %4434 = vmatmul.f32.gmra.mxu0 %v3776
        %v4435 = vpop.f32.mrf.mxu0
        %v4436 = vadd.f32 %v4323, %v4435
        %4437 = vmatmul.f32.gmra.mxu0 %v3785
        %v4438 = vpop.f32.mrf.mxu0
        %v4439 = vadd.f32 %v4326, %v4438
        %4440 = vmatmul.f32.gmra.mxu0 %v3794
        %v4441 = vpop.f32.mrf.mxu0
        %v4442 = vadd.f32 %v4329, %v4441
        %4443 = vmatmul.f32.gmra.mxu0 %v3803
        %v4444 = vpop.f32.mrf.mxu0
        %v4445 = vadd.f32 %v4332, %v4444
        %4446 = vmatmul.f32.gmra.mxu0 %v3812
        %v4447 = vpop.f32.mrf.mxu0
        %v4448 = vadd.f32 %v4335, %v4447
        %4449 = vmatmul.f32.gmra.mxu0 %v3821
        %v4450 = vpop.f32.mrf.mxu0
        %v4451 = vadd.f32 %v4338, %v4450
        %4452 = vmatmul.f32.gmra.mxu0 %v3830
        %v4453 = vpop.f32.mrf.mxu0
        %v4454 = vadd.f32 %v4341, %v4453
        %4455 = vmatmul.f32.gmra.mxu0 %v3839
        %v4456 = vpop.f32.mrf.mxu0
        %v4457 = vadd.f32 %v4344, %v4456
        %4458 = vmatmul.f32.gmra.mxu0 %v3848
        %v4459 = vpop.f32.mrf.mxu0
        %v4460 = vadd.f32 %v4347, %v4459
        %4461 = vmatmul.f32.gmra.mxu0 %v3857
        %v4462 = vpop.f32.mrf.mxu0
        %v4463 = vadd.f32 %v4350, %v4462
        %4464 = vmatmul.f32.gmra.mxu0 %v3866
        %v4465 = vpop.f32.mrf.mxu0
        %v4466 = vadd.f32 %v4353, %v4465
        %4467 = vmatmul.f32.gmra.mxu0 %v3875
        %v4468 = vpop.f32.mrf.mxu0
        %v4469 = vadd.f32 %v4356, %v4468
        %4470 = vmatmul.f32.gmra.mxu0 %v3884
        %v4471 = vpop.f32.mrf.mxu0
        %v4472 = vadd.f32 %v4359, %v4471
        %4473 = vmatmul.f32.gmra.mxu0 %v3893
        %v4474 = vpop.f32.mrf.mxu0
        %v4475 = vadd.f32 %v4362, %v4474
        %4476 = vmatmul.f32.gmra.mxu0 %v3902
        %v4477 = vpop.f32.mrf.mxu0
        %v4478 = vadd.f32 %v4365, %v4477
        %4479 = vmatmul.f32.gmra.mxu0 %v3911
        %v4480 = vpop.f32.mrf.mxu0
        %v4481 = vadd.f32 %v4368, %v4480
        %4482 = vmatmul.f32.gmra.mxu0 %v3920
        %v4483 = vpop.f32.mrf.mxu0
        %v4484 = vadd.f32 %v4371, %v4483
        %4485 = vmatmul.f32.gmra.mxu0 %v3929
        %v4486 = vpop.f32.mrf.mxu0
        %v4487 = vadd.f32 %v4374, %v4486
        %4488 = vmatmul.f32.gmra.mxu0 %v3938
        %v4489 = vpop.f32.mrf.mxu0
        %v4490 = vadd.f32 %v4377, %v4489
        %4491 = vmatmul.f32.gmra.mxu0 %v3947
        %v4492 = vpop.f32.mrf.mxu0
        %v4493 = vadd.f32 %v4380, %v4492
        %4494 = vmatmul.f32.gmra.mxu0 %v3956
        %v4495 = vpop.f32.mrf.mxu0
        %v4496 = vadd.f32 %v4383, %v4495
        %4497 = vmatmul.f32.gmra.mxu0 %v3965
        %v4498 = vpop.f32.mrf.mxu0
        %v4499 = vadd.f32 %v4386, %v4498
        %4500 = vmatmul.f32.gmra.mxu0 %v3974
        %v4501 = vpop.f32.mrf.mxu0
        %v4502 = vadd.f32 %v4389, %v4501
        %4503 = vmatmul.f32.gmra.mxu0 %v3983
        %v4504 = vpop.f32.mrf.mxu0
        %v4505 = vadd.f32 %v4392, %v4504
        %4506 = vmatmul.f32.gmra.mxu0 %v3992
        %v4507 = vpop.f32.mrf.mxu0
        %v4508 = vadd.f32 %v4395, %v4507
        %4509 = vmatmul.f32.gmra.mxu0 %v4001
        %v4510 = vpop.f32.mrf.mxu0
        %v4511 = vadd.f32 %v4398, %v4510
        %4512 = vmatmul.f32.gmra.mxu0 %v4010
        %v4513 = vpop.f32.mrf.mxu0
        %v4514 = vadd.f32 %v4401, %v4513
        %4515 = vmatmul.f32.gmra.mxu0 %v4019
        %v4516 = vpop.f32.mrf.mxu0
        %v4517 = vadd.f32 %v4404, %v4516
        %4518 = vmatmul.f32.gmra.mxu0 %v4028
        %v4519 = vpop.f32.mrf.mxu0
        %v4520 = vadd.f32 %v4407, %v4519
        %4521 = vdwg.mxu0
        %4522 = vmatpush.msra.mxu0 %v4098
        %4523 = vmatpush.msra.mxu0 %v4097
        %4524 = vmatpush.msra.mxu0 %v4096
        %4525 = vmatpush.msra.mxu0 %v4095
        %4526 = vmatpush.msra.mxu0 %v4094
        %4527 = vmatpush.msra.mxu0 %v4093
        %4528 = vmatpush.msra.mxu0 %v4092
        %4529 = vmatpush.msra.mxu0 %v4091
        %4530 = vmatpush.msra.mxu0 %v4090
        %4531 = vmatpush.msra.mxu0 %v4089
        %4532 = vmatpush.msra.mxu0 %v4088
        %4533 = vmatpush.msra.mxu0 %v4087
        %4534 = vmatpush.msra.mxu0 %v4086
        %4535 = vmatpush.msra.mxu0 %v4085
        %4536 = vmatpush.msra.mxu0 %v4084
        %4537 = vmatpush.msra.mxu0 %v4083
        %4538 = vmatmul.f32.gmra.mxu0 %v3750
        %v4539 = vpop.f32.mrf.mxu0
        %v4540 = vadd.f32 %v4427, %v4539
        %4541 = vmatmul.f32.gmra.mxu0 %v3759
        %v4542 = vpop.f32.mrf.mxu0
        %v4543 = vadd.f32 %v4430, %v4542
        %4544 = vmatmul.f32.gmra.mxu0 %v3768
        %v4545 = vpop.f32.mrf.mxu0
        %v4546 = vadd.f32 %v4433, %v4545
        %4547 = vmatmul.f32.gmra.mxu0 %v3777
        %v4548 = vpop.f32.mrf.mxu0
        %v4549 = vadd.f32 %v4436, %v4548
        %4550 = vmatmul.f32.gmra.mxu0 %v3786
        %v4551 = vpop.f32.mrf.mxu0
        %v4552 = vadd.f32 %v4439, %v4551
        %4553 = vmatmul.f32.gmra.mxu0 %v3795
        %v4554 = vpop.f32.mrf.mxu0
        %v4555 = vadd.f32 %v4442, %v4554
        %4556 = vmatmul.f32.gmra.mxu0 %v3804
        %v4557 = vpop.f32.mrf.mxu0
        %v4558 = vadd.f32 %v4445, %v4557
        %4559 = vmatmul.f32.gmra.mxu0 %v3813
        %v4560 = vpop.f32.mrf.mxu0
        %v4561 = vadd.f32 %v4448, %v4560
        %4562 = vmatmul.f32.gmra.mxu0 %v3822
        %v4563 = vpop.f32.mrf.mxu0
        %v4564 = vadd.f32 %v4451, %v4563
        %4565 = vmatmul.f32.gmra.mxu0 %v3831
        %v4566 = vpop.f32.mrf.mxu0
        %v4567 = vadd.f32 %v4454, %v4566
        %4568 = vmatmul.f32.gmra.mxu0 %v3840
        %v4569 = vpop.f32.mrf.mxu0
        %v4570 = vadd.f32 %v4457, %v4569
        %4571 = vmatmul.f32.gmra.mxu0 %v3849
        %v4572 = vpop.f32.mrf.mxu0
        %v4573 = vadd.f32 %v4460, %v4572
        %4574 = vmatmul.f32.gmra.mxu0 %v3858
        %v4575 = vpop.f32.mrf.mxu0
        %v4576 = vadd.f32 %v4463, %v4575
        %4577 = vmatmul.f32.gmra.mxu0 %v3867
        %v4578 = vpop.f32.mrf.mxu0
        %v4579 = vadd.f32 %v4466, %v4578
        %4580 = vmatmul.f32.gmra.mxu0 %v3876
        %v4581 = vpop.f32.mrf.mxu0
        %v4582 = vadd.f32 %v4469, %v4581
        %4583 = vmatmul.f32.gmra.mxu0 %v3885
        %v4584 = vpop.f32.mrf.mxu0
        %v4585 = vadd.f32 %v4472, %v4584
        %4586 = vmatmul.f32.gmra.mxu0 %v3894
        %v4587 = vpop.f32.mrf.mxu0
        %v4588 = vadd.f32 %v4475, %v4587
        %4589 = vmatmul.f32.gmra.mxu0 %v3903
        %v4590 = vpop.f32.mrf.mxu0
        %v4591 = vadd.f32 %v4478, %v4590
        %4592 = vmatmul.f32.gmra.mxu0 %v3912
        %v4593 = vpop.f32.mrf.mxu0
        %v4594 = vadd.f32 %v4481, %v4593
        %4595 = vmatmul.f32.gmra.mxu0 %v3921
        %v4596 = vpop.f32.mrf.mxu0
        %v4597 = vadd.f32 %v4484, %v4596
        %4598 = vmatmul.f32.gmra.mxu0 %v3930
        %v4599 = vpop.f32.mrf.mxu0
        %v4600 = vadd.f32 %v4487, %v4599
        %4601 = vmatmul.f32.gmra.mxu0 %v3939
        %v4602 = vpop.f32.mrf.mxu0
        %v4603 = vadd.f32 %v4490, %v4602
        %4604 = vmatmul.f32.gmra.mxu0 %v3948
        %v4605 = vpop.f32.mrf.mxu0
        %v4606 = vadd.f32 %v4493, %v4605
        %4607 = vmatmul.f32.gmra.mxu0 %v3957
        %v4608 = vpop.f32.mrf.mxu0
        %v4609 = vadd.f32 %v4496, %v4608
        %4610 = vmatmul.f32.gmra.mxu0 %v3966
        %v4611 = vpop.f32.mrf.mxu0
        %v4612 = vadd.f32 %v4499, %v4611
        %4613 = vmatmul.f32.gmra.mxu0 %v3975
        %v4614 = vpop.f32.mrf.mxu0
        %v4615 = vadd.f32 %v4502, %v4614
        %4616 = vmatmul.f32.gmra.mxu0 %v3984
        %v4617 = vpop.f32.mrf.mxu0
        %v4618 = vadd.f32 %v4505, %v4617
        %4619 = vmatmul.f32.gmra.mxu0 %v3993
        %v4620 = vpop.f32.mrf.mxu0
        %v4621 = vadd.f32 %v4508, %v4620
        %4622 = vmatmul.f32.gmra.mxu0 %v4002
        %v4623 = vpop.f32.mrf.mxu0
        %v4624 = vadd.f32 %v4511, %v4623
        %4625 = vmatmul.f32.gmra.mxu0 %v4011
        %v4626 = vpop.f32.mrf.mxu0
        %v4627 = vadd.f32 %v4514, %v4626
        %4628 = vmatmul.f32.gmra.mxu0 %v4020
        %v4629 = vpop.f32.mrf.mxu0
        %v4630 = vadd.f32 %v4517, %v4629
        %4631 = vmatmul.f32.gmra.mxu0 %v4029
        %v4632 = vpop.f32.mrf.mxu0
        %v4633 = vadd.f32 %v4520, %v4632
        %4634 = vdwg.mxu0
        %4635 = vmatpush.msra.mxu0 %v4114
        %4636 = vmatpush.msra.mxu0 %v4113
        %4637 = vmatpush.msra.mxu0 %v4112
        %4638 = vmatpush.msra.mxu0 %v4111
        %4639 = vmatpush.msra.mxu0 %v4110
        %4640 = vmatpush.msra.mxu0 %v4109
        %4641 = vmatpush.msra.mxu0 %v4108
        %4642 = vmatpush.msra.mxu0 %v4107
        %4643 = vmatpush.msra.mxu0 %v4106
        %4644 = vmatpush.msra.mxu0 %v4105
        %4645 = vmatpush.msra.mxu0 %v4104
        %4646 = vmatpush.msra.mxu0 %v4103
        %4647 = vmatpush.msra.mxu0 %v4102
        %4648 = vmatpush.msra.mxu0 %v4101
        %4649 = vmatpush.msra.mxu0 %v4100
        %4650 = vmatpush.msra.mxu0 %v4099
        %4651 = vmatmul.f32.gmra.mxu0 %v3751
        %v4652 = vpop.f32.mrf.mxu0
        %v4653 = vadd.f32 %v4540, %v4652
        %4654 = vmatmul.f32.gmra.mxu0 %v3760
        %v4655 = vpop.f32.mrf.mxu0
        %v4656 = vadd.f32 %v4543, %v4655
        %4657 = vmatmul.f32.gmra.mxu0 %v3769
        %v4658 = vpop.f32.mrf.mxu0
        %v4659 = vadd.f32 %v4546, %v4658
        %4660 = vmatmul.f32.gmra.mxu0 %v3778
        %v4661 = vpop.f32.mrf.mxu0
        %v4662 = vadd.f32 %v4549, %v4661
        %4663 = vmatmul.f32.gmra.mxu0 %v3787
        %v4664 = vpop.f32.mrf.mxu0
        %v4665 = vadd.f32 %v4552, %v4664
        %4666 = vmatmul.f32.gmra.mxu0 %v3796
        %v4667 = vpop.f32.mrf.mxu0
        %v4668 = vadd.f32 %v4555, %v4667
        %4669 = vmatmul.f32.gmra.mxu0 %v3805
        %v4670 = vpop.f32.mrf.mxu0
        %v4671 = vadd.f32 %v4558, %v4670
        %4672 = vmatmul.f32.gmra.mxu0 %v3814
        %v4673 = vpop.f32.mrf.mxu0
        %v4674 = vadd.f32 %v4561, %v4673
        %4675 = vmatmul.f32.gmra.mxu0 %v3823
        %v4676 = vpop.f32.mrf.mxu0
        %v4677 = vadd.f32 %v4564, %v4676
        %4678 = vmatmul.f32.gmra.mxu0 %v3832
        %v4679 = vpop.f32.mrf.mxu0
        %v4680 = vadd.f32 %v4567, %v4679
        %4681 = vmatmul.f32.gmra.mxu0 %v3841
        %v4682 = vpop.f32.mrf.mxu0
        %v4683 = vadd.f32 %v4570, %v4682
        %4684 = vmatmul.f32.gmra.mxu0 %v3850
        %v4685 = vpop.f32.mrf.mxu0
        %v4686 = vadd.f32 %v4573, %v4685
        %4687 = vmatmul.f32.gmra.mxu0 %v3859
        %v4688 = vpop.f32.mrf.mxu0
        %v4689 = vadd.f32 %v4576, %v4688
        %4690 = vmatmul.f32.gmra.mxu0 %v3868
        %v4691 = vpop.f32.mrf.mxu0
        %v4692 = vadd.f32 %v4579, %v4691
        %4693 = vmatmul.f32.gmra.mxu0 %v3877
        %v4694 = vpop.f32.mrf.mxu0
        %v4695 = vadd.f32 %v4582, %v4694
        %4696 = vmatmul.f32.gmra.mxu0 %v3886
        %v4697 = vpop.f32.mrf.mxu0
        %v4698 = vadd.f32 %v4585, %v4697
        %4699 = vmatmul.f32.gmra.mxu0 %v3895
        %v4700 = vpop.f32.mrf.mxu0
        %v4701 = vadd.f32 %v4588, %v4700
        %4702 = vmatmul.f32.gmra.mxu0 %v3904
        %v4703 = vpop.f32.mrf.mxu0
        %v4704 = vadd.f32 %v4591, %v4703
        %4705 = vmatmul.f32.gmra.mxu0 %v3913
        %v4706 = vpop.f32.mrf.mxu0
        %v4707 = vadd.f32 %v4594, %v4706
        %4708 = vmatmul.f32.gmra.mxu0 %v3922
        %v4709 = vpop.f32.mrf.mxu0
        %v4710 = vadd.f32 %v4597, %v4709
        %4711 = vmatmul.f32.gmra.mxu0 %v3931
        %v4712 = vpop.f32.mrf.mxu0
        %v4713 = vadd.f32 %v4600, %v4712
        %4714 = vmatmul.f32.gmra.mxu0 %v3940
        %v4715 = vpop.f32.mrf.mxu0
        %v4716 = vadd.f32 %v4603, %v4715
        %4717 = vmatmul.f32.gmra.mxu0 %v3949
        %v4718 = vpop.f32.mrf.mxu0
        %v4719 = vadd.f32 %v4606, %v4718
        %4720 = vmatmul.f32.gmra.mxu0 %v3958
        %v4721 = vpop.f32.mrf.mxu0
        %v4722 = vadd.f32 %v4609, %v4721
        %4723 = vmatmul.f32.gmra.mxu0 %v3967
        %v4724 = vpop.f32.mrf.mxu0
        %v4725 = vadd.f32 %v4612, %v4724
        %4726 = vmatmul.f32.gmra.mxu0 %v3976
        %v4727 = vpop.f32.mrf.mxu0
        %v4728 = vadd.f32 %v4615, %v4727
        %4729 = vmatmul.f32.gmra.mxu0 %v3985
        %v4730 = vpop.f32.mrf.mxu0
        %v4731 = vadd.f32 %v4618, %v4730
        %4732 = vmatmul.f32.gmra.mxu0 %v3994
        %v4733 = vpop.f32.mrf.mxu0
        %v4734 = vadd.f32 %v4621, %v4733
        %4735 = vmatmul.f32.gmra.mxu0 %v4003
        %v4736 = vpop.f32.mrf.mxu0
        %v4737 = vadd.f32 %v4624, %v4736
        %4738 = vmatmul.f32.gmra.mxu0 %v4012
        %v4739 = vpop.f32.mrf.mxu0
        %v4740 = vadd.f32 %v4627, %v4739
        %4741 = vmatmul.f32.gmra.mxu0 %v4021
        %v4742 = vpop.f32.mrf.mxu0
        %v4743 = vadd.f32 %v4630, %v4742
        %4744 = vmatmul.f32.gmra.mxu0 %v4030
        %v4745 = vpop.f32.mrf.mxu0
        %v4746 = vadd.f32 %v4633, %v4745
        %4747 = vdwg.mxu0
        %4748 = vmatpush.msra.mxu0 %v4130
        %4749 = vmatpush.msra.mxu0 %v4129
        %4750 = vmatpush.msra.mxu0 %v4128
        %4751 = vmatpush.msra.mxu0 %v4127
        %4752 = vmatpush.msra.mxu0 %v4126
        %4753 = vmatpush.msra.mxu0 %v4125
        %4754 = vmatpush.msra.mxu0 %v4124
        %4755 = vmatpush.msra.mxu0 %v4123
        %4756 = vmatpush.msra.mxu0 %v4122
        %4757 = vmatpush.msra.mxu0 %v4121
        %4758 = vmatpush.msra.mxu0 %v4120
        %4759 = vmatpush.msra.mxu0 %v4119
        %4760 = vmatpush.msra.mxu0 %v4118
        %4761 = vmatpush.msra.mxu0 %v4117
        %4762 = vmatpush.msra.mxu0 %v4116
        %4763 = vmatpush.msra.mxu0 %v4115
        %4764 = vmatmul.f32.gmra.mxu0 %v3752
        %v4765 = vpop.f32.mrf.mxu0
        %v4766 = vadd.f32 %v4653, %v4765
        %4767 = vmatmul.f32.gmra.mxu0 %v3761
        %v4768 = vpop.f32.mrf.mxu0
        %v4769 = vadd.f32 %v4656, %v4768
        %4770 = vmatmul.f32.gmra.mxu0 %v3770
        %v4771 = vpop.f32.mrf.mxu0
        %v4772 = vadd.f32 %v4659, %v4771
        %4773 = vmatmul.f32.gmra.mxu0 %v3779
        %v4774 = vpop.f32.mrf.mxu0
        %v4775 = vadd.f32 %v4662, %v4774
        %4776 = vmatmul.f32.gmra.mxu0 %v3788
        %v4777 = vpop.f32.mrf.mxu0
        %v4778 = vadd.f32 %v4665, %v4777
        %4779 = vmatmul.f32.gmra.mxu0 %v3797
        %v4780 = vpop.f32.mrf.mxu0
        %v4781 = vadd.f32 %v4668, %v4780
        %4782 = vmatmul.f32.gmra.mxu0 %v3806
        %v4783 = vpop.f32.mrf.mxu0
        %v4784 = vadd.f32 %v4671, %v4783
        %4785 = vmatmul.f32.gmra.mxu0 %v3815
        %v4786 = vpop.f32.mrf.mxu0
        %v4787 = vadd.f32 %v4674, %v4786
        %4788 = vmatmul.f32.gmra.mxu0 %v3824
        %v4789 = vpop.f32.mrf.mxu0
        %v4790 = vadd.f32 %v4677, %v4789
        %4791 = vmatmul.f32.gmra.mxu0 %v3833
        %v4792 = vpop.f32.mrf.mxu0
        %v4793 = vadd.f32 %v4680, %v4792
        %4794 = vmatmul.f32.gmra.mxu0 %v3842
        %v4795 = vpop.f32.mrf.mxu0
        %v4796 = vadd.f32 %v4683, %v4795
        %4797 = vmatmul.f32.gmra.mxu0 %v3851
        %v4798 = vpop.f32.mrf.mxu0
        %v4799 = vadd.f32 %v4686, %v4798
        %4800 = vmatmul.f32.gmra.mxu0 %v3860
        %v4801 = vpop.f32.mrf.mxu0
        %v4802 = vadd.f32 %v4689, %v4801
        %4803 = vmatmul.f32.gmra.mxu0 %v3869
        %v4804 = vpop.f32.mrf.mxu0
        %v4805 = vadd.f32 %v4692, %v4804
        %4806 = vmatmul.f32.gmra.mxu0 %v3878
        %v4807 = vpop.f32.mrf.mxu0
        %v4808 = vadd.f32 %v4695, %v4807
        %4809 = vmatmul.f32.gmra.mxu0 %v3887
        %v4810 = vpop.f32.mrf.mxu0
        %v4811 = vadd.f32 %v4698, %v4810
        %4812 = vmatmul.f32.gmra.mxu0 %v3896
        %v4813 = vpop.f32.mrf.mxu0
        %v4814 = vadd.f32 %v4701, %v4813
        %4815 = vmatmul.f32.gmra.mxu0 %v3905
        %v4816 = vpop.f32.mrf.mxu0
        %v4817 = vadd.f32 %v4704, %v4816
        %4818 = vmatmul.f32.gmra.mxu0 %v3914
        %v4819 = vpop.f32.mrf.mxu0
        %v4820 = vadd.f32 %v4707, %v4819
        %4821 = vmatmul.f32.gmra.mxu0 %v3923
        %v4822 = vpop.f32.mrf.mxu0
        %v4823 = vadd.f32 %v4710, %v4822
        %4824 = vmatmul.f32.gmra.mxu0 %v3932
        %v4825 = vpop.f32.mrf.mxu0
        %v4826 = vadd.f32 %v4713, %v4825
        %4827 = vmatmul.f32.gmra.mxu0 %v3941
        %v4828 = vpop.f32.mrf.mxu0
        %v4829 = vadd.f32 %v4716, %v4828
        %4830 = vmatmul.f32.gmra.mxu0 %v3950
        %v4831 = vpop.f32.mrf.mxu0
        %v4832 = vadd.f32 %v4719, %v4831
        %4833 = vmatmul.f32.gmra.mxu0 %v3959
        %v4834 = vpop.f32.mrf.mxu0
        %v4835 = vadd.f32 %v4722, %v4834
        %4836 = vmatmul.f32.gmra.mxu0 %v3968
        %v4837 = vpop.f32.mrf.mxu0
        %v4838 = vadd.f32 %v4725, %v4837
        %4839 = vmatmul.f32.gmra.mxu0 %v3977
        %v4840 = vpop.f32.mrf.mxu0
        %v4841 = vadd.f32 %v4728, %v4840
        %4842 = vmatmul.f32.gmra.mxu0 %v3986
        %v4843 = vpop.f32.mrf.mxu0
        %v4844 = vadd.f32 %v4731, %v4843
        %4845 = vmatmul.f32.gmra.mxu0 %v3995
        %v4846 = vpop.f32.mrf.mxu0
        %v4847 = vadd.f32 %v4734, %v4846
        %4848 = vmatmul.f32.gmra.mxu0 %v4004
        %v4849 = vpop.f32.mrf.mxu0
        %v4850 = vadd.f32 %v4737, %v4849
        %4851 = vmatmul.f32.gmra.mxu0 %v4013
        %v4852 = vpop.f32.mrf.mxu0
        %v4853 = vadd.f32 %v4740, %v4852
        %4854 = vmatmul.f32.gmra.mxu0 %v4022
        %v4855 = vpop.f32.mrf.mxu0
        %v4856 = vadd.f32 %v4743, %v4855
        %4857 = vmatmul.f32.gmra.mxu0 %v4031
        %v4858 = vpop.f32.mrf.mxu0
        %v4859 = vadd.f32 %v4746, %v4858
        %4860 = vdwg.mxu0
        %4861 = vmatpush.msra.mxu0 %v4146
        %4862 = vmatpush.msra.mxu0 %v4145
        %4863 = vmatpush.msra.mxu0 %v4144
        %4864 = vmatpush.msra.mxu0 %v4143
        %4865 = vmatpush.msra.mxu0 %v4142
        %4866 = vmatpush.msra.mxu0 %v4141
        %4867 = vmatpush.msra.mxu0 %v4140
        %4868 = vmatpush.msra.mxu0 %v4139
        %4869 = vmatpush.msra.mxu0 %v4138
        %4870 = vmatpush.msra.mxu0 %v4137
        %4871 = vmatpush.msra.mxu0 %v4136
        %4872 = vmatpush.msra.mxu0 %v4135
        %4873 = vmatpush.msra.mxu0 %v4134
        %4874 = vmatpush.msra.mxu0 %v4133
        %4875 = vmatpush.msra.mxu0 %v4132
        %4876 = vmatpush.msra.mxu0 %v4131
        %4877 = vmatmul.f32.gmra.mxu0 %v3753
        %v4878 = vpop.f32.mrf.mxu0
        %v4879 = vadd.f32 %v4766, %v4878
        %4880 = vmatmul.f32.gmra.mxu0 %v3762
        %v4881 = vpop.f32.mrf.mxu0
        %v4882 = vadd.f32 %v4769, %v4881
        %4883 = vmatmul.f32.gmra.mxu0 %v3771
        %v4884 = vpop.f32.mrf.mxu0
        %v4885 = vadd.f32 %v4772, %v4884
        %4886 = vmatmul.f32.gmra.mxu0 %v3780
        %v4887 = vpop.f32.mrf.mxu0
        %v4888 = vadd.f32 %v4775, %v4887
        %4889 = vmatmul.f32.gmra.mxu0 %v3789
        %v4890 = vpop.f32.mrf.mxu0
        %v4891 = vadd.f32 %v4778, %v4890
        %4892 = vmatmul.f32.gmra.mxu0 %v3798
        %v4893 = vpop.f32.mrf.mxu0
        %v4894 = vadd.f32 %v4781, %v4893
        %4895 = vmatmul.f32.gmra.mxu0 %v3807
        %v4896 = vpop.f32.mrf.mxu0
        %v4897 = vadd.f32 %v4784, %v4896
        %4898 = vmatmul.f32.gmra.mxu0 %v3816
        %v4899 = vpop.f32.mrf.mxu0
        %v4900 = vadd.f32 %v4787, %v4899
        %4901 = vmatmul.f32.gmra.mxu0 %v3825
        %v4902 = vpop.f32.mrf.mxu0
        %v4903 = vadd.f32 %v4790, %v4902
        %4904 = vmatmul.f32.gmra.mxu0 %v3834
        %v4905 = vpop.f32.mrf.mxu0
        %v4906 = vadd.f32 %v4793, %v4905
        %4907 = vmatmul.f32.gmra.mxu0 %v3843
        %v4908 = vpop.f32.mrf.mxu0
        %v4909 = vadd.f32 %v4796, %v4908
        %4910 = vmatmul.f32.gmra.mxu0 %v3852
        %v4911 = vpop.f32.mrf.mxu0
        %v4912 = vadd.f32 %v4799, %v4911
        %4913 = vmatmul.f32.gmra.mxu0 %v3861
        %v4914 = vpop.f32.mrf.mxu0
        %v4915 = vadd.f32 %v4802, %v4914
        %4916 = vmatmul.f32.gmra.mxu0 %v3870
        %v4917 = vpop.f32.mrf.mxu0
        %v4918 = vadd.f32 %v4805, %v4917
        %4919 = vmatmul.f32.gmra.mxu0 %v3879
        %v4920 = vpop.f32.mrf.mxu0
        %v4921 = vadd.f32 %v4808, %v4920
        %4922 = vmatmul.f32.gmra.mxu0 %v3888
        %v4923 = vpop.f32.mrf.mxu0
        %v4924 = vadd.f32 %v4811, %v4923
        %4925 = vmatmul.f32.gmra.mxu0 %v3897
        %v4926 = vpop.f32.mrf.mxu0
        %v4927 = vadd.f32 %v4814, %v4926
        %4928 = vmatmul.f32.gmra.mxu0 %v3906
        %v4929 = vpop.f32.mrf.mxu0
        %v4930 = vadd.f32 %v4817, %v4929
        %4931 = vmatmul.f32.gmra.mxu0 %v3915
        %v4932 = vpop.f32.mrf.mxu0
        %v4933 = vadd.f32 %v4820, %v4932
        %4934 = vmatmul.f32.gmra.mxu0 %v3924
        %v4935 = vpop.f32.mrf.mxu0
        %v4936 = vadd.f32 %v4823, %v4935
        %4937 = vmatmul.f32.gmra.mxu0 %v3933
        %v4938 = vpop.f32.mrf.mxu0
        %v4939 = vadd.f32 %v4826, %v4938
        %4940 = vmatmul.f32.gmra.mxu0 %v3942
        %v4941 = vpop.f32.mrf.mxu0
        %v4942 = vadd.f32 %v4829, %v4941
        %4943 = vmatmul.f32.gmra.mxu0 %v3951
        %v4944 = vpop.f32.mrf.mxu0
        %v4945 = vadd.f32 %v4832, %v4944
        %4946 = vmatmul.f32.gmra.mxu0 %v3960
        %v4947 = vpop.f32.mrf.mxu0
        %v4948 = vadd.f32 %v4835, %v4947
        %4949 = vmatmul.f32.gmra.mxu0 %v3969
        %v4950 = vpop.f32.mrf.mxu0
        %v4951 = vadd.f32 %v4838, %v4950
        %4952 = vmatmul.f32.gmra.mxu0 %v3978
        %v4953 = vpop.f32.mrf.mxu0
        %v4954 = vadd.f32 %v4841, %v4953
        %4955 = vmatmul.f32.gmra.mxu0 %v3987
        %v4956 = vpop.f32.mrf.mxu0
        %v4957 = vadd.f32 %v4844, %v4956
        %4958 = vmatmul.f32.gmra.mxu0 %v3996
        %v4959 = vpop.f32.mrf.mxu0
        %v4960 = vadd.f32 %v4847, %v4959
        %4961 = vmatmul.f32.gmra.mxu0 %v4005
        %v4962 = vpop.f32.mrf.mxu0
        %v4963 = vadd.f32 %v4850, %v4962
        %4964 = vmatmul.f32.gmra.mxu0 %v4014
        %v4965 = vpop.f32.mrf.mxu0
        %v4966 = vadd.f32 %v4853, %v4965
        %4967 = vmatmul.f32.gmra.mxu0 %v4023
        %v4968 = vpop.f32.mrf.mxu0
        %v4969 = vadd.f32 %v4856, %v4968
        %4970 = vmatmul.f32.gmra.mxu0 %v4032
        %v4971 = vpop.f32.mrf.mxu0
        %v4972 = vadd.f32 %v4859, %v4971
        %4973 = vdwg.mxu0
        %4974 = vmatpush.msra.mxu0 %v4162
        %4975 = vmatpush.msra.mxu0 %v4161
        %4976 = vmatpush.msra.mxu0 %v4160
        %4977 = vmatpush.msra.mxu0 %v4159
        %4978 = vmatpush.msra.mxu0 %v4158
        %4979 = vmatpush.msra.mxu0 %v4157
        %4980 = vmatpush.msra.mxu0 %v4156
        %4981 = vmatpush.msra.mxu0 %v4155
        %4982 = vmatpush.msra.mxu0 %v4154
        %4983 = vmatpush.msra.mxu0 %v4153
        %4984 = vmatpush.msra.mxu0 %v4152
        %4985 = vmatpush.msra.mxu0 %v4151
        %4986 = vmatpush.msra.mxu0 %v4150
        %4987 = vmatpush.msra.mxu0 %v4149
        %4988 = vmatpush.msra.mxu0 %v4148
        %4989 = vmatpush.msra.mxu0 %v4147
        %4990 = vmatmul.f32.gmra.mxu0 %v3754
        %v4991 = vpop.f32.mrf.mxu0
        %v4992 = vadd.f32 %v4879, %v4991
        %4993 = vmatmul.f32.gmra.mxu0 %v3763
        %v4994 = vpop.f32.mrf.mxu0
        %v4995 = vadd.f32 %v4882, %v4994
        %4996 = vmatmul.f32.gmra.mxu0 %v3772
        %v4997 = vpop.f32.mrf.mxu0
        %v4998 = vadd.f32 %v4885, %v4997
        %4999 = vmatmul.f32.gmra.mxu0 %v3781
        %v5000 = vpop.f32.mrf.mxu0
        %v5001 = vadd.f32 %v4888, %v5000
        %5002 = vmatmul.f32.gmra.mxu0 %v3790
        %v5003 = vpop.f32.mrf.mxu0
        %v5004 = vadd.f32 %v4891, %v5003
        %5005 = vmatmul.f32.gmra.mxu0 %v3799
        %v5006 = vpop.f32.mrf.mxu0
        %v5007 = vadd.f32 %v4894, %v5006
        %5008 = vmatmul.f32.gmra.mxu0 %v3808
        %v5009 = vpop.f32.mrf.mxu0
        %v5010 = vadd.f32 %v4897, %v5009
        %5011 = vmatmul.f32.gmra.mxu0 %v3817
        %v5012 = vpop.f32.mrf.mxu0
        %v5013 = vadd.f32 %v4900, %v5012
        %5014 = vmatmul.f32.gmra.mxu0 %v3826
        %v5015 = vpop.f32.mrf.mxu0
        %v5016 = vadd.f32 %v4903, %v5015
        %5017 = vmatmul.f32.gmra.mxu0 %v3835
        %v5018 = vpop.f32.mrf.mxu0
        %v5019 = vadd.f32 %v4906, %v5018
        %5020 = vmatmul.f32.gmra.mxu0 %v3844
        %v5021 = vpop.f32.mrf.mxu0
        %v5022 = vadd.f32 %v4909, %v5021
        %5023 = vmatmul.f32.gmra.mxu0 %v3853
        %v5024 = vpop.f32.mrf.mxu0
        %v5025 = vadd.f32 %v4912, %v5024
        %5026 = vmatmul.f32.gmra.mxu0 %v3862
        %v5027 = vpop.f32.mrf.mxu0
        %v5028 = vadd.f32 %v4915, %v5027
        %5029 = vmatmul.f32.gmra.mxu0 %v3871
        %v5030 = vpop.f32.mrf.mxu0
        %v5031 = vadd.f32 %v4918, %v5030
        %5032 = vmatmul.f32.gmra.mxu0 %v3880
        %v5033 = vpop.f32.mrf.mxu0
        %v5034 = vadd.f32 %v4921, %v5033
        %5035 = vmatmul.f32.gmra.mxu0 %v3889
        %v5036 = vpop.f32.mrf.mxu0
        %v5037 = vadd.f32 %v4924, %v5036
        %5038 = vmatmul.f32.gmra.mxu0 %v3898
        %v5039 = vpop.f32.mrf.mxu0
        %v5040 = vadd.f32 %v4927, %v5039
        %5041 = vmatmul.f32.gmra.mxu0 %v3907
        %v5042 = vpop.f32.mrf.mxu0
        %v5043 = vadd.f32 %v4930, %v5042
        %5044 = vmatmul.f32.gmra.mxu0 %v3916
        %v5045 = vpop.f32.mrf.mxu0
        %v5046 = vadd.f32 %v4933, %v5045
        %5047 = vmatmul.f32.gmra.mxu0 %v3925
        %v5048 = vpop.f32.mrf.mxu0
        %v5049 = vadd.f32 %v4936, %v5048
        %5050 = vmatmul.f32.gmra.mxu0 %v3934
        %v5051 = vpop.f32.mrf.mxu0
        %v5052 = vadd.f32 %v4939, %v5051
        %5053 = vmatmul.f32.gmra.mxu0 %v3943
        %v5054 = vpop.f32.mrf.mxu0
        %v5055 = vadd.f32 %v4942, %v5054
        %5056 = vmatmul.f32.gmra.mxu0 %v3952
        %v5057 = vpop.f32.mrf.mxu0
        %v5058 = vadd.f32 %v4945, %v5057
        %5059 = vmatmul.f32.gmra.mxu0 %v3961
        %v5060 = vpop.f32.mrf.mxu0
        %v5061 = vadd.f32 %v4948, %v5060
        %5062 = vmatmul.f32.gmra.mxu0 %v3970
        %v5063 = vpop.f32.mrf.mxu0
        %v5064 = vadd.f32 %v4951, %v5063
        %5065 = vmatmul.f32.gmra.mxu0 %v3979
        %v5066 = vpop.f32.mrf.mxu0
        %v5067 = vadd.f32 %v4954, %v5066
        %5068 = vmatmul.f32.gmra.mxu0 %v3988
        %v5069 = vpop.f32.mrf.mxu0
        %v5070 = vadd.f32 %v4957, %v5069
        %5071 = vmatmul.f32.gmra.mxu0 %v3997
        %v5072 = vpop.f32.mrf.mxu0
        %v5073 = vadd.f32 %v4960, %v5072
        %5074 = vmatmul.f32.gmra.mxu0 %v4006
        %v5075 = vpop.f32.mrf.mxu0
        %v5076 = vadd.f32 %v4963, %v5075
        %5077 = vmatmul.f32.gmra.mxu0 %v4015
        %v5078 = vpop.f32.mrf.mxu0
        %v5079 = vadd.f32 %v4966, %v5078
        %5080 = vmatmul.f32.gmra.mxu0 %v4024
        %v5081 = vpop.f32.mrf.mxu0
        %v5082 = vadd.f32 %v4969, %v5081
        %5083 = vmatmul.f32.gmra.mxu0 %v4033
        %v5084 = vpop.f32.mrf.mxu0
        %v5085 = vadd.f32 %v4972, %v5084
        %5086 = vdwg.mxu0
        %5087 = vmatpush.msra.mxu0 %v4178
        %5088 = vmatpush.msra.mxu0 %v4177
        %5089 = vmatpush.msra.mxu0 %v4176
        %5090 = vmatpush.msra.mxu0 %v4175
        %5091 = vmatpush.msra.mxu0 %v4174
        %5092 = vmatpush.msra.mxu0 %v4173
        %5093 = vmatpush.msra.mxu0 %v4172
        %5094 = vmatpush.msra.mxu0 %v4171
        %5095 = vmatpush.msra.mxu0 %v4170
        %5096 = vmatpush.msra.mxu0 %v4169
        %5097 = vmatpush.msra.mxu0 %v4168
        %5098 = vmatpush.msra.mxu0 %v4167
        %5099 = vmatpush.msra.mxu0 %v4166
        %5100 = vmatpush.msra.mxu0 %v4165
        %5101 = vmatpush.msra.mxu0 %v4164
        %5102 = vmatpush.msra.mxu0 %v4163
        %5103 = vmatmul.f32.gmra.mxu0 %v3755
        %v5104 = vpop.f32.mrf.mxu0
        %v5105 = vadd.f32 %v4992, %v5104
        %5106 = vmatmul.f32.gmra.mxu0 %v3764
        %v5107 = vpop.f32.mrf.mxu0
        %v5108 = vadd.f32 %v4995, %v5107
        %5109 = vmatmul.f32.gmra.mxu0 %v3773
        %v5110 = vpop.f32.mrf.mxu0
        %v5111 = vadd.f32 %v4998, %v5110
        %5112 = vmatmul.f32.gmra.mxu0 %v3782
        %v5113 = vpop.f32.mrf.mxu0
        %v5114 = vadd.f32 %v5001, %v5113
        %5115 = vmatmul.f32.gmra.mxu0 %v3791
        %v5116 = vpop.f32.mrf.mxu0
        %v5117 = vadd.f32 %v5004, %v5116
        %5118 = vmatmul.f32.gmra.mxu0 %v3800
        %v5119 = vpop.f32.mrf.mxu0
        %v5120 = vadd.f32 %v5007, %v5119
        %5121 = vmatmul.f32.gmra.mxu0 %v3809
        %v5122 = vpop.f32.mrf.mxu0
        %v5123 = vadd.f32 %v5010, %v5122
        %5124 = vmatmul.f32.gmra.mxu0 %v3818
        %v5125 = vpop.f32.mrf.mxu0
        %v5126 = vadd.f32 %v5013, %v5125
        %5127 = vmatmul.f32.gmra.mxu0 %v3827
        %v5128 = vpop.f32.mrf.mxu0
        %v5129 = vadd.f32 %v5016, %v5128
        %5130 = vmatmul.f32.gmra.mxu0 %v3836
        %v5131 = vpop.f32.mrf.mxu0
        %v5132 = vadd.f32 %v5019, %v5131
        %5133 = vmatmul.f32.gmra.mxu0 %v3845
        %v5134 = vpop.f32.mrf.mxu0
        %v5135 = vadd.f32 %v5022, %v5134
        %5136 = vmatmul.f32.gmra.mxu0 %v3854
        %v5137 = vpop.f32.mrf.mxu0
        %v5138 = vadd.f32 %v5025, %v5137
        %5139 = vmatmul.f32.gmra.mxu0 %v3863
        %v5140 = vpop.f32.mrf.mxu0
        %v5141 = vadd.f32 %v5028, %v5140
        %5142 = vmatmul.f32.gmra.mxu0 %v3872
        %v5143 = vpop.f32.mrf.mxu0
        %v5144 = vadd.f32 %v5031, %v5143
        %5145 = vmatmul.f32.gmra.mxu0 %v3881
        %v5146 = vpop.f32.mrf.mxu0
        %v5147 = vadd.f32 %v5034, %v5146
        %5148 = vmatmul.f32.gmra.mxu0 %v3890
        %v5149 = vpop.f32.mrf.mxu0
        %v5150 = vadd.f32 %v5037, %v5149
        %5151 = vmatmul.f32.gmra.mxu0 %v3899
        %v5152 = vpop.f32.mrf.mxu0
        %v5153 = vadd.f32 %v5040, %v5152
        %5154 = vmatmul.f32.gmra.mxu0 %v3908
        %v5155 = vpop.f32.mrf.mxu0
        %v5156 = vadd.f32 %v5043, %v5155
        %5157 = vmatmul.f32.gmra.mxu0 %v3917
        %v5158 = vpop.f32.mrf.mxu0
        %v5159 = vadd.f32 %v5046, %v5158
        %5160 = vmatmul.f32.gmra.mxu0 %v3926
        %v5161 = vpop.f32.mrf.mxu0
        %v5162 = vadd.f32 %v5049, %v5161
        %5163 = vmatmul.f32.gmra.mxu0 %v3935
        %v5164 = vpop.f32.mrf.mxu0
        %v5165 = vadd.f32 %v5052, %v5164
        %5166 = vmatmul.f32.gmra.mxu0 %v3944
        %v5167 = vpop.f32.mrf.mxu0
        %v5168 = vadd.f32 %v5055, %v5167
        %5169 = vmatmul.f32.gmra.mxu0 %v3953
        %v5170 = vpop.f32.mrf.mxu0
        %v5171 = vadd.f32 %v5058, %v5170
        %5172 = vmatmul.f32.gmra.mxu0 %v3962
        %v5173 = vpop.f32.mrf.mxu0
        %v5174 = vadd.f32 %v5061, %v5173
        %5175 = vmatmul.f32.gmra.mxu0 %v3971
        %v5176 = vpop.f32.mrf.mxu0
        %v5177 = vadd.f32 %v5064, %v5176
        %5178 = vmatmul.f32.gmra.mxu0 %v3980
        %v5179 = vpop.f32.mrf.mxu0
        %v5180 = vadd.f32 %v5067, %v5179
        %5181 = vmatmul.f32.gmra.mxu0 %v3989
        %v5182 = vpop.f32.mrf.mxu0
        %v5183 = vadd.f32 %v5070, %v5182
        %5184 = vmatmul.f32.gmra.mxu0 %v3998
        %v5185 = vpop.f32.mrf.mxu0
        %v5186 = vadd.f32 %v5073, %v5185
        %5187 = vmatmul.f32.gmra.mxu0 %v4007
        %v5188 = vpop.f32.mrf.mxu0
        %v5189 = vadd.f32 %v5076, %v5188
        %5190 = vmatmul.f32.gmra.mxu0 %v4016
        %v5191 = vpop.f32.mrf.mxu0
        %v5192 = vadd.f32 %v5079, %v5191
        %5193 = vmatmul.f32.gmra.mxu0 %v4025
        %v5194 = vpop.f32.mrf.mxu0
        %v5195 = vadd.f32 %v5082, %v5194
        %5196 = vmatmul.f32.gmra.mxu0 %v4034
        %v5197 = vpop.f32.mrf.mxu0
        %v5198 = vadd.f32 %v5085, %v5197
        %5199 = vdwg.mxu0
        %v5200 = vmax.f32 %v5105, 0.0
        %v5201 = vmax.f32 %v5108, 0.0
        %v5202 = vmax.f32 %v5111, 0.0
        %v5203 = vmax.f32 %v5114, 0.0
        %v5204 = vmax.f32 %v5117, 0.0
        %v5205 = vmax.f32 %v5120, 0.0
        %v5206 = vmax.f32 %v5123, 0.0
        %v5207 = vmax.f32 %v5126, 0.0
        %v5208 = vmax.f32 %v5129, 0.0
        %v5209 = vmax.f32 %v5132, 0.0
        %v5210 = vmax.f32 %v5135, 0.0
        %v5211 = vmax.f32 %v5138, 0.0
        %v5212 = vmax.f32 %v5141, 0.0
        %v5213 = vmax.f32 %v5144, 0.0
        %v5214 = vmax.f32 %v5147, 0.0
        %v5215 = vmax.f32 %v5150, 0.0
        %v5216 = vmax.f32 %v5153, 0.0
        %v5217 = vmax.f32 %v5156, 0.0
        %v5218 = vmax.f32 %v5159, 0.0
        %v5219 = vmax.f32 %v5162, 0.0
        %v5220 = vmax.f32 %v5165, 0.0
        %v5221 = vmax.f32 %v5168, 0.0
        %v5222 = vmax.f32 %v5171, 0.0
        %v5223 = vmax.f32 %v5174, 0.0
        %v5224 = vmax.f32 %v5177, 0.0
        %v5225 = vmax.f32 %v5180, 0.0
        %v5226 = vmax.f32 %v5183, 0.0
        %v5227 = vmax.f32 %v5186, 0.0
        %v5228 = vmax.f32 %v5189, 0.0
        %v5229 = vmax.f32 %v5192, 0.0
        %v5230 = vmax.f32 %v5195, 0.0
        %v5231 = vmax.f32 %v5198, 0.0
        %5232 = vst.msk [vmem:[%s3137 + $0x8] sm:$0xff] %vm351, %v5200
        %5233 = vst.msk [vmem:[%s3137 + $0x10] sm:$0xff] %vm351, %v5201
        %5234 = vst.msk [vmem:[%s3137 + $0x28] sm:$0xff] %vm351, %v5202
        %5235 = vst.msk [vmem:[%s3137 + $0x30] sm:$0xff] %vm351, %v5203
        %5236 = vst.msk [vmem:[%s3137 + $0x48] sm:$0xff] %vm351, %v5204
        %5237 = vst.msk [vmem:[%s3137 + $0x50] sm:$0xff] %vm351, %v5205
        %5238 = vst.msk [vmem:[%s3137 + $0x68] sm:$0xff] %vm351, %v5206
        %5239 = vst.msk [vmem:[%s3137 + $0x70] sm:$0xff] %vm351, %v5207
        %5240 = vst.msk [vmem:[%s3137 + $0x88] sm:$0xff] %vm351, %v5208
        %5241 = vst.msk [vmem:[%s3137 + $0x90] sm:$0xff] %vm351, %v5209
        %5242 = vst.msk [vmem:[%s3137 + $0xa8] sm:$0xff] %vm351, %v5210
        %5243 = vst.msk [vmem:[%s3137 + $0xb0] sm:$0xff] %vm351, %v5211
        %5244 = vst.msk [vmem:[%s3137 + $0xc8] sm:$0xff] %vm351, %v5212
        %5245 = vst.msk [vmem:[%s3137 + $0xd0] sm:$0xff] %vm351, %v5213
        %5246 = vst.msk [vmem:[%s3137 + $0xe8] sm:$0xff] %vm351, %v5214
        %5247 = vst.msk [vmem:[%s3137 + $0xf0] sm:$0xff] %vm351, %v5215
        %5248 = vst.msk [vmem:[%s3137 + $0x108] sm:$0xff] %vm351, %v5216
        %5249 = vst.msk [vmem:[%s3137 + $0x110] sm:$0xff] %vm351, %v5217
        %5250 = vst.msk [vmem:[%s3137 + $0x128] sm:$0xff] %vm351, %v5218
        %5251 = vst.msk [vmem:[%s3137 + $0x130] sm:$0xff] %vm351, %v5219
        %5252 = vst.msk [vmem:[%s3137 + $0x148] sm:$0xff] %vm351, %v5220
        %5253 = vst.msk [vmem:[%s3137 + $0x150] sm:$0xff] %vm351, %v5221
        %5254 = vst.msk [vmem:[%s3137 + $0x168] sm:$0xff] %vm351, %v5222
        %5255 = vst.msk [vmem:[%s3137 + $0x170] sm:$0xff] %vm351, %v5223
        %5256 = vst.msk [vmem:[%s3137 + $0x188] sm:$0xff] %vm351, %v5224
        %5257 = vst.msk [vmem:[%s3137 + $0x190] sm:$0xff] %vm351, %v5225
        %5258 = vst.msk [vmem:[%s3137 + $0x1a8] sm:$0xff] %vm351, %v5226
        %5259 = vst.msk [vmem:[%s3137 + $0x1b0] sm:$0xff] %vm351, %v5227
        %5260 = vst.msk [vmem:[%s3137 + $0x1c8] sm:$0xff] %vm351, %v5228
        %5261 = vst.msk [vmem:[%s3137 + $0x1d0] sm:$0xff] %vm351, %v5229
        %5262 = vst.msk [vmem:[%s3137 + $0x1e8] sm:$0xff] %vm351, %v5230
        %5263 = vst.msk [vmem:[%s3137 + $0x1f0] sm:$0xff] %vm351, %v5231
        %v5264 = vld [vmem:[#allocation3 + $0x7] sm:$0xff]
        %v5265 = vld [vmem:[#allocation3 + $0xf] sm:$0xff]
        %v5266 = vld [vmem:[#allocation3 + $0x27] sm:$0xff]
        %v5267 = vld [vmem:[#allocation3 + $0x2f] sm:$0xff]
        %v5268 = vld [vmem:[#allocation3 + $0x47] sm:$0xff]
        %v5269 = vld [vmem:[#allocation3 + $0x4f] sm:$0xff]
        %v5270 = vld [vmem:[#allocation3 + $0x67] sm:$0xff]
        %v5271 = vld [vmem:[#allocation3 + $0x6f] sm:$0xff]
        %v5272 = vld [vmem:[#allocation3 + $0x87] sm:$0xff]
        %v5273 = vld [vmem:[#allocation3 + $0x8f] sm:$0xff]
        %v5274 = vld [vmem:[#allocation3 + $0xa7] sm:$0xff]
        %v5275 = vld [vmem:[#allocation3 + $0xaf] sm:$0xff]
        %v5276 = vld [vmem:[#allocation3 + $0xc7] sm:$0xff]
        %v5277 = vld [vmem:[#allocation3 + $0xcf] sm:$0xff]
        %v5278 = vld [vmem:[#allocation3 + $0xe7] sm:$0xff]
        %v5279 = vld [vmem:[#allocation3 + $0xef] sm:$0xff]
        %v5280 = vld [vmem:[#allocation3 + $0x107] sm:$0xff]
        %v5281 = vld [vmem:[#allocation3 + $0x10f] sm:$0xff]
        %v5282 = vld [vmem:[#allocation3 + $0x127] sm:$0xff]
        %v5283 = vld [vmem:[#allocation3 + $0x12f] sm:$0xff]
        %v5284 = vld [vmem:[#allocation3 + $0x147] sm:$0xff]
        %v5285 = vld [vmem:[#allocation3 + $0x14f] sm:$0xff]
        %v5286 = vld [vmem:[#allocation3 + $0x167] sm:$0xff]
        %v5287 = vld [vmem:[#allocation3 + $0x16f] sm:$0xff]
        %v5288 = vld [vmem:[#allocation3 + $0x187] sm:$0xff]
        %v5289 = vld [vmem:[#allocation3 + $0x18f] sm:$0xff]
        %v5290 = vld [vmem:[#allocation3 + $0x1a7] sm:$0xff]
        %v5291 = vld [vmem:[#allocation3 + $0x1af] sm:$0xff]
        %v5292 = vld [vmem:[#allocation3 + $0x1c7] sm:$0xff]
        %v5293 = vld [vmem:[#allocation3 + $0x1cf] sm:$0xff]
        %v5294 = vld [vmem:[#allocation3 + $0x1e7] sm:$0xff]
        %v5295 = vld [vmem:[#allocation3 + $0x1ef] sm:$0xff]
        %5296 = vst.msk [vmem:[#allocation4] sm:$0xff] %vm351, %v5264
        %5297 = vst.msk [vmem:[#allocation4 + $0x48] sm:$0xff] %vm351, %v5265
        %5298 = vst.msk [vmem:[#allocation4 + $0x90] sm:$0xff] %vm351, %v5266
        %5299 = vst.msk [vmem:[#allocation4 + $0xd8] sm:$0xff] %vm351, %v5267
        %5300 = vst.msk [vmem:[#allocation4 + $0x120] sm:$0xff] %vm351, %v5268
        %5301 = vst.msk [vmem:[#allocation4 + $0x168] sm:$0xff] %vm351, %v5269
        %5302 = vst.msk [vmem:[#allocation4 + $0x1b0] sm:$0xff] %vm351, %v5270
        %5303 = vst.msk [vmem:[#allocation4 + $0x1f8] sm:$0xff] %vm351, %v5271
        %5304 = vst.msk [vmem:[#allocation4 + $0x240] sm:$0xff] %vm351, %v5272
        %5305 = vst.msk [vmem:[#allocation4 + $0x288] sm:$0xff] %vm351, %v5273
        %5306 = vst.msk [vmem:[#allocation4 + $0x2d0] sm:$0xff] %vm351, %v5274
        %5307 = vst.msk [vmem:[#allocation4 + $0x318] sm:$0xff] %vm351, %v5275
        %5308 = vst.msk [vmem:[#allocation4 + $0x360] sm:$0xff] %vm351, %v5276
        %5309 = vst.msk [vmem:[#allocation4 + $0x3a8] sm:$0xff] %vm351, %v5277
        %5310 = vst.msk [vmem:[#allocation4 + $0x3f0] sm:$0xff] %vm351, %v5278
        %5311 = vst.msk [vmem:[#allocation4 + $0x438] sm:$0xff] %vm351, %v5279
        %5312 = vst.msk [vmem:[#allocation4 + $0x480] sm:$0xff] %vm351, %v5280
        %5313 = vst.msk [vmem:[#allocation4 + $0x4c8] sm:$0xff] %vm351, %v5281
        %5314 = vst.msk [vmem:[#allocation4 + $0x510] sm:$0xff] %vm351, %v5282
        %5315 = vst.msk [vmem:[#allocation4 + $0x558] sm:$0xff] %vm351, %v5283
        %5316 = vst.msk [vmem:[#allocation4 + $0x5a0] sm:$0xff] %vm351, %v5284
        %5317 = vst.msk [vmem:[#allocation4 + $0x5e8] sm:$0xff] %vm351, %v5285
        %5318 = vst.msk [vmem:[#allocation4 + $0x630] sm:$0xff] %vm351, %v5286
        %5319 = vst.msk [vmem:[#allocation4 + $0x678] sm:$0xff] %vm351, %v5287
        %5320 = vst.msk [vmem:[#allocation4 + $0x6c0] sm:$0xff] %vm351, %v5288
        %5321 = vst.msk [vmem:[#allocation4 + $0x708] sm:$0xff] %vm351, %v5289
        %5322 = vst.msk [vmem:[#allocation4 + $0x750] sm:$0xff] %vm351, %v5290
        %5323 = vst.msk [vmem:[#allocation4 + $0x798] sm:$0xff] %vm351, %v5291
        %5324 = vst.msk [vmem:[#allocation4 + $0x7e0] sm:$0xff] %vm351, %v5292
        %5325 = vst.msk [vmem:[#allocation4 + $0x828] sm:$0xff] %vm351, %v5293
        %5326 = vst.msk [vmem:[#allocation4 + $0x870] sm:$0xff] %vm351, %v5294
        %5327 = vst.msk [vmem:[#allocation4 + $0x8b8] sm:$0xff] %vm351, %v5295
        %v5328 = vld [vmem:[#allocation3 + $0x8] sm:$0xff]
        %v5329 = vld [vmem:[#allocation3 + $0x10] sm:$0xff]
        %v5330 = vld [vmem:[#allocation3 + $0x28] sm:$0xff]
        %v5331 = vld [vmem:[#allocation3 + $0x30] sm:$0xff]
        %v5332 = vld [vmem:[#allocation3 + $0x48] sm:$0xff]
        %v5333 = vld [vmem:[#allocation3 + $0x50] sm:$0xff]
        %v5334 = vld [vmem:[#allocation3 + $0x68] sm:$0xff]
        %v5335 = vld [vmem:[#allocation3 + $0x70] sm:$0xff]
        %v5336 = vld [vmem:[#allocation3 + $0x88] sm:$0xff]
        %v5337 = vld [vmem:[#allocation3 + $0x90] sm:$0xff]
        %v5338 = vld [vmem:[#allocation3 + $0xa8] sm:$0xff]
        %v5339 = vld [vmem:[#allocation3 + $0xb0] sm:$0xff]
        %v5340 = vld [vmem:[#allocation3 + $0xc8] sm:$0xff]
        %v5341 = vld [vmem:[#allocation3 + $0xd0] sm:$0xff]
        %v5342 = vld [vmem:[#allocation3 + $0xe8] sm:$0xff]
        %v5343 = vld [vmem:[#allocation3 + $0xf0] sm:$0xff]
        %v5344 = vld [vmem:[#allocation3 + $0x108] sm:$0xff]
        %v5345 = vld [vmem:[#allocation3 + $0x110] sm:$0xff]
        %v5346 = vld [vmem:[#allocation3 + $0x128] sm:$0xff]
        %v5347 = vld [vmem:[#allocation3 + $0x130] sm:$0xff]
        %v5348 = vld [vmem:[#allocation3 + $0x148] sm:$0xff]
        %v5349 = vld [vmem:[#allocation3 + $0x150] sm:$0xff]
        %v5350 = vld [vmem:[#allocation3 + $0x168] sm:$0xff]
        %v5351 = vld [vmem:[#allocation3 + $0x170] sm:$0xff]
        %v5352 = vld [vmem:[#allocation3 + $0x188] sm:$0xff]
        %v5353 = vld [vmem:[#allocation3 + $0x190] sm:$0xff]
        %v5354 = vld [vmem:[#allocation3 + $0x1a8] sm:$0xff]
        %v5355 = vld [vmem:[#allocation3 + $0x1b0] sm:$0xff]
        %v5356 = vld [vmem:[#allocation3 + $0x1c8] sm:$0xff]
        %v5357 = vld [vmem:[#allocation3 + $0x1d0] sm:$0xff]
        %v5358 = vld [vmem:[#allocation3 + $0x1e8] sm:$0xff]
        %v5359 = vld [vmem:[#allocation3 + $0x1f0] sm:$0xff]
        %5360 = vst.msk [vmem:[#allocation4 + $0x8] sm:$0xff] %vm351, %v5328
        %5361 = vst.msk [vmem:[#allocation4 + $0x50] sm:$0xff] %vm351, %v5329
        %5362 = vst.msk [vmem:[#allocation4 + $0x98] sm:$0xff] %vm351, %v5330
        %5363 = vst.msk [vmem:[#allocation4 + $0xe0] sm:$0xff] %vm351, %v5331
        %5364 = vst.msk [vmem:[#allocation4 + $0x128] sm:$0xff] %vm351, %v5332
        %5365 = vst.msk [vmem:[#allocation4 + $0x170] sm:$0xff] %vm351, %v5333
        %5366 = vst.msk [vmem:[#allocation4 + $0x1b8] sm:$0xff] %vm351, %v5334
        %5367 = vst.msk [vmem:[#allocation4 + $0x200] sm:$0xff] %vm351, %v5335
        %5368 = vst.msk [vmem:[#allocation4 + $0x248] sm:$0xff] %vm351, %v5336
        %5369 = vst.msk [vmem:[#allocation4 + $0x290] sm:$0xff] %vm351, %v5337
        %5370 = vst.msk [vmem:[#allocation4 + $0x2d8] sm:$0xff] %vm351, %v5338
        %5371 = vst.msk [vmem:[#allocation4 + $0x320] sm:$0xff] %vm351, %v5339
        %5372 = vst.msk [vmem:[#allocation4 + $0x368] sm:$0xff] %vm351, %v5340
        %5373 = vst.msk [vmem:[#allocation4 + $0x3b0] sm:$0xff] %vm351, %v5341
        %5374 = vst.msk [vmem:[#allocation4 + $0x3f8] sm:$0xff] %vm351, %v5342
        %5375 = vst.msk [vmem:[#allocation4 + $0x440] sm:$0xff] %vm351, %v5343
        %5376 = vst.msk [vmem:[#allocation4 + $0x488] sm:$0xff] %vm351, %v5344
        %5377 = vst.msk [vmem:[#allocation4 + $0x4d0] sm:$0xff] %vm351, %v5345
        %5378 = vst.msk [vmem:[#allocation4 + $0x518] sm:$0xff] %vm351, %v5346
        %5379 = vst.msk [vmem:[#allocation4 + $0x560] sm:$0xff] %vm351, %v5347
        %5380 = vst.msk [vmem:[#allocation4 + $0x5a8] sm:$0xff] %vm351, %v5348
        %5381 = vst.msk [vmem:[#allocation4 + $0x5f0] sm:$0xff] %vm351, %v5349
        %5382 = vst.msk [vmem:[#allocation4 + $0x638] sm:$0xff] %vm351, %v5350
        %5383 = vst.msk [vmem:[#allocation4 + $0x680] sm:$0xff] %vm351, %v5351
        %5384 = vst.msk [vmem:[#allocation4 + $0x6c8] sm:$0xff] %vm351, %v5352
        %5385 = vst.msk [vmem:[#allocation4 + $0x710] sm:$0xff] %vm351, %v5353
        %5386 = vst.msk [vmem:[#allocation4 + $0x758] sm:$0xff] %vm351, %v5354
        %5387 = vst.msk [vmem:[#allocation4 + $0x7a0] sm:$0xff] %vm351, %v5355
        %5388 = vst.msk [vmem:[#allocation4 + $0x7e8] sm:$0xff] %vm351, %v5356
        %5389 = vst.msk [vmem:[#allocation4 + $0x830] sm:$0xff] %vm351, %v5357
        %5390 = vst.msk [vmem:[#allocation4 + $0x878] sm:$0xff] %vm351, %v5358
        %5391 = vst.msk [vmem:[#allocation4 + $0x8c0] sm:$0xff] %vm351, %v5359
        %v5392 = vld [vmem:[#allocation3 + $0x9] sm:$0xff]
        %v5393 = vld [vmem:[#allocation3 + $0x11] sm:$0xff]
        %v5394 = vld [vmem:[#allocation3 + $0x29] sm:$0xff]
        %v5395 = vld [vmem:[#allocation3 + $0x31] sm:$0xff]
        %v5396 = vld [vmem:[#allocation3 + $0x49] sm:$0xff]
        %v5397 = vld [vmem:[#allocation3 + $0x51] sm:$0xff]
        %v5398 = vld [vmem:[#allocation3 + $0x69] sm:$0xff]
        %v5399 = vld [vmem:[#allocation3 + $0x71] sm:$0xff]
        %v5400 = vld [vmem:[#allocation3 + $0x89] sm:$0xff]
        %v5401 = vld [vmem:[#allocation3 + $0x91] sm:$0xff]
        %v5402 = vld [vmem:[#allocation3 + $0xa9] sm:$0xff]
        %v5403 = vld [vmem:[#allocation3 + $0xb1] sm:$0xff]
        %v5404 = vld [vmem:[#allocation3 + $0xc9] sm:$0xff]
        %v5405 = vld [vmem:[#allocation3 + $0xd1] sm:$0xff]
        %v5406 = vld [vmem:[#allocation3 + $0xe9] sm:$0xff]
        %v5407 = vld [vmem:[#allocation3 + $0xf1] sm:$0xff]
        %v5408 = vld [vmem:[#allocation3 + $0x109] sm:$0xff]
        %v5409 = vld [vmem:[#allocation3 + $0x111] sm:$0xff]
        %v5410 = vld [vmem:[#allocation3 + $0x129] sm:$0xff]
        %v5411 = vld [vmem:[#allocation3 + $0x131] sm:$0xff]
        %v5412 = vld [vmem:[#allocation3 + $0x149] sm:$0xff]
        %v5413 = vld [vmem:[#allocation3 + $0x151] sm:$0xff]
        %v5414 = vld [vmem:[#allocation3 + $0x169] sm:$0xff]
        %v5415 = vld [vmem:[#allocation3 + $0x171] sm:$0xff]
        %v5416 = vld [vmem:[#allocation3 + $0x189] sm:$0xff]
        %v5417 = vld [vmem:[#allocation3 + $0x191] sm:$0xff]
        %v5418 = vld [vmem:[#allocation3 + $0x1a9] sm:$0xff]
        %v5419 = vld [vmem:[#allocation3 + $0x1b1] sm:$0xff]
        %v5420 = vld [vmem:[#allocation3 + $0x1c9] sm:$0xff]
        %v5421 = vld [vmem:[#allocation3 + $0x1d1] sm:$0xff]
        %v5422 = vld [vmem:[#allocation3 + $0x1e9] sm:$0xff]
        %v5423 = vld [vmem:[#allocation3 + $0x1f1] sm:$0xff]
        %5424 = vst.msk [vmem:[#allocation4 + $0x10] sm:$0xff] %vm351, %v5392
        %5425 = vst.msk [vmem:[#allocation4 + $0x58] sm:$0xff] %vm351, %v5393
        %5426 = vst.msk [vmem:[#allocation4 + $0xa0] sm:$0xff] %vm351, %v5394
        %5427 = vst.msk [vmem:[#allocation4 + $0xe8] sm:$0xff] %vm351, %v5395
        %5428 = vst.msk [vmem:[#allocation4 + $0x130] sm:$0xff] %vm351, %v5396
        %5429 = vst.msk [vmem:[#allocation4 + $0x178] sm:$0xff] %vm351, %v5397
        %5430 = vst.msk [vmem:[#allocation4 + $0x1c0] sm:$0xff] %vm351, %v5398
        %5431 = vst.msk [vmem:[#allocation4 + $0x208] sm:$0xff] %vm351, %v5399
        %5432 = vst.msk [vmem:[#allocation4 + $0x250] sm:$0xff] %vm351, %v5400
        %5433 = vst.msk [vmem:[#allocation4 + $0x298] sm:$0xff] %vm351, %v5401
        %5434 = vst.msk [vmem:[#allocation4 + $0x2e0] sm:$0xff] %vm351, %v5402
        %5435 = vst.msk [vmem:[#allocation4 + $0x328] sm:$0xff] %vm351, %v5403
        %5436 = vst.msk [vmem:[#allocation4 + $0x370] sm:$0xff] %vm351, %v5404
        %5437 = vst.msk [vmem:[#allocation4 + $0x3b8] sm:$0xff] %vm351, %v5405
        %5438 = vst.msk [vmem:[#allocation4 + $0x400] sm:$0xff] %vm351, %v5406
        %5439 = vst.msk [vmem:[#allocation4 + $0x448] sm:$0xff] %vm351, %v5407
        %5440 = vst.msk [vmem:[#allocation4 + $0x490] sm:$0xff] %vm351, %v5408
        %5441 = vst.msk [vmem:[#allocation4 + $0x4d8] sm:$0xff] %vm351, %v5409
        %5442 = vst.msk [vmem:[#allocation4 + $0x520] sm:$0xff] %vm351, %v5410
        %5443 = vst.msk [vmem:[#allocation4 + $0x568] sm:$0xff] %vm351, %v5411
        %5444 = vst.msk [vmem:[#allocation4 + $0x5b0] sm:$0xff] %vm351, %v5412
        %5445 = vst.msk [vmem:[#allocation4 + $0x5f8] sm:$0xff] %vm351, %v5413
        %5446 = vst.msk [vmem:[#allocation4 + $0x640] sm:$0xff] %vm351, %v5414
        %5447 = vst.msk [vmem:[#allocation4 + $0x688] sm:$0xff] %vm351, %v5415
        %5448 = vst.msk [vmem:[#allocation4 + $0x6d0] sm:$0xff] %vm351, %v5416
        %5449 = vst.msk [vmem:[#allocation4 + $0x718] sm:$0xff] %vm351, %v5417
        %5450 = vst.msk [vmem:[#allocation4 + $0x760] sm:$0xff] %vm351, %v5418
        %5451 = vst.msk [vmem:[#allocation4 + $0x7a8] sm:$0xff] %vm351, %v5419
        %5452 = vst.msk [vmem:[#allocation4 + $0x7f0] sm:$0xff] %vm351, %v5420
        %5453 = vst.msk [vmem:[#allocation4 + $0x838] sm:$0xff] %vm351, %v5421
        %5454 = vst.msk [vmem:[#allocation4 + $0x880] sm:$0xff] %vm351, %v5422
        %5455 = vst.msk [vmem:[#allocation4 + $0x8c8] sm:$0xff] %vm351, %v5423
        %v5456 = vld [vmem:[%s3137 + $0x7] sm:$0xff]
        %v5457 = vld [vmem:[%s3137 + $0xf] sm:$0xff]
        %v5458 = vld [vmem:[%s3137 + $0x27] sm:$0xff]
        %v5459 = vld [vmem:[%s3137 + $0x2f] sm:$0xff]
        %v5460 = vld [vmem:[%s3137 + $0x47] sm:$0xff]
        %v5461 = vld [vmem:[%s3137 + $0x4f] sm:$0xff]
        %v5462 = vld [vmem:[%s3137 + $0x67] sm:$0xff]
        %v5463 = vld [vmem:[%s3137 + $0x6f] sm:$0xff]
        %v5464 = vld [vmem:[%s3137 + $0x87] sm:$0xff]
        %v5465 = vld [vmem:[%s3137 + $0x8f] sm:$0xff]
        %v5466 = vld [vmem:[%s3137 + $0xa7] sm:$0xff]
        %v5467 = vld [vmem:[%s3137 + $0xaf] sm:$0xff]
        %v5468 = vld [vmem:[%s3137 + $0xc7] sm:$0xff]
        %v5469 = vld [vmem:[%s3137 + $0xcf] sm:$0xff]
        %v5470 = vld [vmem:[%s3137 + $0xe7] sm:$0xff]
        %v5471 = vld [vmem:[%s3137 + $0xef] sm:$0xff]
        %v5472 = vld [vmem:[%s3137 + $0x107] sm:$0xff]
        %v5473 = vld [vmem:[%s3137 + $0x10f] sm:$0xff]
        %v5474 = vld [vmem:[%s3137 + $0x127] sm:$0xff]
        %v5475 = vld [vmem:[%s3137 + $0x12f] sm:$0xff]
        %v5476 = vld [vmem:[%s3137 + $0x147] sm:$0xff]
        %v5477 = vld [vmem:[%s3137 + $0x14f] sm:$0xff]
        %v5478 = vld [vmem:[%s3137 + $0x167] sm:$0xff]
        %v5479 = vld [vmem:[%s3137 + $0x16f] sm:$0xff]
        %v5480 = vld [vmem:[%s3137 + $0x187] sm:$0xff]
        %v5481 = vld [vmem:[%s3137 + $0x18f] sm:$0xff]
        %v5482 = vld [vmem:[%s3137 + $0x1a7] sm:$0xff]
        %v5483 = vld [vmem:[%s3137 + $0x1af] sm:$0xff]
        %v5484 = vld [vmem:[%s3137 + $0x1c7] sm:$0xff]
        %v5485 = vld [vmem:[%s3137 + $0x1cf] sm:$0xff]
        %v5486 = vld [vmem:[%s3137 + $0x1e7] sm:$0xff]
        %v5487 = vld [vmem:[%s3137 + $0x1ef] sm:$0xff]
        %5488 = vst.msk [vmem:[#allocation4 + $0x18] sm:$0xff] %vm351, %v5456
        %5489 = vst.msk [vmem:[#allocation4 + $0x60] sm:$0xff] %vm351, %v5457
        %5490 = vst.msk [vmem:[#allocation4 + $0xa8] sm:$0xff] %vm351, %v5458
        %5491 = vst.msk [vmem:[#allocation4 + $0xf0] sm:$0xff] %vm351, %v5459
        %5492 = vst.msk [vmem:[#allocation4 + $0x138] sm:$0xff] %vm351, %v5460
        %5493 = vst.msk [vmem:[#allocation4 + $0x180] sm:$0xff] %vm351, %v5461
        %5494 = vst.msk [vmem:[#allocation4 + $0x1c8] sm:$0xff] %vm351, %v5462
        %5495 = vst.msk [vmem:[#allocation4 + $0x210] sm:$0xff] %vm351, %v5463
        %5496 = vst.msk [vmem:[#allocation4 + $0x258] sm:$0xff] %vm351, %v5464
        %5497 = vst.msk [vmem:[#allocation4 + $0x2a0] sm:$0xff] %vm351, %v5465
        %5498 = vst.msk [vmem:[#allocation4 + $0x2e8] sm:$0xff] %vm351, %v5466
        %5499 = vst.msk [vmem:[#allocation4 + $0x330] sm:$0xff] %vm351, %v5467
        %5500 = vst.msk [vmem:[#allocation4 + $0x378] sm:$0xff] %vm351, %v5468
        %5501 = vst.msk [vmem:[#allocation4 + $0x3c0] sm:$0xff] %vm351, %v5469
        %5502 = vst.msk [vmem:[#allocation4 + $0x408] sm:$0xff] %vm351, %v5470
        %5503 = vst.msk [vmem:[#allocation4 + $0x450] sm:$0xff] %vm351, %v5471
        %5504 = vst.msk [vmem:[#allocation4 + $0x498] sm:$0xff] %vm351, %v5472
        %5505 = vst.msk [vmem:[#allocation4 + $0x4e0] sm:$0xff] %vm351, %v5473
        %5506 = vst.msk [vmem:[#allocation4 + $0x528] sm:$0xff] %vm351, %v5474
        %5507 = vst.msk [vmem:[#allocation4 + $0x570] sm:$0xff] %vm351, %v5475
        %5508 = vst.msk [vmem:[#allocation4 + $0x5b8] sm:$0xff] %vm351, %v5476
        %5509 = vst.msk [vmem:[#allocation4 + $0x600] sm:$0xff] %vm351, %v5477
        %5510 = vst.msk [vmem:[#allocation4 + $0x648] sm:$0xff] %vm351, %v5478
        %5511 = vst.msk [vmem:[#allocation4 + $0x690] sm:$0xff] %vm351, %v5479
        %5512 = vst.msk [vmem:[#allocation4 + $0x6d8] sm:$0xff] %vm351, %v5480
        %5513 = vst.msk [vmem:[#allocation4 + $0x720] sm:$0xff] %vm351, %v5481
        %5514 = vst.msk [vmem:[#allocation4 + $0x768] sm:$0xff] %vm351, %v5482
        %5515 = vst.msk [vmem:[#allocation4 + $0x7b0] sm:$0xff] %vm351, %v5483
        %5516 = vst.msk [vmem:[#allocation4 + $0x7f8] sm:$0xff] %vm351, %v5484
        %5517 = vst.msk [vmem:[#allocation4 + $0x840] sm:$0xff] %vm351, %v5485
        %5518 = vst.msk [vmem:[#allocation4 + $0x888] sm:$0xff] %vm351, %v5486
        %5519 = vst.msk [vmem:[#allocation4 + $0x8d0] sm:$0xff] %vm351, %v5487
        %v5520 = vld [vmem:[%s3137 + $0x8] sm:$0xff]
        %v5521 = vld [vmem:[%s3137 + $0x10] sm:$0xff]
        %v5522 = vld [vmem:[%s3137 + $0x28] sm:$0xff]
        %v5523 = vld [vmem:[%s3137 + $0x30] sm:$0xff]
        %v5524 = vld [vmem:[%s3137 + $0x48] sm:$0xff]
        %v5525 = vld [vmem:[%s3137 + $0x50] sm:$0xff]
        %v5526 = vld [vmem:[%s3137 + $0x68] sm:$0xff]
        %v5527 = vld [vmem:[%s3137 + $0x70] sm:$0xff]
        %v5528 = vld [vmem:[%s3137 + $0x88] sm:$0xff]
        %v5529 = vld [vmem:[%s3137 + $0x90] sm:$0xff]
        %v5530 = vld [vmem:[%s3137 + $0xa8] sm:$0xff]
        %v5531 = vld [vmem:[%s3137 + $0xb0] sm:$0xff]
        %v5532 = vld [vmem:[%s3137 + $0xc8] sm:$0xff]
        %v5533 = vld [vmem:[%s3137 + $0xd0] sm:$0xff]
        %v5534 = vld [vmem:[%s3137 + $0xe8] sm:$0xff]
        %v5535 = vld [vmem:[%s3137 + $0xf0] sm:$0xff]
        %v5536 = vld [vmem:[%s3137 + $0x108] sm:$0xff]
        %v5537 = vld [vmem:[%s3137 + $0x110] sm:$0xff]
        %v5538 = vld [vmem:[%s3137 + $0x128] sm:$0xff]
        %v5539 = vld [vmem:[%s3137 + $0x130] sm:$0xff]
        %v5540 = vld [vmem:[%s3137 + $0x148] sm:$0xff]
        %v5541 = vld [vmem:[%s3137 + $0x150] sm:$0xff]
        %v5542 = vld [vmem:[%s3137 + $0x168] sm:$0xff]
        %v5543 = vld [vmem:[%s3137 + $0x170] sm:$0xff]
        %v5544 = vld [vmem:[%s3137 + $0x188] sm:$0xff]
        %v5545 = vld [vmem:[%s3137 + $0x190] sm:$0xff]
        %v5546 = vld [vmem:[%s3137 + $0x1a8] sm:$0xff]
        %v5547 = vld [vmem:[%s3137 + $0x1b0] sm:$0xff]
        %v5548 = vld [vmem:[%s3137 + $0x1c8] sm:$0xff]
        %v5549 = vld [vmem:[%s3137 + $0x1d0] sm:$0xff]
        %v5550 = vld [vmem:[%s3137 + $0x1e8] sm:$0xff]
        %v5551 = vld [vmem:[%s3137 + $0x1f0] sm:$0xff]
        %5552 = vst.msk [vmem:[#allocation4 + $0x20] sm:$0xff] %vm351, %v5520
        %5553 = vst.msk [vmem:[#allocation4 + $0x68] sm:$0xff] %vm351, %v5521
        %5554 = vst.msk [vmem:[#allocation4 + $0xb0] sm:$0xff] %vm351, %v5522
        %5555 = vst.msk [vmem:[#allocation4 + $0xf8] sm:$0xff] %vm351, %v5523
        %5556 = vst.msk [vmem:[#allocation4 + $0x140] sm:$0xff] %vm351, %v5524
        %5557 = vst.msk [vmem:[#allocation4 + $0x188] sm:$0xff] %vm351, %v5525
        %5558 = vst.msk [vmem:[#allocation4 + $0x1d0] sm:$0xff] %vm351, %v5526
        %5559 = vst.msk [vmem:[#allocation4 + $0x218] sm:$0xff] %vm351, %v5527
        %5560 = vst.msk [vmem:[#allocation4 + $0x260] sm:$0xff] %vm351, %v5528
        %5561 = vst.msk [vmem:[#allocation4 + $0x2a8] sm:$0xff] %vm351, %v5529
        %5562 = vst.msk [vmem:[#allocation4 + $0x2f0] sm:$0xff] %vm351, %v5530
        %5563 = vst.msk [vmem:[#allocation4 + $0x338] sm:$0xff] %vm351, %v5531
        %5564 = vst.msk [vmem:[#allocation4 + $0x380] sm:$0xff] %vm351, %v5532
        %5565 = vst.msk [vmem:[#allocation4 + $0x3c8] sm:$0xff] %vm351, %v5533
        %5566 = vst.msk [vmem:[#allocation4 + $0x410] sm:$0xff] %vm351, %v5534
        %5567 = vst.msk [vmem:[#allocation4 + $0x458] sm:$0xff] %vm351, %v5535
        %5568 = vst.msk [vmem:[#allocation4 + $0x4a0] sm:$0xff] %vm351, %v5536
        %5569 = vst.msk [vmem:[#allocation4 + $0x4e8] sm:$0xff] %vm351, %v5537
        %5570 = vst.msk [vmem:[#allocation4 + $0x530] sm:$0xff] %vm351, %v5538
        %5571 = vst.msk [vmem:[#allocation4 + $0x578] sm:$0xff] %vm351, %v5539
        %5572 = vst.msk [vmem:[#allocation4 + $0x5c0] sm:$0xff] %vm351, %v5540
        %5573 = vst.msk [vmem:[#allocation4 + $0x608] sm:$0xff] %vm351, %v5541
        %5574 = vst.msk [vmem:[#allocation4 + $0x650] sm:$0xff] %vm351, %v5542
        %5575 = vst.msk [vmem:[#allocation4 + $0x698] sm:$0xff] %vm351, %v5543
        %5576 = vst.msk [vmem:[#allocation4 + $0x6e0] sm:$0xff] %vm351, %v5544
        %5577 = vst.msk [vmem:[#allocation4 + $0x728] sm:$0xff] %vm351, %v5545
        %5578 = vst.msk [vmem:[#allocation4 + $0x770] sm:$0xff] %vm351, %v5546
        %5579 = vst.msk [vmem:[#allocation4 + $0x7b8] sm:$0xff] %vm351, %v5547
        %5580 = vst.msk [vmem:[#allocation4 + $0x800] sm:$0xff] %vm351, %v5548
        %5581 = vst.msk [vmem:[#allocation4 + $0x848] sm:$0xff] %vm351, %v5549
        %5582 = vst.msk [vmem:[#allocation4 + $0x890] sm:$0xff] %vm351, %v5550
        %5583 = vst.msk [vmem:[#allocation4 + $0x8d8] sm:$0xff] %vm351, %v5551
        %v5584 = vld [vmem:[%s3137 + $0x9] sm:$0xff]
        %v5585 = vld [vmem:[%s3137 + $0x11] sm:$0xff]
        %v5586 = vld [vmem:[%s3137 + $0x29] sm:$0xff]
        %v5587 = vld [vmem:[%s3137 + $0x31] sm:$0xff]
        %v5588 = vld [vmem:[%s3137 + $0x49] sm:$0xff]
        %v5589 = vld [vmem:[%s3137 + $0x51] sm:$0xff]
        %v5590 = vld [vmem:[%s3137 + $0x69] sm:$0xff]
        %v5591 = vld [vmem:[%s3137 + $0x71] sm:$0xff]
        %v5592 = vld [vmem:[%s3137 + $0x89] sm:$0xff]
        %v5593 = vld [vmem:[%s3137 + $0x91] sm:$0xff]
        %v5594 = vld [vmem:[%s3137 + $0xa9] sm:$0xff]
        %v5595 = vld [vmem:[%s3137 + $0xb1] sm:$0xff]
        %v5596 = vld [vmem:[%s3137 + $0xc9] sm:$0xff]
        %v5597 = vld [vmem:[%s3137 + $0xd1] sm:$0xff]
        %v5598 = vld [vmem:[%s3137 + $0xe9] sm:$0xff]
        %v5599 = vld [vmem:[%s3137 + $0xf1] sm:$0xff]
        %v5600 = vld [vmem:[%s3137 + $0x109] sm:$0xff]
        %v5601 = vld [vmem:[%s3137 + $0x111] sm:$0xff]
        %v5602 = vld [vmem:[%s3137 + $0x129] sm:$0xff]
        %v5603 = vld [vmem:[%s3137 + $0x131] sm:$0xff]
        %v5604 = vld [vmem:[%s3137 + $0x149] sm:$0xff]
        %v5605 = vld [vmem:[%s3137 + $0x151] sm:$0xff]
        %v5606 = vld [vmem:[%s3137 + $0x169] sm:$0xff]
        %v5607 = vld [vmem:[%s3137 + $0x171] sm:$0xff]
        %v5608 = vld [vmem:[%s3137 + $0x189] sm:$0xff]
        %v5609 = vld [vmem:[%s3137 + $0x191] sm:$0xff]
        %v5610 = vld [vmem:[%s3137 + $0x1a9] sm:$0xff]
        %v5611 = vld [vmem:[%s3137 + $0x1b1] sm:$0xff]
        %v5612 = vld [vmem:[%s3137 + $0x1c9] sm:$0xff]
        %v5613 = vld [vmem:[%s3137 + $0x1d1] sm:$0xff]
        %v5614 = vld [vmem:[%s3137 + $0x1e9] sm:$0xff]
        %v5615 = vld [vmem:[%s3137 + $0x1f1] sm:$0xff]
        %5616 = vst.msk [vmem:[#allocation4 + $0x28] sm:$0xff] %vm351, %v5584
        %5617 = vst.msk [vmem:[#allocation4 + $0x70] sm:$0xff] %vm351, %v5585
        %5618 = vst.msk [vmem:[#allocation4 + $0xb8] sm:$0xff] %vm351, %v5586
        %5619 = vst.msk [vmem:[#allocation4 + $0x100] sm:$0xff] %vm351, %v5587
        %5620 = vst.msk [vmem:[#allocation4 + $0x148] sm:$0xff] %vm351, %v5588
        %5621 = vst.msk [vmem:[#allocation4 + $0x190] sm:$0xff] %vm351, %v5589
        %5622 = vst.msk [vmem:[#allocation4 + $0x1d8] sm:$0xff] %vm351, %v5590
        %5623 = vst.msk [vmem:[#allocation4 + $0x220] sm:$0xff] %vm351, %v5591
        %5624 = vst.msk [vmem:[#allocation4 + $0x268] sm:$0xff] %vm351, %v5592
        %5625 = vst.msk [vmem:[#allocation4 + $0x2b0] sm:$0xff] %vm351, %v5593
        %5626 = vst.msk [vmem:[#allocation4 + $0x2f8] sm:$0xff] %vm351, %v5594
        %5627 = vst.msk [vmem:[#allocation4 + $0x340] sm:$0xff] %vm351, %v5595
        %5628 = vst.msk [vmem:[#allocation4 + $0x388] sm:$0xff] %vm351, %v5596
        %5629 = vst.msk [vmem:[#allocation4 + $0x3d0] sm:$0xff] %vm351, %v5597
        %5630 = vst.msk [vmem:[#allocation4 + $0x418] sm:$0xff] %vm351, %v5598
        %5631 = vst.msk [vmem:[#allocation4 + $0x460] sm:$0xff] %vm351, %v5599
        %5632 = vst.msk [vmem:[#allocation4 + $0x4a8] sm:$0xff] %vm351, %v5600
        %5633 = vst.msk [vmem:[#allocation4 + $0x4f0] sm:$0xff] %vm351, %v5601
        %5634 = vst.msk [vmem:[#allocation4 + $0x538] sm:$0xff] %vm351, %v5602
        %5635 = vst.msk [vmem:[#allocation4 + $0x580] sm:$0xff] %vm351, %v5603
        %5636 = vst.msk [vmem:[#allocation4 + $0x5c8] sm:$0xff] %vm351, %v5604
        %5637 = vst.msk [vmem:[#allocation4 + $0x610] sm:$0xff] %vm351, %v5605
        %5638 = vst.msk [vmem:[#allocation4 + $0x658] sm:$0xff] %vm351, %v5606
        %5639 = vst.msk [vmem:[#allocation4 + $0x6a0] sm:$0xff] %vm351, %v5607
        %5640 = vst.msk [vmem:[#allocation4 + $0x6e8] sm:$0xff] %vm351, %v5608
        %5641 = vst.msk [vmem:[#allocation4 + $0x730] sm:$0xff] %vm351, %v5609
        %5642 = vst.msk [vmem:[#allocation4 + $0x778] sm:$0xff] %vm351, %v5610
        %5643 = vst.msk [vmem:[#allocation4 + $0x7c0] sm:$0xff] %vm351, %v5611
        %5644 = vst.msk [vmem:[#allocation4 + $0x808] sm:$0xff] %vm351, %v5612
        %5645 = vst.msk [vmem:[#allocation4 + $0x850] sm:$0xff] %vm351, %v5613
        %5646 = vst.msk [vmem:[#allocation4 + $0x898] sm:$0xff] %vm351, %v5614
        %5647 = vst.msk [vmem:[#allocation4 + $0x8e0] sm:$0xff] %vm351, %v5615
        %v5648 = vld [vmem:[%s3554 + $0x7] sm:$0xff]
        %v5649 = vld [vmem:[%s3554 + $0xf] sm:$0xff]
        %v5650 = vld [vmem:[%s3554 + $0x27] sm:$0xff]
        %v5651 = vld [vmem:[%s3554 + $0x2f] sm:$0xff]
        %v5652 = vld [vmem:[%s3554 + $0x47] sm:$0xff]
        %v5653 = vld [vmem:[%s3554 + $0x4f] sm:$0xff]
        %v5654 = vld [vmem:[%s3554 + $0x67] sm:$0xff]
        %v5655 = vld [vmem:[%s3554 + $0x6f] sm:$0xff]
        %v5656 = vld [vmem:[%s3554 + $0x87] sm:$0xff]
        %v5657 = vld [vmem:[%s3554 + $0x8f] sm:$0xff]
        %v5658 = vld [vmem:[%s3554 + $0xa7] sm:$0xff]
        %v5659 = vld [vmem:[%s3554 + $0xaf] sm:$0xff]
        %v5660 = vld [vmem:[%s3554 + $0xc7] sm:$0xff]
        %v5661 = vld [vmem:[%s3554 + $0xcf] sm:$0xff]
        %v5662 = vld [vmem:[%s3554 + $0xe7] sm:$0xff]
        %v5663 = vld [vmem:[%s3554 + $0xef] sm:$0xff]
        %v5664 = vld [vmem:[%s3554 + $0x107] sm:$0xff]
        %v5665 = vld [vmem:[%s3554 + $0x10f] sm:$0xff]
        %v5666 = vld [vmem:[%s3554 + $0x127] sm:$0xff]
        %v5667 = vld [vmem:[%s3554 + $0x12f] sm:$0xff]
        %v5668 = vld [vmem:[%s3554 + $0x147] sm:$0xff]
        %v5669 = vld [vmem:[%s3554 + $0x14f] sm:$0xff]
        %v5670 = vld [vmem:[%s3554 + $0x167] sm:$0xff]
        %v5671 = vld [vmem:[%s3554 + $0x16f] sm:$0xff]
        %v5672 = vld [vmem:[%s3554 + $0x187] sm:$0xff]
        %v5673 = vld [vmem:[%s3554 + $0x18f] sm:$0xff]
        %v5674 = vld [vmem:[%s3554 + $0x1a7] sm:$0xff]
        %v5675 = vld [vmem:[%s3554 + $0x1af] sm:$0xff]
        %v5676 = vld [vmem:[%s3554 + $0x1c7] sm:$0xff]
        %v5677 = vld [vmem:[%s3554 + $0x1cf] sm:$0xff]
        %v5678 = vld [vmem:[%s3554 + $0x1e7] sm:$0xff]
        %v5679 = vld [vmem:[%s3554 + $0x1ef] sm:$0xff]
        %5680 = vst.msk [vmem:[#allocation4 + $0x30] sm:$0xff] %vm351, %v5648
        %5681 = vst.msk [vmem:[#allocation4 + $0x78] sm:$0xff] %vm351, %v5649
        %5682 = vst.msk [vmem:[#allocation4 + $0xc0] sm:$0xff] %vm351, %v5650
        %5683 = vst.msk [vmem:[#allocation4 + $0x108] sm:$0xff] %vm351, %v5651
        %5684 = vst.msk [vmem:[#allocation4 + $0x150] sm:$0xff] %vm351, %v5652
        %5685 = vst.msk [vmem:[#allocation4 + $0x198] sm:$0xff] %vm351, %v5653
        %5686 = vst.msk [vmem:[#allocation4 + $0x1e0] sm:$0xff] %vm351, %v5654
        %5687 = vst.msk [vmem:[#allocation4 + $0x228] sm:$0xff] %vm351, %v5655
        %5688 = vst.msk [vmem:[#allocation4 + $0x270] sm:$0xff] %vm351, %v5656
        %5689 = vst.msk [vmem:[#allocation4 + $0x2b8] sm:$0xff] %vm351, %v5657
        %5690 = vst.msk [vmem:[#allocation4 + $0x300] sm:$0xff] %vm351, %v5658
        %5691 = vst.msk [vmem:[#allocation4 + $0x348] sm:$0xff] %vm351, %v5659
        %5692 = vst.msk [vmem:[#allocation4 + $0x390] sm:$0xff] %vm351, %v5660
        %5693 = vst.msk [vmem:[#allocation4 + $0x3d8] sm:$0xff] %vm351, %v5661
        %5694 = vst.msk [vmem:[#allocation4 + $0x420] sm:$0xff] %vm351, %v5662
        %5695 = vst.msk [vmem:[#allocation4 + $0x468] sm:$0xff] %vm351, %v5663
        %5696 = vst.msk [vmem:[#allocation4 + $0x4b0] sm:$0xff] %vm351, %v5664
        %5697 = vst.msk [vmem:[#allocation4 + $0x4f8] sm:$0xff] %vm351, %v5665
        %5698 = vst.msk [vmem:[#allocation4 + $0x540] sm:$0xff] %vm351, %v5666
        %5699 = vst.msk [vmem:[#allocation4 + $0x588] sm:$0xff] %vm351, %v5667
        %5700 = vst.msk [vmem:[#allocation4 + $0x5d0] sm:$0xff] %vm351, %v5668
        %5701 = vst.msk [vmem:[#allocation4 + $0x618] sm:$0xff] %vm351, %v5669
        %5702 = vst.msk [vmem:[#allocation4 + $0x660] sm:$0xff] %vm351, %v5670
        %5703 = vst.msk [vmem:[#allocation4 + $0x6a8] sm:$0xff] %vm351, %v5671
        %5704 = vst.msk [vmem:[#allocation4 + $0x6f0] sm:$0xff] %vm351, %v5672
        %5705 = vst.msk [vmem:[#allocation4 + $0x738] sm:$0xff] %vm351, %v5673
        %5706 = vst.msk [vmem:[#allocation4 + $0x780] sm:$0xff] %vm351, %v5674
        %5707 = vst.msk [vmem:[#allocation4 + $0x7c8] sm:$0xff] %vm351, %v5675
        %5708 = vst.msk [vmem:[#allocation4 + $0x810] sm:$0xff] %vm351, %v5676
        %5709 = vst.msk [vmem:[#allocation4 + $0x858] sm:$0xff] %vm351, %v5677
        %5710 = vst.msk [vmem:[#allocation4 + $0x8a0] sm:$0xff] %vm351, %v5678
        %5711 = vst.msk [vmem:[#allocation4 + $0x8e8] sm:$0xff] %vm351, %v5679
        %v5712 = vld [vmem:[%s3554 + $0x8] sm:$0xff]
        %v5713 = vld [vmem:[%s3554 + $0x10] sm:$0xff]
        %v5714 = vld [vmem:[%s3554 + $0x28] sm:$0xff]
        %v5715 = vld [vmem:[%s3554 + $0x30] sm:$0xff]
        %v5716 = vld [vmem:[%s3554 + $0x48] sm:$0xff]
        %v5717 = vld [vmem:[%s3554 + $0x50] sm:$0xff]
        %v5718 = vld [vmem:[%s3554 + $0x68] sm:$0xff]
        %v5719 = vld [vmem:[%s3554 + $0x70] sm:$0xff]
        %v5720 = vld [vmem:[%s3554 + $0x88] sm:$0xff]
        %v5721 = vld [vmem:[%s3554 + $0x90] sm:$0xff]
        %v5722 = vld [vmem:[%s3554 + $0xa8] sm:$0xff]
        %v5723 = vld [vmem:[%s3554 + $0xb0] sm:$0xff]
        %v5724 = vld [vmem:[%s3554 + $0xc8] sm:$0xff]
        %v5725 = vld [vmem:[%s3554 + $0xd0] sm:$0xff]
        %v5726 = vld [vmem:[%s3554 + $0xe8] sm:$0xff]
        %v5727 = vld [vmem:[%s3554 + $0xf0] sm:$0xff]
        %v5728 = vld [vmem:[%s3554 + $0x108] sm:$0xff]
        %v5729 = vld [vmem:[%s3554 + $0x110] sm:$0xff]
        %v5730 = vld [vmem:[%s3554 + $0x128] sm:$0xff]
        %v5731 = vld [vmem:[%s3554 + $0x130] sm:$0xff]
        %v5732 = vld [vmem:[%s3554 + $0x148] sm:$0xff]
        %v5733 = vld [vmem:[%s3554 + $0x150] sm:$0xff]
        %v5734 = vld [vmem:[%s3554 + $0x168] sm:$0xff]
        %v5735 = vld [vmem:[%s3554 + $0x170] sm:$0xff]
        %v5736 = vld [vmem:[%s3554 + $0x188] sm:$0xff]
        %v5737 = vld [vmem:[%s3554 + $0x190] sm:$0xff]
        %v5738 = vld [vmem:[%s3554 + $0x1a8] sm:$0xff]
        %v5739 = vld [vmem:[%s3554 + $0x1b0] sm:$0xff]
        %v5740 = vld [vmem:[%s3554 + $0x1c8] sm:$0xff]
        %v5741 = vld [vmem:[%s3554 + $0x1d0] sm:$0xff]
        %v5742 = vld [vmem:[%s3554 + $0x1e8] sm:$0xff]
        %v5743 = vld [vmem:[%s3554 + $0x1f0] sm:$0xff]
        %5744 = vst.msk [vmem:[#allocation4 + $0x38] sm:$0xff] %vm351, %v5712
        %5745 = vst.msk [vmem:[#allocation4 + $0x80] sm:$0xff] %vm351, %v5713
        %5746 = vst.msk [vmem:[#allocation4 + $0xc8] sm:$0xff] %vm351, %v5714
        %5747 = vst.msk [vmem:[#allocation4 + $0x110] sm:$0xff] %vm351, %v5715
        %5748 = vst.msk [vmem:[#allocation4 + $0x158] sm:$0xff] %vm351, %v5716
        %5749 = vst.msk [vmem:[#allocation4 + $0x1a0] sm:$0xff] %vm351, %v5717
        %5750 = vst.msk [vmem:[#allocation4 + $0x1e8] sm:$0xff] %vm351, %v5718
        %5751 = vst.msk [vmem:[#allocation4 + $0x230] sm:$0xff] %vm351, %v5719
        %5752 = vst.msk [vmem:[#allocation4 + $0x278] sm:$0xff] %vm351, %v5720
        %5753 = vst.msk [vmem:[#allocation4 + $0x2c0] sm:$0xff] %vm351, %v5721
        %5754 = vst.msk [vmem:[#allocation4 + $0x308] sm:$0xff] %vm351, %v5722
        %5755 = vst.msk [vmem:[#allocation4 + $0x350] sm:$0xff] %vm351, %v5723
        %5756 = vst.msk [vmem:[#allocation4 + $0x398] sm:$0xff] %vm351, %v5724
        %5757 = vst.msk [vmem:[#allocation4 + $0x3e0] sm:$0xff] %vm351, %v5725
        %5758 = vst.msk [vmem:[#allocation4 + $0x428] sm:$0xff] %vm351, %v5726
        %5759 = vst.msk [vmem:[#allocation4 + $0x470] sm:$0xff] %vm351, %v5727
        %5760 = vst.msk [vmem:[#allocation4 + $0x4b8] sm:$0xff] %vm351, %v5728
        %5761 = vst.msk [vmem:[#allocation4 + $0x500] sm:$0xff] %vm351, %v5729
        %5762 = vst.msk [vmem:[#allocation4 + $0x548] sm:$0xff] %vm351, %v5730
        %5763 = vst.msk [vmem:[#allocation4 + $0x590] sm:$0xff] %vm351, %v5731
        %5764 = vst.msk [vmem:[#allocation4 + $0x5d8] sm:$0xff] %vm351, %v5732
        %5765 = vst.msk [vmem:[#allocation4 + $0x620] sm:$0xff] %vm351, %v5733
        %5766 = vst.msk [vmem:[#allocation4 + $0x668] sm:$0xff] %vm351, %v5734
        %5767 = vst.msk [vmem:[#allocation4 + $0x6b0] sm:$0xff] %vm351, %v5735
        %5768 = vst.msk [vmem:[#allocation4 + $0x6f8] sm:$0xff] %vm351, %v5736
        %5769 = vst.msk [vmem:[#allocation4 + $0x740] sm:$0xff] %vm351, %v5737
        %5770 = vst.msk [vmem:[#allocation4 + $0x788] sm:$0xff] %vm351, %v5738
        %5771 = vst.msk [vmem:[#allocation4 + $0x7d0] sm:$0xff] %vm351, %v5739
        %5772 = vst.msk [vmem:[#allocation4 + $0x818] sm:$0xff] %vm351, %v5740
        %5773 = vst.msk [vmem:[#allocation4 + $0x860] sm:$0xff] %vm351, %v5741
        %5774 = vst.msk [vmem:[#allocation4 + $0x8a8] sm:$0xff] %vm351, %v5742
        %5775 = vst.msk [vmem:[#allocation4 + $0x8f0] sm:$0xff] %vm351, %v5743
        %v5776 = vld [vmem:[%s3554 + $0x9] sm:$0xff]
        %v5777 = vld [vmem:[%s3554 + $0x11] sm:$0xff]
        %v5778 = vld [vmem:[%s3554 + $0x29] sm:$0xff]
        %v5779 = vld [vmem:[%s3554 + $0x31] sm:$0xff]
        %v5780 = vld [vmem:[%s3554 + $0x49] sm:$0xff]
        %v5781 = vld [vmem:[%s3554 + $0x51] sm:$0xff]
        %v5782 = vld [vmem:[%s3554 + $0x69] sm:$0xff]
        %v5783 = vld [vmem:[%s3554 + $0x71] sm:$0xff]
        %v5784 = vld [vmem:[%s3554 + $0x89] sm:$0xff]
        %v5785 = vld [vmem:[%s3554 + $0x91] sm:$0xff]
        %v5786 = vld [vmem:[%s3554 + $0xa9] sm:$0xff]
        %v5787 = vld [vmem:[%s3554 + $0xb1] sm:$0xff]
        %v5788 = vld [vmem:[%s3554 + $0xc9] sm:$0xff]
        %v5789 = vld [vmem:[%s3554 + $0xd1] sm:$0xff]
        %v5790 = vld [vmem:[%s3554 + $0xe9] sm:$0xff]
        %v5791 = vld [vmem:[%s3554 + $0xf1] sm:$0xff]
        %v5792 = vld [vmem:[%s3554 + $0x109] sm:$0xff]
        %v5793 = vld [vmem:[%s3554 + $0x111] sm:$0xff]
        %v5794 = vld [vmem:[%s3554 + $0x129] sm:$0xff]
        %v5795 = vld [vmem:[%s3554 + $0x131] sm:$0xff]
        %v5796 = vld [vmem:[%s3554 + $0x149] sm:$0xff]
        %v5797 = vld [vmem:[%s3554 + $0x151] sm:$0xff]
        %v5798 = vld [vmem:[%s3554 + $0x169] sm:$0xff]
        %v5799 = vld [vmem:[%s3554 + $0x171] sm:$0xff]
        %v5800 = vld [vmem:[%s3554 + $0x189] sm:$0xff]
        %v5801 = vld [vmem:[%s3554 + $0x191] sm:$0xff]
        %v5802 = vld [vmem:[%s3554 + $0x1a9] sm:$0xff]
        %v5803 = vld [vmem:[%s3554 + $0x1b1] sm:$0xff]
        %v5804 = vld [vmem:[%s3554 + $0x1c9] sm:$0xff]
        %v5805 = vld [vmem:[%s3554 + $0x1d1] sm:$0xff]
        %v5806 = vld [vmem:[%s3554 + $0x1e9] sm:$0xff]
        %v5807 = vld [vmem:[%s3554 + $0x1f1] sm:$0xff]
        %5808 = vst.msk [vmem:[#allocation4 + $0x40] sm:$0xff] %vm351, %v5776
        %5809 = vst.msk [vmem:[#allocation4 + $0x88] sm:$0xff] %vm351, %v5777
        %5810 = vst.msk [vmem:[#allocation4 + $0xd0] sm:$0xff] %vm351, %v5778
        %5811 = vst.msk [vmem:[#allocation4 + $0x118] sm:$0xff] %vm351, %v5779
        %5812 = vst.msk [vmem:[#allocation4 + $0x160] sm:$0xff] %vm351, %v5780
        %5813 = vst.msk [vmem:[#allocation4 + $0x1a8] sm:$0xff] %vm351, %v5781
        %5814 = vst.msk [vmem:[#allocation4 + $0x1f0] sm:$0xff] %vm351, %v5782
        %5815 = vst.msk [vmem:[#allocation4 + $0x238] sm:$0xff] %vm351, %v5783
        %5816 = vst.msk [vmem:[#allocation4 + $0x280] sm:$0xff] %vm351, %v5784
        %5817 = vst.msk [vmem:[#allocation4 + $0x2c8] sm:$0xff] %vm351, %v5785
        %5818 = vst.msk [vmem:[#allocation4 + $0x310] sm:$0xff] %vm351, %v5786
        %5819 = vst.msk [vmem:[#allocation4 + $0x358] sm:$0xff] %vm351, %v5787
        %5820 = vst.msk [vmem:[#allocation4 + $0x3a0] sm:$0xff] %vm351, %v5788
        %5821 = vst.msk [vmem:[#allocation4 + $0x3e8] sm:$0xff] %vm351, %v5789
        %5822 = vst.msk [vmem:[#allocation4 + $0x430] sm:$0xff] %vm351, %v5790
        %5823 = vst.msk [vmem:[#allocation4 + $0x478] sm:$0xff] %vm351, %v5791
        %5824 = vst.msk [vmem:[#allocation4 + $0x4c0] sm:$0xff] %vm351, %v5792
        %5825 = vst.msk [vmem:[#allocation4 + $0x508] sm:$0xff] %vm351, %v5793
        %5826 = vst.msk [vmem:[#allocation4 + $0x550] sm:$0xff] %vm351, %v5794
        %5827 = vst.msk [vmem:[#allocation4 + $0x598] sm:$0xff] %vm351, %v5795
        %5828 = vst.msk [vmem:[#allocation4 + $0x5e0] sm:$0xff] %vm351, %v5796
        %5829 = vst.msk [vmem:[#allocation4 + $0x628] sm:$0xff] %vm351, %v5797
        %5830 = vst.msk [vmem:[#allocation4 + $0x670] sm:$0xff] %vm351, %v5798
        %5831 = vst.msk [vmem:[#allocation4 + $0x6b8] sm:$0xff] %vm351, %v5799
        %5832 = vst.msk [vmem:[#allocation4 + $0x700] sm:$0xff] %vm351, %v5800
        %5833 = vst.msk [vmem:[#allocation4 + $0x748] sm:$0xff] %vm351, %v5801
        %5834 = vst.msk [vmem:[#allocation4 + $0x790] sm:$0xff] %vm351, %v5802
        %5835 = vst.msk [vmem:[#allocation4 + $0x7d8] sm:$0xff] %vm351, %v5803
        %5836 = vst.msk [vmem:[#allocation4 + $0x820] sm:$0xff] %vm351, %v5804
        %5837 = vst.msk [vmem:[#allocation4 + $0x868] sm:$0xff] %vm351, %v5805
        %5838 = vst.msk [vmem:[#allocation4 + $0x8b0] sm:$0xff] %vm351, %v5806
        %5839 = vst.msk [vmem:[#allocation4 + $0x8f8] sm:$0xff] %vm351, %v5807
        %v5840 = vld [vmem:[#allocation4] sm:$0xff]
        %v5841 = vld [vmem:[#allocation4 + $0x8] sm:$0xff]
        %v5842 = vld [vmem:[#allocation4 + $0x10] sm:$0xff]
        %v5843 = vld [vmem:[#allocation4 + $0x18] sm:$0xff]
        %v5844 = vld [vmem:[#allocation4 + $0x20] sm:$0xff]
        %v5845 = vld [vmem:[#allocation4 + $0x28] sm:$0xff]
        %v5846 = vld [vmem:[#allocation4 + $0x30] sm:$0xff]
        %v5847 = vld [vmem:[#allocation4 + $0x38] sm:$0xff]
        %v5848 = vld [vmem:[#allocation4 + $0x40] sm:$0xff]
        %v5849 = vld [vmem:[#allocation4 + $0x48] sm:$0xff]
        %v5850 = vld [vmem:[#allocation4 + $0x50] sm:$0xff]
        %v5851 = vld [vmem:[#allocation4 + $0x58] sm:$0xff]
        %v5852 = vld [vmem:[#allocation4 + $0x60] sm:$0xff]
        %v5853 = vld [vmem:[#allocation4 + $0x68] sm:$0xff]
        %v5854 = vld [vmem:[#allocation4 + $0x70] sm:$0xff]
        %v5855 = vld [vmem:[#allocation4 + $0x78] sm:$0xff]
        %v5856 = vld [vmem:[#allocation4 + $0x80] sm:$0xff]
        %v5857 = vld [vmem:[#allocation4 + $0x88] sm:$0xff]
        %v5858 = vld [vmem:[#allocation4 + $0x90] sm:$0xff]
        %v5859 = vld [vmem:[#allocation4 + $0x98] sm:$0xff]
        %v5860 = vld [vmem:[#allocation4 + $0xa0] sm:$0xff]
        %v5861 = vld [vmem:[#allocation4 + $0xa8] sm:$0xff]
        %v5862 = vld [vmem:[#allocation4 + $0xb0] sm:$0xff]
        %v5863 = vld [vmem:[#allocation4 + $0xb8] sm:$0xff]
        %v5864 = vld [vmem:[#allocation4 + $0xc0] sm:$0xff]
        %v5865 = vld [vmem:[#allocation4 + $0xc8] sm:$0xff]
        %v5866 = vld [vmem:[#allocation4 + $0xd0] sm:$0xff]
        %v5867 = vld [vmem:[#allocation4 + $0xd8] sm:$0xff]
        %v5868 = vld [vmem:[#allocation4 + $0xe0] sm:$0xff]
        %v5869 = vld [vmem:[#allocation4 + $0xe8] sm:$0xff]
        %v5870 = vld [vmem:[#allocation4 + $0xf0] sm:$0xff]
        %v5871 = vld [vmem:[#allocation4 + $0xf8] sm:$0xff]
        %v5872 = vld [vmem:[#allocation4 + $0x100] sm:$0xff]
        %v5873 = vld [vmem:[#allocation4 + $0x108] sm:$0xff]
        %v5874 = vld [vmem:[#allocation4 + $0x110] sm:$0xff]
        %v5875 = vld [vmem:[#allocation4 + $0x118] sm:$0xff]
        %v5876 = vld [vmem:[#allocation4 + $0x120] sm:$0xff]
        %v5877 = vld [vmem:[#allocation4 + $0x128] sm:$0xff]
        %v5878 = vld [vmem:[#allocation4 + $0x130] sm:$0xff]
        %v5879 = vld [vmem:[#allocation4 + $0x138] sm:$0xff]
        %v5880 = vld [vmem:[#allocation4 + $0x140] sm:$0xff]
        %v5881 = vld [vmem:[#allocation4 + $0x148] sm:$0xff]
        %v5882 = vld [vmem:[#allocation4 + $0x150] sm:$0xff]
        %v5883 = vld [vmem:[#allocation4 + $0x158] sm:$0xff]
        %v5884 = vld [vmem:[#allocation4 + $0x160] sm:$0xff]
        %v5885 = vld [vmem:[#allocation4 + $0x168] sm:$0xff]
        %v5886 = vld [vmem:[#allocation4 + $0x170] sm:$0xff]
        %v5887 = vld [vmem:[#allocation4 + $0x178] sm:$0xff]
        %v5888 = vld [vmem:[#allocation4 + $0x180] sm:$0xff]
        %v5889 = vld [vmem:[#allocation4 + $0x188] sm:$0xff]
        %v5890 = vld [vmem:[#allocation4 + $0x190] sm:$0xff]
        %v5891 = vld [vmem:[#allocation4 + $0x198] sm:$0xff]
        %v5892 = vld [vmem:[#allocation4 + $0x1a0] sm:$0xff]
        %v5893 = vld [vmem:[#allocation4 + $0x1a8] sm:$0xff]
        %v5894 = vld [vmem:[#allocation4 + $0x1b0] sm:$0xff]
        %v5895 = vld [vmem:[#allocation4 + $0x1b8] sm:$0xff]
        %v5896 = vld [vmem:[#allocation4 + $0x1c0] sm:$0xff]
        %v5897 = vld [vmem:[#allocation4 + $0x1c8] sm:$0xff]
        %v5898 = vld [vmem:[#allocation4 + $0x1d0] sm:$0xff]
        %v5899 = vld [vmem:[#allocation4 + $0x1d8] sm:$0xff]
        %v5900 = vld [vmem:[#allocation4 + $0x1e0] sm:$0xff]
        %v5901 = vld [vmem:[#allocation4 + $0x1e8] sm:$0xff]
        %v5902 = vld [vmem:[#allocation4 + $0x1f0] sm:$0xff]
        %v5903 = vld [vmem:[#allocation4 + $0x1f8] sm:$0xff]
        %v5904 = vld [vmem:[#allocation4 + $0x200] sm:$0xff]
        %v5905 = vld [vmem:[#allocation4 + $0x208] sm:$0xff]
        %v5906 = vld [vmem:[#allocation4 + $0x210] sm:$0xff]
        %v5907 = vld [vmem:[#allocation4 + $0x218] sm:$0xff]
        %v5908 = vld [vmem:[#allocation4 + $0x220] sm:$0xff]
        %v5909 = vld [vmem:[#allocation4 + $0x228] sm:$0xff]
        %v5910 = vld [vmem:[#allocation4 + $0x230] sm:$0xff]
        %v5911 = vld [vmem:[#allocation4 + $0x238] sm:$0xff]
        %v5912 = vld [vmem:[#allocation4 + $0x240] sm:$0xff]
        %v5913 = vld [vmem:[#allocation4 + $0x248] sm:$0xff]
        %v5914 = vld [vmem:[#allocation4 + $0x250] sm:$0xff]
        %v5915 = vld [vmem:[#allocation4 + $0x258] sm:$0xff]
        %v5916 = vld [vmem:[#allocation4 + $0x260] sm:$0xff]
        %v5917 = vld [vmem:[#allocation4 + $0x268] sm:$0xff]
        %v5918 = vld [vmem:[#allocation4 + $0x270] sm:$0xff]
        %v5919 = vld [vmem:[#allocation4 + $0x278] sm:$0xff]
        %v5920 = vld [vmem:[#allocation4 + $0x280] sm:$0xff]
        %v5921 = vld [vmem:[#allocation4 + $0x288] sm:$0xff]
        %v5922 = vld [vmem:[#allocation4 + $0x290] sm:$0xff]
        %v5923 = vld [vmem:[#allocation4 + $0x298] sm:$0xff]
        %v5924 = vld [vmem:[#allocation4 + $0x2a0] sm:$0xff]
        %v5925 = vld [vmem:[#allocation4 + $0x2a8] sm:$0xff]
        %v5926 = vld [vmem:[#allocation4 + $0x2b0] sm:$0xff]
        %v5927 = vld [vmem:[#allocation4 + $0x2b8] sm:$0xff]
        %v5928 = vld [vmem:[#allocation4 + $0x2c0] sm:$0xff]
        %v5929 = vld [vmem:[#allocation4 + $0x2c8] sm:$0xff]
        %v5930 = vld [vmem:[#allocation4 + $0x2d0] sm:$0xff]
        %v5931 = vld [vmem:[#allocation4 + $0x2d8] sm:$0xff]
        %v5932 = vld [vmem:[#allocation4 + $0x2e0] sm:$0xff]
        %v5933 = vld [vmem:[#allocation4 + $0x2e8] sm:$0xff]
        %v5934 = vld [vmem:[#allocation4 + $0x2f0] sm:$0xff]
        %v5935 = vld [vmem:[#allocation4 + $0x2f8] sm:$0xff]
        %v5936 = vld [vmem:[#allocation4 + $0x300] sm:$0xff]
        %v5937 = vld [vmem:[#allocation4 + $0x308] sm:$0xff]
        %v5938 = vld [vmem:[#allocation4 + $0x310] sm:$0xff]
        %v5939 = vld [vmem:[#allocation4 + $0x318] sm:$0xff]
        %v5940 = vld [vmem:[#allocation4 + $0x320] sm:$0xff]
        %v5941 = vld [vmem:[#allocation4 + $0x328] sm:$0xff]
        %v5942 = vld [vmem:[#allocation4 + $0x330] sm:$0xff]
        %v5943 = vld [vmem:[#allocation4 + $0x338] sm:$0xff]
        %v5944 = vld [vmem:[#allocation4 + $0x340] sm:$0xff]
        %v5945 = vld [vmem:[#allocation4 + $0x348] sm:$0xff]
        %v5946 = vld [vmem:[#allocation4 + $0x350] sm:$0xff]
        %v5947 = vld [vmem:[#allocation4 + $0x358] sm:$0xff]
        %v5948 = vld [vmem:[#allocation4 + $0x360] sm:$0xff]
        %v5949 = vld [vmem:[#allocation4 + $0x368] sm:$0xff]
        %v5950 = vld [vmem:[#allocation4 + $0x370] sm:$0xff]
        %v5951 = vld [vmem:[#allocation4 + $0x378] sm:$0xff]
        %v5952 = vld [vmem:[#allocation4 + $0x380] sm:$0xff]
        %v5953 = vld [vmem:[#allocation4 + $0x388] sm:$0xff]
        %v5954 = vld [vmem:[#allocation4 + $0x390] sm:$0xff]
        %v5955 = vld [vmem:[#allocation4 + $0x398] sm:$0xff]
        %v5956 = vld [vmem:[#allocation4 + $0x3a0] sm:$0xff]
        %v5957 = vld [vmem:[#allocation4 + $0x3a8] sm:$0xff]
        %v5958 = vld [vmem:[#allocation4 + $0x3b0] sm:$0xff]
        %v5959 = vld [vmem:[#allocation4 + $0x3b8] sm:$0xff]
        %v5960 = vld [vmem:[#allocation4 + $0x3c0] sm:$0xff]
        %v5961 = vld [vmem:[#allocation4 + $0x3c8] sm:$0xff]
        %v5962 = vld [vmem:[#allocation4 + $0x3d0] sm:$0xff]
        %v5963 = vld [vmem:[#allocation4 + $0x3d8] sm:$0xff]
        %v5964 = vld [vmem:[#allocation4 + $0x3e0] sm:$0xff]
        %v5965 = vld [vmem:[#allocation4 + $0x3e8] sm:$0xff]
        %v5966 = vld [vmem:[#allocation4 + $0x3f0] sm:$0xff]
        %v5967 = vld [vmem:[#allocation4 + $0x3f8] sm:$0xff]
        %v5968 = vld [vmem:[#allocation4 + $0x400] sm:$0xff]
        %v5969 = vld [vmem:[#allocation4 + $0x408] sm:$0xff]
        %v5970 = vld [vmem:[#allocation4 + $0x410] sm:$0xff]
        %v5971 = vld [vmem:[#allocation4 + $0x418] sm:$0xff]
        %v5972 = vld [vmem:[#allocation4 + $0x420] sm:$0xff]
        %v5973 = vld [vmem:[#allocation4 + $0x428] sm:$0xff]
        %v5974 = vld [vmem:[#allocation4 + $0x430] sm:$0xff]
        %v5975 = vld [vmem:[#allocation4 + $0x438] sm:$0xff]
        %v5976 = vld [vmem:[#allocation4 + $0x440] sm:$0xff]
        %v5977 = vld [vmem:[#allocation4 + $0x448] sm:$0xff]
        %v5978 = vld [vmem:[#allocation4 + $0x450] sm:$0xff]
        %v5979 = vld [vmem:[#allocation4 + $0x458] sm:$0xff]
        %v5980 = vld [vmem:[#allocation4 + $0x460] sm:$0xff]
        %v5981 = vld [vmem:[#allocation4 + $0x468] sm:$0xff]
        %v5982 = vld [vmem:[#allocation4 + $0x470] sm:$0xff]
        %v5983 = vld [vmem:[#allocation4 + $0x478] sm:$0xff]
        %v5984 = vld [vmem:[#allocation4 + $0x480] sm:$0xff]
        %v5985 = vld [vmem:[#allocation4 + $0x488] sm:$0xff]
        %v5986 = vld [vmem:[#allocation4 + $0x490] sm:$0xff]
        %v5987 = vld [vmem:[#allocation4 + $0x498] sm:$0xff]
        %v5988 = vld [vmem:[#allocation4 + $0x4a0] sm:$0xff]
        %v5989 = vld [vmem:[#allocation4 + $0x4a8] sm:$0xff]
        %v5990 = vld [vmem:[#allocation4 + $0x4b0] sm:$0xff]
        %v5991 = vld [vmem:[#allocation4 + $0x4b8] sm:$0xff]
        %v5992 = vld [vmem:[#allocation4 + $0x4c0] sm:$0xff]
        %v5993 = vld [vmem:[#allocation4 + $0x4c8] sm:$0xff]
        %v5994 = vld [vmem:[#allocation4 + $0x4d0] sm:$0xff]
        %v5995 = vld [vmem:[#allocation4 + $0x4d8] sm:$0xff]
        %v5996 = vld [vmem:[#allocation4 + $0x4e0] sm:$0xff]
        %v5997 = vld [vmem:[#allocation4 + $0x4e8] sm:$0xff]
        %v5998 = vld [vmem:[#allocation4 + $0x4f0] sm:$0xff]
        %v5999 = vld [vmem:[#allocation4 + $0x4f8] sm:$0xff]
        %v6000 = vld [vmem:[#allocation4 + $0x500] sm:$0xff]
        %v6001 = vld [vmem:[#allocation4 + $0x508] sm:$0xff]
        %v6002 = vld [vmem:[#allocation4 + $0x510] sm:$0xff]
        %v6003 = vld [vmem:[#allocation4 + $0x518] sm:$0xff]
        %v6004 = vld [vmem:[#allocation4 + $0x520] sm:$0xff]
        %v6005 = vld [vmem:[#allocation4 + $0x528] sm:$0xff]
        %v6006 = vld [vmem:[#allocation4 + $0x530] sm:$0xff]
        %v6007 = vld [vmem:[#allocation4 + $0x538] sm:$0xff]
        %v6008 = vld [vmem:[#allocation4 + $0x540] sm:$0xff]
        %v6009 = vld [vmem:[#allocation4 + $0x548] sm:$0xff]
        %v6010 = vld [vmem:[#allocation4 + $0x550] sm:$0xff]
        %v6011 = vld [vmem:[#allocation4 + $0x558] sm:$0xff]
        %v6012 = vld [vmem:[#allocation4 + $0x560] sm:$0xff]
        %v6013 = vld [vmem:[#allocation4 + $0x568] sm:$0xff]
        %v6014 = vld [vmem:[#allocation4 + $0x570] sm:$0xff]
        %v6015 = vld [vmem:[#allocation4 + $0x578] sm:$0xff]
        %v6016 = vld [vmem:[#allocation4 + $0x580] sm:$0xff]
        %v6017 = vld [vmem:[#allocation4 + $0x588] sm:$0xff]
        %v6018 = vld [vmem:[#allocation4 + $0x590] sm:$0xff]
        %v6019 = vld [vmem:[#allocation4 + $0x598] sm:$0xff]
        %v6020 = vld [vmem:[#allocation4 + $0x5a0] sm:$0xff]
        %v6021 = vld [vmem:[#allocation4 + $0x5a8] sm:$0xff]
        %v6022 = vld [vmem:[#allocation4 + $0x5b0] sm:$0xff]
        %v6023 = vld [vmem:[#allocation4 + $0x5b8] sm:$0xff]
        %v6024 = vld [vmem:[#allocation4 + $0x5c0] sm:$0xff]
        %v6025 = vld [vmem:[#allocation4 + $0x5c8] sm:$0xff]
        %v6026 = vld [vmem:[#allocation4 + $0x5d0] sm:$0xff]
        %v6027 = vld [vmem:[#allocation4 + $0x5d8] sm:$0xff]
        %v6028 = vld [vmem:[#allocation4 + $0x5e0] sm:$0xff]
        %v6029 = vld [vmem:[#allocation4 + $0x5e8] sm:$0xff]
        %v6030 = vld [vmem:[#allocation4 + $0x5f0] sm:$0xff]
        %v6031 = vld [vmem:[#allocation4 + $0x5f8] sm:$0xff]
        %v6032 = vld [vmem:[#allocation4 + $0x600] sm:$0xff]
        %v6033 = vld [vmem:[#allocation4 + $0x608] sm:$0xff]
        %v6034 = vld [vmem:[#allocation4 + $0x610] sm:$0xff]
        %v6035 = vld [vmem:[#allocation4 + $0x618] sm:$0xff]
        %v6036 = vld [vmem:[#allocation4 + $0x620] sm:$0xff]
        %v6037 = vld [vmem:[#allocation4 + $0x628] sm:$0xff]
        %v6038 = vld [vmem:[#allocation4 + $0x630] sm:$0xff]
        %v6039 = vld [vmem:[#allocation4 + $0x638] sm:$0xff]
        %v6040 = vld [vmem:[#allocation4 + $0x640] sm:$0xff]
        %v6041 = vld [vmem:[#allocation4 + $0x648] sm:$0xff]
        %v6042 = vld [vmem:[#allocation4 + $0x650] sm:$0xff]
        %v6043 = vld [vmem:[#allocation4 + $0x658] sm:$0xff]
        %v6044 = vld [vmem:[#allocation4 + $0x660] sm:$0xff]
        %v6045 = vld [vmem:[#allocation4 + $0x668] sm:$0xff]
        %v6046 = vld [vmem:[#allocation4 + $0x670] sm:$0xff]
        %v6047 = vld [vmem:[#allocation4 + $0x678] sm:$0xff]
        %v6048 = vld [vmem:[#allocation4 + $0x680] sm:$0xff]
        %v6049 = vld [vmem:[#allocation4 + $0x688] sm:$0xff]
        %v6050 = vld [vmem:[#allocation4 + $0x690] sm:$0xff]
        %v6051 = vld [vmem:[#allocation4 + $0x698] sm:$0xff]
        %v6052 = vld [vmem:[#allocation4 + $0x6a0] sm:$0xff]
        %v6053 = vld [vmem:[#allocation4 + $0x6a8] sm:$0xff]
        %v6054 = vld [vmem:[#allocation4 + $0x6b0] sm:$0xff]
        %v6055 = vld [vmem:[#allocation4 + $0x6b8] sm:$0xff]
        %v6056 = vld [vmem:[#allocation4 + $0x6c0] sm:$0xff]
        %v6057 = vld [vmem:[#allocation4 + $0x6c8] sm:$0xff]
        %v6058 = vld [vmem:[#allocation4 + $0x6d0] sm:$0xff]
        %v6059 = vld [vmem:[#allocation4 + $0x6d8] sm:$0xff]
        %v6060 = vld [vmem:[#allocation4 + $0x6e0] sm:$0xff]
        %v6061 = vld [vmem:[#allocation4 + $0x6e8] sm:$0xff]
        %v6062 = vld [vmem:[#allocation4 + $0x6f0] sm:$0xff]
        %v6063 = vld [vmem:[#allocation4 + $0x6f8] sm:$0xff]
        %v6064 = vld [vmem:[#allocation4 + $0x700] sm:$0xff]
        %v6065 = vld [vmem:[#allocation4 + $0x708] sm:$0xff]
        %v6066 = vld [vmem:[#allocation4 + $0x710] sm:$0xff]
        %v6067 = vld [vmem:[#allocation4 + $0x718] sm:$0xff]
        %v6068 = vld [vmem:[#allocation4 + $0x720] sm:$0xff]
        %v6069 = vld [vmem:[#allocation4 + $0x728] sm:$0xff]
        %v6070 = vld [vmem:[#allocation4 + $0x730] sm:$0xff]
        %v6071 = vld [vmem:[#allocation4 + $0x738] sm:$0xff]
        %v6072 = vld [vmem:[#allocation4 + $0x740] sm:$0xff]
        %v6073 = vld [vmem:[#allocation4 + $0x748] sm:$0xff]
        %v6074 = vld [vmem:[#allocation4 + $0x750] sm:$0xff]
        %v6075 = vld [vmem:[#allocation4 + $0x758] sm:$0xff]
        %v6076 = vld [vmem:[#allocation4 + $0x760] sm:$0xff]
        %v6077 = vld [vmem:[#allocation4 + $0x768] sm:$0xff]
        %v6078 = vld [vmem:[#allocation4 + $0x770] sm:$0xff]
        %v6079 = vld [vmem:[#allocation4 + $0x778] sm:$0xff]
        %v6080 = vld [vmem:[#allocation4 + $0x780] sm:$0xff]
        %v6081 = vld [vmem:[#allocation4 + $0x788] sm:$0xff]
        %v6082 = vld [vmem:[#allocation4 + $0x790] sm:$0xff]
        %v6083 = vld [vmem:[#allocation4 + $0x798] sm:$0xff]
        %v6084 = vld [vmem:[#allocation4 + $0x7a0] sm:$0xff]
        %v6085 = vld [vmem:[#allocation4 + $0x7a8] sm:$0xff]
        %v6086 = vld [vmem:[#allocation4 + $0x7b0] sm:$0xff]
        %v6087 = vld [vmem:[#allocation4 + $0x7b8] sm:$0xff]
        %v6088 = vld [vmem:[#allocation4 + $0x7c0] sm:$0xff]
        %v6089 = vld [vmem:[#allocation4 + $0x7c8] sm:$0xff]
        %v6090 = vld [vmem:[#allocation4 + $0x7d0] sm:$0xff]
        %v6091 = vld [vmem:[#allocation4 + $0x7d8] sm:$0xff]
        %v6092 = vld [vmem:[#allocation4 + $0x7e0] sm:$0xff]
        %v6093 = vld [vmem:[#allocation4 + $0x7e8] sm:$0xff]
        %v6094 = vld [vmem:[#allocation4 + $0x7f0] sm:$0xff]
        %v6095 = vld [vmem:[#allocation4 + $0x7f8] sm:$0xff]
        %v6096 = vld [vmem:[#allocation4 + $0x800] sm:$0xff]
        %v6097 = vld [vmem:[#allocation4 + $0x808] sm:$0xff]
        %v6098 = vld [vmem:[#allocation4 + $0x810] sm:$0xff]
        %v6099 = vld [vmem:[#allocation4 + $0x818] sm:$0xff]
        %v6100 = vld [vmem:[#allocation4 + $0x820] sm:$0xff]
        %v6101 = vld [vmem:[#allocation4 + $0x828] sm:$0xff]
        %v6102 = vld [vmem:[#allocation4 + $0x830] sm:$0xff]
        %v6103 = vld [vmem:[#allocation4 + $0x838] sm:$0xff]
        %v6104 = vld [vmem:[#allocation4 + $0x840] sm:$0xff]
        %v6105 = vld [vmem:[#allocation4 + $0x848] sm:$0xff]
        %v6106 = vld [vmem:[#allocation4 + $0x850] sm:$0xff]
        %v6107 = vld [vmem:[#allocation4 + $0x858] sm:$0xff]
        %v6108 = vld [vmem:[#allocation4 + $0x860] sm:$0xff]
        %v6109 = vld [vmem:[#allocation4 + $0x868] sm:$0xff]
        %v6110 = vld [vmem:[#allocation4 + $0x870] sm:$0xff]
        %v6111 = vld [vmem:[#allocation4 + $0x878] sm:$0xff]
        %v6112 = vld [vmem:[#allocation4 + $0x880] sm:$0xff]
        %v6113 = vld [vmem:[#allocation4 + $0x888] sm:$0xff]
        %v6114 = vld [vmem:[#allocation4 + $0x890] sm:$0xff]
        %v6115 = vld [vmem:[#allocation4 + $0x898] sm:$0xff]
        %v6116 = vld [vmem:[#allocation4 + $0x8a0] sm:$0xff]
        %v6117 = vld [vmem:[#allocation4 + $0x8a8] sm:$0xff]
        %v6118 = vld [vmem:[#allocation4 + $0x8b0] sm:$0xff]
        %v6119 = vld [vmem:[#allocation4 + $0x8b8] sm:$0xff]
        %v6120 = vld [vmem:[#allocation4 + $0x8c0] sm:$0xff]
        %v6121 = vld [vmem:[#allocation4 + $0x8c8] sm:$0xff]
        %v6122 = vld [vmem:[#allocation4 + $0x8d0] sm:$0xff]
        %v6123 = vld [vmem:[#allocation4 + $0x8d8] sm:$0xff]
        %v6124 = vld [vmem:[#allocation4 + $0x8e0] sm:$0xff]
        %v6125 = vld [vmem:[#allocation4 + $0x8e8] sm:$0xff]
        %v6126 = vld [vmem:[#allocation4 + $0x8f0] sm:$0xff]
        %v6127 = vld [vmem:[#allocation4 + $0x8f8] sm:$0xff]
        %v6128 = vld [vmem:[%s5] sm:$0xff]
        %v6129 = vld [vmem:[%s5 + $0x8] sm:$0xff]
        %v6130 = vld [vmem:[%s5 + $0x10] sm:$0xff]
        %v6131 = vld [vmem:[%s5 + $0x18] sm:$0xff]
        %v6132 = vld [vmem:[%s5 + $0x20] sm:$0xff]
        %v6133 = vld [vmem:[%s5 + $0x28] sm:$0xff]
        %v6134 = vld [vmem:[%s5 + $0x30] sm:$0xff]
        %v6135 = vld [vmem:[%s5 + $0x38] sm:$0xff]
        %v6136 = vld [vmem:[%s5 + $0x40] sm:$0xff]
        %v6137 = vld [vmem:[%s5 + $0x48] sm:$0xff]
        %v6138 = vld [vmem:[%s5 + $0x50] sm:$0xff]
        %v6139 = vld [vmem:[%s5 + $0x58] sm:$0xff]
        %v6140 = vld [vmem:[%s5 + $0x60] sm:$0xff]
        %v6141 = vld [vmem:[%s5 + $0x68] sm:$0xff]
        %v6142 = vld [vmem:[%s5 + $0x70] sm:$0xff]
        %v6143 = vld [vmem:[%s5 + $0x78] sm:$0xff]
        %v6144 = vld [vmem:[%s5 + $0x80] sm:$0xff]
        %v6145 = vld [vmem:[%s5 + $0x88] sm:$0xff]
        %v6146 = vld [vmem:[%s5 + $0x90] sm:$0xff]
        %v6147 = vld [vmem:[%s5 + $0x98] sm:$0xff]
        %v6148 = vld [vmem:[%s5 + $0xa0] sm:$0xff]
        %v6149 = vld [vmem:[%s5 + $0xa8] sm:$0xff]
        %v6150 = vld [vmem:[%s5 + $0xb0] sm:$0xff]
        %v6151 = vld [vmem:[%s5 + $0xb8] sm:$0xff]
        %v6152 = vld [vmem:[%s5 + $0xc0] sm:$0xff]
        %v6153 = vld [vmem:[%s5 + $0xc8] sm:$0xff]
        %v6154 = vld [vmem:[%s5 + $0xd0] sm:$0xff]
        %v6155 = vld [vmem:[%s5 + $0xd8] sm:$0xff]
        %v6156 = vld [vmem:[%s5 + $0xe0] sm:$0xff]
        %v6157 = vld [vmem:[%s5 + $0xe8] sm:$0xff]
        %v6158 = vld [vmem:[%s5 + $0xf0] sm:$0xff]
        %v6159 = vld [vmem:[%s5 + $0xf8] sm:$0xff]
        %v6160 = vld [vmem:[%s5 + $0x100] sm:$0xff]
        %v6161 = vld [vmem:[%s5 + $0x108] sm:$0xff]
        %v6162 = vld [vmem:[%s5 + $0x110] sm:$0xff]
        %v6163 = vld [vmem:[%s5 + $0x118] sm:$0xff]
        %v6164 = vld [vmem:[%s5 + $0x120] sm:$0xff]
        %v6165 = vld [vmem:[%s5 + $0x128] sm:$0xff]
        %v6166 = vld [vmem:[%s5 + $0x130] sm:$0xff]
        %v6167 = vld [vmem:[%s5 + $0x138] sm:$0xff]
        %v6168 = vld [vmem:[%s5 + $0x140] sm:$0xff]
        %v6169 = vld [vmem:[%s5 + $0x148] sm:$0xff]
        %v6170 = vld [vmem:[%s5 + $0x150] sm:$0xff]
        %v6171 = vld [vmem:[%s5 + $0x158] sm:$0xff]
        %v6172 = vld [vmem:[%s5 + $0x160] sm:$0xff]
        %v6173 = vld [vmem:[%s5 + $0x168] sm:$0xff]
        %v6174 = vld [vmem:[%s5 + $0x170] sm:$0xff]
        %v6175 = vld [vmem:[%s5 + $0x178] sm:$0xff]
        %v6176 = vld [vmem:[%s5 + $0x180] sm:$0xff]
        %v6177 = vld [vmem:[%s5 + $0x188] sm:$0xff]
        %v6178 = vld [vmem:[%s5 + $0x190] sm:$0xff]
        %v6179 = vld [vmem:[%s5 + $0x198] sm:$0xff]
        %v6180 = vld [vmem:[%s5 + $0x1a0] sm:$0xff]
        %v6181 = vld [vmem:[%s5 + $0x1a8] sm:$0xff]
        %v6182 = vld [vmem:[%s5 + $0x1b0] sm:$0xff]
        %v6183 = vld [vmem:[%s5 + $0x1b8] sm:$0xff]
        %v6184 = vld [vmem:[%s5 + $0x1c0] sm:$0xff]
        %v6185 = vld [vmem:[%s5 + $0x1c8] sm:$0xff]
        %v6186 = vld [vmem:[%s5 + $0x1d0] sm:$0xff]
        %v6187 = vld [vmem:[%s5 + $0x1d8] sm:$0xff]
        %v6188 = vld [vmem:[%s5 + $0x1e0] sm:$0xff]
        %v6189 = vld [vmem:[%s5 + $0x1e8] sm:$0xff]
        %v6190 = vld [vmem:[%s5 + $0x1f0] sm:$0xff]
        %v6191 = vld [vmem:[%s5 + $0x1f8] sm:$0xff]
        %v6192 = vld [vmem:[%s5 + $0x200] sm:$0xff]
        %v6193 = vld [vmem:[%s5 + $0x208] sm:$0xff]
        %v6194 = vld [vmem:[%s5 + $0x210] sm:$0xff]
        %v6195 = vld [vmem:[%s5 + $0x218] sm:$0xff]
        %v6196 = vld [vmem:[%s5 + $0x220] sm:$0xff]
        %v6197 = vld [vmem:[%s5 + $0x228] sm:$0xff]
        %v6198 = vld [vmem:[%s5 + $0x230] sm:$0xff]
        %v6199 = vld [vmem:[%s5 + $0x238] sm:$0xff]
        %v6200 = vld [vmem:[%s5 + $0x240] sm:$0xff]
        %v6201 = vld [vmem:[%s5 + $0x248] sm:$0xff]
        %v6202 = vld [vmem:[%s5 + $0x250] sm:$0xff]
        %v6203 = vld [vmem:[%s5 + $0x258] sm:$0xff]
        %v6204 = vld [vmem:[%s5 + $0x260] sm:$0xff]
        %v6205 = vld [vmem:[%s5 + $0x268] sm:$0xff]
        %v6206 = vld [vmem:[%s5 + $0x270] sm:$0xff]
        %v6207 = vld [vmem:[%s5 + $0x278] sm:$0xff]
        %v6208 = vld [vmem:[%s5 + $0x280] sm:$0xff]
        %v6209 = vld [vmem:[%s5 + $0x288] sm:$0xff]
        %v6210 = vld [vmem:[%s5 + $0x290] sm:$0xff]
        %v6211 = vld [vmem:[%s5 + $0x298] sm:$0xff]
        %v6212 = vld [vmem:[%s5 + $0x2a0] sm:$0xff]
        %v6213 = vld [vmem:[%s5 + $0x2a8] sm:$0xff]
        %v6214 = vld [vmem:[%s5 + $0x2b0] sm:$0xff]
        %v6215 = vld [vmem:[%s5 + $0x2b8] sm:$0xff]
        %v6216 = vld [vmem:[%s5 + $0x2c0] sm:$0xff]
        %v6217 = vld [vmem:[%s5 + $0x2c8] sm:$0xff]
        %v6218 = vld [vmem:[%s5 + $0x2d0] sm:$0xff]
        %v6219 = vld [vmem:[%s5 + $0x2d8] sm:$0xff]
        %v6220 = vld [vmem:[%s5 + $0x2e0] sm:$0xff]
        %v6221 = vld [vmem:[%s5 + $0x2e8] sm:$0xff]
        %v6222 = vld [vmem:[%s5 + $0x2f0] sm:$0xff]
        %v6223 = vld [vmem:[%s5 + $0x2f8] sm:$0xff]
        %v6224 = vld [vmem:[%s5 + $0x300] sm:$0xff]
        %v6225 = vld [vmem:[%s5 + $0x308] sm:$0xff]
        %v6226 = vld [vmem:[%s5 + $0x310] sm:$0xff]
        %v6227 = vld [vmem:[%s5 + $0x318] sm:$0xff]
        %v6228 = vld [vmem:[%s5 + $0x320] sm:$0xff]
        %v6229 = vld [vmem:[%s5 + $0x328] sm:$0xff]
        %v6230 = vld [vmem:[%s5 + $0x330] sm:$0xff]
        %v6231 = vld [vmem:[%s5 + $0x338] sm:$0xff]
        %v6232 = vld [vmem:[%s5 + $0x340] sm:$0xff]
        %v6233 = vld [vmem:[%s5 + $0x348] sm:$0xff]
        %v6234 = vld [vmem:[%s5 + $0x350] sm:$0xff]
        %v6235 = vld [vmem:[%s5 + $0x358] sm:$0xff]
        %v6236 = vld [vmem:[%s5 + $0x360] sm:$0xff]
        %v6237 = vld [vmem:[%s5 + $0x368] sm:$0xff]
        %v6238 = vld [vmem:[%s5 + $0x370] sm:$0xff]
        %v6239 = vld [vmem:[%s5 + $0x378] sm:$0xff]
        %v6240 = vld [vmem:[%s5 + $0x380] sm:$0xff]
        %v6241 = vld [vmem:[%s5 + $0x388] sm:$0xff]
        %v6242 = vld [vmem:[%s5 + $0x390] sm:$0xff]
        %v6243 = vld [vmem:[%s5 + $0x398] sm:$0xff]
        %v6244 = vld [vmem:[%s5 + $0x3a0] sm:$0xff]
        %v6245 = vld [vmem:[%s5 + $0x3a8] sm:$0xff]
        %v6246 = vld [vmem:[%s5 + $0x3b0] sm:$0xff]
        %v6247 = vld [vmem:[%s5 + $0x3b8] sm:$0xff]
        %v6248 = vld [vmem:[%s5 + $0x3c0] sm:$0xff]
        %v6249 = vld [vmem:[%s5 + $0x3c8] sm:$0xff]
        %v6250 = vld [vmem:[%s5 + $0x3d0] sm:$0xff]
        %v6251 = vld [vmem:[%s5 + $0x3d8] sm:$0xff]
        %v6252 = vld [vmem:[%s5 + $0x3e0] sm:$0xff]
        %v6253 = vld [vmem:[%s5 + $0x3e8] sm:$0xff]
        %v6254 = vld [vmem:[%s5 + $0x3f0] sm:$0xff]
        %v6255 = vld [vmem:[%s5 + $0x3f8] sm:$0xff]
        %v6256 = vld [vmem:[%s5 + $0x400] sm:$0xff]
        %v6257 = vld [vmem:[%s5 + $0x408] sm:$0xff]
        %v6258 = vld [vmem:[%s5 + $0x410] sm:$0xff]
        %v6259 = vld [vmem:[%s5 + $0x418] sm:$0xff]
        %v6260 = vld [vmem:[%s5 + $0x420] sm:$0xff]
        %v6261 = vld [vmem:[%s5 + $0x428] sm:$0xff]
        %v6262 = vld [vmem:[%s5 + $0x430] sm:$0xff]
        %v6263 = vld [vmem:[%s5 + $0x438] sm:$0xff]
        %v6264 = vld [vmem:[%s5 + $0x440] sm:$0xff]
        %v6265 = vld [vmem:[%s5 + $0x448] sm:$0xff]
        %v6266 = vld [vmem:[%s5 + $0x450] sm:$0xff]
        %v6267 = vld [vmem:[%s5 + $0x458] sm:$0xff]
        %v6268 = vld [vmem:[%s5 + $0x460] sm:$0xff]
        %v6269 = vld [vmem:[%s5 + $0x468] sm:$0xff]
        %v6270 = vld [vmem:[%s5 + $0x470] sm:$0xff]
        %v6271 = vld [vmem:[%s5 + $0x478] sm:$0xff]
        %v6272 = vld [vmem:[%s6] sm:$0x1]
        %v6274 = vperm.slane %v6272, 0
        %6276 = vmatpush.msra.mxu0 %v6143
        %6277 = vmatpush.msra.mxu0 %v6142
        %6278 = vmatpush.msra.mxu0 %v6141
        %6279 = vmatpush.msra.mxu0 %v6140
        %6280 = vmatpush.msra.mxu0 %v6139
        %6281 = vmatpush.msra.mxu0 %v6138
        %6282 = vmatpush.msra.mxu0 %v6137
        %6283 = vmatpush.msra.mxu0 %v6136
        %6284 = vmatpush.msra.mxu0 %v6135
        %6285 = vmatpush.msra.mxu0 %v6134
        %6286 = vmatpush.msra.mxu0 %v6133
        %6287 = vmatpush.msra.mxu0 %v6132
        %6288 = vmatpush.msra.mxu0 %v6131
        %6289 = vmatpush.msra.mxu0 %v6130
        %6290 = vmatpush.msra.mxu0 %v6129
        %6291 = vmatpush.msra.mxu0 %v6128
        %6292 = vmatmul.f32.gmra.mxu0 %v5840
        %v6293 = vpop.f32.mrf.mxu0
        %v6294 = vadd.f32 %v6274, %v6293
        %6295 = vmatmul.f32.gmra.mxu0 %v5849
        %v6296 = vpop.f32.mrf.mxu0
        %v6297 = vadd.f32 %v6274, %v6296
        %6298 = vmatmul.f32.gmra.mxu0 %v5858
        %v6299 = vpop.f32.mrf.mxu0
        %v6300 = vadd.f32 %v6274, %v6299
        %6301 = vmatmul.f32.gmra.mxu0 %v5867
        %v6302 = vpop.f32.mrf.mxu0
        %v6303 = vadd.f32 %v6274, %v6302
        %6304 = vmatmul.f32.gmra.mxu0 %v5876
        %v6305 = vpop.f32.mrf.mxu0
        %v6306 = vadd.f32 %v6274, %v6305
        %6307 = vmatmul.f32.gmra.mxu0 %v5885
        %v6308 = vpop.f32.mrf.mxu0
        %v6309 = vadd.f32 %v6274, %v6308
        %6310 = vmatmul.f32.gmra.mxu0 %v5894
        %v6311 = vpop.f32.mrf.mxu0
        %v6312 = vadd.f32 %v6274, %v6311
        %6313 = vmatmul.f32.gmra.mxu0 %v5903
        %v6314 = vpop.f32.mrf.mxu0
        %v6315 = vadd.f32 %v6274, %v6314
        %6316 = vmatmul.f32.gmra.mxu0 %v5912
        %v6317 = vpop.f32.mrf.mxu0
        %v6318 = vadd.f32 %v6274, %v6317
        %6319 = vmatmul.f32.gmra.mxu0 %v5921
        %v6320 = vpop.f32.mrf.mxu0
        %v6321 = vadd.f32 %v6274, %v6320
        %6322 = vmatmul.f32.gmra.mxu0 %v5930
        %v6323 = vpop.f32.mrf.mxu0
        %v6324 = vadd.f32 %v6274, %v6323
        %6325 = vmatmul.f32.gmra.mxu0 %v5939
        %v6326 = vpop.f32.mrf.mxu0
        %v6327 = vadd.f32 %v6274, %v6326
        %6328 = vmatmul.f32.gmra.mxu0 %v5948
        %v6329 = vpop.f32.mrf.mxu0
        %v6330 = vadd.f32 %v6274, %v6329
        %6331 = vmatmul.f32.gmra.mxu0 %v5957
        %v6332 = vpop.f32.mrf.mxu0
        %v6333 = vadd.f32 %v6274, %v6332
        %6334 = vmatmul.f32.gmra.mxu0 %v5966
        %v6335 = vpop.f32.mrf.mxu0
        %v6336 = vadd.f32 %v6274, %v6335
        %6337 = vmatmul.f32.gmra.mxu0 %v5975
        %v6338 = vpop.f32.mrf.mxu0
        %v6339 = vadd.f32 %v6274, %v6338
        %6340 = vmatmul.f32.gmra.mxu0 %v5984
        %v6341 = vpop.f32.mrf.mxu0
        %v6342 = vadd.f32 %v6274, %v6341
        %6343 = vmatmul.f32.gmra.mxu0 %v5993
        %v6344 = vpop.f32.mrf.mxu0
        %v6345 = vadd.f32 %v6274, %v6344
        %6346 = vmatmul.f32.gmra.mxu0 %v6002
        %v6347 = vpop.f32.mrf.mxu0
        %v6348 = vadd.f32 %v6274, %v6347
        %6349 = vmatmul.f32.gmra.mxu0 %v6011
        %v6350 = vpop.f32.mrf.mxu0
        %v6351 = vadd.f32 %v6274, %v6350
        %6352 = vmatmul.f32.gmra.mxu0 %v6020
        %v6353 = vpop.f32.mrf.mxu0
        %v6354 = vadd.f32 %v6274, %v6353
        %6355 = vmatmul.f32.gmra.mxu0 %v6029
        %v6356 = vpop.f32.mrf.mxu0
        %v6357 = vadd.f32 %v6274, %v6356
        %6358 = vmatmul.f32.gmra.mxu0 %v6038
        %v6359 = vpop.f32.mrf.mxu0
        %v6360 = vadd.f32 %v6274, %v6359
        %6361 = vmatmul.f32.gmra.mxu0 %v6047
        %v6362 = vpop.f32.mrf.mxu0
        %v6363 = vadd.f32 %v6274, %v6362
        %6364 = vmatmul.f32.gmra.mxu0 %v6056
        %v6365 = vpop.f32.mrf.mxu0
        %v6366 = vadd.f32 %v6274, %v6365
        %6367 = vmatmul.f32.gmra.mxu0 %v6065
        %v6368 = vpop.f32.mrf.mxu0
        %v6369 = vadd.f32 %v6274, %v6368
        %6370 = vmatmul.f32.gmra.mxu0 %v6074
        %v6371 = vpop.f32.mrf.mxu0
        %v6372 = vadd.f32 %v6274, %v6371
        %6373 = vmatmul.f32.gmra.mxu0 %v6083
        %v6374 = vpop.f32.mrf.mxu0
        %v6375 = vadd.f32 %v6274, %v6374
        %6376 = vmatmul.f32.gmra.mxu0 %v6092
        %v6377 = vpop.f32.mrf.mxu0
        %v6378 = vadd.f32 %v6274, %v6377
        %6379 = vmatmul.f32.gmra.mxu0 %v6101
        %v6380 = vpop.f32.mrf.mxu0
        %v6381 = vadd.f32 %v6274, %v6380
        %6382 = vmatmul.f32.gmra.mxu0 %v6110
        %v6383 = vpop.f32.mrf.mxu0
        %v6384 = vadd.f32 %v6274, %v6383
        %6385 = vmatmul.f32.gmra.mxu0 %v6119
        %v6386 = vpop.f32.mrf.mxu0
        %v6387 = vadd.f32 %v6274, %v6386
        %6388 = vdwg.mxu0
        %6389 = vmatpush.msra.mxu0 %v6159
        %6390 = vmatpush.msra.mxu0 %v6158
        %6391 = vmatpush.msra.mxu0 %v6157
        %6392 = vmatpush.msra.mxu0 %v6156
        %6393 = vmatpush.msra.mxu0 %v6155
        %6394 = vmatpush.msra.mxu0 %v6154
        %6395 = vmatpush.msra.mxu0 %v6153
        %6396 = vmatpush.msra.mxu0 %v6152
        %6397 = vmatpush.msra.mxu0 %v6151
        %6398 = vmatpush.msra.mxu0 %v6150
        %6399 = vmatpush.msra.mxu0 %v6149
        %6400 = vmatpush.msra.mxu0 %v6148
        %6401 = vmatpush.msra.mxu0 %v6147
        %6402 = vmatpush.msra.mxu0 %v6146
        %6403 = vmatpush.msra.mxu0 %v6145
        %6404 = vmatpush.msra.mxu0 %v6144
        %6405 = vmatmul.f32.gmra.mxu0 %v5841
        %v6406 = vpop.f32.mrf.mxu0
        %v6407 = vadd.f32 %v6294, %v6406
        %6408 = vmatmul.f32.gmra.mxu0 %v5850
        %v6409 = vpop.f32.mrf.mxu0
        %v6410 = vadd.f32 %v6297, %v6409
        %6411 = vmatmul.f32.gmra.mxu0 %v5859
        %v6412 = vpop.f32.mrf.mxu0
        %v6413 = vadd.f32 %v6300, %v6412
        %6414 = vmatmul.f32.gmra.mxu0 %v5868
        %v6415 = vpop.f32.mrf.mxu0
        %v6416 = vadd.f32 %v6303, %v6415
        %6417 = vmatmul.f32.gmra.mxu0 %v5877
        %v6418 = vpop.f32.mrf.mxu0
        %v6419 = vadd.f32 %v6306, %v6418
        %6420 = vmatmul.f32.gmra.mxu0 %v5886
        %v6421 = vpop.f32.mrf.mxu0
        %v6422 = vadd.f32 %v6309, %v6421
        %6423 = vmatmul.f32.gmra.mxu0 %v5895
        %v6424 = vpop.f32.mrf.mxu0
        %v6425 = vadd.f32 %v6312, %v6424
        %6426 = vmatmul.f32.gmra.mxu0 %v5904
        %v6427 = vpop.f32.mrf.mxu0
        %v6428 = vadd.f32 %v6315, %v6427
        %6429 = vmatmul.f32.gmra.mxu0 %v5913
        %v6430 = vpop.f32.mrf.mxu0
        %v6431 = vadd.f32 %v6318, %v6430
        %6432 = vmatmul.f32.gmra.mxu0 %v5922
        %v6433 = vpop.f32.mrf.mxu0
        %v6434 = vadd.f32 %v6321, %v6433
        %6435 = vmatmul.f32.gmra.mxu0 %v5931
        %v6436 = vpop.f32.mrf.mxu0
        %v6437 = vadd.f32 %v6324, %v6436
        %6438 = vmatmul.f32.gmra.mxu0 %v5940
        %v6439 = vpop.f32.mrf.mxu0
        %v6440 = vadd.f32 %v6327, %v6439
        %6441 = vmatmul.f32.gmra.mxu0 %v5949
        %v6442 = vpop.f32.mrf.mxu0
        %v6443 = vadd.f32 %v6330, %v6442
        %6444 = vmatmul.f32.gmra.mxu0 %v5958
        %v6445 = vpop.f32.mrf.mxu0
        %v6446 = vadd.f32 %v6333, %v6445
        %6447 = vmatmul.f32.gmra.mxu0 %v5967
        %v6448 = vpop.f32.mrf.mxu0
        %v6449 = vadd.f32 %v6336, %v6448
        %6450 = vmatmul.f32.gmra.mxu0 %v5976
        %v6451 = vpop.f32.mrf.mxu0
        %v6452 = vadd.f32 %v6339, %v6451
        %6453 = vmatmul.f32.gmra.mxu0 %v5985
        %v6454 = vpop.f32.mrf.mxu0
        %v6455 = vadd.f32 %v6342, %v6454
        %6456 = vmatmul.f32.gmra.mxu0 %v5994
        %v6457 = vpop.f32.mrf.mxu0
        %v6458 = vadd.f32 %v6345, %v6457
        %6459 = vmatmul.f32.gmra.mxu0 %v6003
        %v6460 = vpop.f32.mrf.mxu0
        %v6461 = vadd.f32 %v6348, %v6460
        %6462 = vmatmul.f32.gmra.mxu0 %v6012
        %v6463 = vpop.f32.mrf.mxu0
        %v6464 = vadd.f32 %v6351, %v6463
        %6465 = vmatmul.f32.gmra.mxu0 %v6021
        %v6466 = vpop.f32.mrf.mxu0
        %v6467 = vadd.f32 %v6354, %v6466
        %6468 = vmatmul.f32.gmra.mxu0 %v6030
        %v6469 = vpop.f32.mrf.mxu0
        %v6470 = vadd.f32 %v6357, %v6469
        %6471 = vmatmul.f32.gmra.mxu0 %v6039
        %v6472 = vpop.f32.mrf.mxu0
        %v6473 = vadd.f32 %v6360, %v6472
        %6474 = vmatmul.f32.gmra.mxu0 %v6048
        %v6475 = vpop.f32.mrf.mxu0
        %v6476 = vadd.f32 %v6363, %v6475
        %6477 = vmatmul.f32.gmra.mxu0 %v6057
        %v6478 = vpop.f32.mrf.mxu0
        %v6479 = vadd.f32 %v6366, %v6478
        %6480 = vmatmul.f32.gmra.mxu0 %v6066
        %v6481 = vpop.f32.mrf.mxu0
        %v6482 = vadd.f32 %v6369, %v6481
        %6483 = vmatmul.f32.gmra.mxu0 %v6075
        %v6484 = vpop.f32.mrf.mxu0
        %v6485 = vadd.f32 %v6372, %v6484
        %6486 = vmatmul.f32.gmra.mxu0 %v6084
        %v6487 = vpop.f32.mrf.mxu0
        %v6488 = vadd.f32 %v6375, %v6487
        %6489 = vmatmul.f32.gmra.mxu0 %v6093
        %v6490 = vpop.f32.mrf.mxu0
        %v6491 = vadd.f32 %v6378, %v6490
        %6492 = vmatmul.f32.gmra.mxu0 %v6102
        %v6493 = vpop.f32.mrf.mxu0
        %v6494 = vadd.f32 %v6381, %v6493
        %6495 = vmatmul.f32.gmra.mxu0 %v6111
        %v6496 = vpop.f32.mrf.mxu0
        %v6497 = vadd.f32 %v6384, %v6496
        %6498 = vmatmul.f32.gmra.mxu0 %v6120
        %v6499 = vpop.f32.mrf.mxu0
        %v6500 = vadd.f32 %v6387, %v6499
        %6501 = vdwg.mxu0
        %6502 = vmatpush.msra.mxu0 %v6175
        %6503 = vmatpush.msra.mxu0 %v6174
        %6504 = vmatpush.msra.mxu0 %v6173
        %6505 = vmatpush.msra.mxu0 %v6172
        %6506 = vmatpush.msra.mxu0 %v6171
        %6507 = vmatpush.msra.mxu0 %v6170
        %6508 = vmatpush.msra.mxu0 %v6169
        %6509 = vmatpush.msra.mxu0 %v6168
        %6510 = vmatpush.msra.mxu0 %v6167
        %6511 = vmatpush.msra.mxu0 %v6166
        %6512 = vmatpush.msra.mxu0 %v6165
        %6513 = vmatpush.msra.mxu0 %v6164
        %6514 = vmatpush.msra.mxu0 %v6163
        %6515 = vmatpush.msra.mxu0 %v6162
        %6516 = vmatpush.msra.mxu0 %v6161
        %6517 = vmatpush.msra.mxu0 %v6160
        %6518 = vmatmul.f32.gmra.mxu0 %v5842
        %v6519 = vpop.f32.mrf.mxu0
        %v6520 = vadd.f32 %v6407, %v6519
        %6521 = vmatmul.f32.gmra.mxu0 %v5851
        %v6522 = vpop.f32.mrf.mxu0
        %v6523 = vadd.f32 %v6410, %v6522
        %6524 = vmatmul.f32.gmra.mxu0 %v5860
        %v6525 = vpop.f32.mrf.mxu0
        %v6526 = vadd.f32 %v6413, %v6525
        %6527 = vmatmul.f32.gmra.mxu0 %v5869
        %v6528 = vpop.f32.mrf.mxu0
        %v6529 = vadd.f32 %v6416, %v6528
        %6530 = vmatmul.f32.gmra.mxu0 %v5878
        %v6531 = vpop.f32.mrf.mxu0
        %v6532 = vadd.f32 %v6419, %v6531
        %6533 = vmatmul.f32.gmra.mxu0 %v5887
        %v6534 = vpop.f32.mrf.mxu0
        %v6535 = vadd.f32 %v6422, %v6534
        %6536 = vmatmul.f32.gmra.mxu0 %v5896
        %v6537 = vpop.f32.mrf.mxu0
        %v6538 = vadd.f32 %v6425, %v6537
        %6539 = vmatmul.f32.gmra.mxu0 %v5905
        %v6540 = vpop.f32.mrf.mxu0
        %v6541 = vadd.f32 %v6428, %v6540
        %6542 = vmatmul.f32.gmra.mxu0 %v5914
        %v6543 = vpop.f32.mrf.mxu0
        %v6544 = vadd.f32 %v6431, %v6543
        %6545 = vmatmul.f32.gmra.mxu0 %v5923
        %v6546 = vpop.f32.mrf.mxu0
        %v6547 = vadd.f32 %v6434, %v6546
        %6548 = vmatmul.f32.gmra.mxu0 %v5932
        %v6549 = vpop.f32.mrf.mxu0
        %v6550 = vadd.f32 %v6437, %v6549
        %6551 = vmatmul.f32.gmra.mxu0 %v5941
        %v6552 = vpop.f32.mrf.mxu0
        %v6553 = vadd.f32 %v6440, %v6552
        %6554 = vmatmul.f32.gmra.mxu0 %v5950
        %v6555 = vpop.f32.mrf.mxu0
        %v6556 = vadd.f32 %v6443, %v6555
        %6557 = vmatmul.f32.gmra.mxu0 %v5959
        %v6558 = vpop.f32.mrf.mxu0
        %v6559 = vadd.f32 %v6446, %v6558
        %6560 = vmatmul.f32.gmra.mxu0 %v5968
        %v6561 = vpop.f32.mrf.mxu0
        %v6562 = vadd.f32 %v6449, %v6561
        %6563 = vmatmul.f32.gmra.mxu0 %v5977
        %v6564 = vpop.f32.mrf.mxu0
        %v6565 = vadd.f32 %v6452, %v6564
        %6566 = vmatmul.f32.gmra.mxu0 %v5986
        %v6567 = vpop.f32.mrf.mxu0
        %v6568 = vadd.f32 %v6455, %v6567
        %6569 = vmatmul.f32.gmra.mxu0 %v5995
        %v6570 = vpop.f32.mrf.mxu0
        %v6571 = vadd.f32 %v6458, %v6570
        %6572 = vmatmul.f32.gmra.mxu0 %v6004
        %v6573 = vpop.f32.mrf.mxu0
        %v6574 = vadd.f32 %v6461, %v6573
        %6575 = vmatmul.f32.gmra.mxu0 %v6013
        %v6576 = vpop.f32.mrf.mxu0
        %v6577 = vadd.f32 %v6464, %v6576
        %6578 = vmatmul.f32.gmra.mxu0 %v6022
        %v6579 = vpop.f32.mrf.mxu0
        %v6580 = vadd.f32 %v6467, %v6579
        %6581 = vmatmul.f32.gmra.mxu0 %v6031
        %v6582 = vpop.f32.mrf.mxu0
        %v6583 = vadd.f32 %v6470, %v6582
        %6584 = vmatmul.f32.gmra.mxu0 %v6040
        %v6585 = vpop.f32.mrf.mxu0
        %v6586 = vadd.f32 %v6473, %v6585
        %6587 = vmatmul.f32.gmra.mxu0 %v6049
        %v6588 = vpop.f32.mrf.mxu0
        %v6589 = vadd.f32 %v6476, %v6588
        %6590 = vmatmul.f32.gmra.mxu0 %v6058
        %v6591 = vpop.f32.mrf.mxu0
        %v6592 = vadd.f32 %v6479, %v6591
        %6593 = vmatmul.f32.gmra.mxu0 %v6067
        %v6594 = vpop.f32.mrf.mxu0
        %v6595 = vadd.f32 %v6482, %v6594
        %6596 = vmatmul.f32.gmra.mxu0 %v6076
        %v6597 = vpop.f32.mrf.mxu0
        %v6598 = vadd.f32 %v6485, %v6597
        %6599 = vmatmul.f32.gmra.mxu0 %v6085
        %v6600 = vpop.f32.mrf.mxu0
        %v6601 = vadd.f32 %v6488, %v6600
        %6602 = vmatmul.f32.gmra.mxu0 %v6094
        %v6603 = vpop.f32.mrf.mxu0
        %v6604 = vadd.f32 %v6491, %v6603
        %6605 = vmatmul.f32.gmra.mxu0 %v6103
        %v6606 = vpop.f32.mrf.mxu0
        %v6607 = vadd.f32 %v6494, %v6606
        %6608 = vmatmul.f32.gmra.mxu0 %v6112
        %v6609 = vpop.f32.mrf.mxu0
        %v6610 = vadd.f32 %v6497, %v6609
        %6611 = vmatmul.f32.gmra.mxu0 %v6121
        %v6612 = vpop.f32.mrf.mxu0
        %v6613 = vadd.f32 %v6500, %v6612
        %6614 = vdwg.mxu0
        %6615 = vmatpush.msra.mxu0 %v6191
        %6616 = vmatpush.msra.mxu0 %v6190
        %6617 = vmatpush.msra.mxu0 %v6189
        %6618 = vmatpush.msra.mxu0 %v6188
        %6619 = vmatpush.msra.mxu0 %v6187
        %6620 = vmatpush.msra.mxu0 %v6186
        %6621 = vmatpush.msra.mxu0 %v6185
        %6622 = vmatpush.msra.mxu0 %v6184
        %6623 = vmatpush.msra.mxu0 %v6183
        %6624 = vmatpush.msra.mxu0 %v6182
        %6625 = vmatpush.msra.mxu0 %v6181
        %6626 = vmatpush.msra.mxu0 %v6180
        %6627 = vmatpush.msra.mxu0 %v6179
        %6628 = vmatpush.msra.mxu0 %v6178
        %6629 = vmatpush.msra.mxu0 %v6177
        %6630 = vmatpush.msra.mxu0 %v6176
        %6631 = vmatmul.f32.gmra.mxu0 %v5843
        %v6632 = vpop.f32.mrf.mxu0
        %v6633 = vadd.f32 %v6520, %v6632
        %6634 = vmatmul.f32.gmra.mxu0 %v5852
        %v6635 = vpop.f32.mrf.mxu0
        %v6636 = vadd.f32 %v6523, %v6635
        %6637 = vmatmul.f32.gmra.mxu0 %v5861
        %v6638 = vpop.f32.mrf.mxu0
        %v6639 = vadd.f32 %v6526, %v6638
        %6640 = vmatmul.f32.gmra.mxu0 %v5870
        %v6641 = vpop.f32.mrf.mxu0
        %v6642 = vadd.f32 %v6529, %v6641
        %6643 = vmatmul.f32.gmra.mxu0 %v5879
        %v6644 = vpop.f32.mrf.mxu0
        %v6645 = vadd.f32 %v6532, %v6644
        %6646 = vmatmul.f32.gmra.mxu0 %v5888
        %v6647 = vpop.f32.mrf.mxu0
        %v6648 = vadd.f32 %v6535, %v6647
        %6649 = vmatmul.f32.gmra.mxu0 %v5897
        %v6650 = vpop.f32.mrf.mxu0
        %v6651 = vadd.f32 %v6538, %v6650
        %6652 = vmatmul.f32.gmra.mxu0 %v5906
        %v6653 = vpop.f32.mrf.mxu0
        %v6654 = vadd.f32 %v6541, %v6653
        %6655 = vmatmul.f32.gmra.mxu0 %v5915
        %v6656 = vpop.f32.mrf.mxu0
        %v6657 = vadd.f32 %v6544, %v6656
        %6658 = vmatmul.f32.gmra.mxu0 %v5924
        %v6659 = vpop.f32.mrf.mxu0
        %v6660 = vadd.f32 %v6547, %v6659
        %6661 = vmatmul.f32.gmra.mxu0 %v5933
        %v6662 = vpop.f32.mrf.mxu0
        %v6663 = vadd.f32 %v6550, %v6662
        %6664 = vmatmul.f32.gmra.mxu0 %v5942
        %v6665 = vpop.f32.mrf.mxu0
        %v6666 = vadd.f32 %v6553, %v6665
        %6667 = vmatmul.f32.gmra.mxu0 %v5951
        %v6668 = vpop.f32.mrf.mxu0
        %v6669 = vadd.f32 %v6556, %v6668
        %6670 = vmatmul.f32.gmra.mxu0 %v5960
        %v6671 = vpop.f32.mrf.mxu0
        %v6672 = vadd.f32 %v6559, %v6671
        %6673 = vmatmul.f32.gmra.mxu0 %v5969
        %v6674 = vpop.f32.mrf.mxu0
        %v6675 = vadd.f32 %v6562, %v6674
        %6676 = vmatmul.f32.gmra.mxu0 %v5978
        %v6677 = vpop.f32.mrf.mxu0
        %v6678 = vadd.f32 %v6565, %v6677
        %6679 = vmatmul.f32.gmra.mxu0 %v5987
        %v6680 = vpop.f32.mrf.mxu0
        %v6681 = vadd.f32 %v6568, %v6680
        %6682 = vmatmul.f32.gmra.mxu0 %v5996
        %v6683 = vpop.f32.mrf.mxu0
        %v6684 = vadd.f32 %v6571, %v6683
        %6685 = vmatmul.f32.gmra.mxu0 %v6005
        %v6686 = vpop.f32.mrf.mxu0
        %v6687 = vadd.f32 %v6574, %v6686
        %6688 = vmatmul.f32.gmra.mxu0 %v6014
        %v6689 = vpop.f32.mrf.mxu0
        %v6690 = vadd.f32 %v6577, %v6689
        %6691 = vmatmul.f32.gmra.mxu0 %v6023
        %v6692 = vpop.f32.mrf.mxu0
        %v6693 = vadd.f32 %v6580, %v6692
        %6694 = vmatmul.f32.gmra.mxu0 %v6032
        %v6695 = vpop.f32.mrf.mxu0
        %v6696 = vadd.f32 %v6583, %v6695
        %6697 = vmatmul.f32.gmra.mxu0 %v6041
        %v6698 = vpop.f32.mrf.mxu0
        %v6699 = vadd.f32 %v6586, %v6698
        %6700 = vmatmul.f32.gmra.mxu0 %v6050
        %v6701 = vpop.f32.mrf.mxu0
        %v6702 = vadd.f32 %v6589, %v6701
        %6703 = vmatmul.f32.gmra.mxu0 %v6059
        %v6704 = vpop.f32.mrf.mxu0
        %v6705 = vadd.f32 %v6592, %v6704
        %6706 = vmatmul.f32.gmra.mxu0 %v6068
        %v6707 = vpop.f32.mrf.mxu0
        %v6708 = vadd.f32 %v6595, %v6707
        %6709 = vmatmul.f32.gmra.mxu0 %v6077
        %v6710 = vpop.f32.mrf.mxu0
        %v6711 = vadd.f32 %v6598, %v6710
        %6712 = vmatmul.f32.gmra.mxu0 %v6086
        %v6713 = vpop.f32.mrf.mxu0
        %v6714 = vadd.f32 %v6601, %v6713
        %6715 = vmatmul.f32.gmra.mxu0 %v6095
        %v6716 = vpop.f32.mrf.mxu0
        %v6717 = vadd.f32 %v6604, %v6716
        %6718 = vmatmul.f32.gmra.mxu0 %v6104
        %v6719 = vpop.f32.mrf.mxu0
        %v6720 = vadd.f32 %v6607, %v6719
        %6721 = vmatmul.f32.gmra.mxu0 %v6113
        %v6722 = vpop.f32.mrf.mxu0
        %v6723 = vadd.f32 %v6610, %v6722
        %6724 = vmatmul.f32.gmra.mxu0 %v6122
        %v6725 = vpop.f32.mrf.mxu0
        %v6726 = vadd.f32 %v6613, %v6725
        %6727 = vdwg.mxu0
        %6728 = vmatpush.msra.mxu0 %v6207
        %6729 = vmatpush.msra.mxu0 %v6206
        %6730 = vmatpush.msra.mxu0 %v6205
        %6731 = vmatpush.msra.mxu0 %v6204
        %6732 = vmatpush.msra.mxu0 %v6203
        %6733 = vmatpush.msra.mxu0 %v6202
        %6734 = vmatpush.msra.mxu0 %v6201
        %6735 = vmatpush.msra.mxu0 %v6200
        %6736 = vmatpush.msra.mxu0 %v6199
        %6737 = vmatpush.msra.mxu0 %v6198
        %6738 = vmatpush.msra.mxu0 %v6197
        %6739 = vmatpush.msra.mxu0 %v6196
        %6740 = vmatpush.msra.mxu0 %v6195
        %6741 = vmatpush.msra.mxu0 %v6194
        %6742 = vmatpush.msra.mxu0 %v6193
        %6743 = vmatpush.msra.mxu0 %v6192
        %6744 = vmatmul.f32.gmra.mxu0 %v5844
        %v6745 = vpop.f32.mrf.mxu0
        %v6746 = vadd.f32 %v6633, %v6745
        %6747 = vmatmul.f32.gmra.mxu0 %v5853
        %v6748 = vpop.f32.mrf.mxu0
        %v6749 = vadd.f32 %v6636, %v6748
        %6750 = vmatmul.f32.gmra.mxu0 %v5862
        %v6751 = vpop.f32.mrf.mxu0
        %v6752 = vadd.f32 %v6639, %v6751
        %6753 = vmatmul.f32.gmra.mxu0 %v5871
        %v6754 = vpop.f32.mrf.mxu0
        %v6755 = vadd.f32 %v6642, %v6754
        %6756 = vmatmul.f32.gmra.mxu0 %v5880
        %v6757 = vpop.f32.mrf.mxu0
        %v6758 = vadd.f32 %v6645, %v6757
        %6759 = vmatmul.f32.gmra.mxu0 %v5889
        %v6760 = vpop.f32.mrf.mxu0
        %v6761 = vadd.f32 %v6648, %v6760
        %6762 = vmatmul.f32.gmra.mxu0 %v5898
        %v6763 = vpop.f32.mrf.mxu0
        %v6764 = vadd.f32 %v6651, %v6763
        %6765 = vmatmul.f32.gmra.mxu0 %v5907
        %v6766 = vpop.f32.mrf.mxu0
        %v6767 = vadd.f32 %v6654, %v6766
        %6768 = vmatmul.f32.gmra.mxu0 %v5916
        %v6769 = vpop.f32.mrf.mxu0
        %v6770 = vadd.f32 %v6657, %v6769
        %6771 = vmatmul.f32.gmra.mxu0 %v5925
        %v6772 = vpop.f32.mrf.mxu0
        %v6773 = vadd.f32 %v6660, %v6772
        %6774 = vmatmul.f32.gmra.mxu0 %v5934
        %v6775 = vpop.f32.mrf.mxu0
        %v6776 = vadd.f32 %v6663, %v6775
        %6777 = vmatmul.f32.gmra.mxu0 %v5943
        %v6778 = vpop.f32.mrf.mxu0
        %v6779 = vadd.f32 %v6666, %v6778
        %6780 = vmatmul.f32.gmra.mxu0 %v5952
        %v6781 = vpop.f32.mrf.mxu0
        %v6782 = vadd.f32 %v6669, %v6781
        %6783 = vmatmul.f32.gmra.mxu0 %v5961
        %v6784 = vpop.f32.mrf.mxu0
        %v6785 = vadd.f32 %v6672, %v6784
        %6786 = vmatmul.f32.gmra.mxu0 %v5970
        %v6787 = vpop.f32.mrf.mxu0
        %v6788 = vadd.f32 %v6675, %v6787
        %6789 = vmatmul.f32.gmra.mxu0 %v5979
        %v6790 = vpop.f32.mrf.mxu0
        %v6791 = vadd.f32 %v6678, %v6790
        %6792 = vmatmul.f32.gmra.mxu0 %v5988
        %v6793 = vpop.f32.mrf.mxu0
        %v6794 = vadd.f32 %v6681, %v6793
        %6795 = vmatmul.f32.gmra.mxu0 %v5997
        %v6796 = vpop.f32.mrf.mxu0
        %v6797 = vadd.f32 %v6684, %v6796
        %6798 = vmatmul.f32.gmra.mxu0 %v6006
        %v6799 = vpop.f32.mrf.mxu0
        %v6800 = vadd.f32 %v6687, %v6799
        %6801 = vmatmul.f32.gmra.mxu0 %v6015
        %v6802 = vpop.f32.mrf.mxu0
        %v6803 = vadd.f32 %v6690, %v6802
        %6804 = vmatmul.f32.gmra.mxu0 %v6024
        %v6805 = vpop.f32.mrf.mxu0
        %v6806 = vadd.f32 %v6693, %v6805
        %6807 = vmatmul.f32.gmra.mxu0 %v6033
        %v6808 = vpop.f32.mrf.mxu0
        %v6809 = vadd.f32 %v6696, %v6808
        %6810 = vmatmul.f32.gmra.mxu0 %v6042
        %v6811 = vpop.f32.mrf.mxu0
        %v6812 = vadd.f32 %v6699, %v6811
        %6813 = vmatmul.f32.gmra.mxu0 %v6051
        %v6814 = vpop.f32.mrf.mxu0
        %v6815 = vadd.f32 %v6702, %v6814
        %6816 = vmatmul.f32.gmra.mxu0 %v6060
        %v6817 = vpop.f32.mrf.mxu0
        %v6818 = vadd.f32 %v6705, %v6817
        %6819 = vmatmul.f32.gmra.mxu0 %v6069
        %v6820 = vpop.f32.mrf.mxu0
        %v6821 = vadd.f32 %v6708, %v6820
        %6822 = vmatmul.f32.gmra.mxu0 %v6078
        %v6823 = vpop.f32.mrf.mxu0
        %v6824 = vadd.f32 %v6711, %v6823
        %6825 = vmatmul.f32.gmra.mxu0 %v6087
        %v6826 = vpop.f32.mrf.mxu0
        %v6827 = vadd.f32 %v6714, %v6826
        %6828 = vmatmul.f32.gmra.mxu0 %v6096
        %v6829 = vpop.f32.mrf.mxu0
        %v6830 = vadd.f32 %v6717, %v6829
        %6831 = vmatmul.f32.gmra.mxu0 %v6105
        %v6832 = vpop.f32.mrf.mxu0
        %v6833 = vadd.f32 %v6720, %v6832
        %6834 = vmatmul.f32.gmra.mxu0 %v6114
        %v6835 = vpop.f32.mrf.mxu0
        %v6836 = vadd.f32 %v6723, %v6835
        %6837 = vmatmul.f32.gmra.mxu0 %v6123
        %v6838 = vpop.f32.mrf.mxu0
        %v6839 = vadd.f32 %v6726, %v6838
        %6840 = vdwg.mxu0
        %6841 = vmatpush.msra.mxu0 %v6223
        %6842 = vmatpush.msra.mxu0 %v6222
        %6843 = vmatpush.msra.mxu0 %v6221
        %6844 = vmatpush.msra.mxu0 %v6220
        %6845 = vmatpush.msra.mxu0 %v6219
        %6846 = vmatpush.msra.mxu0 %v6218
        %6847 = vmatpush.msra.mxu0 %v6217
        %6848 = vmatpush.msra.mxu0 %v6216
        %6849 = vmatpush.msra.mxu0 %v6215
        %6850 = vmatpush.msra.mxu0 %v6214
        %6851 = vmatpush.msra.mxu0 %v6213
        %6852 = vmatpush.msra.mxu0 %v6212
        %6853 = vmatpush.msra.mxu0 %v6211
        %6854 = vmatpush.msra.mxu0 %v6210
        %6855 = vmatpush.msra.mxu0 %v6209
        %6856 = vmatpush.msra.mxu0 %v6208
        %6857 = vmatmul.f32.gmra.mxu0 %v5845
        %v6858 = vpop.f32.mrf.mxu0
        %v6859 = vadd.f32 %v6746, %v6858
        %6860 = vmatmul.f32.gmra.mxu0 %v5854
        %v6861 = vpop.f32.mrf.mxu0
        %v6862 = vadd.f32 %v6749, %v6861
        %6863 = vmatmul.f32.gmra.mxu0 %v5863
        %v6864 = vpop.f32.mrf.mxu0
        %v6865 = vadd.f32 %v6752, %v6864
        %6866 = vmatmul.f32.gmra.mxu0 %v5872
        %v6867 = vpop.f32.mrf.mxu0
        %v6868 = vadd.f32 %v6755, %v6867
        %6869 = vmatmul.f32.gmra.mxu0 %v5881
        %v6870 = vpop.f32.mrf.mxu0
        %v6871 = vadd.f32 %v6758, %v6870
        %6872 = vmatmul.f32.gmra.mxu0 %v5890
        %v6873 = vpop.f32.mrf.mxu0
        %v6874 = vadd.f32 %v6761, %v6873
        %6875 = vmatmul.f32.gmra.mxu0 %v5899
        %v6876 = vpop.f32.mrf.mxu0
        %v6877 = vadd.f32 %v6764, %v6876
        %6878 = vmatmul.f32.gmra.mxu0 %v5908
        %v6879 = vpop.f32.mrf.mxu0
        %v6880 = vadd.f32 %v6767, %v6879
        %6881 = vmatmul.f32.gmra.mxu0 %v5917
        %v6882 = vpop.f32.mrf.mxu0
        %v6883 = vadd.f32 %v6770, %v6882
        %6884 = vmatmul.f32.gmra.mxu0 %v5926
        %v6885 = vpop.f32.mrf.mxu0
        %v6886 = vadd.f32 %v6773, %v6885
        %6887 = vmatmul.f32.gmra.mxu0 %v5935
        %v6888 = vpop.f32.mrf.mxu0
        %v6889 = vadd.f32 %v6776, %v6888
        %6890 = vmatmul.f32.gmra.mxu0 %v5944
        %v6891 = vpop.f32.mrf.mxu0
        %v6892 = vadd.f32 %v6779, %v6891
        %6893 = vmatmul.f32.gmra.mxu0 %v5953
        %v6894 = vpop.f32.mrf.mxu0
        %v6895 = vadd.f32 %v6782, %v6894
        %6896 = vmatmul.f32.gmra.mxu0 %v5962
        %v6897 = vpop.f32.mrf.mxu0
        %v6898 = vadd.f32 %v6785, %v6897
        %6899 = vmatmul.f32.gmra.mxu0 %v5971
        %v6900 = vpop.f32.mrf.mxu0
        %v6901 = vadd.f32 %v6788, %v6900
        %6902 = vmatmul.f32.gmra.mxu0 %v5980
        %v6903 = vpop.f32.mrf.mxu0
        %v6904 = vadd.f32 %v6791, %v6903
        %6905 = vmatmul.f32.gmra.mxu0 %v5989
        %v6906 = vpop.f32.mrf.mxu0
        %v6907 = vadd.f32 %v6794, %v6906
        %6908 = vmatmul.f32.gmra.mxu0 %v5998
        %v6909 = vpop.f32.mrf.mxu0
        %v6910 = vadd.f32 %v6797, %v6909
        %6911 = vmatmul.f32.gmra.mxu0 %v6007
        %v6912 = vpop.f32.mrf.mxu0
        %v6913 = vadd.f32 %v6800, %v6912
        %6914 = vmatmul.f32.gmra.mxu0 %v6016
        %v6915 = vpop.f32.mrf.mxu0
        %v6916 = vadd.f32 %v6803, %v6915
        %6917 = vmatmul.f32.gmra.mxu0 %v6025
        %v6918 = vpop.f32.mrf.mxu0
        %v6919 = vadd.f32 %v6806, %v6918
        %6920 = vmatmul.f32.gmra.mxu0 %v6034
        %v6921 = vpop.f32.mrf.mxu0
        %v6922 = vadd.f32 %v6809, %v6921
        %6923 = vmatmul.f32.gmra.mxu0 %v6043
        %v6924 = vpop.f32.mrf.mxu0
        %v6925 = vadd.f32 %v6812, %v6924
        %6926 = vmatmul.f32.gmra.mxu0 %v6052
        %v6927 = vpop.f32.mrf.mxu0
        %v6928 = vadd.f32 %v6815, %v6927
        %6929 = vmatmul.f32.gmra.mxu0 %v6061
        %v6930 = vpop.f32.mrf.mxu0
        %v6931 = vadd.f32 %v6818, %v6930
        %6932 = vmatmul.f32.gmra.mxu0 %v6070
        %v6933 = vpop.f32.mrf.mxu0
        %v6934 = vadd.f32 %v6821, %v6933
        %6935 = vmatmul.f32.gmra.mxu0 %v6079
        %v6936 = vpop.f32.mrf.mxu0
        %v6937 = vadd.f32 %v6824, %v6936
        %6938 = vmatmul.f32.gmra.mxu0 %v6088
        %v6939 = vpop.f32.mrf.mxu0
        %v6940 = vadd.f32 %v6827, %v6939
        %6941 = vmatmul.f32.gmra.mxu0 %v6097
        %v6942 = vpop.f32.mrf.mxu0
        %v6943 = vadd.f32 %v6830, %v6942
        %6944 = vmatmul.f32.gmra.mxu0 %v6106
        %v6945 = vpop.f32.mrf.mxu0
        %v6946 = vadd.f32 %v6833, %v6945
        %6947 = vmatmul.f32.gmra.mxu0 %v6115
        %v6948 = vpop.f32.mrf.mxu0
        %v6949 = vadd.f32 %v6836, %v6948
        %6950 = vmatmul.f32.gmra.mxu0 %v6124
        %v6951 = vpop.f32.mrf.mxu0
        %v6952 = vadd.f32 %v6839, %v6951
        %6953 = vdwg.mxu0
        %6954 = vmatpush.msra.mxu0 %v6239
        %6955 = vmatpush.msra.mxu0 %v6238
        %6956 = vmatpush.msra.mxu0 %v6237
        %6957 = vmatpush.msra.mxu0 %v6236
        %6958 = vmatpush.msra.mxu0 %v6235
        %6959 = vmatpush.msra.mxu0 %v6234
        %6960 = vmatpush.msra.mxu0 %v6233
        %6961 = vmatpush.msra.mxu0 %v6232
        %6962 = vmatpush.msra.mxu0 %v6231
        %6963 = vmatpush.msra.mxu0 %v6230
        %6964 = vmatpush.msra.mxu0 %v6229
        %6965 = vmatpush.msra.mxu0 %v6228
        %6966 = vmatpush.msra.mxu0 %v6227
        %6967 = vmatpush.msra.mxu0 %v6226
        %6968 = vmatpush.msra.mxu0 %v6225
        %6969 = vmatpush.msra.mxu0 %v6224
        %6970 = vmatmul.f32.gmra.mxu0 %v5846
        %v6971 = vpop.f32.mrf.mxu0
        %v6972 = vadd.f32 %v6859, %v6971
        %6973 = vmatmul.f32.gmra.mxu0 %v5855
        %v6974 = vpop.f32.mrf.mxu0
        %v6975 = vadd.f32 %v6862, %v6974
        %6976 = vmatmul.f32.gmra.mxu0 %v5864
        %v6977 = vpop.f32.mrf.mxu0
        %v6978 = vadd.f32 %v6865, %v6977
        %6979 = vmatmul.f32.gmra.mxu0 %v5873
        %v6980 = vpop.f32.mrf.mxu0
        %v6981 = vadd.f32 %v6868, %v6980
        %6982 = vmatmul.f32.gmra.mxu0 %v5882
        %v6983 = vpop.f32.mrf.mxu0
        %v6984 = vadd.f32 %v6871, %v6983
        %6985 = vmatmul.f32.gmra.mxu0 %v5891
        %v6986 = vpop.f32.mrf.mxu0
        %v6987 = vadd.f32 %v6874, %v6986
        %6988 = vmatmul.f32.gmra.mxu0 %v5900
        %v6989 = vpop.f32.mrf.mxu0
        %v6990 = vadd.f32 %v6877, %v6989
        %6991 = vmatmul.f32.gmra.mxu0 %v5909
        %v6992 = vpop.f32.mrf.mxu0
        %v6993 = vadd.f32 %v6880, %v6992
        %6994 = vmatmul.f32.gmra.mxu0 %v5918
        %v6995 = vpop.f32.mrf.mxu0
        %v6996 = vadd.f32 %v6883, %v6995
        %6997 = vmatmul.f32.gmra.mxu0 %v5927
        %v6998 = vpop.f32.mrf.mxu0
        %v6999 = vadd.f32 %v6886, %v6998
        %7000 = vmatmul.f32.gmra.mxu0 %v5936
        %v7001 = vpop.f32.mrf.mxu0
        %v7002 = vadd.f32 %v6889, %v7001
        %7003 = vmatmul.f32.gmra.mxu0 %v5945
        %v7004 = vpop.f32.mrf.mxu0
        %v7005 = vadd.f32 %v6892, %v7004
        %7006 = vmatmul.f32.gmra.mxu0 %v5954
        %v7007 = vpop.f32.mrf.mxu0
        %v7008 = vadd.f32 %v6895, %v7007
        %7009 = vmatmul.f32.gmra.mxu0 %v5963
        %v7010 = vpop.f32.mrf.mxu0
        %v7011 = vadd.f32 %v6898, %v7010
        %7012 = vmatmul.f32.gmra.mxu0 %v5972
        %v7013 = vpop.f32.mrf.mxu0
        %v7014 = vadd.f32 %v6901, %v7013
        %7015 = vmatmul.f32.gmra.mxu0 %v5981
        %v7016 = vpop.f32.mrf.mxu0
        %v7017 = vadd.f32 %v6904, %v7016
        %7018 = vmatmul.f32.gmra.mxu0 %v5990
        %v7019 = vpop.f32.mrf.mxu0
        %v7020 = vadd.f32 %v6907, %v7019
        %7021 = vmatmul.f32.gmra.mxu0 %v5999
        %v7022 = vpop.f32.mrf.mxu0
        %v7023 = vadd.f32 %v6910, %v7022
        %7024 = vmatmul.f32.gmra.mxu0 %v6008
        %v7025 = vpop.f32.mrf.mxu0
        %v7026 = vadd.f32 %v6913, %v7025
        %7027 = vmatmul.f32.gmra.mxu0 %v6017
        %v7028 = vpop.f32.mrf.mxu0
        %v7029 = vadd.f32 %v6916, %v7028
        %7030 = vmatmul.f32.gmra.mxu0 %v6026
        %v7031 = vpop.f32.mrf.mxu0
        %v7032 = vadd.f32 %v6919, %v7031
        %7033 = vmatmul.f32.gmra.mxu0 %v6035
        %v7034 = vpop.f32.mrf.mxu0
        %v7035 = vadd.f32 %v6922, %v7034
        %7036 = vmatmul.f32.gmra.mxu0 %v6044
        %v7037 = vpop.f32.mrf.mxu0
        %v7038 = vadd.f32 %v6925, %v7037
        %7039 = vmatmul.f32.gmra.mxu0 %v6053
        %v7040 = vpop.f32.mrf.mxu0
        %v7041 = vadd.f32 %v6928, %v7040
        %7042 = vmatmul.f32.gmra.mxu0 %v6062
        %v7043 = vpop.f32.mrf.mxu0
        %v7044 = vadd.f32 %v6931, %v7043
        %7045 = vmatmul.f32.gmra.mxu0 %v6071
        %v7046 = vpop.f32.mrf.mxu0
        %v7047 = vadd.f32 %v6934, %v7046
        %7048 = vmatmul.f32.gmra.mxu0 %v6080
        %v7049 = vpop.f32.mrf.mxu0
        %v7050 = vadd.f32 %v6937, %v7049
        %7051 = vmatmul.f32.gmra.mxu0 %v6089
        %v7052 = vpop.f32.mrf.mxu0
        %v7053 = vadd.f32 %v6940, %v7052
        %7054 = vmatmul.f32.gmra.mxu0 %v6098
        %v7055 = vpop.f32.mrf.mxu0
        %v7056 = vadd.f32 %v6943, %v7055
        %7057 = vmatmul.f32.gmra.mxu0 %v6107
        %v7058 = vpop.f32.mrf.mxu0
        %v7059 = vadd.f32 %v6946, %v7058
        %7060 = vmatmul.f32.gmra.mxu0 %v6116
        %v7061 = vpop.f32.mrf.mxu0
        %v7062 = vadd.f32 %v6949, %v7061
        %7063 = vmatmul.f32.gmra.mxu0 %v6125
        %v7064 = vpop.f32.mrf.mxu0
        %v7065 = vadd.f32 %v6952, %v7064
        %7066 = vdwg.mxu0
        %7067 = vmatpush.msra.mxu0 %v6255
        %7068 = vmatpush.msra.mxu0 %v6254
        %7069 = vmatpush.msra.mxu0 %v6253
        %7070 = vmatpush.msra.mxu0 %v6252
        %7071 = vmatpush.msra.mxu0 %v6251
        %7072 = vmatpush.msra.mxu0 %v6250
        %7073 = vmatpush.msra.mxu0 %v6249
        %7074 = vmatpush.msra.mxu0 %v6248
        %7075 = vmatpush.msra.mxu0 %v6247
        %7076 = vmatpush.msra.mxu0 %v6246
        %7077 = vmatpush.msra.mxu0 %v6245
        %7078 = vmatpush.msra.mxu0 %v6244
        %7079 = vmatpush.msra.mxu0 %v6243
        %7080 = vmatpush.msra.mxu0 %v6242
        %7081 = vmatpush.msra.mxu0 %v6241
        %7082 = vmatpush.msra.mxu0 %v6240
        %7083 = vmatmul.f32.gmra.mxu0 %v5847
        %v7084 = vpop.f32.mrf.mxu0
        %v7085 = vadd.f32 %v6972, %v7084
        %7086 = vmatmul.f32.gmra.mxu0 %v5856
        %v7087 = vpop.f32.mrf.mxu0
        %v7088 = vadd.f32 %v6975, %v7087
        %7089 = vmatmul.f32.gmra.mxu0 %v5865
        %v7090 = vpop.f32.mrf.mxu0
        %v7091 = vadd.f32 %v6978, %v7090
        %7092 = vmatmul.f32.gmra.mxu0 %v5874
        %v7093 = vpop.f32.mrf.mxu0
        %v7094 = vadd.f32 %v6981, %v7093
        %7095 = vmatmul.f32.gmra.mxu0 %v5883
        %v7096 = vpop.f32.mrf.mxu0
        %v7097 = vadd.f32 %v6984, %v7096
        %7098 = vmatmul.f32.gmra.mxu0 %v5892
        %v7099 = vpop.f32.mrf.mxu0
        %v7100 = vadd.f32 %v6987, %v7099
        %7101 = vmatmul.f32.gmra.mxu0 %v5901
        %v7102 = vpop.f32.mrf.mxu0
        %v7103 = vadd.f32 %v6990, %v7102
        %7104 = vmatmul.f32.gmra.mxu0 %v5910
        %v7105 = vpop.f32.mrf.mxu0
        %v7106 = vadd.f32 %v6993, %v7105
        %7107 = vmatmul.f32.gmra.mxu0 %v5919
        %v7108 = vpop.f32.mrf.mxu0
        %v7109 = vadd.f32 %v6996, %v7108
        %7110 = vmatmul.f32.gmra.mxu0 %v5928
        %v7111 = vpop.f32.mrf.mxu0
        %v7112 = vadd.f32 %v6999, %v7111
        %7113 = vmatmul.f32.gmra.mxu0 %v5937
        %v7114 = vpop.f32.mrf.mxu0
        %v7115 = vadd.f32 %v7002, %v7114
        %7116 = vmatmul.f32.gmra.mxu0 %v5946
        %v7117 = vpop.f32.mrf.mxu0
        %v7118 = vadd.f32 %v7005, %v7117
        %7119 = vmatmul.f32.gmra.mxu0 %v5955
        %v7120 = vpop.f32.mrf.mxu0
        %v7121 = vadd.f32 %v7008, %v7120
        %7122 = vmatmul.f32.gmra.mxu0 %v5964
        %v7123 = vpop.f32.mrf.mxu0
        %v7124 = vadd.f32 %v7011, %v7123
        %7125 = vmatmul.f32.gmra.mxu0 %v5973
        %v7126 = vpop.f32.mrf.mxu0
        %v7127 = vadd.f32 %v7014, %v7126
        %7128 = vmatmul.f32.gmra.mxu0 %v5982
        %v7129 = vpop.f32.mrf.mxu0
        %v7130 = vadd.f32 %v7017, %v7129
        %7131 = vmatmul.f32.gmra.mxu0 %v5991
        %v7132 = vpop.f32.mrf.mxu0
        %v7133 = vadd.f32 %v7020, %v7132
        %7134 = vmatmul.f32.gmra.mxu0 %v6000
        %v7135 = vpop.f32.mrf.mxu0
        %v7136 = vadd.f32 %v7023, %v7135
        %7137 = vmatmul.f32.gmra.mxu0 %v6009
        %v7138 = vpop.f32.mrf.mxu0
        %v7139 = vadd.f32 %v7026, %v7138
        %7140 = vmatmul.f32.gmra.mxu0 %v6018
        %v7141 = vpop.f32.mrf.mxu0
        %v7142 = vadd.f32 %v7029, %v7141
        %7143 = vmatmul.f32.gmra.mxu0 %v6027
        %v7144 = vpop.f32.mrf.mxu0
        %v7145 = vadd.f32 %v7032, %v7144
        %7146 = vmatmul.f32.gmra.mxu0 %v6036
        %v7147 = vpop.f32.mrf.mxu0
        %v7148 = vadd.f32 %v7035, %v7147
        %7149 = vmatmul.f32.gmra.mxu0 %v6045
        %v7150 = vpop.f32.mrf.mxu0
        %v7151 = vadd.f32 %v7038, %v7150
        %7152 = vmatmul.f32.gmra.mxu0 %v6054
        %v7153 = vpop.f32.mrf.mxu0
        %v7154 = vadd.f32 %v7041, %v7153
        %7155 = vmatmul.f32.gmra.mxu0 %v6063
        %v7156 = vpop.f32.mrf.mxu0
        %v7157 = vadd.f32 %v7044, %v7156
        %7158 = vmatmul.f32.gmra.mxu0 %v6072
        %v7159 = vpop.f32.mrf.mxu0
        %v7160 = vadd.f32 %v7047, %v7159
        %7161 = vmatmul.f32.gmra.mxu0 %v6081
        %v7162 = vpop.f32.mrf.mxu0
        %v7163 = vadd.f32 %v7050, %v7162
        %7164 = vmatmul.f32.gmra.mxu0 %v6090
        %v7165 = vpop.f32.mrf.mxu0
        %v7166 = vadd.f32 %v7053, %v7165
        %7167 = vmatmul.f32.gmra.mxu0 %v6099
        %v7168 = vpop.f32.mrf.mxu0
        %v7169 = vadd.f32 %v7056, %v7168
        %7170 = vmatmul.f32.gmra.mxu0 %v6108
        %v7171 = vpop.f32.mrf.mxu0
        %v7172 = vadd.f32 %v7059, %v7171
        %7173 = vmatmul.f32.gmra.mxu0 %v6117
        %v7174 = vpop.f32.mrf.mxu0
        %v7175 = vadd.f32 %v7062, %v7174
        %7176 = vmatmul.f32.gmra.mxu0 %v6126
        %v7177 = vpop.f32.mrf.mxu0
        %v7178 = vadd.f32 %v7065, %v7177
        %7179 = vdwg.mxu0
        %7180 = vmatpush.msra.mxu0 %v6271
        %7181 = vmatpush.msra.mxu0 %v6270
        %7182 = vmatpush.msra.mxu0 %v6269
        %7183 = vmatpush.msra.mxu0 %v6268
        %7184 = vmatpush.msra.mxu0 %v6267
        %7185 = vmatpush.msra.mxu0 %v6266
        %7186 = vmatpush.msra.mxu0 %v6265
        %7187 = vmatpush.msra.mxu0 %v6264
        %7188 = vmatpush.msra.mxu0 %v6263
        %7189 = vmatpush.msra.mxu0 %v6262
        %7190 = vmatpush.msra.mxu0 %v6261
        %7191 = vmatpush.msra.mxu0 %v6260
        %7192 = vmatpush.msra.mxu0 %v6259
        %7193 = vmatpush.msra.mxu0 %v6258
        %7194 = vmatpush.msra.mxu0 %v6257
        %7195 = vmatpush.msra.mxu0 %v6256
        %7196 = vmatmul.f32.gmra.mxu0 %v5848
        %v7197 = vpop.f32.mrf.mxu0
        %v7198 = vadd.f32 %v7085, %v7197
        %7199 = vmatmul.f32.gmra.mxu0 %v5857
        %v7200 = vpop.f32.mrf.mxu0
        %v7201 = vadd.f32 %v7088, %v7200
        %7202 = vmatmul.f32.gmra.mxu0 %v5866
        %v7203 = vpop.f32.mrf.mxu0
        %v7204 = vadd.f32 %v7091, %v7203
        %7205 = vmatmul.f32.gmra.mxu0 %v5875
        %v7206 = vpop.f32.mrf.mxu0
        %v7207 = vadd.f32 %v7094, %v7206
        %7208 = vmatmul.f32.gmra.mxu0 %v5884
        %v7209 = vpop.f32.mrf.mxu0
        %v7210 = vadd.f32 %v7097, %v7209
        %7211 = vmatmul.f32.gmra.mxu0 %v5893
        %v7212 = vpop.f32.mrf.mxu0
        %v7213 = vadd.f32 %v7100, %v7212
        %7214 = vmatmul.f32.gmra.mxu0 %v5902
        %v7215 = vpop.f32.mrf.mxu0
        %v7216 = vadd.f32 %v7103, %v7215
        %7217 = vmatmul.f32.gmra.mxu0 %v5911
        %v7218 = vpop.f32.mrf.mxu0
        %v7219 = vadd.f32 %v7106, %v7218
        %7220 = vmatmul.f32.gmra.mxu0 %v5920
        %v7221 = vpop.f32.mrf.mxu0
        %v7222 = vadd.f32 %v7109, %v7221
        %7223 = vmatmul.f32.gmra.mxu0 %v5929
        %v7224 = vpop.f32.mrf.mxu0
        %v7225 = vadd.f32 %v7112, %v7224
        %7226 = vmatmul.f32.gmra.mxu0 %v5938
        %v7227 = vpop.f32.mrf.mxu0
        %v7228 = vadd.f32 %v7115, %v7227
        %7229 = vmatmul.f32.gmra.mxu0 %v5947
        %v7230 = vpop.f32.mrf.mxu0
        %v7231 = vadd.f32 %v7118, %v7230
        %7232 = vmatmul.f32.gmra.mxu0 %v5956
        %v7233 = vpop.f32.mrf.mxu0
        %v7234 = vadd.f32 %v7121, %v7233
        %7235 = vmatmul.f32.gmra.mxu0 %v5965
        %v7236 = vpop.f32.mrf.mxu0
        %v7237 = vadd.f32 %v7124, %v7236
        %7238 = vmatmul.f32.gmra.mxu0 %v5974
        %v7239 = vpop.f32.mrf.mxu0
        %v7240 = vadd.f32 %v7127, %v7239
        %7241 = vmatmul.f32.gmra.mxu0 %v5983
        %v7242 = vpop.f32.mrf.mxu0
        %v7243 = vadd.f32 %v7130, %v7242
        %7244 = vmatmul.f32.gmra.mxu0 %v5992
        %v7245 = vpop.f32.mrf.mxu0
        %v7246 = vadd.f32 %v7133, %v7245
        %7247 = vmatmul.f32.gmra.mxu0 %v6001
        %v7248 = vpop.f32.mrf.mxu0
        %v7249 = vadd.f32 %v7136, %v7248
        %7250 = vmatmul.f32.gmra.mxu0 %v6010
        %v7251 = vpop.f32.mrf.mxu0
        %v7252 = vadd.f32 %v7139, %v7251
        %7253 = vmatmul.f32.gmra.mxu0 %v6019
        %v7254 = vpop.f32.mrf.mxu0
        %v7255 = vadd.f32 %v7142, %v7254
        %7256 = vmatmul.f32.gmra.mxu0 %v6028
        %v7257 = vpop.f32.mrf.mxu0
        %v7258 = vadd.f32 %v7145, %v7257
        %7259 = vmatmul.f32.gmra.mxu0 %v6037
        %v7260 = vpop.f32.mrf.mxu0
        %v7261 = vadd.f32 %v7148, %v7260
        %7262 = vmatmul.f32.gmra.mxu0 %v6046
        %v7263 = vpop.f32.mrf.mxu0
        %v7264 = vadd.f32 %v7151, %v7263
        %7265 = vmatmul.f32.gmra.mxu0 %v6055
        %v7266 = vpop.f32.mrf.mxu0
        %v7267 = vadd.f32 %v7154, %v7266
        %7268 = vmatmul.f32.gmra.mxu0 %v6064
        %v7269 = vpop.f32.mrf.mxu0
        %v7270 = vadd.f32 %v7157, %v7269
        %7271 = vmatmul.f32.gmra.mxu0 %v6073
        %v7272 = vpop.f32.mrf.mxu0
        %v7273 = vadd.f32 %v7160, %v7272
        %7274 = vmatmul.f32.gmra.mxu0 %v6082
        %v7275 = vpop.f32.mrf.mxu0
        %v7276 = vadd.f32 %v7163, %v7275
        %7277 = vmatmul.f32.gmra.mxu0 %v6091
        %v7278 = vpop.f32.mrf.mxu0
        %v7279 = vadd.f32 %v7166, %v7278
        %7280 = vmatmul.f32.gmra.mxu0 %v6100
        %v7281 = vpop.f32.mrf.mxu0
        %v7282 = vadd.f32 %v7169, %v7281
        %7283 = vmatmul.f32.gmra.mxu0 %v6109
        %v7284 = vpop.f32.mrf.mxu0
        %v7285 = vadd.f32 %v7172, %v7284
        %7286 = vmatmul.f32.gmra.mxu0 %v6118
        %v7287 = vpop.f32.mrf.mxu0
        %v7288 = vadd.f32 %v7175, %v7287
        %7289 = vmatmul.f32.gmra.mxu0 %v6127
        %v7290 = vpop.f32.mrf.mxu0
        %v7291 = vadd.f32 %v7178, %v7290
        %7292 = vdwg.mxu0
        %v7293 = vmax.f32 %v7198, 0.0
        %v7294 = vmax.f32 %v7201, 0.0
        %v7295 = vmax.f32 %v7204, 0.0
        %v7296 = vmax.f32 %v7207, 0.0
        %v7297 = vmax.f32 %v7210, 0.0
        %v7298 = vmax.f32 %v7213, 0.0
        %v7299 = vmax.f32 %v7216, 0.0
        %v7300 = vmax.f32 %v7219, 0.0
        %v7301 = vmax.f32 %v7222, 0.0
        %v7302 = vmax.f32 %v7225, 0.0
        %v7303 = vmax.f32 %v7228, 0.0
        %v7304 = vmax.f32 %v7231, 0.0
        %v7305 = vmax.f32 %v7234, 0.0
        %v7306 = vmax.f32 %v7237, 0.0
        %v7307 = vmax.f32 %v7240, 0.0
        %v7308 = vmax.f32 %v7243, 0.0
        %v7309 = vmax.f32 %v7246, 0.0
        %v7310 = vmax.f32 %v7249, 0.0
        %v7311 = vmax.f32 %v7252, 0.0
        %v7312 = vmax.f32 %v7255, 0.0
        %v7313 = vmax.f32 %v7258, 0.0
        %v7314 = vmax.f32 %v7261, 0.0
        %v7315 = vmax.f32 %v7264, 0.0
        %v7316 = vmax.f32 %v7267, 0.0
        %v7317 = vmax.f32 %v7270, 0.0
        %v7318 = vmax.f32 %v7273, 0.0
        %v7319 = vmax.f32 %v7276, 0.0
        %v7320 = vmax.f32 %v7279, 0.0
        %v7321 = vmax.f32 %v7282, 0.0
        %v7322 = vmax.f32 %v7285, 0.0
        %v7323 = vmax.f32 %v7288, 0.0
        %v7324 = vmax.f32 %v7291, 0.0
        %7325 = vst.msk [vmem:[%s271] sm:$0xff] %vm351, %v7293
        %7326 = vst.msk [vmem:[%s271 + $0x8] sm:$0xff] %vm351, %v7294
        %7327 = vst.msk [vmem:[%s271 + $0x10] sm:$0xff] %vm351, %v7295
        %7328 = vst.msk [vmem:[%s271 + $0x18] sm:$0xff] %vm351, %v7296
        %7329 = vst.msk [vmem:[%s271 + $0x20] sm:$0xff] %vm351, %v7297
        %7330 = vst.msk [vmem:[%s271 + $0x28] sm:$0xff] %vm351, %v7298
        %7331 = vst.msk [vmem:[%s271 + $0x30] sm:$0xff] %vm351, %v7299
        %7332 = vst.msk [vmem:[%s271 + $0x38] sm:$0xff] %vm351, %v7300
        %7333 = vst.msk [vmem:[%s271 + $0x40] sm:$0xff] %vm351, %v7301
        %7334 = vst.msk [vmem:[%s271 + $0x48] sm:$0xff] %vm351, %v7302
        %7335 = vst.msk [vmem:[%s271 + $0x50] sm:$0xff] %vm351, %v7303
        %7336 = vst.msk [vmem:[%s271 + $0x58] sm:$0xff] %vm351, %v7304
        %7337 = vst.msk [vmem:[%s271 + $0x60] sm:$0xff] %vm351, %v7305
        %7338 = vst.msk [vmem:[%s271 + $0x68] sm:$0xff] %vm351, %v7306
        %7339 = vst.msk [vmem:[%s271 + $0x70] sm:$0xff] %vm351, %v7307
        %7340 = vst.msk [vmem:[%s271 + $0x78] sm:$0xff] %vm351, %v7308
        %7341 = vst.msk [vmem:[%s271 + $0x80] sm:$0xff] %vm351, %v7309
        %7342 = vst.msk [vmem:[%s271 + $0x88] sm:$0xff] %vm351, %v7310
        %7343 = vst.msk [vmem:[%s271 + $0x90] sm:$0xff] %vm351, %v7311
        %7344 = vst.msk [vmem:[%s271 + $0x98] sm:$0xff] %vm351, %v7312
        %7345 = vst.msk [vmem:[%s271 + $0xa0] sm:$0xff] %vm351, %v7313
        %7346 = vst.msk [vmem:[%s271 + $0xa8] sm:$0xff] %vm351, %v7314
        %7347 = vst.msk [vmem:[%s271 + $0xb0] sm:$0xff] %vm351, %v7315
        %7348 = vst.msk [vmem:[%s271 + $0xb8] sm:$0xff] %vm351, %v7316
        %7349 = vst.msk [vmem:[%s271 + $0xc0] sm:$0xff] %vm351, %v7317
        %7350 = vst.msk [vmem:[%s271 + $0xc8] sm:$0xff] %vm351, %v7318
        %7351 = vst.msk [vmem:[%s271 + $0xd0] sm:$0xff] %vm351, %v7319
        %7352 = vst.msk [vmem:[%s271 + $0xd8] sm:$0xff] %vm351, %v7320
        %7353 = vst.msk [vmem:[%s271 + $0xe0] sm:$0xff] %vm351, %v7321
        %7354 = vst.msk [vmem:[%s271 + $0xe8] sm:$0xff] %vm351, %v7322
        %7355 = vst.msk [vmem:[%s271 + $0xf0] sm:$0xff] %vm351, %v7323
        %7356 = vst.msk [vmem:[%s271 + $0xf8] sm:$0xff] %vm351, %v7324
        %s7357 = sand.u32 %s181, 1
        %s7358 = scalar_lea.sflag [#allocation6], %s7357
        %s7359 = sand.u32 %s181, 1
        %s7360 = smul.addr %s7359, 256
        %s7361 = scalar_lea.vmem [#allocation5], %s7360
        // Predicated region
        $region49: #{secret_encoding_forward.1} parent=47 // pred_check
          %p7362 = pneg %p191
        $region50: #{secret_encoding_forward.1} parent=47 // pred_check_branch
          %7364 = sbr.rel (%p7362) target = $region52
        $region51: #{secret_encoding_forward.1} parent=47 // pred_region
          %7366 = vsyncadd %s7358, 0
          %s7367 = smul.addr %s21, 32
          %s7368 = smul.addr %s7367, 8
          %s7369 = scalar_lea.hbm %s7, %s7368
          %s7370 = sshll.u32 %s7361, 4
          %s7371 = int_to_ptr.vmem [resolvable:$true] %s7370
          %s7372 = sshll.u32 %s7369, 4
          %s7373 = int_to_ptr.hbm [resolvable:$true] %s7372
          %7378 = dma.vmem_to_hbm [thread:$0]  %s7371, 4096, %s7373, %s7358, 128, 128, 8
        $region52: #{secret_encoding_forward.1} parent=47 // pred_fallthru
          _
      $region48: #{secret_encoding_forward.1} parent=5 // pred_fallthru
        _
      %p7379 = scmp.le.s32.totalorder 2, %s16
      // Predicated region
      $region53: #{secret_encoding_forward.1} parent=5 // pred_check
        %p7380 = pneg %p7379
      $region54: #{secret_encoding_forward.1} parent=5 // pred_check_branch
        %7382 = sbr.rel (%p7380) target = $region56
      $region55: #{secret_encoding_forward.1} parent=5 // pred_region
        %s7383 = ssub.s32 %s16, 2
        // Predicated region
        $region57: #{secret_encoding_forward.1} parent=55 // pred_check
          %p7384 = pneg %p197
        $region58: #{secret_encoding_forward.1} parent=55 // pred_check_branch
          %7386 = sbr.rel (%p7384) target = $region60
        $region59: #{secret_encoding_forward.1} parent=55 // pred_region
          %s7387 = sand.u32 %s182, 1
          %s7388 = scalar_lea.sflag [#allocation6], %s7387
          %s7389 = sand.u32 %s182, 1
          %s7390 = smul.addr %s7389, 256
          %s7391 = scalar_lea.vmem [#allocation5], %s7390
          %7393 = dma.done %s7388, 4096
        $region60: #{secret_encoding_forward.1} parent=55 // pred_fallthru
          _
      $region56: #{secret_encoding_forward.1} parent=5 // pred_fallthru
        _
    $region6: #{secret_encoding_forward.1} parent=1 // loop_footer
      %s20 = sadd.s32 1, %s16
    $region7: #{secret_encoding_forward.1} parent=1 // loop_footer_branch
      %15 = sbr.rel target = $region3
    $region8: #{secret_encoding_forward.1} parent=1 // loop_exit
      _
    %7394 = vsyncpa [#allocation6], 1
    %s7395 = scalar_lea.sflag [#allocation6], 1
    %7396 = vsyncpa %s7395, 1

</llo_original>
